<compile_context>
chip_gen: v7x
topology: tpu7x:2x2x1
jax: 0.10.0
libtpu: 0.0.40
codegen_flags: <defaults>
</compile_context>

<pallas_src>
import functools
import math

import jax
import jax.numpy as jnp
from jax.experimental import pallas as pl
from jax.experimental.pallas import tpu as pltpu

LRELU_SLOPE = 0.1


def _round_up(x, m):
    return ((x + m - 1) // m) * m


# ---------------------------------------------------------------------------
# Pallas kernel: fused leaky_relu -> dilated conv1d -> bias (+ residual)
# ---------------------------------------------------------------------------
def _fused_conv1d_kernel(x_hbm, w_ref, b_ref, *rest, dilation, tm, halo, k,
                         in_slope, has_res, compute_dtype):
    """One (batch b, L-tile i) grid step.

    x_hbm : (N, L_tiles + halo, C) f32 in HBM (memory_space=pl.ANY), manual DMA
    w_ref : (k, C, Cout) compute_dtype, resident in VMEM
    b_ref : (1, Cout)    f32,           resident in VMEM
    res   : (1, tm, Cout) f32 tile      (optional, fused residual add)
    out   : (1, tm, Cout) f32 tile
    xbuf  : VMEM (2, tm + halo, C) f32 double buffer
    sem   : DMA semaphores (2,)
    """
    if has_res:
        res_ref, o_ref, xbuf, sem = rest
    else:
        o_ref, xbuf, sem = rest

    b_idx = pl.program_id(0)
    i = pl.program_id(1)
    nt = pl.num_programs(1)

    def halo_copy(step, slot):
        start = pl.multiple_of(step * tm, 8)
        return pltpu.make_async_copy(
            x_hbm.at[b_idx, pl.ds(start, tm + halo), :],
            xbuf.at[slot],
            sem.at[slot],
        )

    # Prime the pipeline at the first L-tile of this batch row.  Works per-core
    # under megacore because the parallel axis is the outer (batch) axis, so
    # every core sees i == 0 at the start of each of its batch rows.
    @pl.when(i == 0)
    def _():
        halo_copy(0, 0).start()

    # Prefetch the next L-tile into the other slot while computing this one.
    @pl.when(i + 1 < nt)
    def _():
        halo_copy(i + 1, (i + 1) % 2).start()

    slot = i % 2
    halo_copy(i, slot).wait()

    xt = xbuf[slot]                                   # (tm + halo, C) f32
    if in_slope is not None:
        xt = jnp.where(xt >= 0, xt, in_slope * xt)    # fused leaky_relu
    xt = xt.astype(compute_dtype)

    # Dilated conv as k shifted matmuls, f32 accumulation on the MXU.
    acc = jnp.dot(xt[0:tm, :], w_ref[0], preferred_element_type=jnp.float32)
    for j in range(1, k):
        off = j * dilation
        acc = acc + jnp.dot(xt[off:off + tm, :], w_ref[j],
                            preferred_element_type=jnp.float32)

    y = acc + b_ref[...]                              # (1, Cout) broadcast
    if has_res:
        y = y + res_ref[0]
    o_ref[0] = y.astype(o_ref.dtype)


def fused_lrelu_conv1d(x_nlc, w, b, *, dilation, in_slope=LRELU_SLOPE,
                       residual=None, compute_dtype=jnp.bfloat16, tile_l=512):
    """y = conv1d(act(x), w, b, dilation=d, 'same' padding) [+ residual].

    x_nlc    : (N, L, C) float32 channels-last.
    w        : (Cout, Cin, k) PyTorch Conv1d weight layout.
    b        : (Cout,)
    residual : optional (N, L, Cout), added to the conv output inside the kernel.
    Returns (N, L, Cout) float32.
    """
    N, L, C = x_nlc.shape
    Cout, Cin, k = w.shape
    assert Cin == C, "ResBlock1 convs are not grouped"

    pad = (k - 1) * dilation // 2        # get_padding(k, d)
    halo = (k - 1) * dilation            # extra input rows a tm-row output tile needs

    tm = _round_up(min(tile_l, _round_up(L, 8)), 8)
    nt = -(-L // tm)
    L_tiles = nt * tm

    # left zero pad = pad; right pad covers 'same' padding + tile rounding.
    # leaky_relu(0) == 0, so padding before the fused activation is equivalent.
    xp = jnp.pad(x_nlc, ((0, 0), (pad, (L_tiles - L) + (halo - pad)), (0, 0)))
    # xp: (N, L_tiles + halo, C)

    wk = jnp.transpose(w, (2, 1, 0)).astype(compute_dtype)   # (k, Cin, Cout)
    b2 = b.reshape(1, Cout).astype(jnp.float32)

    in_specs = [
        pl.BlockSpec(memory_space=pl.ANY),                      # x stays in HBM
        pl.BlockSpec((k, C, Cout), lambda bb, ii: (0, 0, 0)),   # weights resident
        pl.BlockSpec((1, Cout), lambda bb, ii: (0, 0)),         # bias resident
    ]
    operands = [xp, wk, b2]
    has_res = residual is not None
    if has_res:
        rp = jnp.pad(residual, ((0, 0), (0, L_tiles - L), (0, 0)))
        in_specs.append(pl.BlockSpec((1, tm, Cout), lambda bb, ii: (bb, ii, 0)))
        operands.append(rp)

    kernel = functools.partial(
        _fused_conv1d_kernel, dilation=dilation, tm=tm, halo=halo, k=k,
        in_slope=in_slope, has_res=has_res, compute_dtype=compute_dtype)

    y = pl.pallas_call(
        kernel,
        out_shape=jax.ShapeDtypeStruct((N, L_tiles, Cout), jnp.float32),
        grid_spec=pltpu.PrefetchScalarGridSpec(
            num_scalar_prefetch=0,
            grid=(N, nt),
            in_specs=in_specs,
            out_specs=pl.BlockSpec((1, tm, Cout), lambda bb, ii: (bb, ii, 0)),
            scratch_shapes=[
                pltpu.VMEM((2, tm + halo, C), jnp.float32),
                pltpu.SemaphoreType.DMA((2,)),
            ],
        ),
        compiler_params=pltpu.CompilerParams(
            dimension_semantics=("parallel", "arbitrary"),
            vmem_limit_bytes=48 * 1024 * 1024,
        ),
    )(*operands)

    return y[:, :L, :]


# ---------------------------------------------------------------------------
# Pure-JAX reference conv (same bf16-in / f32-acc math), for validation
# ---------------------------------------------------------------------------
def _conv1d_ref(x_nlc, w, b, *, dilation, in_slope=LRELU_SLOPE, residual=None,
                compute_dtype=jnp.bfloat16):
    N, L, C = x_nlc.shape
    Cout, Cin, k = w.shape
    pad = (k - 1) * dilation // 2
    xt = x_nlc
    if in_slope is not None:
        xt = jnp.where(xt >= 0, xt, in_slope * xt)
    xp = jnp.pad(xt, ((0, 0), (pad, pad), (0, 0))).astype(compute_dtype)
    wk = jnp.transpose(w, (2, 1, 0)).astype(compute_dtype)
    y = jnp.zeros((N, L, Cout), jnp.float32)
    for j in range(k):
        y = y + jax.lax.dot_general(
            xp[:, j * dilation:j * dilation + L, :], wk[j],
            (((2,), (0,)), ((), ())), preferred_element_type=jnp.float32)
    y = y + b.astype(jnp.float32)[None, None, :]
    if residual is not None:
        y = y + residual
    return y


# ---------------------------------------------------------------------------
# ResBlock1 forward (matches the PyTorch module semantics)
# ---------------------------------------------------------------------------
def _resblock1_apply(conv_fn, params, x_ncl, x_mask=None):
    """x_ncl: (N, C, L) like PyTorch; x_mask: (N, 1, L) binary or None."""
    dilations = params["dilation"]
    x = jnp.transpose(x_ncl, (0, 2, 1))        # (N, L, C) internal layout
    mask = None if x_mask is None else jnp.transpose(x_mask, (0, 2, 1))

    for (w1, b1), (w2, b2), d in zip(params["convs1"], params["convs2"], dilations):
        if mask is None:
            xt = conv_fn(x, w1, b1, dilation=d, in_slope=LRELU_SLOPE, residual=None)
            x = conv_fn(xt, w2, b2, dilation=1, in_slope=LRELU_SLOPE, residual=x)
        else:
            # exact semantics with a mask: activation+mask in JAX, conv fused
            a = jnp.where(x >= 0, x, LRELU_SLOPE * x) * mask
            xt = conv_fn(a, w1, b1, dilation=d, in_slope=None, residual=None)
            a = jnp.where(xt >= 0, xt, LRELU_SLOPE * xt) * mask
            x = conv_fn(a, w2, b2, dilation=1, in_slope=None, residual=x)
    if mask is not None:
        x = x * mask
    return jnp.transpose(x, (0, 2, 1))


def resblock1_forward(params, x_ncl, x_mask=None, *, tile_l=512,
                      compute_dtype=jnp.bfloat16):
    conv = functools.partial(fused_lrelu_conv1d, tile_l=tile_l,
                             compute_dtype=compute_dtype)
    return _resblock1_apply(conv, params, x_ncl, x_mask)


def resblock1_forward_ref(params, x_ncl, x_mask=None, *,
                          compute_dtype=jnp.bfloat16):
    conv = functools.partial(_conv1d_ref, compute_dtype=compute_dtype)
    return _resblock1_apply(conv, params, x_ncl, x_mask)


# ---------------------------------------------------------------------------
# Parameter construction (HiFi-GAN init_weights: N(0, 0.01); PyTorch bias init)
# ---------------------------------------------------------------------------
def init_resblock1_params(key, channels, kernel_size=3, dilation=(1, 3, 5)):
    n = len(dilation)
    keys = jax.random.split(key, 2 * n)
    bound = 1.0 / math.sqrt(channels * kernel_size)

    def make(kk):
        kw, kb = jax.random.split(kk)
        w = 0.01 * jax.random.normal(
            kw, (channels, channels, kernel_size), jnp.float32)
        b = jax.random.uniform(kb, (channels,), jnp.float32, -bound, bound)
        return (w, b)

    convs1 = [make(keys[i]) for i in range(n)]
    convs2 = [make(keys[n + i]) for i in range(n)]
    return {"convs1": convs1, "convs2": convs2,
            "dilation": tuple(dilation), "kernel_size": kernel_size}


# ---------------------------------------------------------------------------
if __name__ == "__main__":
    key = jax.random.PRNGKey(0)
    kp, kx = jax.random.split(key, 2)

    # small shapes, but lane-dense channels and multiple L tiles (tile_l=256)
    N, C, L = 2, 128, 600
    params = init_resblock1_params(kp, C, kernel_size=3, dilation=(1, 3, 5))
    x = jax.random.normal(kx, (N, C, L), dtype=jnp.float32)

    fwd = jax.jit(functools.partial(resblock1_forward, params, tile_l=256))

    # unmasked path
    y = jax.block_until_ready(fwd(x))
    assert y.shape == (N, C, L) and y.dtype == jnp.float32
    y_ref = jax.block_until_ready(resblock1_forward_ref(params, x))
    err = float(jnp.max(jnp.abs(y - y_ref)))
    assert err < 1e-2, f"mismatch vs reference: {err}"

    # masked path (binary sequence mask)
    lens = jnp.array([L, L // 2])
    mask = (jnp.arange(L)[None, :] < lens[:, None]).astype(jnp.float32)[:, None, :]
    ym = jax.block_until_ready(fwd(x, mask))
    ym_ref = jax.block_until_ready(resblock1_forward_ref(params, x, mask))
    err_m = float(jnp.max(jnp.abs(ym - ym_ref)))
    assert err_m < 1e-2, f"masked mismatch vs reference: {err_m}"

    print("KERNEL_OK")
</pallas_src>

<mosaic_0001>
module attributes {stable_mosaic.version = 11 : i64} {
  func.func @_fused_conv1d_kernel(%arg0: i32, %arg1: i32, %arg2: memref<2x770x128xf32, #tpu.memory_space<any>>, %arg3: memref<3x128x128xbf16, #tpu.memory_space<vmem>>, %arg4: memref<1x128xf32, #tpu.memory_space<vmem>>, %arg5: memref<1x256x128xf32, #tpu.memory_space<vmem>>, %arg6: memref<2x258x128xf32, #tpu.memory_space<vmem>>, %arg7: memref<2x!tpu.dma_semaphore, #tpu.memory_space<semaphore_mem>>) attributes {dimension_semantics = [#tpu.dimension_semantics<parallel>, #tpu.dimension_semantics<arbitrary>], iteration_bounds = array<i64: 2, 3>, scalar_prefetch = 0 : i64, scratch_operands = 2 : i64, tpu.core_type = #tpu.core_type<tc>, window_params = [{}, {pipeline_mode = #tpu.pipeline_mode<synchronous>, transform_indices = @transform_1, window_bounds = array<i64: 3, 128, 128>}, {pipeline_mode = #tpu.pipeline_mode<synchronous>, transform_indices = @transform_2, window_bounds = array<i64: 1, 128>}, {transform_indices = @transform_3, window_bounds = array<i64: 1, 256, 128>}]} {
    %c0_i32 = arith.constant 0 : i32
    %0 = arith.cmpi eq, %arg1, %c0_i32 : i32
    %1 = arith.extui %0 : i1 to i32
    %c0_i32_0 = arith.constant 0 : i32
    %2 = arith.cmpi ne, %1, %c0_i32_0 : i32
    scf.if %2 {
      %c0_i32_27 = arith.constant 0 : i32
      %54 = tpu.assume_multiple %c0_i32_27, 8 : i32
      %c0_i32_28 = arith.constant 0 : i32
      %c0_i32_29 = arith.constant 0 : i32
      %c0_i32_30 = arith.constant 0 : i32
      %55 = tpu.memref_slice %arg2[%arg0, %54, %c0_i32_30] : memref<2x770x128xf32, #tpu.memory_space<any>> -> memref<1x258x128xf32, #tpu.memory_space<any>>
      %56 = tpu.memref_squeeze %55 : memref<1x258x128xf32, #tpu.memory_space<any>> -> memref<258x128xf32, #tpu.memory_space<any>>
      %c0_i32_31 = arith.constant 0 : i32
      %c0_i32_32 = arith.constant 0 : i32
      %57 = tpu.memref_slice %arg6[%c0_i32_28, %c0_i32_31, %c0_i32_32] : memref<2x258x128xf32, #tpu.memory_space<vmem>> -> memref<1x258x128xf32, #tpu.memory_space<vmem>>
      %58 = tpu.memref_squeeze %57 : memref<1x258x128xf32, #tpu.memory_space<vmem>> -> memref<258x128xf32, #tpu.memory_space<vmem>>
      %59 = tpu.memref_slice %arg7[%c0_i32_29] : memref<2x!tpu.dma_semaphore, #tpu.memory_space<semaphore_mem>> -> memref<1x!tpu.dma_semaphore, #tpu.memory_space<semaphore_mem>>
      %60 = tpu.memref_squeeze %59 : memref<1x!tpu.dma_semaphore, #tpu.memory_space<semaphore_mem>> -> memref<!tpu.dma_semaphore, #tpu.memory_space<semaphore_mem>>
      tpu.enqueue_dma source(%56 : memref<258x128xf32, #tpu.memory_space<any>>) target(%58 : memref<258x128xf32, #tpu.memory_space<vmem>>) target_semaphore(%60 : memref<!tpu.dma_semaphore, #tpu.memory_space<semaphore_mem>>)
    } else {
    }
    %c1_i32 = arith.constant 1 : i32
    %3 = arith.addi %arg1, %c1_i32 : i32
    %c3_i32 = arith.constant 3 : i32
    %4 = arith.cmpi slt, %3, %c3_i32 : i32
    %5 = arith.extui %4 : i1 to i32
    %c0_i32_1 = arith.constant 0 : i32
    %6 = arith.cmpi ne, %5, %c0_i32_1 : i32
    scf.if %6 {
      %c1_i32_27 = arith.constant 1 : i32
      %54 = arith.addi %arg1, %c1_i32_27 : i32
      %c1_i32_28 = arith.constant 1 : i32
      %55 = arith.addi %arg1, %c1_i32_28 : i32
      %c2_i32_29 = arith.constant 2 : i32
      %c0_i32_30 = arith.constant 0 : i32
      %56 = arith.cmpi eq, %c2_i32_29, %c0_i32_30 : i32
      %c1_i32_31 = arith.constant 1 : i32
      %57 = arith.select %56, %c1_i32_31, %c2_i32_29 : i32
      %58 = arith.remsi %55, %57 : i32
      %c0_i32_32 = arith.constant 0 : i32
      %59 = arith.cmpi ne, %58, %c0_i32_32 : i32
      %c0_i32_33 = arith.constant 0 : i32
      %60 = arith.cmpi slt, %58, %c0_i32_33 : i32
      %c0_i32_34 = arith.constant 0 : i32
      %61 = arith.cmpi slt, %57, %c0_i32_34 : i32
      %62 = arith.xori %60, %61 : i1
      %63 = arith.andi %62, %59 : i1
      %64 = arith.addi %58, %57 : i32
      %65 = arith.select %63, %64, %58 : i32
      %c256_i32_35 = arith.constant 256 : i32
      %66 = arith.muli %54, %c256_i32_35 : i32
      %67 = tpu.assume_multiple %66, 8 : i32
      %c0_i32_36 = arith.constant 0 : i32
      %68 = tpu.memref_slice %arg2[%arg0, %67, %c0_i32_36] : memref<2x770x128xf32, #tpu.memory_space<any>> -> memref<1x258x128xf32, #tpu.memory_space<any>>
      %69 = tpu.memref_squeeze %68 : memref<1x258x128xf32, #tpu.memory_space<any>> -> memref<258x128xf32, #tpu.memory_space<any>>
      %c0_i32_37 = arith.constant 0 : i32
      %c0_i32_38 = arith.constant 0 : i32
      %70 = tpu.memref_slice %arg6[%65, %c0_i32_37, %c0_i32_38] : memref<2x258x128xf32, #tpu.memory_space<vmem>> -> memref<1x258x128xf32, #tpu.memory_space<vmem>>
      %71 = tpu.memref_squeeze %70 : memref<1x258x128xf32, #tpu.memory_space<vmem>> -> memref<258x128xf32, #tpu.memory_space<vmem>>
      %72 = tpu.memref_slice %arg7[%65] : memref<2x!tpu.dma_semaphore, #tpu.memory_space<semaphore_mem>> -> memref<1x!tpu.dma_semaphore, #tpu.memory_space<semaphore_mem>>
      %73 = tpu.memref_squeeze %72 : memref<1x!tpu.dma_semaphore, #tpu.memory_space<semaphore_mem>> -> memref<!tpu.dma_semaphore, #tpu.memory_space<semaphore_mem>>
      tpu.enqueue_dma source(%69 : memref<258x128xf32, #tpu.memory_space<any>>) target(%71 : memref<258x128xf32, #tpu.memory_space<vmem>>) target_semaphore(%73 : memref<!tpu.dma_semaphore, #tpu.memory_space<semaphore_mem>>)
    } else {
    }
    %c2_i32 = arith.constant 2 : i32
    %c0_i32_2 = arith.constant 0 : i32
    %7 = arith.cmpi eq, %c2_i32, %c0_i32_2 : i32
    %c1_i32_3 = arith.constant 1 : i32
    %8 = arith.select %7, %c1_i32_3, %c2_i32 : i32
    %9 = arith.remsi %arg1, %8 : i32
    %c0_i32_4 = arith.constant 0 : i32
    %10 = arith.cmpi ne, %9, %c0_i32_4 : i32
    %c0_i32_5 = arith.constant 0 : i32
    %11 = arith.cmpi slt, %9, %c0_i32_5 : i32
    %c0_i32_6 = arith.constant 0 : i32
    %12 = arith.cmpi slt, %8, %c0_i32_6 : i32
    %13 = arith.xori %11, %12 : i1
    %14 = arith.andi %13, %10 : i1
    %15 = arith.addi %9, %8 : i32
    %16 = arith.select %14, %15, %9 : i32
    %c256_i32 = arith.constant 256 : i32
    %17 = arith.muli %arg1, %c256_i32 : i32
    %18 = tpu.assume_multiple %17, 8 : i32
    %c0_i32_7 = arith.constant 0 : i32
    %19 = tpu.memref_slice %arg2[%arg0, %18, %c0_i32_7] : memref<2x770x128xf32, #tpu.memory_space<any>> -> memref<1x258x128xf32, #tpu.memory_space<any>>
    %20 = tpu.memref_squeeze %19 : memref<1x258x128xf32, #tpu.memory_space<any>> -> memref<258x128xf32, #tpu.memory_space<any>>
    %c0_i32_8 = arith.constant 0 : i32
    %c0_i32_9 = arith.constant 0 : i32
    %21 = tpu.memref_slice %arg6[%16, %c0_i32_8, %c0_i32_9] : memref<2x258x128xf32, #tpu.memory_space<vmem>> -> memref<1x258x128xf32, #tpu.memory_space<vmem>>
    %22 = tpu.memref_squeeze %21 : memref<1x258x128xf32, #tpu.memory_space<vmem>> -> memref<258x128xf32, #tpu.memory_space<vmem>>
    %23 = tpu.memref_slice %arg7[%16] : memref<2x!tpu.dma_semaphore, #tpu.memory_space<semaphore_mem>> -> memref<1x!tpu.dma_semaphore, #tpu.memory_space<semaphore_mem>>
    %24 = tpu.memref_squeeze %23 : memref<1x!tpu.dma_semaphore, #tpu.memory_space<semaphore_mem>> -> memref<!tpu.dma_semaphore, #tpu.memory_space<semaphore_mem>>
    tpu.wait_dma2 semaphore(%24 : memref<!tpu.dma_semaphore, #tpu.memory_space<semaphore_mem>>) src(%20 : memref<258x128xf32, #tpu.memory_space<any>>) dst(%22 : memref<258x128xf32, #tpu.memory_space<vmem>>)
    %25 = arith.index_cast %16 : i32 to index
    %c0 = arith.constant 0 : index
    %c0_10 = arith.constant 0 : index
    %26 = vector.load %arg6[%25, %c0, %c0_10] : memref<2x258x128xf32, #tpu.memory_space<vmem>>, vector<1x258x128xf32>
    %27 = vector.shape_cast %26 : vector<1x258x128xf32> to vector<258x128xf32>
    %cst = arith.constant 0.000000e+00 : f32
    %28 = vector.broadcast %cst : f32 to vector<258x128xf32>
    %29 = arith.cmpf oge, %27, %28 : vector<258x128xf32>
    %cst_11 = arith.constant 1.000000e-01 : f32
    %30 = vector.broadcast %cst_11 : f32 to vector<258x128xf32>
    %31 = arith.mulf %30, %27 : vector<258x128xf32>
    %32 = arith.select %29, %27, %31 : vector<258x128xi1>, vector<258x128xf32>
    %33 = arith.truncf %32 : vector<258x128xf32> to vector<258x128xbf16>
    %34 = vector.extract_strided_slice %33 {offsets = [0, 0], sizes = [256, 128], strides = [1, 1]} : vector<258x128xbf16> to vector<256x128xbf16>
    %c0_12 = arith.constant 0 : index
    %c0_13 = arith.constant 0 : index
    %c0_14 = arith.constant 0 : index
    %35 = vector.load %arg3[%c0_12, %c0_13, %c0_14] : memref<3x128x128xbf16, #tpu.memory_space<vmem>>, vector<1x128x128xbf16>
    %36 = vector.shape_cast %35 : vector<1x128x128xbf16> to vector<128x128xbf16>
    %cst_15 = arith.constant dense<0.000000e+00> : vector<256x128xf32>
    %37 = tpu.matmul %34, %36, %cst_15 {dimension_numbers = #tpu.dot_dimension_numbers<[1], [0], [0], [1], [0, 0, 1, 1], [], []>} : vector<256x128xbf16>, vector<128x128xbf16>, vector<256x128xf32> -> vector<256x128xf32>
    %38 = vector.extract_strided_slice %33 {offsets = [1, 0], sizes = [256, 128], strides = [1, 1]} : vector<258x128xbf16> to vector<256x128xbf16>
    %c1 = arith.constant 1 : index
    %c0_16 = arith.constant 0 : index
    %c0_17 = arith.constant 0 : index
    %39 = vector.load %arg3[%c1, %c0_16, %c0_17] : memref<3x128x128xbf16, #tpu.memory_space<vmem>>, vector<1x128x128xbf16>
    %40 = vector.shape_cast %39 : vector<1x128x128xbf16> to vector<128x128xbf16>
    %cst_18 = arith.constant dense<0.000000e+00> : vector<256x128xf32>
    %41 = tpu.matmul %38, %40, %cst_18 {dimension_numbers = #tpu.dot_dimension_numbers<[1], [0], [0], [1], [0, 0, 1, 1], [], []>} : vector<256x128xbf16>, vector<128x128xbf16>, vector<256x128xf32> -> vector<256x128xf32>
    %42 = arith.addf %37, %41 : vector<256x128xf32>
    %43 = vector.extract_strided_slice %33 {offsets = [2, 0], sizes = [256, 128], strides = [1, 1]} : vector<258x128xbf16> to vector<256x128xbf16>
    %c2 = arith.constant 2 : index
    %c0_19 = arith.constant 0 : index
    %c0_20 = arith.constant 0 : index
    %44 = vector.load %arg3[%c2, %c0_19, %c0_20] : memref<3x128x128xbf16, #tpu.memory_space<vmem>>, vector<1x128x128xbf16>
    %45 = vector.shape_cast %44 : vector<1x128x128xbf16> to vector<128x128xbf16>
    %cst_21 = arith.constant dense<0.000000e+00> : vector<256x128xf32>
    %46 = tpu.matmul %43, %45, %cst_21 {dimension_numbers = #tpu.dot_dimension_numbers<[1], [0], [0], [1], [0, 0, 1, 1], [], []>} : vector<256x128xbf16>, vector<128x128xbf16>, vector<256x128xf32> -> vector<256x128xf32>
    %47 = arith.addf %42, %46 : vector<256x128xf32>
    %c0_22 = arith.constant 0 : index
    %c0_23 = arith.constant 0 : index
    %48 = vector.load %arg4[%c0_22, %c0_23] : memref<1x128xf32, #tpu.memory_space<vmem>>, vector<1x128xf32>
    %49 = vector.broadcast %48 : vector<1x128xf32> to vector<256x128xf32>
    %50 = arith.addf %47, %49 : vector<256x128xf32>
    %c0_24 = arith.constant 0 : index
    %c0_25 = arith.constant 0 : index
    %c0_26 = arith.constant 0 : index
    %51 = vector.load %arg5[%c0_24, %c0_25, %c0_26] : memref<1x256x128xf32, #tpu.memory_space<vmem>>, vector<1x256x128xf32>
    %52 = vector.shape_cast %51 : vector<1x256x128xf32> to vector<256x128xf32>
    %53 = vector.shape_cast %50 : vector<256x128xf32> to vector<1x256x128xf32>
    tpu.vector_store %arg5[%c0_24, %c0_25, %c0_26], %53 {strides = array<i32>} : memref<1x256x128xf32, #tpu.memory_space<vmem>>, vector<1x256x128xf32>,
    return
  }
  func.func @transform_1(%arg0: i32, %arg1: i32) -> (i32, i32, i32) {
    %c0_i32 = arith.constant 0 : i32
    %c0_i32_0 = arith.constant 0 : i32
    %c0_i32_1 = arith.constant 0 : i32
    %c0_i32_2 = arith.constant 0 : i32
    return %c0_i32, %c0_i32_0, %c0_i32_1 : i32, i32, i32
  }
  func.func @transform_2(%arg0: i32, %arg1: i32) -> (i32, i32) {
    %c0_i32 = arith.constant 0 : i32
    %c0_i32_0 = arith.constant 0 : i32
    %c0_i32_1 = arith.constant 0 : i32
    return %c0_i32, %c0_i32_0 : i32, i32
  }
  func.func @transform_3(%arg0: i32, %arg1: i32) -> (i32, i32, i32) {
    %c0_i32 = arith.constant 0 : i32
    %c0_i32_0 = arith.constant 0 : i32
    return %arg0, %arg1, %c0_i32 : i32, i32, i32
  }
}

module attributes {stable_mosaic.version = 11 : i64} {
  func.func @_fused_conv1d_kernel(%arg0: i32, %arg1: i32, %arg2: memref<2x770x128xf32, #tpu.memory_space<any>>, %arg3: memref<3x128x128xbf16, #tpu.memory_space<vmem>>, %arg4: memref<1x128xf32, #tpu.memory_space<vmem>>, %arg5: memref<1x256x128xf32, #tpu.memory_space<vmem>>, %arg6: memref<1x256x128xf32, #tpu.memory_space<vmem>>, %arg7: memref<2x258x128xf32, #tpu.memory_space<vmem>>, %arg8: memref<2x!tpu.dma_semaphore, #tpu.memory_space<semaphore_mem>>) attributes {dimension_semantics = [#tpu.dimension_semantics<parallel>, #tpu.dimension_semantics<arbitrary>], iteration_bounds = array<i64: 2, 3>, scalar_prefetch = 0 : i64, scratch_operands = 2 : i64, tpu.core_type = #tpu.core_type<tc>, window_params = [{}, {pipeline_mode = #tpu.pipeline_mode<synchronous>, transform_indices = @transform_1, window_bounds = array<i64: 3, 128, 128>}, {pipeline_mode = #tpu.pipeline_mode<synchronous>, transform_indices = @transform_2, window_bounds = array<i64: 1, 128>}, {transform_indices = @transform_3, window_bounds = array<i64: 1, 256, 128>}, {transform_indices = @transform_4, window_bounds = array<i64: 1, 256, 128>}]} {
    %c0_i32 = arith.constant 0 : i32
    %0 = arith.cmpi eq, %arg1, %c0_i32 : i32
    %1 = arith.extui %0 : i1 to i32
    %c0_i32_0 = arith.constant 0 : i32
    %2 = arith.cmpi ne, %1, %c0_i32_0 : i32
    scf.if %2 {
      %c0_i32_30 = arith.constant 0 : i32
      %57 = tpu.assume_multiple %c0_i32_30, 8 : i32
      %c0_i32_31 = arith.constant 0 : i32
      %c0_i32_32 = arith.constant 0 : i32
      %c0_i32_33 = arith.constant 0 : i32
      %58 = tpu.memref_slice %arg2[%arg0, %57, %c0_i32_33] : memref<2x770x128xf32, #tpu.memory_space<any>> -> memref<1x258x128xf32, #tpu.memory_space<any>>
      %59 = tpu.memref_squeeze %58 : memref<1x258x128xf32, #tpu.memory_space<any>> -> memref<258x128xf32, #tpu.memory_space<any>>
      %c0_i32_34 = arith.constant 0 : i32
      %c0_i32_35 = arith.constant 0 : i32
      %60 = tpu.memref_slice %arg7[%c0_i32_31, %c0_i32_34, %c0_i32_35] : memref<2x258x128xf32, #tpu.memory_space<vmem>> -> memref<1x258x128xf32, #tpu.memory_space<vmem>>
      %61 = tpu.memref_squeeze %60 : memref<1x258x128xf32, #tpu.memory_space<vmem>> -> memref<258x128xf32, #tpu.memory_space<vmem>>
      %62 = tpu.memref_slice %arg8[%c0_i32_32] : memref<2x!tpu.dma_semaphore, #tpu.memory_space<semaphore_mem>> -> memref<1x!tpu.dma_semaphore, #tpu.memory_space<semaphore_mem>>
      %63 = tpu.memref_squeeze %62 : memref<1x!tpu.dma_semaphore, #tpu.memory_space<semaphore_mem>> -> memref<!tpu.dma_semaphore, #tpu.memory_space<semaphore_mem>>
      tpu.enqueue_dma source(%59 : memref<258x128xf32, #tpu.memory_space<any>>) target(%61 : memref<258x128xf32, #tpu.memory_space<vmem>>) target_semaphore(%63 : memref<!tpu.dma_semaphore, #tpu.memory_space<semaphore_mem>>)
    } else {
    }
    %c1_i32 = arith.constant 1 : i32
    %3 = arith.addi %arg1, %c1_i32 : i32
    %c3_i32 = arith.constant 3 : i32
    %4 = arith.cmpi slt, %3, %c3_i32 : i32
    %5 = arith.extui %4 : i1 to i32
    %c0_i32_1 = arith.constant 0 : i32
    %6 = arith.cmpi ne, %5, %c0_i32_1 : i32
    scf.if %6 {
      %c1_i32_30 = arith.constant 1 : i32
      %57 = arith.addi %arg1, %c1_i32_30 : i32
      %c1_i32_31 = arith.constant 1 : i32
      %58 = arith.addi %arg1, %c1_i32_31 : i32
      %c2_i32_32 = arith.constant 2 : i32
      %c0_i32_33 = arith.constant 0 : i32
      %59 = arith.cmpi eq, %c2_i32_32, %c0_i32_33 : i32
      %c1_i32_34 = arith.constant 1 : i32
      %60 = arith.select %59, %c1_i32_34, %c2_i32_32 : i32
      %61 = arith.remsi %58, %60 : i32
      %c0_i32_35 = arith.constant 0 : i32
      %62 = arith.cmpi ne, %61, %c0_i32_35 : i32
      %c0_i32_36 = arith.constant 0 : i32
      %63 = arith.cmpi slt, %61, %c0_i32_36 : i32
      %c0_i32_37 = arith.constant 0 : i32
      %64 = arith.cmpi slt, %60, %c0_i32_37 : i32
      %65 = arith.xori %63, %64 : i1
      %66 = arith.andi %65, %62 : i1
      %67 = arith.addi %61, %60 : i32
      %68 = arith.select %66, %67, %61 : i32
      %c256_i32_38 = arith.constant 256 : i32
      %69 = arith.muli %57, %c256_i32_38 : i32
      %70 = tpu.assume_multiple %69, 8 : i32
      %c0_i32_39 = arith.constant 0 : i32
      %71 = tpu.memref_slice %arg2[%arg0, %70, %c0_i32_39] : memref<2x770x128xf32, #tpu.memory_space<any>> -> memref<1x258x128xf32, #tpu.memory_space<any>>
      %72 = tpu.memref_squeeze %71 : memref<1x258x128xf32, #tpu.memory_space<any>> -> memref<258x128xf32, #tpu.memory_space<any>>
      %c0_i32_40 = arith.constant 0 : i32
      %c0_i32_41 = arith.constant 0 : i32
      %73 = tpu.memref_slice %arg7[%68, %c0_i32_40, %c0_i32_41] : memref<2x258x128xf32, #tpu.memory_space<vmem>> -> memref<1x258x128xf32, #tpu.memory_space<vmem>>
      %74 = tpu.memref_squeeze %73 : memref<1x258x128xf32, #tpu.memory_space<vmem>> -> memref<258x128xf32, #tpu.memory_space<vmem>>
      %75 = tpu.memref_slice %arg8[%68] : memref<2x!tpu.dma_semaphore, #tpu.memory_space<semaphore_mem>> -> memref<1x!tpu.dma_semaphore, #tpu.memory_space<semaphore_mem>>
      %76 = tpu.memref_squeeze %75 : memref<1x!tpu.dma_semaphore, #tpu.memory_space<semaphore_mem>> -> memref<!tpu.dma_semaphore, #tpu.memory_space<semaphore_mem>>
      tpu.enqueue_dma source(%72 : memref<258x128xf32, #tpu.memory_space<any>>) target(%74 : memref<258x128xf32, #tpu.memory_space<vmem>>) target_semaphore(%76 : memref<!tpu.dma_semaphore, #tpu.memory_space<semaphore_mem>>)
    } else {
    }
    %c2_i32 = arith.constant 2 : i32
    %c0_i32_2 = arith.constant 0 : i32
    %7 = arith.cmpi eq, %c2_i32, %c0_i32_2 : i32
    %c1_i32_3 = arith.constant 1 : i32
    %8 = arith.select %7, %c1_i32_3, %c2_i32 : i32
    %9 = arith.remsi %arg1, %8 : i32
    %c0_i32_4 = arith.constant 0 : i32
    %10 = arith.cmpi ne, %9, %c0_i32_4 : i32
    %c0_i32_5 = arith.constant 0 : i32
    %11 = arith.cmpi slt, %9, %c0_i32_5 : i32
    %c0_i32_6 = arith.constant 0 : i32
    %12 = arith.cmpi slt, %8, %c0_i32_6 : i32
    %13 = arith.xori %11, %12 : i1
    %14 = arith.andi %13, %10 : i1
    %15 = arith.addi %9, %8 : i32
    %16 = arith.select %14, %15, %9 : i32
    %c256_i32 = arith.constant 256 : i32
    %17 = arith.muli %arg1, %c256_i32 : i32
    %18 = tpu.assume_multiple %17, 8 : i32
    %c0_i32_7 = arith.constant 0 : i32
    %19 = tpu.memref_slice %arg2[%arg0, %18, %c0_i32_7] : memref<2x770x128xf32, #tpu.memory_space<any>> -> memref<1x258x128xf32, #tpu.memory_space<any>>
    %20 = tpu.memref_squeeze %19 : memref<1x258x128xf32, #tpu.memory_space<any>> -> memref<258x128xf32, #tpu.memory_space<any>>
    %c0_i32_8 = arith.constant 0 : i32
    %c0_i32_9 = arith.constant 0 : i32
    %21 = tpu.memref_slice %arg7[%16, %c0_i32_8, %c0_i32_9] : memref<2x258x128xf32, #tpu.memory_space<vmem>> -> memref<1x258x128xf32, #tpu.memory_space<vmem>>
    %22 = tpu.memref_squeeze %21 : memref<1x258x128xf32, #tpu.memory_space<vmem>> -> memref<258x128xf32, #tpu.memory_space<vmem>>
    %23 = tpu.memref_slice %arg8[%16] : memref<2x!tpu.dma_semaphore, #tpu.memory_space<semaphore_mem>> -> memref<1x!tpu.dma_semaphore, #tpu.memory_space<semaphore_mem>>
    %24 = tpu.memref_squeeze %23 : memref<1x!tpu.dma_semaphore, #tpu.memory_space<semaphore_mem>> -> memref<!tpu.dma_semaphore, #tpu.memory_space<semaphore_mem>>
    tpu.wait_dma2 semaphore(%24 : memref<!tpu.dma_semaphore, #tpu.memory_space<semaphore_mem>>) src(%20 : memref<258x128xf32, #tpu.memory_space<any>>) dst(%22 : memref<258x128xf32, #tpu.memory_space<vmem>>)
    %25 = arith.index_cast %16 : i32 to index
    %c0 = arith.constant 0 : index
    %c0_10 = arith.constant 0 : index
    %26 = vector.load %arg7[%25, %c0, %c0_10] : memref<2x258x128xf32, #tpu.memory_space<vmem>>, vector<1x258x128xf32>
    %27 = vector.shape_cast %26 : vector<1x258x128xf32> to vector<258x128xf32>
    %cst = arith.constant 0.000000e+00 : f32
    %28 = vector.broadcast %cst : f32 to vector<258x128xf32>
    %29 = arith.cmpf oge, %27, %28 : vector<258x128xf32>
    %cst_11 = arith.constant 1.000000e-01 : f32
    %30 = vector.broadcast %cst_11 : f32 to vector<258x128xf32>
    %31 = arith.mulf %30, %27 : vector<258x128xf32>
    %32 = arith.select %29, %27, %31 : vector<258x128xi1>, vector<258x128xf32>
    %33 = arith.truncf %32 : vector<258x128xf32> to vector<258x128xbf16>
    %34 = vector.extract_strided_slice %33 {offsets = [0, 0], sizes = [256, 128], strides = [1, 1]} : vector<258x128xbf16> to vector<256x128xbf16>
    %c0_12 = arith.constant 0 : index
    %c0_13 = arith.constant 0 : index
    %c0_14 = arith.constant 0 : index
    %35 = vector.load %arg3[%c0_12, %c0_13, %c0_14] : memref<3x128x128xbf16, #tpu.memory_space<vmem>>, vector<1x128x128xbf16>
    %36 = vector.shape_cast %35 : vector<1x128x128xbf16> to vector<128x128xbf16>
    %cst_15 = arith.constant dense<0.000000e+00> : vector<256x128xf32>
    %37 = tpu.matmul %34, %36, %cst_15 {dimension_numbers = #tpu.dot_dimension_numbers<[1], [0], [0], [1], [0, 0, 1, 1], [], []>} : vector<256x128xbf16>, vector<128x128xbf16>, vector<256x128xf32> -> vector<256x128xf32>
    %38 = vector.extract_strided_slice %33 {offsets = [1, 0], sizes = [256, 128], strides = [1, 1]} : vector<258x128xbf16> to vector<256x128xbf16>
    %c1 = arith.constant 1 : index
    %c0_16 = arith.constant 0 : index
    %c0_17 = arith.constant 0 : index
    %39 = vector.load %arg3[%c1, %c0_16, %c0_17] : memref<3x128x128xbf16, #tpu.memory_space<vmem>>, vector<1x128x128xbf16>
    %40 = vector.shape_cast %39 : vector<1x128x128xbf16> to vector<128x128xbf16>
    %cst_18 = arith.constant dense<0.000000e+00> : vector<256x128xf32>
    %41 = tpu.matmul %38, %40, %cst_18 {dimension_numbers = #tpu.dot_dimension_numbers<[1], [0], [0], [1], [0, 0, 1, 1], [], []>} : vector<256x128xbf16>, vector<128x128xbf16>, vector<256x128xf32> -> vector<256x128xf32>
    %42 = arith.addf %37, %41 : vector<256x128xf32>
    %43 = vector.extract_strided_slice %33 {offsets = [2, 0], sizes = [256, 128], strides = [1, 1]} : vector<258x128xbf16> to vector<256x128xbf16>
    %c2 = arith.constant 2 : index
    %c0_19 = arith.constant 0 : index
    %c0_20 = arith.constant 0 : index
    %44 = vector.load %arg3[%c2, %c0_19, %c0_20] : memref<3x128x128xbf16, #tpu.memory_space<vmem>>, vector<1x128x128xbf16>
    %45 = vector.shape_cast %44 : vector<1x128x128xbf16> to vector<128x128xbf16>
    %cst_21 = arith.constant dense<0.000000e+00> : vector<256x128xf32>
    %46 = tpu.matmul %43, %45, %cst_21 {dimension_numbers = #tpu.dot_dimension_numbers<[1], [0], [0], [1], [0, 0, 1, 1], [], []>} : vector<256x128xbf16>, vector<128x128xbf16>, vector<256x128xf32> -> vector<256x128xf32>
    %47 = arith.addf %42, %46 : vector<256x128xf32>
    %c0_22 = arith.constant 0 : index
    %c0_23 = arith.constant 0 : index
    %48 = vector.load %arg4[%c0_22, %c0_23] : memref<1x128xf32, #tpu.memory_space<vmem>>, vector<1x128xf32>
    %49 = vector.broadcast %48 : vector<1x128xf32> to vector<256x128xf32>
    %50 = arith.addf %47, %49 : vector<256x128xf32>
    %c0_24 = arith.constant 0 : index
    %c0_25 = arith.constant 0 : index
    %c0_26 = arith.constant 0 : index
    %51 = vector.load %arg5[%c0_24, %c0_25, %c0_26] : memref<1x256x128xf32, #tpu.memory_space<vmem>>, vector<1x256x128xf32>
    %52 = vector.shape_cast %51 : vector<1x256x128xf32> to vector<256x128xf32>
    %53 = arith.addf %50, %52 : vector<256x128xf32>
    %c0_27 = arith.constant 0 : index
    %c0_28 = arith.constant 0 : index
    %c0_29 = arith.constant 0 : index
    %54 = vector.load %arg6[%c0_27, %c0_28, %c0_29] : memref<1x256x128xf32, #tpu.memory_space<vmem>>, vector<1x256x128xf32>
    %55 = vector.shape_cast %54 : vector<1x256x128xf32> to vector<256x128xf32>
    %56 = vector.shape_cast %53 : vector<256x128xf32> to vector<1x256x128xf32>
    tpu.vector_store %arg6[%c0_27, %c0_28, %c0_29], %56 {strides = array<i32>} : memref<1x256x128xf32, #tpu.memory_space<vmem>>, vector<1x256x128xf32>,
    return
  }
  func.func @transform_1(%arg0: i32, %arg1: i32) -> (i32, i32, i32) {
    %c0_i32 = arith.constant 0 : i32
    %c0_i32_0 = arith.constant 0 : i32
    %c0_i32_1 = arith.constant 0 : i32
    %c0_i32_2 = arith.constant 0 : i32
    return %c0_i32, %c0_i32_0, %c0_i32_1 : i32, i32, i32
  }
  func.func @transform_2(%arg0: i32, %arg1: i32) -> (i32, i32) {
    %c0_i32 = arith.constant 0 : i32
    %c0_i32_0 = arith.constant 0 : i32
    %c0_i32_1 = arith.constant 0 : i32
    return %c0_i32, %c0_i32_0 : i32, i32
  }
  func.func @transform_3(%arg0: i32, %arg1: i32) -> (i32, i32, i32) {
    %c0_i32 = arith.constant 0 : i32
    %c0_i32_0 = arith.constant 0 : i32
    return %arg0, %arg1, %c0_i32 : i32, i32, i32
  }
  func.func @transform_4(%arg0: i32, %arg1: i32) -> (i32, i32, i32) {
    %c0_i32 = arith.constant 0 : i32
    %c0_i32_0 = arith.constant 0 : i32
    return %arg0, %arg1, %c0_i32 : i32, i32, i32
  }
}

module attributes {stable_mosaic.version = 11 : i64} {
  func.func @_fused_conv1d_kernel(%arg0: i32, %arg1: i32, %arg2: memref<2x774x128xf32, #tpu.memory_space<any>>, %arg3: memref<3x128x128xbf16, #tpu.memory_space<vmem>>, %arg4: memref<1x128xf32, #tpu.memory_space<vmem>>, %arg5: memref<1x256x128xf32, #tpu.memory_space<vmem>>, %arg6: memref<2x262x128xf32, #tpu.memory_space<vmem>>, %arg7: memref<2x!tpu.dma_semaphore, #tpu.memory_space<semaphore_mem>>) attributes {dimension_semantics = [#tpu.dimension_semantics<parallel>, #tpu.dimension_semantics<arbitrary>], iteration_bounds = array<i64: 2, 3>, scalar_prefetch = 0 : i64, scratch_operands = 2 : i64, tpu.core_type = #tpu.core_type<tc>, window_params = [{}, {pipeline_mode = #tpu.pipeline_mode<synchronous>, transform_indices = @transform_1, window_bounds = array<i64: 3, 128, 128>}, {pipeline_mode = #tpu.pipeline_mode<synchronous>, transform_indices = @transform_2, window_bounds = array<i64: 1, 128>}, {transform_indices = @transform_3, window_bounds = array<i64: 1, 256, 128>}]} {
    %c0_i32 = arith.constant 0 : i32
    %0 = arith.cmpi eq, %arg1, %c0_i32 : i32
    %1 = arith.extui %0 : i1 to i32
    %c0_i32_0 = arith.constant 0 : i32
    %2 = arith.cmpi ne, %1, %c0_i32_0 : i32
    scf.if %2 {
      %c0_i32_27 = arith.constant 0 : i32
      %54 = tpu.assume_multiple %c0_i32_27, 8 : i32
      %c0_i32_28 = arith.constant 0 : i32
      %c0_i32_29 = arith.constant 0 : i32
      %c0_i32_30 = arith.constant 0 : i32
      %55 = tpu.memref_slice %arg2[%arg0, %54, %c0_i32_30] : memref<2x774x128xf32, #tpu.memory_space<any>> -> memref<1x262x128xf32, #tpu.memory_space<any>>
      %56 = tpu.memref_squeeze %55 : memref<1x262x128xf32, #tpu.memory_space<any>> -> memref<262x128xf32, #tpu.memory_space<any>>
      %c0_i32_31 = arith.constant 0 : i32
      %c0_i32_32 = arith.constant 0 : i32
      %57 = tpu.memref_slice %arg6[%c0_i32_28, %c0_i32_31, %c0_i32_32] : memref<2x262x128xf32, #tpu.memory_space<vmem>> -> memref<1x262x128xf32, #tpu.memory_space<vmem>>
      %58 = tpu.memref_squeeze %57 : memref<1x262x128xf32, #tpu.memory_space<vmem>> -> memref<262x128xf32, #tpu.memory_space<vmem>>
      %59 = tpu.memref_slice %arg7[%c0_i32_29] : memref<2x!tpu.dma_semaphore, #tpu.memory_space<semaphore_mem>> -> memref<1x!tpu.dma_semaphore, #tpu.memory_space<semaphore_mem>>
      %60 = tpu.memref_squeeze %59 : memref<1x!tpu.dma_semaphore, #tpu.memory_space<semaphore_mem>> -> memref<!tpu.dma_semaphore, #tpu.memory_space<semaphore_mem>>
      tpu.enqueue_dma source(%56 : memref<262x128xf32, #tpu.memory_space<any>>) target(%58 : memref<262x128xf32, #tpu.memory_space<vmem>>) target_semaphore(%60 : memref<!tpu.dma_semaphore, #tpu.memory_space<semaphore_mem>>)
    } else {
    }
    %c1_i32 = arith.constant 1 : i32
    %3 = arith.addi %arg1, %c1_i32 : i32
    %c3_i32 = arith.constant 3 : i32
    %4 = arith.cmpi slt, %3, %c3_i32 : i32
    %5 = arith.extui %4 : i1 to i32
    %c0_i32_1 = arith.constant 0 : i32
    %6 = arith.cmpi ne, %5, %c0_i32_1 : i32
    scf.if %6 {
      %c1_i32_27 = arith.constant 1 : i32
      %54 = arith.addi %arg1, %c1_i32_27 : i32
      %c1_i32_28 = arith.constant 1 : i32
      %55 = arith.addi %arg1, %c1_i32_28 : i32
      %c2_i32_29 = arith.constant 2 : i32
      %c0_i32_30 = arith.constant 0 : i32
      %56 = arith.cmpi eq, %c2_i32_29, %c0_i32_30 : i32
      %c1_i32_31 = arith.constant 1 : i32
      %57 = arith.select %56, %c1_i32_31, %c2_i32_29 : i32
      %58 = arith.remsi %55, %57 : i32
      %c0_i32_32 = arith.constant 0 : i32
      %59 = arith.cmpi ne, %58, %c0_i32_32 : i32
      %c0_i32_33 = arith.constant 0 : i32
      %60 = arith.cmpi slt, %58, %c0_i32_33 : i32
      %c0_i32_34 = arith.constant 0 : i32
      %61 = arith.cmpi slt, %57, %c0_i32_34 : i32
      %62 = arith.xori %60, %61 : i1
      %63 = arith.andi %62, %59 : i1
      %64 = arith.addi %58, %57 : i32
      %65 = arith.select %63, %64, %58 : i32
      %c256_i32_35 = arith.constant 256 : i32
      %66 = arith.muli %54, %c256_i32_35 : i32
      %67 = tpu.assume_multiple %66, 8 : i32
      %c0_i32_36 = arith.constant 0 : i32
      %68 = tpu.memref_slice %arg2[%arg0, %67, %c0_i32_36] : memref<2x774x128xf32, #tpu.memory_space<any>> -> memref<1x262x128xf32, #tpu.memory_space<any>>
      %69 = tpu.memref_squeeze %68 : memref<1x262x128xf32, #tpu.memory_space<any>> -> memref<262x128xf32, #tpu.memory_space<any>>
      %c0_i32_37 = arith.constant 0 : i32
      %c0_i32_38 = arith.constant 0 : i32
      %70 = tpu.memref_slice %arg6[%65, %c0_i32_37, %c0_i32_38] : memref<2x262x128xf32, #tpu.memory_space<vmem>> -> memref<1x262x128xf32, #tpu.memory_space<vmem>>
      %71 = tpu.memref_squeeze %70 : memref<1x262x128xf32, #tpu.memory_space<vmem>> -> memref<262x128xf32, #tpu.memory_space<vmem>>
      %72 = tpu.memref_slice %arg7[%65] : memref<2x!tpu.dma_semaphore, #tpu.memory_space<semaphore_mem>> -> memref<1x!tpu.dma_semaphore, #tpu.memory_space<semaphore_mem>>
      %73 = tpu.memref_squeeze %72 : memref<1x!tpu.dma_semaphore, #tpu.memory_space<semaphore_mem>> -> memref<!tpu.dma_semaphore, #tpu.memory_space<semaphore_mem>>
      tpu.enqueue_dma source(%69 : memref<262x128xf32, #tpu.memory_space<any>>) target(%71 : memref<262x128xf32, #tpu.memory_space<vmem>>) target_semaphore(%73 : memref<!tpu.dma_semaphore, #tpu.memory_space<semaphore_mem>>)
    } else {
    }
    %c2_i32 = arith.constant 2 : i32
    %c0_i32_2 = arith.constant 0 : i32
    %7 = arith.cmpi eq, %c2_i32, %c0_i32_2 : i32
    %c1_i32_3 = arith.constant 1 : i32
    %8 = arith.select %7, %c1_i32_3, %c2_i32 : i32
    %9 = arith.remsi %arg1, %8 : i32
    %c0_i32_4 = arith.constant 0 : i32
    %10 = arith.cmpi ne, %9, %c0_i32_4 : i32
    %c0_i32_5 = arith.constant 0 : i32
    %11 = arith.cmpi slt, %9, %c0_i32_5 : i32
    %c0_i32_6 = arith.constant 0 : i32
    %12 = arith.cmpi slt, %8, %c0_i32_6 : i32
    %13 = arith.xori %11, %12 : i1
    %14 = arith.andi %13, %10 : i1
    %15 = arith.addi %9, %8 : i32
    %16 = arith.select %14, %15, %9 : i32
    %c256_i32 = arith.constant 256 : i32
    %17 = arith.muli %arg1, %c256_i32 : i32
    %18 = tpu.assume_multiple %17, 8 : i32
    %c0_i32_7 = arith.constant 0 : i32
    %19 = tpu.memref_slice %arg2[%arg0, %18, %c0_i32_7] : memref<2x774x128xf32, #tpu.memory_space<any>> -> memref<1x262x128xf32, #tpu.memory_space<any>>
    %20 = tpu.memref_squeeze %19 : memref<1x262x128xf32, #tpu.memory_space<any>> -> memref<262x128xf32, #tpu.memory_space<any>>
    %c0_i32_8 = arith.constant 0 : i32
    %c0_i32_9 = arith.constant 0 : i32
    %21 = tpu.memref_slice %arg6[%16, %c0_i32_8, %c0_i32_9] : memref<2x262x128xf32, #tpu.memory_space<vmem>> -> memref<1x262x128xf32, #tpu.memory_space<vmem>>
    %22 = tpu.memref_squeeze %21 : memref<1x262x128xf32, #tpu.memory_space<vmem>> -> memref<262x128xf32, #tpu.memory_space<vmem>>
    %23 = tpu.memref_slice %arg7[%16] : memref<2x!tpu.dma_semaphore, #tpu.memory_space<semaphore_mem>> -> memref<1x!tpu.dma_semaphore, #tpu.memory_space<semaphore_mem>>
    %24 = tpu.memref_squeeze %23 : memref<1x!tpu.dma_semaphore, #tpu.memory_space<semaphore_mem>> -> memref<!tpu.dma_semaphore, #tpu.memory_space<semaphore_mem>>
    tpu.wait_dma2 semaphore(%24 : memref<!tpu.dma_semaphore, #tpu.memory_space<semaphore_mem>>) src(%20 : memref<262x128xf32, #tpu.memory_space<any>>) dst(%22 : memref<262x128xf32, #tpu.memory_space<vmem>>)
    %25 = arith.index_cast %16 : i32 to index
    %c0 = arith.constant 0 : index
    %c0_10 = arith.constant 0 : index
    %26 = vector.load %arg6[%25, %c0, %c0_10] : memref<2x262x128xf32, #tpu.memory_space<vmem>>, vector<1x262x128xf32>
    %27 = vector.shape_cast %26 : vector<1x262x128xf32> to vector<262x128xf32>
    %cst = arith.constant 0.000000e+00 : f32
    %28 = vector.broadcast %cst : f32 to vector<262x128xf32>
    %29 = arith.cmpf oge, %27, %28 : vector<262x128xf32>
    %cst_11 = arith.constant 1.000000e-01 : f32
    %30 = vector.broadcast %cst_11 : f32 to vector<262x128xf32>
    %31 = arith.mulf %30, %27 : vector<262x128xf32>
    %32 = arith.select %29, %27, %31 : vector<262x128xi1>, vector<262x128xf32>
    %33 = arith.truncf %32 : vector<262x128xf32> to vector<262x128xbf16>
    %34 = vector.extract_strided_slice %33 {offsets = [0, 0], sizes = [256, 128], strides = [1, 1]} : vector<262x128xbf16> to vector<256x128xbf16>
    %c0_12 = arith.constant 0 : index
    %c0_13 = arith.constant 0 : index
    %c0_14 = arith.constant 0 : index
    %35 = vector.load %arg3[%c0_12, %c0_13, %c0_14] : memref<3x128x128xbf16, #tpu.memory_space<vmem>>, vector<1x128x128xbf16>
    %36 = vector.shape_cast %35 : vector<1x128x128xbf16> to vector<128x128xbf16>
    %cst_15 = arith.constant dense<0.000000e+00> : vector<256x128xf32>
    %37 = tpu.matmul %34, %36, %cst_15 {dimension_numbers = #tpu.dot_dimension_numbers<[1], [0], [0], [1], [0, 0, 1, 1], [], []>} : vector<256x128xbf16>, vector<128x128xbf16>, vector<256x128xf32> -> vector<256x128xf32>
    %38 = vector.extract_strided_slice %33 {offsets = [3, 0], sizes = [256, 128], strides = [1, 1]} : vector<262x128xbf16> to vector<256x128xbf16>
    %c1 = arith.constant 1 : index
    %c0_16 = arith.constant 0 : index
    %c0_17 = arith.constant 0 : index
    %39 = vector.load %arg3[%c1, %c0_16, %c0_17] : memref<3x128x128xbf16, #tpu.memory_space<vmem>>, vector<1x128x128xbf16>
    %40 = vector.shape_cast %39 : vector<1x128x128xbf16> to vector<128x128xbf16>
    %cst_18 = arith.constant dense<0.000000e+00> : vector<256x128xf32>
    %41 = tpu.matmul %38, %40, %cst_18 {dimension_numbers = #tpu.dot_dimension_numbers<[1], [0], [0], [1], [0, 0, 1, 1], [], []>} : vector<256x128xbf16>, vector<128x128xbf16>, vector<256x128xf32> -> vector<256x128xf32>
    %42 = arith.addf %37, %41 : vector<256x128xf32>
    %43 = vector.extract_strided_slice %33 {offsets = [6, 0], sizes = [256, 128], strides = [1, 1]} : vector<262x128xbf16> to vector<256x128xbf16>
    %c2 = arith.constant 2 : index
    %c0_19 = arith.constant 0 : index
    %c0_20 = arith.constant 0 : index
    %44 = vector.load %arg3[%c2, %c0_19, %c0_20] : memref<3x128x128xbf16, #tpu.memory_space<vmem>>, vector<1x128x128xbf16>
    %45 = vector.shape_cast %44 : vector<1x128x128xbf16> to vector<128x128xbf16>
    %cst_21 = arith.constant dense<0.000000e+00> : vector<256x128xf32>
    %46 = tpu.matmul %43, %45, %cst_21 {dimension_numbers = #tpu.dot_dimension_numbers<[1], [0], [0], [1], [0, 0, 1, 1], [], []>} : vector<256x128xbf16>, vector<128x128xbf16>, vector<256x128xf32> -> vector<256x128xf32>
    %47 = arith.addf %42, %46 : vector<256x128xf32>
    %c0_22 = arith.constant 0 : index
    %c0_23 = arith.constant 0 : index
    %48 = vector.load %arg4[%c0_22, %c0_23] : memref<1x128xf32, #tpu.memory_space<vmem>>, vector<1x128xf32>
    %49 = vector.broadcast %48 : vector<1x128xf32> to vector<256x128xf32>
    %50 = arith.addf %47, %49 : vector<256x128xf32>
    %c0_24 = arith.constant 0 : index
    %c0_25 = arith.constant 0 : index
    %c0_26 = arith.constant 0 : index
    %51 = vector.load %arg5[%c0_24, %c0_25, %c0_26] : memref<1x256x128xf32, #tpu.memory_space<vmem>>, vector<1x256x128xf32>
    %52 = vector.shape_cast %51 : vector<1x256x128xf32> to vector<256x128xf32>
    %53 = vector.shape_cast %50 : vector<256x128xf32> to vector<1x256x128xf32>
    tpu.vector_store %arg5[%c0_24, %c0_25, %c0_26], %53 {strides = array<i32>} : memref<1x256x128xf32, #tpu.memory_space<vmem>>, vector<1x256x128xf32>,
    return
  }
  func.func @transform_1(%arg0: i32, %arg1: i32) -> (i32, i32, i32) {
    %c0_i32 = arith.constant 0 : i32
    %c0_i32_0 = arith.constant 0 : i32
    %c0_i32_1 = arith.constant 0 : i32
    %c0_i32_2 = arith.constant 0 : i32
    return %c0_i32, %c0_i32_0, %c0_i32_1 : i32, i32, i32
  }
  func.func @transform_2(%arg0: i32, %arg1: i32) -> (i32, i32) {
    %c0_i32 = arith.constant 0 : i32
    %c0_i32_0 = arith.constant 0 : i32
    %c0_i32_1 = arith.constant 0 : i32
    return %c0_i32, %c0_i32_0 : i32, i32
  }
  func.func @transform_3(%arg0: i32, %arg1: i32) -> (i32, i32, i32) {
    %c0_i32 = arith.constant 0 : i32
    %c0_i32_0 = arith.constant 0 : i32
    return %arg0, %arg1, %c0_i32 : i32, i32, i32
  }
}

module attributes {stable_mosaic.version = 11 : i64} {
  func.func @_fused_conv1d_kernel(%arg0: i32, %arg1: i32, %arg2: memref<2x778x128xf32, #tpu.memory_space<any>>, %arg3: memref<3x128x128xbf16, #tpu.memory_space<vmem>>, %arg4: memref<1x128xf32, #tpu.memory_space<vmem>>, %arg5: memref<1x256x128xf32, #tpu.memory_space<vmem>>, %arg6: memref<2x266x128xf32, #tpu.memory_space<vmem>>, %arg7: memref<2x!tpu.dma_semaphore, #tpu.memory_space<semaphore_mem>>) attributes {dimension_semantics = [#tpu.dimension_semantics<parallel>, #tpu.dimension_semantics<arbitrary>], iteration_bounds = array<i64: 2, 3>, scalar_prefetch = 0 : i64, scratch_operands = 2 : i64, tpu.core_type = #tpu.core_type<tc>, window_params = [{}, {pipeline_mode = #tpu.pipeline_mode<synchronous>, transform_indices = @transform_1, window_bounds = array<i64: 3, 128, 128>}, {pipeline_mode = #tpu.pipeline_mode<synchronous>, transform_indices = @transform_2, window_bounds = array<i64: 1, 128>}, {transform_indices = @transform_3, window_bounds = array<i64: 1, 256, 128>}]} {
    %c0_i32 = arith.constant 0 : i32
    %0 = arith.cmpi eq, %arg1, %c0_i32 : i32
    %1 = arith.extui %0 : i1 to i32
    %c0_i32_0 = arith.constant 0 : i32
    %2 = arith.cmpi ne, %1, %c0_i32_0 : i32
    scf.if %2 {
      %c0_i32_27 = arith.constant 0 : i32
      %54 = tpu.assume_multiple %c0_i32_27, 8 : i32
      %c0_i32_28 = arith.constant 0 : i32
      %c0_i32_29 = arith.constant 0 : i32
      %c0_i32_30 = arith.constant 0 : i32
      %55 = tpu.memref_slice %arg2[%arg0, %54, %c0_i32_30] : memref<2x778x128xf32, #tpu.memory_space<any>> -> memref<1x266x128xf32, #tpu.memory_space<any>>
      %56 = tpu.memref_squeeze %55 : memref<1x266x128xf32, #tpu.memory_space<any>> -> memref<266x128xf32, #tpu.memory_space<any>>
      %c0_i32_31 = arith.constant 0 : i32
      %c0_i32_32 = arith.constant 0 : i32
      %57 = tpu.memref_slice %arg6[%c0_i32_28, %c0_i32_31, %c0_i32_32] : memref<2x266x128xf32, #tpu.memory_space<vmem>> -> memref<1x266x128xf32, #tpu.memory_space<vmem>>
      %58 = tpu.memref_squeeze %57 : memref<1x266x128xf32, #tpu.memory_space<vmem>> -> memref<266x128xf32, #tpu.memory_space<vmem>>
      %59 = tpu.memref_slice %arg7[%c0_i32_29] : memref<2x!tpu.dma_semaphore, #tpu.memory_space<semaphore_mem>> -> memref<1x!tpu.dma_semaphore, #tpu.memory_space<semaphore_mem>>
      %60 = tpu.memref_squeeze %59 : memref<1x!tpu.dma_semaphore, #tpu.memory_space<semaphore_mem>> -> memref<!tpu.dma_semaphore, #tpu.memory_space<semaphore_mem>>
      tpu.enqueue_dma source(%56 : memref<266x128xf32, #tpu.memory_space<any>>) target(%58 : memref<266x128xf32, #tpu.memory_space<vmem>>) target_semaphore(%60 : memref<!tpu.dma_semaphore, #tpu.memory_space<semaphore_mem>>)
    } else {
    }
    %c1_i32 = arith.constant 1 : i32
    %3 = arith.addi %arg1, %c1_i32 : i32
    %c3_i32 = arith.constant 3 : i32
    %4 = arith.cmpi slt, %3, %c3_i32 : i32
    %5 = arith.extui %4 : i1 to i32
    %c0_i32_1 = arith.constant 0 : i32
    %6 = arith.cmpi ne, %5, %c0_i32_1 : i32
    scf.if %6 {
      %c1_i32_27 = arith.constant 1 : i32
      %54 = arith.addi %arg1, %c1_i32_27 : i32
      %c1_i32_28 = arith.constant 1 : i32
      %55 = arith.addi %arg1, %c1_i32_28 : i32
      %c2_i32_29 = arith.constant 2 : i32
      %c0_i32_30 = arith.constant 0 : i32
      %56 = arith.cmpi eq, %c2_i32_29, %c0_i32_30 : i32
      %c1_i32_31 = arith.constant 1 : i32
      %57 = arith.select %56, %c1_i32_31, %c2_i32_29 : i32
      %58 = arith.remsi %55, %57 : i32
      %c0_i32_32 = arith.constant 0 : i32
      %59 = arith.cmpi ne, %58, %c0_i32_32 : i32
      %c0_i32_33 = arith.constant 0 : i32
      %60 = arith.cmpi slt, %58, %c0_i32_33 : i32
      %c0_i32_34 = arith.constant 0 : i32
      %61 = arith.cmpi slt, %57, %c0_i32_34 : i32
      %62 = arith.xori %60, %61 : i1
      %63 = arith.andi %62, %59 : i1
      %64 = arith.addi %58, %57 : i32
      %65 = arith.select %63, %64, %58 : i32
      %c256_i32_35 = arith.constant 256 : i32
      %66 = arith.muli %54, %c256_i32_35 : i32
      %67 = tpu.assume_multiple %66, 8 : i32
      %c0_i32_36 = arith.constant 0 : i32
      %68 = tpu.memref_slice %arg2[%arg0, %67, %c0_i32_36] : memref<2x778x128xf32, #tpu.memory_space<any>> -> memref<1x266x128xf32, #tpu.memory_space<any>>
      %69 = tpu.memref_squeeze %68 : memref<1x266x128xf32, #tpu.memory_space<any>> -> memref<266x128xf32, #tpu.memory_space<any>>
      %c0_i32_37 = arith.constant 0 : i32
      %c0_i32_38 = arith.constant 0 : i32
      %70 = tpu.memref_slice %arg6[%65, %c0_i32_37, %c0_i32_38] : memref<2x266x128xf32, #tpu.memory_space<vmem>> -> memref<1x266x128xf32, #tpu.memory_space<vmem>>
      %71 = tpu.memref_squeeze %70 : memref<1x266x128xf32, #tpu.memory_space<vmem>> -> memref<266x128xf32, #tpu.memory_space<vmem>>
      %72 = tpu.memref_slice %arg7[%65] : memref<2x!tpu.dma_semaphore, #tpu.memory_space<semaphore_mem>> -> memref<1x!tpu.dma_semaphore, #tpu.memory_space<semaphore_mem>>
      %73 = tpu.memref_squeeze %72 : memref<1x!tpu.dma_semaphore, #tpu.memory_space<semaphore_mem>> -> memref<!tpu.dma_semaphore, #tpu.memory_space<semaphore_mem>>
      tpu.enqueue_dma source(%69 : memref<266x128xf32, #tpu.memory_space<any>>) target(%71 : memref<266x128xf32, #tpu.memory_space<vmem>>) target_semaphore(%73 : memref<!tpu.dma_semaphore, #tpu.memory_space<semaphore_mem>>)
    } else {
    }
    %c2_i32 = arith.constant 2 : i32
    %c0_i32_2 = arith.constant 0 : i32
    %7 = arith.cmpi eq, %c2_i32, %c0_i32_2 : i32
    %c1_i32_3 = arith.constant 1 : i32
    %8 = arith.select %7, %c1_i32_3, %c2_i32 : i32
    %9 = arith.remsi %arg1, %8 : i32
    %c0_i32_4 = arith.constant 0 : i32
    %10 = arith.cmpi ne, %9, %c0_i32_4 : i32
    %c0_i32_5 = arith.constant 0 : i32
    %11 = arith.cmpi slt, %9, %c0_i32_5 : i32
    %c0_i32_6 = arith.constant 0 : i32
    %12 = arith.cmpi slt, %8, %c0_i32_6 : i32
    %13 = arith.xori %11, %12 : i1
    %14 = arith.andi %13, %10 : i1
    %15 = arith.addi %9, %8 : i32
    %16 = arith.select %14, %15, %9 : i32
    %c256_i32 = arith.constant 256 : i32
    %17 = arith.muli %arg1, %c256_i32 : i32
    %18 = tpu.assume_multiple %17, 8 : i32
    %c0_i32_7 = arith.constant 0 : i32
    %19 = tpu.memref_slice %arg2[%arg0, %18, %c0_i32_7] : memref<2x778x128xf32, #tpu.memory_space<any>> -> memref<1x266x128xf32, #tpu.memory_space<any>>
    %20 = tpu.memref_squeeze %19 : memref<1x266x128xf32, #tpu.memory_space<any>> -> memref<266x128xf32, #tpu.memory_space<any>>
    %c0_i32_8 = arith.constant 0 : i32
    %c0_i32_9 = arith.constant 0 : i32
    %21 = tpu.memref_slice %arg6[%16, %c0_i32_8, %c0_i32_9] : memref<2x266x128xf32, #tpu.memory_space<vmem>> -> memref<1x266x128xf32, #tpu.memory_space<vmem>>
    %22 = tpu.memref_squeeze %21 : memref<1x266x128xf32, #tpu.memory_space<vmem>> -> memref<266x128xf32, #tpu.memory_space<vmem>>
    %23 = tpu.memref_slice %arg7[%16] : memref<2x!tpu.dma_semaphore, #tpu.memory_space<semaphore_mem>> -> memref<1x!tpu.dma_semaphore, #tpu.memory_space<semaphore_mem>>
    %24 = tpu.memref_squeeze %23 : memref<1x!tpu.dma_semaphore, #tpu.memory_space<semaphore_mem>> -> memref<!tpu.dma_semaphore, #tpu.memory_space<semaphore_mem>>
    tpu.wait_dma2 semaphore(%24 : memref<!tpu.dma_semaphore, #tpu.memory_space<semaphore_mem>>) src(%20 : memref<266x128xf32, #tpu.memory_space<any>>) dst(%22 : memref<266x128xf32, #tpu.memory_space<vmem>>)
    %25 = arith.index_cast %16 : i32 to index
    %c0 = arith.constant 0 : index
    %c0_10 = arith.constant 0 : index
    %26 = vector.load %arg6[%25, %c0, %c0_10] : memref<2x266x128xf32, #tpu.memory_space<vmem>>, vector<1x266x128xf32>
    %27 = vector.shape_cast %26 : vector<1x266x128xf32> to vector<266x128xf32>
    %cst = arith.constant 0.000000e+00 : f32
    %28 = vector.broadcast %cst : f32 to vector<266x128xf32>
    %29 = arith.cmpf oge, %27, %28 : vector<266x128xf32>
    %cst_11 = arith.constant 1.000000e-01 : f32
    %30 = vector.broadcast %cst_11 : f32 to vector<266x128xf32>
    %31 = arith.mulf %30, %27 : vector<266x128xf32>
    %32 = arith.select %29, %27, %31 : vector<266x128xi1>, vector<266x128xf32>
    %33 = arith.truncf %32 : vector<266x128xf32> to vector<266x128xbf16>
    %34 = vector.extract_strided_slice %33 {offsets = [0, 0], sizes = [256, 128], strides = [1, 1]} : vector<266x128xbf16> to vector<256x128xbf16>
    %c0_12 = arith.constant 0 : index
    %c0_13 = arith.constant 0 : index
    %c0_14 = arith.constant 0 : index
    %35 = vector.load %arg3[%c0_12, %c0_13, %c0_14] : memref<3x128x128xbf16, #tpu.memory_space<vmem>>, vector<1x128x128xbf16>
    %36 = vector.shape_cast %35 : vector<1x128x128xbf16> to vector<128x128xbf16>
    %cst_15 = arith.constant dense<0.000000e+00> : vector<256x128xf32>
    %37 = tpu.matmul %34, %36, %cst_15 {dimension_numbers = #tpu.dot_dimension_numbers<[1], [0], [0], [1], [0, 0, 1, 1], [], []>} : vector<256x128xbf16>, vector<128x128xbf16>, vector<256x128xf32> -> vector<256x128xf32>
    %38 = vector.extract_strided_slice %33 {offsets = [5, 0], sizes = [256, 128], strides = [1, 1]} : vector<266x128xbf16> to vector<256x128xbf16>
    %c1 = arith.constant 1 : index
    %c0_16 = arith.constant 0 : index
    %c0_17 = arith.constant 0 : index
    %39 = vector.load %arg3[%c1, %c0_16, %c0_17] : memref<3x128x128xbf16, #tpu.memory_space<vmem>>, vector<1x128x128xbf16>
    %40 = vector.shape_cast %39 : vector<1x128x128xbf16> to vector<128x128xbf16>
    %cst_18 = arith.constant dense<0.000000e+00> : vector<256x128xf32>
    %41 = tpu.matmul %38, %40, %cst_18 {dimension_numbers = #tpu.dot_dimension_numbers<[1], [0], [0], [1], [0, 0, 1, 1], [], []>} : vector<256x128xbf16>, vector<128x128xbf16>, vector<256x128xf32> -> vector<256x128xf32>
    %42 = arith.addf %37, %41 : vector<256x128xf32>
    %43 = vector.extract_strided_slice %33 {offsets = [10, 0], sizes = [256, 128], strides = [1, 1]} : vector<266x128xbf16> to vector<256x128xbf16>
    %c2 = arith.constant 2 : index
    %c0_19 = arith.constant 0 : index
    %c0_20 = arith.constant 0 : index
    %44 = vector.load %arg3[%c2, %c0_19, %c0_20] : memref<3x128x128xbf16, #tpu.memory_space<vmem>>, vector<1x128x128xbf16>
    %45 = vector.shape_cast %44 : vector<1x128x128xbf16> to vector<128x128xbf16>
    %cst_21 = arith.constant dense<0.000000e+00> : vector<256x128xf32>
    %46 = tpu.matmul %43, %45, %cst_21 {dimension_numbers = #tpu.dot_dimension_numbers<[1], [0], [0], [1], [0, 0, 1, 1], [], []>} : vector<256x128xbf16>, vector<128x128xbf16>, vector<256x128xf32> -> vector<256x128xf32>
    %47 = arith.addf %42, %46 : vector<256x128xf32>
    %c0_22 = arith.constant 0 : index
    %c0_23 = arith.constant 0 : index
    %48 = vector.load %arg4[%c0_22, %c0_23] : memref<1x128xf32, #tpu.memory_space<vmem>>, vector<1x128xf32>
    %49 = vector.broadcast %48 : vector<1x128xf32> to vector<256x128xf32>
    %50 = arith.addf %47, %49 : vector<256x128xf32>
    %c0_24 = arith.constant 0 : index
    %c0_25 = arith.constant 0 : index
    %c0_26 = arith.constant 0 : index
    %51 = vector.load %arg5[%c0_24, %c0_25, %c0_26] : memref<1x256x128xf32, #tpu.memory_space<vmem>>, vector<1x256x128xf32>
    %52 = vector.shape_cast %51 : vector<1x256x128xf32> to vector<256x128xf32>
    %53 = vector.shape_cast %50 : vector<256x128xf32> to vector<1x256x128xf32>
    tpu.vector_store %arg5[%c0_24, %c0_25, %c0_26], %53 {strides = array<i32>} : memref<1x256x128xf32, #tpu.memory_space<vmem>>, vector<1x256x128xf32>,
    return
  }
  func.func @transform_1(%arg0: i32, %arg1: i32) -> (i32, i32, i32) {
    %c0_i32 = arith.constant 0 : i32
    %c0_i32_0 = arith.constant 0 : i32
    %c0_i32_1 = arith.constant 0 : i32
    %c0_i32_2 = arith.constant 0 : i32
    return %c0_i32, %c0_i32_0, %c0_i32_1 : i32, i32, i32
  }
  func.func @transform_2(%arg0: i32, %arg1: i32) -> (i32, i32) {
    %c0_i32 = arith.constant 0 : i32
    %c0_i32_0 = arith.constant 0 : i32
    %c0_i32_1 = arith.constant 0 : i32
    return %c0_i32, %c0_i32_0 : i32, i32
  }
  func.func @transform_3(%arg0: i32, %arg1: i32) -> (i32, i32, i32) {
    %c0_i32 = arith.constant 0 : i32
    %c0_i32_0 = arith.constant 0 : i32
    return %arg0, %arg1, %c0_i32 : i32, i32, i32
  }
}

</mosaic_0001>

<llo_original>
// kernel: resblock1_forward.6
$region0: #{resblock1_forward.6}
  #allocation0 [shape = 'u32[]', space=smem, size = 0x4, offset = 0x4, fixed_abs, tag = 'smem constant byte address 0x4 - core index']
  #allocation1 [shape = 'u32[144,128]{1,0:T(1,128)}', space=vmem, size = 0x12000, scoped, tag = 'internal scratch']
  #allocation2 [shape = 'f32[2,258,128]{2,1,0:T(8,128)}', space=vmem, size = 0x42000, scoped, tag = 'scratch operand']
  #allocation3 [shape = 's32[2]{0}', space=sflag, size = 0x8, scoped, tag = 'scratch operand']
  #allocation4 [shape = 's32[]', space=sflag, size = 0x4, offset = 0, fixed_abs, tag = 'sflag constant byte address 0x0 - dummy sync flag']
  #allocation5 [shape = 's32[]', space=sflag, size = 0x4, offset = 0, fixed_abs, tag = 'sflag constant byte address 0x0 - dummy sync flag']
  %s0 = inlined_call_operand.vmem [shape: f32[2,770,128], index: 0, kind: input, shape index: {}]
  %s1 = inlined_call_operand.vmem [shape: bf16[3,128,128], index: 1, kind: input, shape index: {}]
  %s2 = inlined_call_operand.vmem [shape: f32[1,128], index: 2, kind: input, shape index: {}]
  %s3 = inlined_call_operand.vmem [shape: f32[2,768,128], index: 3, kind: output, shape index: {}]
  %s4 = sld [smem:[#allocation0]]
  $region123: #{resblock1_forward.6} parent=0
    _
  %s6 = ssub.s32 1, %s4
  %s7 = scalar_select 0, %s6, %s4
  loop: start=0, step=1, limit=8
  $region2: #{resblock1_forward.6} parent=0 // loop_pre_header
    _
  $region3: #{resblock1_forward.6} parent=0 // loop_header
    %s9 = sphi 0, %s13
    %p10 = scmp.ge.s32.totalorder %s9, 8
    %s16 = sphi 0, %s28
    %s17 = sphi 0, %s24
    %s18 = sphi 0, %s16
    %s19 = sphi 0, %s17
    %s20 = sphi 0, %s18
    %s21 = sphi 0, %s19
    %s29 = sphi 0, %s29
    %s31 = sphi 0, %s29
    %s32 = sphi 0, %s31
    %s46 = sphi 0, %s32
    %s50 = sphi 0, %s50
    %s52 = sphi 0, %s50
    %s53 = sphi 0, %s52
    %s67 = sphi 0, %s53
    %s75 = sphi 0, %s77
    %s78 = sphi 0, %s75
    %s79 = sphi 0, %s78
    %s95 = sphi 0, %s79
  $region4: #{resblock1_forward.6} parent=0 // loop_header_branch
    %12 = sbr.rel (%p10) target = $region8
  $region5: #{resblock1_forward.6} parent=0 // loop_body
    %s14 = ssub.s32 %s9, 1
    %s15 = ssub.s32 %s9, 2
    %s22 = sadd.s32 1, %s17
    %p23 = scmp.ge.s32.totalorder %s22, 3
    %s24 = scalar_select %p23, 0, %s22
    %s25 = sadd.s32 1, %s16
    %s26 = scalar_select %p23, %s25, %s16
    %p27 = scmp.ge.s32.totalorder %s26, 2
    %s28 = scalar_select %p27, 0, %s26
    %s30 = sadd.s32 %s29, 1
    %p33 = scmp.eq.s32.totalorder %s9, 5
    %p34 = scmp.ne.s32.totalorder %s29, %s31
    %p35 = scmp.eq.s32.totalorder %s9, 0
    %p36 = por %p34, %p35
    %p37 = scmp.ne.s32.totalorder %s29, %s31
    %p38 = scmp.eq.s32.totalorder %s14, 5
    %p39 = por %p37, %p38
    %p40 = scmp.ne.s32.totalorder %s31, %s32
    %p41 = scmp.eq.s32.totalorder %s14, 0
    %p42 = por %p40, %p41
    %p43 = scmp.ne.s32.totalorder %s31, %s32
    %p44 = scmp.eq.s32.totalorder %s15, 5
    %p45 = por %p43, %p44
    %p47 = scmp.ne.s32.totalorder %s32, %s46
    %p48 = scmp.eq.s32.totalorder %s15, 0
    %p49 = por %p47, %p48
    %s51 = sadd.s32 %s50, 1
    %p54 = scmp.eq.s32.totalorder %s9, 5
    %p55 = scmp.ne.s32.totalorder %s50, %s52
    %p56 = scmp.eq.s32.totalorder %s9, 0
    %p57 = por %p55, %p56
    %p58 = scmp.ne.s32.totalorder %s50, %s52
    %p59 = scmp.eq.s32.totalorder %s14, 5
    %p60 = por %p58, %p59
    %p61 = scmp.ne.s32.totalorder %s52, %s53
    %p62 = scmp.eq.s32.totalorder %s14, 0
    %p63 = por %p61, %p62
    %p64 = scmp.ne.s32.totalorder %s52, %s53
    %p65 = scmp.eq.s32.totalorder %s15, 5
    %p66 = por %p64, %p65
    %p68 = scmp.ne.s32.totalorder %s53, %s67
    %p69 = scmp.eq.s32.totalorder %s15, 0
    %p70 = por %p68, %p69
    %s71 = ssub.s32 %s16, %s28
    %s72 = ssub.s32 %s17, %s24
    %s73 = sor.u32 %s71, %s72
    %p74 = scmp.eq.s32.totalorder %s73, 0
    %s76 = sadd.s32 %s75, 1
    %s77 = scalar_select %p74, %s75, %s76
    %p80 = pneg %p74
    %p81 = scmp.eq.s32.totalorder %s9, 5
    %p82 = por %p80, %p81
    %p83 = scmp.ne.s32.totalorder %s75, %s78
    %p84 = scmp.eq.s32.totalorder %s9, 0
    %p85 = por %p83, %p84
    %p86 = scmp.ne.s32.totalorder %s75, %s78
    %p87 = scmp.eq.s32.totalorder %s14, 5
    %p88 = por %p86, %p87
    %p89 = scmp.ne.s32.totalorder %s78, %s79
    %p90 = scmp.eq.s32.totalorder %s14, 0
    %p91 = por %p89, %p90
    %p92 = scmp.ne.s32.totalorder %s78, %s79
    %p93 = scmp.eq.s32.totalorder %s15, 5
    %p94 = por %p92, %p93
    %p96 = scmp.ne.s32.totalorder %s79, %s95
    %p97 = scmp.eq.s32.totalorder %s15, 0
    %p98 = por %p96, %p97
    %p99 = scmp.le.s32.totalorder 1, %s9
    %p100 = scmp.lt.s32.totalorder %s9, 7
    %p101 = pnand %p99, %p100
    %p102 = pneg %p101
    // Predicated region
    $region9: #{resblock1_forward.6} parent=5 // pred_check
      _
    $region10: #{resblock1_forward.6} parent=5 // pred_check_branch
      %104 = sbr.rel (%p101) target = $region12
    $region11: #{resblock1_forward.6} parent=5 // pred_region
      %s105 = ssub.s32 %s9, 1
      // Predicated region
      $region13: #{resblock1_forward.6} parent=11 // pred_check
        %p106 = pneg %p42
      $region14: #{resblock1_forward.6} parent=11 // pred_check_branch
        %108 = sbr.rel (%p106) target = $region16
      $region15: #{resblock1_forward.6} parent=11 // pred_region
        _
      $region16: #{resblock1_forward.6} parent=11 // pred_fallthru
        _
      // Predicated region
      $region17: #{resblock1_forward.6} parent=11 // pred_check
        %p109 = pneg %p63
      $region18: #{resblock1_forward.6} parent=11 // pred_check_branch
        %111 = sbr.rel (%p109) target = $region20
      $region19: #{resblock1_forward.6} parent=11 // pred_region
        _
      $region20: #{resblock1_forward.6} parent=11 // pred_fallthru
        _
    $region12: #{resblock1_forward.6} parent=5 // pred_fallthru
      _
    %p112 = scmp.lt.s32.totalorder %s9, 6
    // Predicated region
    $region21: #{resblock1_forward.6} parent=5 // pred_check
      %p113 = pneg %p112
    $region22: #{resblock1_forward.6} parent=5 // pred_check_branch
      %115 = sbr.rel (%p113) target = $region24
    $region23: #{resblock1_forward.6} parent=5 // pred_region
      _
    $region24: #{resblock1_forward.6} parent=5 // pred_fallthru
      _
    %p116 = scmp.le.s32.totalorder 1, %s9
    %p117 = scmp.lt.s32.totalorder %s9, 7
    %p118 = pnand %p116, %p117
    %p119 = pneg %p118
    // Predicated region
    $region25: #{resblock1_forward.6} parent=5 // pred_check
      _
    $region26: #{resblock1_forward.6} parent=5 // pred_check_branch
      %121 = sbr.rel (%p118) target = $region28
    $region27: #{resblock1_forward.6} parent=5 // pred_region
      %s122 = ssub.s32 %s9, 1
      %p123 = pneg %p42
      %p124 = pneg %p39
      %p125 = pneg %p63
      %p126 = pneg %p60
      %p127 = pneg %p91
      %p128 = pneg %p88
      %s129 = smul.u32 32, %s19
      %p130 = scmp.lt.s32.totalorder %s18, 1
      %s131 = scalar_select %p130, %s18, 1
      %p132 = scmp.lt.s32.totalorder %s129, 95
      %s133 = scalar_select %p132, %s129, 95
      %s134 = smul.addr %s131, 96
      %s135 = sadd.s32 %s133, %s134
      %s136 = smul.addr %s135, 8
      %s137 = scalar_lea.vmem %s3, %s136
      %s138 = smul.u32 32, %s19
      %p139 = scmp.lt.s32.totalorder %s18, 1
      %s140 = scalar_select %p139, %s18, 1
      %p141 = scmp.lt.s32.totalorder %s138, 95
      %s142 = scalar_select %p141, %s138, 95
      %s143 = smul.addr %s140, 96
      %s144 = sadd.s32 %s142, %s143
      %s145 = smul.addr %s144, 8
      %s146 = scalar_lea.vmem %s3, %s145
      %s147 = smul.u32 32, %s19
      %p149 = scmp.eq.s32.totalorder %s19, 0
      // Predicated region
      $region29: #{resblock1_forward.6} parent=27 // pred_check
        %p150 = pneg %p149
      $region30: #{resblock1_forward.6} parent=27 // pred_check_branch
        %152 = sbr.rel (%p150) target = $region32
      $region31: #{resblock1_forward.6} parent=27 // pred_region
        %s153 = smul.u32 %s18, 776
        %s154 = sadd.s32 0, %s153
        %s155 = scalar_lea.vmem %s0, %s154
        %p157 = scmp.lt.u32.totalorder 258, 8
        %p158 = pneg %p157
        // Predicated region
        $region33: #{resblock1_forward.6} parent=31 // pred_check
          _
        $region34: #{resblock1_forward.6} parent=31 // pred_check_branch
          %160 = sbr.rel (%p157) target = $region36
        $region35: #{resblock1_forward.6} parent=31 // pred_region
          %s175 = sand.u32 258, 7
          %p176 = scmp.eq.s32.totalorder %s175, 0
          %p177 = pneg %p176
          // Predicated region
          $region48: #{resblock1_forward.6} parent=35 // pred_check
            _
          $region49: #{resblock1_forward.6} parent=35 // pred_check_branch
            %179 = sbr.rel (%p176) target = $region51
          $region50: #{resblock1_forward.6} parent=35 // pred_region
            %s180 = sand.u32 258, 7
            %s181 = ssub.s32 258, %s180
            %s182 = scalar_lea.vmem %s155, %s181
            %s183 = ssub.s32 258, %s180
            %s184 = scalar_lea.vmem [#allocation2], %s183
            loop: start=0, step=1, limit=1
            $region52: #{resblock1_forward.6} parent=50 // loop_pre_header
              _
            $region53: #{resblock1_forward.6} parent=50 // loop_header
              %s186 = sphi 0, %s190
              %p187 = scmp.ge.s32.totalorder %s186, 1
              %s191 = sphi %s155, %s155
              %s192 = sphi [#allocation2], [#allocation2]
            $region54: #{resblock1_forward.6} parent=50 // loop_header_branch
              %189 = sbr.rel (%p187) target = $region58
            $region55: #{resblock1_forward.6} parent=50 // loop_body
              %v193 = vld [vmem:[%s191] sm:$0xff]
              %194 = vst [vmem:[%s192] sm:$0xff] %v193
              %v195 = vld [vmem:[%s191 + $0x8] sm:$0xff]
              %196 = vst [vmem:[%s192 + $0x8] sm:$0xff] %v195
              %v197 = vld [vmem:[%s191 + $0x10] sm:$0xff]
              %198 = vst [vmem:[%s192 + $0x10] sm:$0xff] %v197
              %v199 = vld [vmem:[%s191 + $0x18] sm:$0xff]
              %200 = vst [vmem:[%s192 + $0x18] sm:$0xff] %v199
              %v201 = vld [vmem:[%s191 + $0x20] sm:$0xff]
              %202 = vst [vmem:[%s192 + $0x20] sm:$0xff] %v201
              %v203 = vld [vmem:[%s191 + $0x28] sm:$0xff]
              %204 = vst [vmem:[%s192 + $0x28] sm:$0xff] %v203
              %v205 = vld [vmem:[%s191 + $0x30] sm:$0xff]
              %206 = vst [vmem:[%s192 + $0x30] sm:$0xff] %v205
              %v207 = vld [vmem:[%s191 + $0x38] sm:$0xff]
              %208 = vst [vmem:[%s192 + $0x38] sm:$0xff] %v207
              %v209 = vld [vmem:[%s191 + $0x40] sm:$0xff]
              %210 = vst [vmem:[%s192 + $0x40] sm:$0xff] %v209
              %v211 = vld [vmem:[%s191 + $0x48] sm:$0xff]
              %212 = vst [vmem:[%s192 + $0x48] sm:$0xff] %v211
              %v213 = vld [vmem:[%s191 + $0x50] sm:$0xff]
              %214 = vst [vmem:[%s192 + $0x50] sm:$0xff] %v213
              %v215 = vld [vmem:[%s191 + $0x58] sm:$0xff]
              %216 = vst [vmem:[%s192 + $0x58] sm:$0xff] %v215
              %v217 = vld [vmem:[%s191 + $0x60] sm:$0xff]
              %218 = vst [vmem:[%s192 + $0x60] sm:$0xff] %v217
              %v219 = vld [vmem:[%s191 + $0x68] sm:$0xff]
              %220 = vst [vmem:[%s192 + $0x68] sm:$0xff] %v219
              %v221 = vld [vmem:[%s191 + $0x70] sm:$0xff]
              %222 = vst [vmem:[%s192 + $0x70] sm:$0xff] %v221
              %v223 = vld [vmem:[%s191 + $0x78] sm:$0xff]
              %224 = vst [vmem:[%s192 + $0x78] sm:$0xff] %v223
              %v225 = vld [vmem:[%s191 + $0x80] sm:$0xff]
              %226 = vst [vmem:[%s192 + $0x80] sm:$0xff] %v225
              %v227 = vld [vmem:[%s191 + $0x88] sm:$0xff]
              %228 = vst [vmem:[%s192 + $0x88] sm:$0xff] %v227
              %v229 = vld [vmem:[%s191 + $0x90] sm:$0xff]
              %230 = vst [vmem:[%s192 + $0x90] sm:$0xff] %v229
              %v231 = vld [vmem:[%s191 + $0x98] sm:$0xff]
              %232 = vst [vmem:[%s192 + $0x98] sm:$0xff] %v231
              %v233 = vld [vmem:[%s191 + $0xa0] sm:$0xff]
              %234 = vst [vmem:[%s192 + $0xa0] sm:$0xff] %v233
              %v235 = vld [vmem:[%s191 + $0xa8] sm:$0xff]
              %236 = vst [vmem:[%s192 + $0xa8] sm:$0xff] %v235
              %v237 = vld [vmem:[%s191 + $0xb0] sm:$0xff]
              %238 = vst [vmem:[%s192 + $0xb0] sm:$0xff] %v237
              %v239 = vld [vmem:[%s191 + $0xb8] sm:$0xff]
              %240 = vst [vmem:[%s192 + $0xb8] sm:$0xff] %v239
              %v241 = vld [vmem:[%s191 + $0xc0] sm:$0xff]
              %242 = vst [vmem:[%s192 + $0xc0] sm:$0xff] %v241
              %v243 = vld [vmem:[%s191 + $0xc8] sm:$0xff]
              %244 = vst [vmem:[%s192 + $0xc8] sm:$0xff] %v243
              %v245 = vld [vmem:[%s191 + $0xd0] sm:$0xff]
              %246 = vst [vmem:[%s192 + $0xd0] sm:$0xff] %v245
              %v247 = vld [vmem:[%s191 + $0xd8] sm:$0xff]
              %248 = vst [vmem:[%s192 + $0xd8] sm:$0xff] %v247
              %v249 = vld [vmem:[%s191 + $0xe0] sm:$0xff]
              %250 = vst [vmem:[%s192 + $0xe0] sm:$0xff] %v249
              %v251 = vld [vmem:[%s191 + $0xe8] sm:$0xff]
              %252 = vst [vmem:[%s192 + $0xe8] sm:$0xff] %v251
              %v253 = vld [vmem:[%s191 + $0xf0] sm:$0xff]
              %254 = vst [vmem:[%s192 + $0xf0] sm:$0xff] %v253
              %v255 = vld [vmem:[%s191 + $0xf8] sm:$0xff]
              %256 = vst [vmem:[%s192 + $0xf8] sm:$0xff] %v255
            $region56: #{resblock1_forward.6} parent=50 // loop_footer
              %s190 = sadd.s32 1, %s186
            $region57: #{resblock1_forward.6} parent=50 // loop_footer_branch
              %185 = sbr.rel target = $region53
            $region58: #{resblock1_forward.6} parent=50 // loop_exit
              _
            %s257 = sshllo.u32 0, %s180
            loop: start=0, step=1, limit=1
            $region59: #{resblock1_forward.6} parent=50 // loop_pre_header
              _
            $region60: #{resblock1_forward.6} parent=50 // loop_header
              %s259 = sphi 0, %s263
              %p260 = scmp.ge.s32.totalorder %s259, 1
              %s264 = sphi %s182, %s182
              %s265 = sphi %s184, %s184
            $region61: #{resblock1_forward.6} parent=50 // loop_header_branch
              %262 = sbr.rel (%p260) target = $region65
            $region62: #{resblock1_forward.6} parent=50 // loop_body
              %v266 = vld [vmem:[%s264] sm:%s257]
              %267 = vst [vmem:[%s265] sm:%s257] %v266
            $region63: #{resblock1_forward.6} parent=50 // loop_footer
              %s263 = sadd.s32 1, %s259
            $region64: #{resblock1_forward.6} parent=50 // loop_footer_branch
              %258 = sbr.rel target = $region60
            $region65: #{resblock1_forward.6} parent=50 // loop_exit
              _
          $region51: #{resblock1_forward.6} parent=35 // pred_fallthru
            _
        $region36: #{resblock1_forward.6} parent=31 // pred_fallthru
          _
        // Predicated region
        $region37: #{resblock1_forward.6} parent=31 // pred_check
          %p161 = pneg %p157
        $region38: #{resblock1_forward.6} parent=31 // pred_check_branch
          %163 = sbr.rel (%p161) target = $region40
        $region39: #{resblock1_forward.6} parent=31 // pred_region
          %s164 = sshllo.u32 0, 258
          loop: start=0, step=1, limit=1
          $region41: #{resblock1_forward.6} parent=39 // loop_pre_header
            _
          $region42: #{resblock1_forward.6} parent=39 // loop_header
            %s166 = sphi 0, %s170
            %p167 = scmp.ge.s32.totalorder %s166, 1
            %s171 = sphi %s155, %s155
            %s172 = sphi [#allocation2], [#allocation2]
          $region43: #{resblock1_forward.6} parent=39 // loop_header_branch
            %169 = sbr.rel (%p167) target = $region47
          $region44: #{resblock1_forward.6} parent=39 // loop_body
            %v173 = vld [vmem:[%s171] sm:%s164]
            %174 = vst [vmem:[%s172] sm:%s164] %v173
          $region45: #{resblock1_forward.6} parent=39 // loop_footer
            %s170 = sadd.s32 1, %s166
          $region46: #{resblock1_forward.6} parent=39 // loop_footer_branch
            %165 = sbr.rel target = $region42
          $region47: #{resblock1_forward.6} parent=39 // loop_exit
            _
        $region40: #{resblock1_forward.6} parent=31 // pred_fallthru
          _
        // Predicated region
        $region66: #{resblock1_forward.6} parent=31 // pred_check
          _
        $region67: #{resblock1_forward.6} parent=31 // pred_check_branch
          %270 = sbr.rel (0) target = $region69
        $region68: #{resblock1_forward.6} parent=31 // pred_region
          %271 = vsyncadd [#allocation3], 4128
        $region69: #{resblock1_forward.6} parent=31 // pred_fallthru
          _
      $region32: #{resblock1_forward.6} parent=27 // pred_fallthru
        _
      %s272 = sadd.s32 %s19, 1
      %p273 = scmp.lt.s32.totalorder %s272, 3
      // Predicated region
      $region70: #{resblock1_forward.6} parent=27 // pred_check
        %p274 = pneg %p273
      $region71: #{resblock1_forward.6} parent=27 // pred_check_branch
        %276 = sbr.rel (%p274) target = $region73
      $region72: #{resblock1_forward.6} parent=27 // pred_region
        %p277 = scmp.lt.s32.totalorder %s272, 0
        %s278 = ssub.s32 0, %s272
        %s279 = scalar_select %p277, %s278, %s272
        %s280 = sand.u32 %s279, 1
        %s281 = ssub.s32 0, %s280
        %s282 = scalar_select %p277, %s281, %s280
        %p283 = scmp.ne.s32.totalorder %s282, 0
        %p284 = scmp.lt.s32.totalorder %s282, 0
        %p285 = pnand %p284, %p283
        %p286 = pneg %p285
        %s287 = sadd.s32 %s282, 2
        %s288 = scalar_select %p286, %s287, %s282
        %s289 = smul.u32 %s272, 256
        %s290 = smul.u32 %s18, 776
        %s291 = sadd.s32 %s289, %s290
        %s292 = scalar_lea.vmem %s0, %s291
        %s293 = smul.u32 %s288, 264
        %s294 = scalar_lea.vmem [#allocation2], %s293
        %s295 = scalar_lea.sflag [#allocation3], %s288
        %p297 = scmp.lt.u32.totalorder 258, 8
        %p298 = pneg %p297
        // Predicated region
        $region74: #{resblock1_forward.6} parent=72 // pred_check
          _
        $region75: #{resblock1_forward.6} parent=72 // pred_check_branch
          %300 = sbr.rel (%p297) target = $region77
        $region76: #{resblock1_forward.6} parent=72 // pred_region
          %s315 = sand.u32 258, 7
          %p316 = scmp.eq.s32.totalorder %s315, 0
          %p317 = pneg %p316
          // Predicated region
          $region89: #{resblock1_forward.6} parent=76 // pred_check
            _
          $region90: #{resblock1_forward.6} parent=76 // pred_check_branch
            %319 = sbr.rel (%p316) target = $region92
          $region91: #{resblock1_forward.6} parent=76 // pred_region
            %s320 = sand.u32 258, 7
            %s321 = ssub.s32 258, %s320
            %s322 = scalar_lea.vmem %s292, %s321
            %s323 = ssub.s32 258, %s320
            %s324 = scalar_lea.vmem %s294, %s323 [#allocation2]
            loop: start=0, step=1, limit=1
            $region93: #{resblock1_forward.6} parent=91 // loop_pre_header
              _
            $region94: #{resblock1_forward.6} parent=91 // loop_header
              %s326 = sphi 0, %s330
              %p327 = scmp.ge.s32.totalorder %s326, 1
              %s331 = sphi %s292, %s292
              %s332 = sphi %s294, %s294
            $region95: #{resblock1_forward.6} parent=91 // loop_header_branch
              %329 = sbr.rel (%p327) target = $region99
            $region96: #{resblock1_forward.6} parent=91 // loop_body
              %v333 = vld [vmem:[%s331] sm:$0xff]
              %334 = vst [vmem:[%s332] sm:$0xff] %v333
              %v335 = vld [vmem:[%s331 + $0x8] sm:$0xff]
              %336 = vst [vmem:[%s332 + $0x8] sm:$0xff] %v335
              %v337 = vld [vmem:[%s331 + $0x10] sm:$0xff]
              %338 = vst [vmem:[%s332 + $0x10] sm:$0xff] %v337
              %v339 = vld [vmem:[%s331 + $0x18] sm:$0xff]
              %340 = vst [vmem:[%s332 + $0x18] sm:$0xff] %v339
              %v341 = vld [vmem:[%s331 + $0x20] sm:$0xff]
              %342 = vst [vmem:[%s332 + $0x20] sm:$0xff] %v341
              %v343 = vld [vmem:[%s331 + $0x28] sm:$0xff]
              %344 = vst [vmem:[%s332 + $0x28] sm:$0xff] %v343
              %v345 = vld [vmem:[%s331 + $0x30] sm:$0xff]
              %346 = vst [vmem:[%s332 + $0x30] sm:$0xff] %v345
              %v347 = vld [vmem:[%s331 + $0x38] sm:$0xff]
              %348 = vst [vmem:[%s332 + $0x38] sm:$0xff] %v347
              %v349 = vld [vmem:[%s331 + $0x40] sm:$0xff]
              %350 = vst [vmem:[%s332 + $0x40] sm:$0xff] %v349
              %v351 = vld [vmem:[%s331 + $0x48] sm:$0xff]
              %352 = vst [vmem:[%s332 + $0x48] sm:$0xff] %v351
              %v353 = vld [vmem:[%s331 + $0x50] sm:$0xff]
              %354 = vst [vmem:[%s332 + $0x50] sm:$0xff] %v353
              %v355 = vld [vmem:[%s331 + $0x58] sm:$0xff]
              %356 = vst [vmem:[%s332 + $0x58] sm:$0xff] %v355
              %v357 = vld [vmem:[%s331 + $0x60] sm:$0xff]
              %358 = vst [vmem:[%s332 + $0x60] sm:$0xff] %v357
              %v359 = vld [vmem:[%s331 + $0x68] sm:$0xff]
              %360 = vst [vmem:[%s332 + $0x68] sm:$0xff] %v359
              %v361 = vld [vmem:[%s331 + $0x70] sm:$0xff]
              %362 = vst [vmem:[%s332 + $0x70] sm:$0xff] %v361
              %v363 = vld [vmem:[%s331 + $0x78] sm:$0xff]
              %364 = vst [vmem:[%s332 + $0x78] sm:$0xff] %v363
              %v365 = vld [vmem:[%s331 + $0x80] sm:$0xff]
              %366 = vst [vmem:[%s332 + $0x80] sm:$0xff] %v365
              %v367 = vld [vmem:[%s331 + $0x88] sm:$0xff]
              %368 = vst [vmem:[%s332 + $0x88] sm:$0xff] %v367
              %v369 = vld [vmem:[%s331 + $0x90] sm:$0xff]
              %370 = vst [vmem:[%s332 + $0x90] sm:$0xff] %v369
              %v371 = vld [vmem:[%s331 + $0x98] sm:$0xff]
              %372 = vst [vmem:[%s332 + $0x98] sm:$0xff] %v371
              %v373 = vld [vmem:[%s331 + $0xa0] sm:$0xff]
              %374 = vst [vmem:[%s332 + $0xa0] sm:$0xff] %v373
              %v375 = vld [vmem:[%s331 + $0xa8] sm:$0xff]
              %376 = vst [vmem:[%s332 + $0xa8] sm:$0xff] %v375
              %v377 = vld [vmem:[%s331 + $0xb0] sm:$0xff]
              %378 = vst [vmem:[%s332 + $0xb0] sm:$0xff] %v377
              %v379 = vld [vmem:[%s331 + $0xb8] sm:$0xff]
              %380 = vst [vmem:[%s332 + $0xb8] sm:$0xff] %v379
              %v381 = vld [vmem:[%s331 + $0xc0] sm:$0xff]
              %382 = vst [vmem:[%s332 + $0xc0] sm:$0xff] %v381
              %v383 = vld [vmem:[%s331 + $0xc8] sm:$0xff]
              %384 = vst [vmem:[%s332 + $0xc8] sm:$0xff] %v383
              %v385 = vld [vmem:[%s331 + $0xd0] sm:$0xff]
              %386 = vst [vmem:[%s332 + $0xd0] sm:$0xff] %v385
              %v387 = vld [vmem:[%s331 + $0xd8] sm:$0xff]
              %388 = vst [vmem:[%s332 + $0xd8] sm:$0xff] %v387
              %v389 = vld [vmem:[%s331 + $0xe0] sm:$0xff]
              %390 = vst [vmem:[%s332 + $0xe0] sm:$0xff] %v389
              %v391 = vld [vmem:[%s331 + $0xe8] sm:$0xff]
              %392 = vst [vmem:[%s332 + $0xe8] sm:$0xff] %v391
              %v393 = vld [vmem:[%s331 + $0xf0] sm:$0xff]
              %394 = vst [vmem:[%s332 + $0xf0] sm:$0xff] %v393
              %v395 = vld [vmem:[%s331 + $0xf8] sm:$0xff]
              %396 = vst [vmem:[%s332 + $0xf8] sm:$0xff] %v395
            $region97: #{resblock1_forward.6} parent=91 // loop_footer
              %s330 = sadd.s32 1, %s326
            $region98: #{resblock1_forward.6} parent=91 // loop_footer_branch
              %325 = sbr.rel target = $region94
            $region99: #{resblock1_forward.6} parent=91 // loop_exit
              _
            %s397 = sshllo.u32 0, %s320
            loop: start=0, step=1, limit=1
            $region100: #{resblock1_forward.6} parent=91 // loop_pre_header
              _
            $region101: #{resblock1_forward.6} parent=91 // loop_header
              %s399 = sphi 0, %s403
              %p400 = scmp.ge.s32.totalorder %s399, 1
              %s404 = sphi %s322, %s322
              %s405 = sphi %s324, %s324
            $region102: #{resblock1_forward.6} parent=91 // loop_header_branch
              %402 = sbr.rel (%p400) target = $region106
            $region103: #{resblock1_forward.6} parent=91 // loop_body
              %v406 = vld [vmem:[%s404] sm:%s397]
              %407 = vst [vmem:[%s405] sm:%s397] %v406
            $region104: #{resblock1_forward.6} parent=91 // loop_footer
              %s403 = sadd.s32 1, %s399
            $region105: #{resblock1_forward.6} parent=91 // loop_footer_branch
              %398 = sbr.rel target = $region101
            $region106: #{resblock1_forward.6} parent=91 // loop_exit
              _
          $region92: #{resblock1_forward.6} parent=76 // pred_fallthru
            _
        $region77: #{resblock1_forward.6} parent=72 // pred_fallthru
          _
        // Predicated region
        $region78: #{resblock1_forward.6} parent=72 // pred_check
          %p301 = pneg %p297
        $region79: #{resblock1_forward.6} parent=72 // pred_check_branch
          %303 = sbr.rel (%p301) target = $region81
        $region80: #{resblock1_forward.6} parent=72 // pred_region
          %s304 = sshllo.u32 0, 258
          loop: start=0, step=1, limit=1
          $region82: #{resblock1_forward.6} parent=80 // loop_pre_header
            _
          $region83: #{resblock1_forward.6} parent=80 // loop_header
            %s306 = sphi 0, %s310
            %p307 = scmp.ge.s32.totalorder %s306, 1
            %s311 = sphi %s292, %s292
            %s312 = sphi %s294, %s294
          $region84: #{resblock1_forward.6} parent=80 // loop_header_branch
            %309 = sbr.rel (%p307) target = $region88
          $region85: #{resblock1_forward.6} parent=80 // loop_body
            %v313 = vld [vmem:[%s311] sm:%s304]
            %314 = vst [vmem:[%s312] sm:%s304] %v313
          $region86: #{resblock1_forward.6} parent=80 // loop_footer
            %s310 = sadd.s32 1, %s306
          $region87: #{resblock1_forward.6} parent=80 // loop_footer_branch
            %305 = sbr.rel target = $region83
          $region88: #{resblock1_forward.6} parent=80 // loop_exit
            _
        $region81: #{resblock1_forward.6} parent=72 // pred_fallthru
          _
        // Predicated region
        $region107: #{resblock1_forward.6} parent=72 // pred_check
          _
        $region108: #{resblock1_forward.6} parent=72 // pred_check_branch
          %410 = sbr.rel (0) target = $region110
        $region109: #{resblock1_forward.6} parent=72 // pred_region
          %411 = vsyncadd %s295, 4128
        $region110: #{resblock1_forward.6} parent=72 // pred_fallthru
          _
      $region73: #{resblock1_forward.6} parent=27 // pred_fallthru
        _
      %p412 = scmp.lt.s32.totalorder %s19, 0
      %s413 = ssub.s32 0, %s19
      %s414 = scalar_select %p412, %s413, %s19
      %s415 = sand.u32 %s414, 1
      %s416 = ssub.s32 0, %s415
      %s417 = scalar_select %p412, %s416, %s415
      %p418 = scmp.ne.s32.totalorder %s417, 0
      %p419 = scmp.lt.s32.totalorder %s417, 0
      %p420 = pnand %p419, %p418
      %p421 = pneg %p420
      %s422 = sadd.s32 %s417, 2
      %s423 = scalar_select %p421, %s422, %s417
      %s424 = smul.u32 %s19, 256
      %s425 = smul.u32 %s423, 264
      %s426 = scalar_lea.vmem [#allocation2], %s425
      %s427 = scalar_lea.sflag [#allocation3], %s423
      %s428 = smul.u32 258, 1
      %s429 = sshll.u32 %s428, 4
      %430 = dma.done %s427, %s429
      %v431 = vld [vmem:[%s426] sm:$0xff]
      %v432 = vld [vmem:[%s426 + $0x8] sm:$0xff]
      %v433 = vld [vmem:[%s426 + $0x10] sm:$0xff]
      %v434 = vld [vmem:[%s426 + $0x18] sm:$0xff]
      %v435 = vld [vmem:[%s426 + $0x20] sm:$0xff]
      %v436 = vld [vmem:[%s426 + $0x28] sm:$0xff]
      %v437 = vld [vmem:[%s426 + $0x30] sm:$0xff]
      %v438 = vld [vmem:[%s426 + $0x38] sm:$0xff]
      %v439 = vld [vmem:[%s426 + $0x40] sm:$0xff]
      %v440 = vld [vmem:[%s426 + $0x48] sm:$0xff]
      %v441 = vld [vmem:[%s426 + $0x50] sm:$0xff]
      %v442 = vld [vmem:[%s426 + $0x58] sm:$0xff]
      %v443 = vld [vmem:[%s426 + $0x60] sm:$0xff]
      %v444 = vld [vmem:[%s426 + $0x68] sm:$0xff]
      %v445 = vld [vmem:[%s426 + $0x70] sm:$0xff]
      %v446 = vld [vmem:[%s426 + $0x78] sm:$0xff]
      %v447 = vld [vmem:[%s426 + $0x80] sm:$0xff]
      %v448 = vld [vmem:[%s426 + $0x88] sm:$0xff]
      %v449 = vld [vmem:[%s426 + $0x90] sm:$0xff]
      %v450 = vld [vmem:[%s426 + $0x98] sm:$0xff]
      %v451 = vld [vmem:[%s426 + $0xa0] sm:$0xff]
      %v452 = vld [vmem:[%s426 + $0xa8] sm:$0xff]
      %v453 = vld [vmem:[%s426 + $0xb0] sm:$0xff]
      %v454 = vld [vmem:[%s426 + $0xb8] sm:$0xff]
      %v455 = vld [vmem:[%s426 + $0xc0] sm:$0xff]
      %v456 = vld [vmem:[%s426 + $0xc8] sm:$0xff]
      %v457 = vld [vmem:[%s426 + $0xd0] sm:$0xff]
      %v458 = vld [vmem:[%s426 + $0xd8] sm:$0xff]
      %v459 = vld [vmem:[%s426 + $0xe0] sm:$0xff]
      %v460 = vld [vmem:[%s426 + $0xe8] sm:$0xff]
      %v461 = vld [vmem:[%s426 + $0xf0] sm:$0xff]
      %v462 = vld [vmem:[%s426 + $0xf8] sm:$0xff]
      %v463 = vld [vmem:[%s426 + $0x100] sm:$0x3]
      %vm464 = vcmp.ge.f32.partialorder %v431, 0.0
      %vm465 = vcmp.ge.f32.partialorder %v432, 0.0
      %vm466 = vcmp.ge.f32.partialorder %v433, 0.0
      %vm467 = vcmp.ge.f32.partialorder %v434, 0.0
      %vm468 = vcmp.ge.f32.partialorder %v435, 0.0
      %vm469 = vcmp.ge.f32.partialorder %v436, 0.0
      %vm470 = vcmp.ge.f32.partialorder %v437, 0.0
      %vm471 = vcmp.ge.f32.partialorder %v438, 0.0
      %vm472 = vcmp.ge.f32.partialorder %v439, 0.0
      %vm473 = vcmp.ge.f32.partialorder %v440, 0.0
      %vm474 = vcmp.ge.f32.partialorder %v441, 0.0
      %vm475 = vcmp.ge.f32.partialorder %v442, 0.0
      %vm476 = vcmp.ge.f32.partialorder %v443, 0.0
      %vm477 = vcmp.ge.f32.partialorder %v444, 0.0
      %vm478 = vcmp.ge.f32.partialorder %v445, 0.0
      %vm479 = vcmp.ge.f32.partialorder %v446, 0.0
      %vm480 = vcmp.ge.f32.partialorder %v447, 0.0
      %vm481 = vcmp.ge.f32.partialorder %v448, 0.0
      %vm482 = vcmp.ge.f32.partialorder %v449, 0.0
      %vm483 = vcmp.ge.f32.partialorder %v450, 0.0
      %vm484 = vcmp.ge.f32.partialorder %v451, 0.0
      %vm485 = vcmp.ge.f32.partialorder %v452, 0.0
      %vm486 = vcmp.ge.f32.partialorder %v453, 0.0
      %vm487 = vcmp.ge.f32.partialorder %v454, 0.0
      %vm488 = vcmp.ge.f32.partialorder %v455, 0.0
      %vm489 = vcmp.ge.f32.partialorder %v456, 0.0
      %vm490 = vcmp.ge.f32.partialorder %v457, 0.0
      %vm491 = vcmp.ge.f32.partialorder %v458, 0.0
      %vm492 = vcmp.ge.f32.partialorder %v459, 0.0
      %vm493 = vcmp.ge.f32.partialorder %v460, 0.0
      %vm494 = vcmp.ge.f32.partialorder %v461, 0.0
      %vm495 = vcmp.ge.f32.partialorder %v462, 0.0
      %vm496 = vcmp.ge.f32.partialorder %v463, 0.0
      %v497 = vmul.f32 %v431, 0.1
      %v498 = vmul.f32 %v432, 0.1
      %v499 = vmul.f32 %v433, 0.1
      %v500 = vmul.f32 %v434, 0.1
      %v501 = vmul.f32 %v435, 0.1
      %v502 = vmul.f32 %v436, 0.1
      %v503 = vmul.f32 %v437, 0.1
      %v504 = vmul.f32 %v438, 0.1
      %v505 = vmul.f32 %v439, 0.1
      %v506 = vmul.f32 %v440, 0.1
      %v507 = vmul.f32 %v441, 0.1
      %v508 = vmul.f32 %v442, 0.1
      %v509 = vmul.f32 %v443, 0.1
      %v510 = vmul.f32 %v444, 0.1
      %v511 = vmul.f32 %v445, 0.1
      %v512 = vmul.f32 %v446, 0.1
      %v513 = vmul.f32 %v447, 0.1
      %v514 = vmul.f32 %v448, 0.1
      %v515 = vmul.f32 %v449, 0.1
      %v516 = vmul.f32 %v450, 0.1
      %v517 = vmul.f32 %v451, 0.1
      %v518 = vmul.f32 %v452, 0.1
      %v519 = vmul.f32 %v453, 0.1
      %v520 = vmul.f32 %v454, 0.1
      %v521 = vmul.f32 %v455, 0.1
      %v522 = vmul.f32 %v456, 0.1
      %v523 = vmul.f32 %v457, 0.1
      %v524 = vmul.f32 %v458, 0.1
      %v525 = vmul.f32 %v459, 0.1
      %v526 = vmul.f32 %v460, 0.1
      %v527 = vmul.f32 %v461, 0.1
      %v528 = vmul.f32 %v462, 0.1
      %v529 = vmul.f32 %v463, 0.1
      %v530 = vsel %vm464, %v431, %v497
      %v531 = vsel %vm465, %v432, %v498
      %v532 = vsel %vm466, %v433, %v499
      %v533 = vsel %vm467, %v434, %v500
      %v534 = vsel %vm468, %v435, %v501
      %v535 = vsel %vm469, %v436, %v502
      %v536 = vsel %vm470, %v437, %v503
      %v537 = vsel %vm471, %v438, %v504
      %v538 = vsel %vm472, %v439, %v505
      %v539 = vsel %vm473, %v440, %v506
      %v540 = vsel %vm474, %v441, %v507
      %v541 = vsel %vm475, %v442, %v508
      %v542 = vsel %vm476, %v443, %v509
      %v543 = vsel %vm477, %v444, %v510
      %v544 = vsel %vm478, %v445, %v511
      %v545 = vsel %vm479, %v446, %v512
      %v546 = vsel %vm480, %v447, %v513
      %v547 = vsel %vm481, %v448, %v514
      %v548 = vsel %vm482, %v449, %v515
      %v549 = vsel %vm483, %v450, %v516
      %v550 = vsel %vm484, %v451, %v517
      %v551 = vsel %vm485, %v452, %v518
      %v552 = vsel %vm486, %v453, %v519
      %v553 = vsel %vm487, %v454, %v520
      %v554 = vsel %vm488, %v455, %v521
      %v555 = vsel %vm489, %v456, %v522
      %v556 = vsel %vm490, %v457, %v523
      %v557 = vsel %vm491, %v458, %v524
      %v558 = vsel %vm492, %v459, %v525
      %v559 = vsel %vm493, %v460, %v526
      %v560 = vsel %vm494, %v461, %v527
      %v561 = vsel %vm495, %v462, %v528
      %v562 = vsel %vm496, %v463, %v529
      %v563 = vpack.c.bf16 %v531, %v530
      %v564 = vpack.c.bf16 %v533, %v532
      %v565 = vpack.c.bf16 %v535, %v534
      %v566 = vpack.c.bf16 %v537, %v536
      %v567 = vpack.c.bf16 %v539, %v538
      %v568 = vpack.c.bf16 %v541, %v540
      %v569 = vpack.c.bf16 %v543, %v542
      %v570 = vpack.c.bf16 %v545, %v544
      %v571 = vpack.c.bf16 %v547, %v546
      %v572 = vpack.c.bf16 %v549, %v548
      %v573 = vpack.c.bf16 %v551, %v550
      %v574 = vpack.c.bf16 %v553, %v552
      %v575 = vpack.c.bf16 %v555, %v554
      %v576 = vpack.c.bf16 %v557, %v556
      %v577 = vpack.c.bf16 %v559, %v558
      %v578 = vpack.c.bf16 %v561, %v560
      %v579 = vpack.c.bf16 %v562, %v562
      %v580 = vld [vmem:[%s1] sm:$0xf]
      %v581 = vld [vmem:[%s1 + $0x4] sm:$0xf]
      %v582 = vld [vmem:[%s1 + $0x8] sm:$0xf]
      %v583 = vld [vmem:[%s1 + $0xc] sm:$0xf]
      %v584 = vld [vmem:[%s1 + $0x10] sm:$0xf]
      %v585 = vld [vmem:[%s1 + $0x14] sm:$0xf]
      %v586 = vld [vmem:[%s1 + $0x18] sm:$0xf]
      %v587 = vld [vmem:[%s1 + $0x1c] sm:$0xf]
      %v588 = vld [vmem:[%s1 + $0x20] sm:$0xf]
      %v589 = vld [vmem:[%s1 + $0x24] sm:$0xf]
      %v590 = vld [vmem:[%s1 + $0x28] sm:$0xf]
      %v591 = vld [vmem:[%s1 + $0x2c] sm:$0xf]
      %v592 = vld [vmem:[%s1 + $0x30] sm:$0xf]
      %v593 = vld [vmem:[%s1 + $0x34] sm:$0xf]
      %v594 = vld [vmem:[%s1 + $0x38] sm:$0xf]
      %v595 = vld [vmem:[%s1 + $0x3c] sm:$0xf]
      %s596 = scalar_lea.vmem %s1, 64
      %v597 = vld [vmem:[%s596] sm:$0xf]
      %v598 = vld [vmem:[%s596 + $0x4] sm:$0xf]
      %v599 = vld [vmem:[%s596 + $0x8] sm:$0xf]
      %v600 = vld [vmem:[%s596 + $0xc] sm:$0xf]
      %v601 = vld [vmem:[%s596 + $0x10] sm:$0xf]
      %v602 = vld [vmem:[%s596 + $0x14] sm:$0xf]
      %v603 = vld [vmem:[%s596 + $0x18] sm:$0xf]
      %v604 = vld [vmem:[%s596 + $0x1c] sm:$0xf]
      %v605 = vld [vmem:[%s596 + $0x20] sm:$0xf]
      %v606 = vld [vmem:[%s596 + $0x24] sm:$0xf]
      %v607 = vld [vmem:[%s596 + $0x28] sm:$0xf]
      %v608 = vld [vmem:[%s596 + $0x2c] sm:$0xf]
      %v609 = vld [vmem:[%s596 + $0x30] sm:$0xf]
      %v610 = vld [vmem:[%s596 + $0x34] sm:$0xf]
      %v611 = vld [vmem:[%s596 + $0x38] sm:$0xf]
      %v612 = vld [vmem:[%s596 + $0x3c] sm:$0xf]
      %vm613 = vsmask.f32 7424
      %v615 = vshrl.u32 %v563, 16
      %v617 = vshll.u32 %v563, 16
      %v619 = vrot.slane %v617, 1
      %v620 = vor.u32 %v615, %v619
      %v622 = vshll.u32 %v564, 16
      %v624 = vrot.slane %v622, 1
      %v625 = vsel %vm613, %v620, %v624
      %v626 = vshrl.u32 %v564, 16
      %v628 = vor.u32 %v626, %v624
      %v630 = vshll.u32 %v565, 16
      %v632 = vrot.slane %v630, 1
      %v633 = vsel %vm613, %v628, %v632
      %v634 = vshrl.u32 %v565, 16
      %v636 = vor.u32 %v634, %v632
      %v638 = vshll.u32 %v566, 16
      %v640 = vrot.slane %v638, 1
      %v641 = vsel %vm613, %v636, %v640
      %v642 = vshrl.u32 %v566, 16
      %v644 = vor.u32 %v642, %v640
      %v646 = vshll.u32 %v567, 16
      %v648 = vrot.slane %v646, 1
      %v649 = vsel %vm613, %v644, %v648
      %v650 = vshrl.u32 %v567, 16
      %v652 = vor.u32 %v650, %v648
      %v654 = vshll.u32 %v568, 16
      %v656 = vrot.slane %v654, 1
      %v657 = vsel %vm613, %v652, %v656
      %v658 = vshrl.u32 %v568, 16
      %v660 = vor.u32 %v658, %v656
      %v662 = vshll.u32 %v569, 16
      %v664 = vrot.slane %v662, 1
      %v665 = vsel %vm613, %v660, %v664
      %v666 = vshrl.u32 %v569, 16
      %v668 = vor.u32 %v666, %v664
      %v670 = vshll.u32 %v570, 16
      %v672 = vrot.slane %v670, 1
      %v673 = vsel %vm613, %v668, %v672
      %v674 = vshrl.u32 %v570, 16
      %v676 = vor.u32 %v674, %v672
      %v678 = vshll.u32 %v571, 16
      %v680 = vrot.slane %v678, 1
      %v681 = vsel %vm613, %v676, %v680
      %v682 = vshrl.u32 %v571, 16
      %v684 = vor.u32 %v682, %v680
      %v686 = vshll.u32 %v572, 16
      %v688 = vrot.slane %v686, 1
      %v689 = vsel %vm613, %v684, %v688
      %v690 = vshrl.u32 %v572, 16
      %v692 = vor.u32 %v690, %v688
      %v694 = vshll.u32 %v573, 16
      %v696 = vrot.slane %v694, 1
      %v697 = vsel %vm613, %v692, %v696
      %v698 = vshrl.u32 %v573, 16
      %v700 = vor.u32 %v698, %v696
      %v702 = vshll.u32 %v574, 16
      %v704 = vrot.slane %v702, 1
      %v705 = vsel %vm613, %v700, %v704
      %v706 = vshrl.u32 %v574, 16
      %v708 = vor.u32 %v706, %v704
      %v710 = vshll.u32 %v575, 16
      %v712 = vrot.slane %v710, 1
      %v713 = vsel %vm613, %v708, %v712
      %v714 = vshrl.u32 %v575, 16
      %v716 = vor.u32 %v714, %v712
      %v718 = vshll.u32 %v576, 16
      %v720 = vrot.slane %v718, 1
      %v721 = vsel %vm613, %v716, %v720
      %v722 = vshrl.u32 %v576, 16
      %v724 = vor.u32 %v722, %v720
      %v726 = vshll.u32 %v577, 16
      %v728 = vrot.slane %v726, 1
      %v729 = vsel %vm613, %v724, %v728
      %v730 = vshrl.u32 %v577, 16
      %v732 = vor.u32 %v730, %v728
      %v734 = vshll.u32 %v578, 16
      %v736 = vrot.slane %v734, 1
      %v737 = vsel %vm613, %v732, %v736
      %v738 = vshrl.u32 %v578, 16
      %v740 = vor.u32 %v738, %v736
      %v742 = vshll.u32 %v579, 16
      %v744 = vrot.slane %v742, 1
      %v745 = vsel %vm613, %v740, %v744
      %v778 = vunpack.c.l.b16 %v597
      %v779 = vunpack.c.l.b16 %v598
      %v780 = vunpack.c.l.b16 %v599
      %v781 = vunpack.c.l.b16 %v600
      %v782 = vunpack.c.l.b16 %v601
      %v783 = vunpack.c.l.b16 %v602
      %v784 = vunpack.c.l.b16 %v603
      %v785 = vunpack.c.l.b16 %v604
      %v786 = vunpack.c.l.b16 %v605
      %v787 = vunpack.c.l.b16 %v606
      %v788 = vunpack.c.l.b16 %v607
      %v789 = vunpack.c.l.b16 %v608
      %v790 = vunpack.c.l.b16 %v609
      %v791 = vunpack.c.l.b16 %v610
      %v792 = vunpack.c.l.b16 %v611
      %v793 = vunpack.c.l.b16 %v612
      %v794 = vpack.c.b16 %v779, %v778
      %v795 = vpack.c.b16 %v781, %v780
      %v796 = vpack.c.b16 %v783, %v782
      %v797 = vpack.c.b16 %v785, %v784
      %v798 = vpack.c.b16 %v787, %v786
      %v799 = vpack.c.b16 %v789, %v788
      %v800 = vpack.c.b16 %v791, %v790
      %v801 = vpack.c.b16 %v793, %v792
      %810 = vmatprep.subr.bf16.mxu0 0
      %811 = vmatpush1.bf16.msra.mxu0 %v794
      %812 = vmatprep.subr.bf16.mxu0 0
      %813 = vmatpush1.bf16.msra.mxu0 %v795
      %814 = vmatprep.subr.bf16.mxu0 0
      %815 = vmatpush1.bf16.msra.mxu0 %v796
      %816 = vmatprep.subr.bf16.mxu0 0
      %817 = vmatpush1.bf16.msra.mxu0 %v797
      %818 = vmatprep.subr.bf16.mxu0 0
      %819 = vmatpush1.bf16.msra.mxu0 %v798
      %820 = vmatprep.subr.bf16.mxu0 0
      %821 = vmatpush1.bf16.msra.mxu0 %v799
      %822 = vmatprep.subr.bf16.mxu0 0
      %823 = vmatpush1.bf16.msra.mxu0 %v800
      %824 = vmatprep.subr.bf16.mxu0 0
      %825 = vmatpush1.bf16.msra.mxu0 %v801
      %826 = vmatprep.subr.bf16.mxu0 0
      %827 = vmatpush1.bf16.msra.mxu0 0
      %828 = vmatprep.subr.bf16.mxu0 0
      %829 = vmatpush1.bf16.msra.mxu0 0
      %830 = vmatprep.subr.bf16.mxu0 0
      %831 = vmatpush1.bf16.msra.mxu0 0
      %832 = vmatprep.subr.bf16.mxu0 0
      %833 = vmatpush1.bf16.msra.mxu0 0
      %834 = vmatprep.subr.bf16.mxu0 0
      %835 = vmatpush1.bf16.msra.mxu0 0
      %836 = vmatprep.subr.bf16.mxu0 0
      %837 = vmatpush1.bf16.msra.mxu0 0
      %838 = vmatprep.subr.bf16.mxu0 0
      %839 = vmatpush1.bf16.msra.mxu0 0
      %840 = vmatprep.subr.bf16.mxu0 0
      %841 = vmatpush1.bf16.msra.mxu0 0
      %842 = vmatprep.mubr.bf16.mxu0 0
      %843 = vmatmul.mubr.bf16.gmra.mrb[0].mxu0 %v625
      %v844 = vpop.f32.mrb[0].mxu0
      %v845 = vadd.f32 0.0, %v844
      %v846 = vpop.f32.mrb[0].mxu0
      %v847 = vpop.f32.mrb[0].mxu0
      %v848 = vadd.f32 0.0, %v847
      %v849 = vpop.f32.mrb[0].mxu0
      %850 = vmatprep.mubr.bf16.mxu0 0
      %851 = vmatmul.mubr.bf16.gmra.mrb[0].mxu0 %v633
      %v852 = vpop.f32.mrb[0].mxu0
      %v853 = vadd.f32 0.0, %v852
      %v854 = vpop.f32.mrb[0].mxu0
      %v855 = vpop.f32.mrb[0].mxu0
      %v856 = vadd.f32 0.0, %v855
      %v857 = vpop.f32.mrb[0].mxu0
      %858 = vmatprep.mubr.bf16.mxu0 0
      %859 = vmatmul.mubr.bf16.gmra.mrb[0].mxu0 %v641
      %v860 = vpop.f32.mrb[0].mxu0
      %v861 = vadd.f32 0.0, %v860
      %v862 = vpop.f32.mrb[0].mxu0
      %v863 = vpop.f32.mrb[0].mxu0
      %v864 = vadd.f32 0.0, %v863
      %v865 = vpop.f32.mrb[0].mxu0
      %866 = vmatprep.mubr.bf16.mxu0 0
      %867 = vmatmul.mubr.bf16.gmra.mrb[0].mxu0 %v649
      %v868 = vpop.f32.mrb[0].mxu0
      %v869 = vadd.f32 0.0, %v868
      %v870 = vpop.f32.mrb[0].mxu0
      %v871 = vpop.f32.mrb[0].mxu0
      %v872 = vadd.f32 0.0, %v871
      %v873 = vpop.f32.mrb[0].mxu0
      %874 = vmatprep.mubr.bf16.mxu0 0
      %875 = vmatmul.mubr.bf16.gmra.mrb[0].mxu0 %v657
      %v876 = vpop.f32.mrb[0].mxu0
      %v877 = vadd.f32 0.0, %v876
      %v878 = vpop.f32.mrb[0].mxu0
      %v879 = vpop.f32.mrb[0].mxu0
      %v880 = vadd.f32 0.0, %v879
      %v881 = vpop.f32.mrb[0].mxu0
      %882 = vmatprep.mubr.bf16.mxu0 0
      %883 = vmatmul.mubr.bf16.gmra.mrb[0].mxu0 %v665
      %v884 = vpop.f32.mrb[0].mxu0
      %v885 = vadd.f32 0.0, %v884
      %v886 = vpop.f32.mrb[0].mxu0
      %v887 = vpop.f32.mrb[0].mxu0
      %v888 = vadd.f32 0.0, %v887
      %v889 = vpop.f32.mrb[0].mxu0
      %890 = vmatprep.mubr.bf16.mxu0 0
      %891 = vmatmul.mubr.bf16.gmra.mrb[0].mxu0 %v673
      %v892 = vpop.f32.mrb[0].mxu0
      %v893 = vadd.f32 0.0, %v892
      %v894 = vpop.f32.mrb[0].mxu0
      %v895 = vpop.f32.mrb[0].mxu0
      %v896 = vadd.f32 0.0, %v895
      %v897 = vpop.f32.mrb[0].mxu0
      %898 = vmatprep.mubr.bf16.mxu0 0
      %899 = vmatmul.mubr.bf16.gmra.mrb[0].mxu0 %v681
      %v900 = vpop.f32.mrb[0].mxu0
      %v901 = vadd.f32 0.0, %v900
      %v902 = vpop.f32.mrb[0].mxu0
      %v903 = vpop.f32.mrb[0].mxu0
      %v904 = vadd.f32 0.0, %v903
      %v905 = vpop.f32.mrb[0].mxu0
      %906 = vmatprep.mubr.bf16.mxu0 0
      %907 = vmatmul.mubr.bf16.gmra.mrb[0].mxu0 %v689
      %v908 = vpop.f32.mrb[0].mxu0
      %v909 = vadd.f32 0.0, %v908
      %v910 = vpop.f32.mrb[0].mxu0
      %v911 = vpop.f32.mrb[0].mxu0
      %v912 = vadd.f32 0.0, %v911
      %v913 = vpop.f32.mrb[0].mxu0
      %914 = vmatprep.mubr.bf16.mxu0 0
      %915 = vmatmul.mubr.bf16.gmra.mrb[0].mxu0 %v697
      %v916 = vpop.f32.mrb[0].mxu0
      %v917 = vadd.f32 0.0, %v916
      %v918 = vpop.f32.mrb[0].mxu0
      %v919 = vpop.f32.mrb[0].mxu0
      %v920 = vadd.f32 0.0, %v919
      %v921 = vpop.f32.mrb[0].mxu0
      %922 = vmatprep.mubr.bf16.mxu0 0
      %923 = vmatmul.mubr.bf16.gmra.mrb[0].mxu0 %v705
      %v924 = vpop.f32.mrb[0].mxu0
      %v925 = vadd.f32 0.0, %v924
      %v926 = vpop.f32.mrb[0].mxu0
      %v927 = vpop.f32.mrb[0].mxu0
      %v928 = vadd.f32 0.0, %v927
      %v929 = vpop.f32.mrb[0].mxu0
      %930 = vmatprep.mubr.bf16.mxu0 0
      %931 = vmatmul.mubr.bf16.gmra.mrb[0].mxu0 %v713
      %v932 = vpop.f32.mrb[0].mxu0
      %v933 = vadd.f32 0.0, %v932
      %v934 = vpop.f32.mrb[0].mxu0
      %v935 = vpop.f32.mrb[0].mxu0
      %v936 = vadd.f32 0.0, %v935
      %v937 = vpop.f32.mrb[0].mxu0
      %938 = vmatprep.mubr.bf16.mxu0 0
      %939 = vmatmul.mubr.bf16.gmra.mrb[0].mxu0 %v721
      %v940 = vpop.f32.mrb[0].mxu0
      %v941 = vadd.f32 0.0, %v940
      %v942 = vpop.f32.mrb[0].mxu0
      %v943 = vpop.f32.mrb[0].mxu0
      %v944 = vadd.f32 0.0, %v943
      %v945 = vpop.f32.mrb[0].mxu0
      %946 = vmatprep.mubr.bf16.mxu0 0
      %947 = vmatmul.mubr.bf16.gmra.mrb[0].mxu0 %v729
      %v948 = vpop.f32.mrb[0].mxu0
      %v949 = vadd.f32 0.0, %v948
      %v950 = vpop.f32.mrb[0].mxu0
      %v951 = vpop.f32.mrb[0].mxu0
      %v952 = vadd.f32 0.0, %v951
      %v953 = vpop.f32.mrb[0].mxu0
      %954 = vmatprep.mubr.bf16.mxu0 0
      %955 = vmatmul.mubr.bf16.gmra.mrb[0].mxu0 %v737
      %v956 = vpop.f32.mrb[0].mxu0
      %v957 = vadd.f32 0.0, %v956
      %v958 = vpop.f32.mrb[0].mxu0
      %v959 = vpop.f32.mrb[0].mxu0
      %v960 = vadd.f32 0.0, %v959
      %v961 = vpop.f32.mrb[0].mxu0
      %962 = vmatprep.mubr.bf16.mxu0 0
      %963 = vmatmul.mubr.bf16.gmra.mrb[0].mxu0 %v745
      %v964 = vpop.f32.mrb[0].mxu0
      %v965 = vadd.f32 0.0, %v964
      %v966 = vpop.f32.mrb[0].mxu0
      %v967 = vpop.f32.mrb[0].mxu0
      %v968 = vadd.f32 0.0, %v967
      %v969 = vpop.f32.mrb[0].mxu0
      %970 = vdwg.mxu0
      %v987 = vunpack.c.l.b16 %v580
      %v988 = vunpack.c.l.b16 %v581
      %v989 = vunpack.c.l.b16 %v582
      %v990 = vunpack.c.l.b16 %v583
      %v991 = vunpack.c.l.b16 %v584
      %v992 = vunpack.c.l.b16 %v585
      %v993 = vunpack.c.l.b16 %v586
      %v994 = vunpack.c.l.b16 %v587
      %v995 = vunpack.c.l.b16 %v588
      %v996 = vunpack.c.l.b16 %v589
      %v997 = vunpack.c.l.b16 %v590
      %v998 = vunpack.c.l.b16 %v591
      %v999 = vunpack.c.l.b16 %v592
      %v1000 = vunpack.c.l.b16 %v593
      %v1001 = vunpack.c.l.b16 %v594
      %v1002 = vunpack.c.l.b16 %v595
      %v1003 = vpack.c.b16 %v988, %v987
      %v1004 = vpack.c.b16 %v990, %v989
      %v1005 = vpack.c.b16 %v992, %v991
      %v1006 = vpack.c.b16 %v994, %v993
      %v1007 = vpack.c.b16 %v996, %v995
      %v1008 = vpack.c.b16 %v998, %v997
      %v1009 = vpack.c.b16 %v1000, %v999
      %v1010 = vpack.c.b16 %v1002, %v1001
      %1019 = vmatprep.subr.bf16.mxu0 0
      %1020 = vmatpush1.bf16.msra.mxu0 %v1003
      %1021 = vmatprep.subr.bf16.mxu0 0
      %1022 = vmatpush1.bf16.msra.mxu0 %v1004
      %1023 = vmatprep.subr.bf16.mxu0 0
      %1024 = vmatpush1.bf16.msra.mxu0 %v1005
      %1025 = vmatprep.subr.bf16.mxu0 0
      %1026 = vmatpush1.bf16.msra.mxu0 %v1006
      %1027 = vmatprep.subr.bf16.mxu0 0
      %1028 = vmatpush1.bf16.msra.mxu0 %v1007
      %1029 = vmatprep.subr.bf16.mxu0 0
      %1030 = vmatpush1.bf16.msra.mxu0 %v1008
      %1031 = vmatprep.subr.bf16.mxu0 0
      %1032 = vmatpush1.bf16.msra.mxu0 %v1009
      %1033 = vmatprep.subr.bf16.mxu0 0
      %1034 = vmatpush1.bf16.msra.mxu0 %v1010
      %1035 = vmatprep.subr.bf16.mxu0 0
      %1036 = vmatpush1.bf16.msra.mxu0 0
      %1037 = vmatprep.subr.bf16.mxu0 0
      %1038 = vmatpush1.bf16.msra.mxu0 0
      %1039 = vmatprep.subr.bf16.mxu0 0
      %1040 = vmatpush1.bf16.msra.mxu0 0
      %1041 = vmatprep.subr.bf16.mxu0 0
      %1042 = vmatpush1.bf16.msra.mxu0 0
      %1043 = vmatprep.subr.bf16.mxu0 0
      %1044 = vmatpush1.bf16.msra.mxu0 0
      %1045 = vmatprep.subr.bf16.mxu0 0
      %1046 = vmatpush1.bf16.msra.mxu0 0
      %1047 = vmatprep.subr.bf16.mxu0 0
      %1048 = vmatpush1.bf16.msra.mxu0 0
      %1049 = vmatprep.subr.bf16.mxu0 0
      %1050 = vmatpush1.bf16.msra.mxu0 0
      %1051 = vmatprep.mubr.bf16.mxu0 0
      %1052 = vmatmul.mubr.bf16.gmra.mrb[0].mxu0 %v563
      %v1053 = vpop.f32.mrb[0].mxu0
      %v1054 = vadd.f32 %v845, %v1053
      %v1055 = vpop.f32.mrb[0].mxu0
      %v1056 = vpop.f32.mrb[0].mxu0
      %v1057 = vadd.f32 %v848, %v1056
      %v1058 = vpop.f32.mrb[0].mxu0
      %1059 = vmatprep.mubr.bf16.mxu0 0
      %1060 = vmatmul.mubr.bf16.gmra.mrb[0].mxu0 %v564
      %v1061 = vpop.f32.mrb[0].mxu0
      %v1062 = vadd.f32 %v853, %v1061
      %v1063 = vpop.f32.mrb[0].mxu0
      %v1064 = vpop.f32.mrb[0].mxu0
      %v1065 = vadd.f32 %v856, %v1064
      %v1066 = vpop.f32.mrb[0].mxu0
      %1067 = vmatprep.mubr.bf16.mxu0 0
      %1068 = vmatmul.mubr.bf16.gmra.mrb[0].mxu0 %v565
      %v1069 = vpop.f32.mrb[0].mxu0
      %v1070 = vadd.f32 %v861, %v1069
      %v1071 = vpop.f32.mrb[0].mxu0
      %v1072 = vpop.f32.mrb[0].mxu0
      %v1073 = vadd.f32 %v864, %v1072
      %v1074 = vpop.f32.mrb[0].mxu0
      %1075 = vmatprep.mubr.bf16.mxu0 0
      %1076 = vmatmul.mubr.bf16.gmra.mrb[0].mxu0 %v566
      %v1077 = vpop.f32.mrb[0].mxu0
      %v1078 = vadd.f32 %v869, %v1077
      %v1079 = vpop.f32.mrb[0].mxu0
      %v1080 = vpop.f32.mrb[0].mxu0
      %v1081 = vadd.f32 %v872, %v1080
      %v1082 = vpop.f32.mrb[0].mxu0
      %1083 = vmatprep.mubr.bf16.mxu0 0
      %1084 = vmatmul.mubr.bf16.gmra.mrb[0].mxu0 %v567
      %v1085 = vpop.f32.mrb[0].mxu0
      %v1086 = vadd.f32 %v877, %v1085
      %v1087 = vpop.f32.mrb[0].mxu0
      %v1088 = vpop.f32.mrb[0].mxu0
      %v1089 = vadd.f32 %v880, %v1088
      %v1090 = vpop.f32.mrb[0].mxu0
      %1091 = vmatprep.mubr.bf16.mxu0 0
      %1092 = vmatmul.mubr.bf16.gmra.mrb[0].mxu0 %v568
      %v1093 = vpop.f32.mrb[0].mxu0
      %v1094 = vadd.f32 %v885, %v1093
      %v1095 = vpop.f32.mrb[0].mxu0
      %v1096 = vpop.f32.mrb[0].mxu0
      %v1097 = vadd.f32 %v888, %v1096
      %v1098 = vpop.f32.mrb[0].mxu0
      %1099 = vmatprep.mubr.bf16.mxu0 0
      %1100 = vmatmul.mubr.bf16.gmra.mrb[0].mxu0 %v569
      %v1101 = vpop.f32.mrb[0].mxu0
      %v1102 = vadd.f32 %v893, %v1101
      %v1103 = vpop.f32.mrb[0].mxu0
      %v1104 = vpop.f32.mrb[0].mxu0
      %v1105 = vadd.f32 %v896, %v1104
      %v1106 = vpop.f32.mrb[0].mxu0
      %1107 = vmatprep.mubr.bf16.mxu0 0
      %1108 = vmatmul.mubr.bf16.gmra.mrb[0].mxu0 %v570
      %v1109 = vpop.f32.mrb[0].mxu0
      %v1110 = vadd.f32 %v901, %v1109
      %v1111 = vpop.f32.mrb[0].mxu0
      %v1112 = vpop.f32.mrb[0].mxu0
      %v1113 = vadd.f32 %v904, %v1112
      %v1114 = vpop.f32.mrb[0].mxu0
      %1115 = vmatprep.mubr.bf16.mxu0 0
      %1116 = vmatmul.mubr.bf16.gmra.mrb[0].mxu0 %v571
      %v1117 = vpop.f32.mrb[0].mxu0
      %v1118 = vadd.f32 %v909, %v1117
      %v1119 = vpop.f32.mrb[0].mxu0
      %v1120 = vpop.f32.mrb[0].mxu0
      %v1121 = vadd.f32 %v912, %v1120
      %v1122 = vpop.f32.mrb[0].mxu0
      %1123 = vmatprep.mubr.bf16.mxu0 0
      %1124 = vmatmul.mubr.bf16.gmra.mrb[0].mxu0 %v572
      %v1125 = vpop.f32.mrb[0].mxu0
      %v1126 = vadd.f32 %v917, %v1125
      %v1127 = vpop.f32.mrb[0].mxu0
      %v1128 = vpop.f32.mrb[0].mxu0
      %v1129 = vadd.f32 %v920, %v1128
      %v1130 = vpop.f32.mrb[0].mxu0
      %1131 = vmatprep.mubr.bf16.mxu0 0
      %1132 = vmatmul.mubr.bf16.gmra.mrb[0].mxu0 %v573
      %v1133 = vpop.f32.mrb[0].mxu0
      %v1134 = vadd.f32 %v925, %v1133
      %v1135 = vpop.f32.mrb[0].mxu0
      %v1136 = vpop.f32.mrb[0].mxu0
      %v1137 = vadd.f32 %v928, %v1136
      %v1138 = vpop.f32.mrb[0].mxu0
      %1139 = vmatprep.mubr.bf16.mxu0 0
      %1140 = vmatmul.mubr.bf16.gmra.mrb[0].mxu0 %v574
      %v1141 = vpop.f32.mrb[0].mxu0
      %v1142 = vadd.f32 %v933, %v1141
      %v1143 = vpop.f32.mrb[0].mxu0
      %v1144 = vpop.f32.mrb[0].mxu0
      %v1145 = vadd.f32 %v936, %v1144
      %v1146 = vpop.f32.mrb[0].mxu0
      %1147 = vmatprep.mubr.bf16.mxu0 0
      %1148 = vmatmul.mubr.bf16.gmra.mrb[0].mxu0 %v575
      %v1149 = vpop.f32.mrb[0].mxu0
      %v1150 = vadd.f32 %v941, %v1149
      %v1151 = vpop.f32.mrb[0].mxu0
      %v1152 = vpop.f32.mrb[0].mxu0
      %v1153 = vadd.f32 %v944, %v1152
      %v1154 = vpop.f32.mrb[0].mxu0
      %1155 = vmatprep.mubr.bf16.mxu0 0
      %1156 = vmatmul.mubr.bf16.gmra.mrb[0].mxu0 %v576
      %v1157 = vpop.f32.mrb[0].mxu0
      %v1158 = vadd.f32 %v949, %v1157
      %v1159 = vpop.f32.mrb[0].mxu0
      %v1160 = vpop.f32.mrb[0].mxu0
      %v1161 = vadd.f32 %v952, %v1160
      %v1162 = vpop.f32.mrb[0].mxu0
      %1163 = vmatprep.mubr.bf16.mxu0 0
      %1164 = vmatmul.mubr.bf16.gmra.mrb[0].mxu0 %v577
      %v1165 = vpop.f32.mrb[0].mxu0
      %v1166 = vadd.f32 %v957, %v1165
      %v1167 = vpop.f32.mrb[0].mxu0
      %v1168 = vpop.f32.mrb[0].mxu0
      %v1169 = vadd.f32 %v960, %v1168
      %v1170 = vpop.f32.mrb[0].mxu0
      %1171 = vmatprep.mubr.bf16.mxu0 0
      %1172 = vmatmul.mubr.bf16.gmra.mrb[0].mxu0 %v578
      %v1173 = vpop.f32.mrb[0].mxu0
      %v1174 = vadd.f32 %v965, %v1173
      %v1175 = vpop.f32.mrb[0].mxu0
      %v1176 = vpop.f32.mrb[0].mxu0
      %v1177 = vadd.f32 %v968, %v1176
      %v1178 = vpop.f32.mrb[0].mxu0
      %1179 = vdwg.mxu0
      %s1180 = scalar_lea.vmem %s1, 128
      %v1181 = vld [vmem:[%s1180] sm:$0xf]
      %v1182 = vld [vmem:[%s1180 + $0x4] sm:$0xf]
      %v1183 = vld [vmem:[%s1180 + $0x8] sm:$0xf]
      %v1184 = vld [vmem:[%s1180 + $0xc] sm:$0xf]
      %v1185 = vld [vmem:[%s1180 + $0x10] sm:$0xf]
      %v1186 = vld [vmem:[%s1180 + $0x14] sm:$0xf]
      %v1187 = vld [vmem:[%s1180 + $0x18] sm:$0xf]
      %v1188 = vld [vmem:[%s1180 + $0x1c] sm:$0xf]
      %v1189 = vld [vmem:[%s1180 + $0x20] sm:$0xf]
      %v1190 = vld [vmem:[%s1180 + $0x24] sm:$0xf]
      %v1191 = vld [vmem:[%s1180 + $0x28] sm:$0xf]
      %v1192 = vld [vmem:[%s1180 + $0x2c] sm:$0xf]
      %v1193 = vld [vmem:[%s1180 + $0x30] sm:$0xf]
      %v1194 = vld [vmem:[%s1180 + $0x34] sm:$0xf]
      %v1195 = vld [vmem:[%s1180 + $0x38] sm:$0xf]
      %v1196 = vld [vmem:[%s1180 + $0x3c] sm:$0xf]
      %vm1214 = vcmask 1046528
      %v1215 = vrot.slane %v563, 1
      %v1216 = vrot.slane %v564, 1
      %v1217 = vsel %vm1214, %v1215, %v1216
      %v1218 = vrot.slane %v565, 1
      %v1219 = vsel %vm1214, %v1216, %v1218
      %v1220 = vrot.slane %v566, 1
      %v1221 = vsel %vm1214, %v1218, %v1220
      %v1222 = vrot.slane %v567, 1
      %v1223 = vsel %vm1214, %v1220, %v1222
      %v1224 = vrot.slane %v568, 1
      %v1225 = vsel %vm1214, %v1222, %v1224
      %v1226 = vrot.slane %v569, 1
      %v1227 = vsel %vm1214, %v1224, %v1226
      %v1228 = vrot.slane %v570, 1
      %v1229 = vsel %vm1214, %v1226, %v1228
      %v1230 = vrot.slane %v571, 1
      %v1231 = vsel %vm1214, %v1228, %v1230
      %v1232 = vrot.slane %v572, 1
      %v1233 = vsel %vm1214, %v1230, %v1232
      %v1234 = vrot.slane %v573, 1
      %v1235 = vsel %vm1214, %v1232, %v1234
      %v1236 = vrot.slane %v574, 1
      %v1237 = vsel %vm1214, %v1234, %v1236
      %v1238 = vrot.slane %v575, 1
      %v1239 = vsel %vm1214, %v1236, %v1238
      %v1240 = vrot.slane %v576, 1
      %v1241 = vsel %vm1214, %v1238, %v1240
      %v1242 = vrot.slane %v577, 1
      %v1243 = vsel %vm1214, %v1240, %v1242
      %v1244 = vrot.slane %v578, 1
      %v1245 = vsel %vm1214, %v1242, %v1244
      %v1246 = vrot.slane %v579, 1
      %v1247 = vsel %vm1214, %v1244, %v1246
      %v1280 = vunpack.c.l.b16 %v1181
      %v1281 = vunpack.c.l.b16 %v1182
      %v1282 = vunpack.c.l.b16 %v1183
      %v1283 = vunpack.c.l.b16 %v1184
      %v1284 = vunpack.c.l.b16 %v1185
      %v1285 = vunpack.c.l.b16 %v1186
      %v1286 = vunpack.c.l.b16 %v1187
      %v1287 = vunpack.c.l.b16 %v1188
      %v1288 = vunpack.c.l.b16 %v1189
      %v1289 = vunpack.c.l.b16 %v1190
      %v1290 = vunpack.c.l.b16 %v1191
      %v1291 = vunpack.c.l.b16 %v1192
      %v1292 = vunpack.c.l.b16 %v1193
      %v1293 = vunpack.c.l.b16 %v1194
      %v1294 = vunpack.c.l.b16 %v1195
      %v1295 = vunpack.c.l.b16 %v1196
      %v1296 = vpack.c.b16 %v1281, %v1280
      %v1297 = vpack.c.b16 %v1283, %v1282
      %v1298 = vpack.c.b16 %v1285, %v1284
      %v1299 = vpack.c.b16 %v1287, %v1286
      %v1300 = vpack.c.b16 %v1289, %v1288
      %v1301 = vpack.c.b16 %v1291, %v1290
      %v1302 = vpack.c.b16 %v1293, %v1292
      %v1303 = vpack.c.b16 %v1295, %v1294
      %1312 = vmatprep.subr.bf16.mxu0 0
      %1313 = vmatpush1.bf16.msra.mxu0 %v1296
      %1314 = vmatprep.subr.bf16.mxu0 0
      %1315 = vmatpush1.bf16.msra.mxu0 %v1297
      %1316 = vmatprep.subr.bf16.mxu0 0
      %1317 = vmatpush1.bf16.msra.mxu0 %v1298
      %1318 = vmatprep.subr.bf16.mxu0 0
      %1319 = vmatpush1.bf16.msra.mxu0 %v1299
      %1320 = vmatprep.subr.bf16.mxu0 0
      %1321 = vmatpush1.bf16.msra.mxu0 %v1300
      %1322 = vmatprep.subr.bf16.mxu0 0
      %1323 = vmatpush1.bf16.msra.mxu0 %v1301
      %1324 = vmatprep.subr.bf16.mxu0 0
      %1325 = vmatpush1.bf16.msra.mxu0 %v1302
      %1326 = vmatprep.subr.bf16.mxu0 0
      %1327 = vmatpush1.bf16.msra.mxu0 %v1303
      %1328 = vmatprep.subr.bf16.mxu0 0
      %1329 = vmatpush1.bf16.msra.mxu0 0
      %1330 = vmatprep.subr.bf16.mxu0 0
      %1331 = vmatpush1.bf16.msra.mxu0 0
      %1332 = vmatprep.subr.bf16.mxu0 0
      %1333 = vmatpush1.bf16.msra.mxu0 0
      %1334 = vmatprep.subr.bf16.mxu0 0
      %1335 = vmatpush1.bf16.msra.mxu0 0
      %1336 = vmatprep.subr.bf16.mxu0 0
      %1337 = vmatpush1.bf16.msra.mxu0 0
      %1338 = vmatprep.subr.bf16.mxu0 0
      %1339 = vmatpush1.bf16.msra.mxu0 0
      %1340 = vmatprep.subr.bf16.mxu0 0
      %1341 = vmatpush1.bf16.msra.mxu0 0
      %1342 = vmatprep.subr.bf16.mxu0 0
      %1343 = vmatpush1.bf16.msra.mxu0 0
      %1344 = vmatprep.mubr.bf16.mxu0 0
      %1345 = vmatmul.mubr.bf16.gmra.mrb[0].mxu0 %v1217
      %v1346 = vpop.f32.mrb[0].mxu0
      %v1347 = vadd.f32 0.0, %v1346
      %v1348 = vpop.f32.mrb[0].mxu0
      %v1349 = vpop.f32.mrb[0].mxu0
      %v1350 = vadd.f32 0.0, %v1349
      %v1351 = vpop.f32.mrb[0].mxu0
      %1352 = vmatprep.mubr.bf16.mxu0 0
      %1353 = vmatmul.mubr.bf16.gmra.mrb[0].mxu0 %v1219
      %v1354 = vpop.f32.mrb[0].mxu0
      %v1355 = vadd.f32 0.0, %v1354
      %v1356 = vpop.f32.mrb[0].mxu0
      %v1357 = vpop.f32.mrb[0].mxu0
      %v1358 = vadd.f32 0.0, %v1357
      %v1359 = vpop.f32.mrb[0].mxu0
      %1360 = vmatprep.mubr.bf16.mxu0 0
      %1361 = vmatmul.mubr.bf16.gmra.mrb[0].mxu0 %v1221
      %v1362 = vpop.f32.mrb[0].mxu0
      %v1363 = vadd.f32 0.0, %v1362
      %v1364 = vpop.f32.mrb[0].mxu0
      %v1365 = vpop.f32.mrb[0].mxu0
      %v1366 = vadd.f32 0.0, %v1365
      %v1367 = vpop.f32.mrb[0].mxu0
      %1368 = vmatprep.mubr.bf16.mxu0 0
      %1369 = vmatmul.mubr.bf16.gmra.mrb[0].mxu0 %v1223
      %v1370 = vpop.f32.mrb[0].mxu0
      %v1371 = vadd.f32 0.0, %v1370
      %v1372 = vpop.f32.mrb[0].mxu0
      %v1373 = vpop.f32.mrb[0].mxu0
      %v1374 = vadd.f32 0.0, %v1373
      %v1375 = vpop.f32.mrb[0].mxu0
      %1376 = vmatprep.mubr.bf16.mxu0 0
      %1377 = vmatmul.mubr.bf16.gmra.mrb[0].mxu0 %v1225
      %v1378 = vpop.f32.mrb[0].mxu0
      %v1379 = vadd.f32 0.0, %v1378
      %v1380 = vpop.f32.mrb[0].mxu0
      %v1381 = vpop.f32.mrb[0].mxu0
      %v1382 = vadd.f32 0.0, %v1381
      %v1383 = vpop.f32.mrb[0].mxu0
      %1384 = vmatprep.mubr.bf16.mxu0 0
      %1385 = vmatmul.mubr.bf16.gmra.mrb[0].mxu0 %v1227
      %v1386 = vpop.f32.mrb[0].mxu0
      %v1387 = vadd.f32 0.0, %v1386
      %v1388 = vpop.f32.mrb[0].mxu0
      %v1389 = vpop.f32.mrb[0].mxu0
      %v1390 = vadd.f32 0.0, %v1389
      %v1391 = vpop.f32.mrb[0].mxu0
      %1392 = vmatprep.mubr.bf16.mxu0 0
      %1393 = vmatmul.mubr.bf16.gmra.mrb[0].mxu0 %v1229
      %v1394 = vpop.f32.mrb[0].mxu0
      %v1395 = vadd.f32 0.0, %v1394
      %v1396 = vpop.f32.mrb[0].mxu0
      %v1397 = vpop.f32.mrb[0].mxu0
      %v1398 = vadd.f32 0.0, %v1397
      %v1399 = vpop.f32.mrb[0].mxu0
      %1400 = vmatprep.mubr.bf16.mxu0 0
      %1401 = vmatmul.mubr.bf16.gmra.mrb[0].mxu0 %v1231
      %v1402 = vpop.f32.mrb[0].mxu0
      %v1403 = vadd.f32 0.0, %v1402
      %v1404 = vpop.f32.mrb[0].mxu0
      %v1405 = vpop.f32.mrb[0].mxu0
      %v1406 = vadd.f32 0.0, %v1405
      %v1407 = vpop.f32.mrb[0].mxu0
      %1408 = vmatprep.mubr.bf16.mxu0 0
      %1409 = vmatmul.mubr.bf16.gmra.mrb[0].mxu0 %v1233
      %v1410 = vpop.f32.mrb[0].mxu0
      %v1411 = vadd.f32 0.0, %v1410
      %v1412 = vpop.f32.mrb[0].mxu0
      %v1413 = vpop.f32.mrb[0].mxu0
      %v1414 = vadd.f32 0.0, %v1413
      %v1415 = vpop.f32.mrb[0].mxu0
      %1416 = vmatprep.mubr.bf16.mxu0 0
      %1417 = vmatmul.mubr.bf16.gmra.mrb[0].mxu0 %v1235
      %v1418 = vpop.f32.mrb[0].mxu0
      %v1419 = vadd.f32 0.0, %v1418
      %v1420 = vpop.f32.mrb[0].mxu0
      %v1421 = vpop.f32.mrb[0].mxu0
      %v1422 = vadd.f32 0.0, %v1421
      %v1423 = vpop.f32.mrb[0].mxu0
      %1424 = vmatprep.mubr.bf16.mxu0 0
      %1425 = vmatmul.mubr.bf16.gmra.mrb[0].mxu0 %v1237
      %v1426 = vpop.f32.mrb[0].mxu0
      %v1427 = vadd.f32 0.0, %v1426
      %v1428 = vpop.f32.mrb[0].mxu0
      %v1429 = vpop.f32.mrb[0].mxu0
      %v1430 = vadd.f32 0.0, %v1429
      %v1431 = vpop.f32.mrb[0].mxu0
      %1432 = vmatprep.mubr.bf16.mxu0 0
      %1433 = vmatmul.mubr.bf16.gmra.mrb[0].mxu0 %v1239
      %v1434 = vpop.f32.mrb[0].mxu0
      %v1435 = vadd.f32 0.0, %v1434
      %v1436 = vpop.f32.mrb[0].mxu0
      %v1437 = vpop.f32.mrb[0].mxu0
      %v1438 = vadd.f32 0.0, %v1437
      %v1439 = vpop.f32.mrb[0].mxu0
      %1440 = vmatprep.mubr.bf16.mxu0 0
      %1441 = vmatmul.mubr.bf16.gmra.mrb[0].mxu0 %v1241
      %v1442 = vpop.f32.mrb[0].mxu0
      %v1443 = vadd.f32 0.0, %v1442
      %v1444 = vpop.f32.mrb[0].mxu0
      %v1445 = vpop.f32.mrb[0].mxu0
      %v1446 = vadd.f32 0.0, %v1445
      %v1447 = vpop.f32.mrb[0].mxu0
      %1448 = vmatprep.mubr.bf16.mxu0 0
      %1449 = vmatmul.mubr.bf16.gmra.mrb[0].mxu0 %v1243
      %v1450 = vpop.f32.mrb[0].mxu0
      %v1451 = vadd.f32 0.0, %v1450
      %v1452 = vpop.f32.mrb[0].mxu0
      %v1453 = vpop.f32.mrb[0].mxu0
      %v1454 = vadd.f32 0.0, %v1453
      %v1455 = vpop.f32.mrb[0].mxu0
      %1456 = vmatprep.mubr.bf16.mxu0 0
      %1457 = vmatmul.mubr.bf16.gmra.mrb[0].mxu0 %v1245
      %v1458 = vpop.f32.mrb[0].mxu0
      %v1459 = vadd.f32 0.0, %v1458
      %v1460 = vpop.f32.mrb[0].mxu0
      %v1461 = vpop.f32.mrb[0].mxu0
      %v1462 = vadd.f32 0.0, %v1461
      %v1463 = vpop.f32.mrb[0].mxu0
      %1464 = vmatprep.mubr.bf16.mxu0 0
      %1465 = vmatmul.mubr.bf16.gmra.mrb[0].mxu0 %v1247
      %v1466 = vpop.f32.mrb[0].mxu0
      %v1467 = vadd.f32 0.0, %v1466
      %v1468 = vpop.f32.mrb[0].mxu0
      %v1469 = vpop.f32.mrb[0].mxu0
      %v1470 = vadd.f32 0.0, %v1469
      %v1471 = vpop.f32.mrb[0].mxu0
      %1472 = vdwg.mxu0
      %v1473 = vadd.f32 %v1054, %v1347
      %v1474 = vadd.f32 %v1057, %v1350
      %v1475 = vadd.f32 %v1062, %v1355
      %v1476 = vadd.f32 %v1065, %v1358
      %v1477 = vadd.f32 %v1070, %v1363
      %v1478 = vadd.f32 %v1073, %v1366
      %v1479 = vadd.f32 %v1078, %v1371
      %v1480 = vadd.f32 %v1081, %v1374
      %v1481 = vadd.f32 %v1086, %v1379
      %v1482 = vadd.f32 %v1089, %v1382
      %v1483 = vadd.f32 %v1094, %v1387
      %v1484 = vadd.f32 %v1097, %v1390
      %v1485 = vadd.f32 %v1102, %v1395
      %v1486 = vadd.f32 %v1105, %v1398
      %v1487 = vadd.f32 %v1110, %v1403
      %v1488 = vadd.f32 %v1113, %v1406
      %v1489 = vadd.f32 %v1118, %v1411
      %v1490 = vadd.f32 %v1121, %v1414
      %v1491 = vadd.f32 %v1126, %v1419
      %v1492 = vadd.f32 %v1129, %v1422
      %v1493 = vadd.f32 %v1134, %v1427
      %v1494 = vadd.f32 %v1137, %v1430
      %v1495 = vadd.f32 %v1142, %v1435
      %v1496 = vadd.f32 %v1145, %v1438
      %v1497 = vadd.f32 %v1150, %v1443
      %v1498 = vadd.f32 %v1153, %v1446
      %v1499 = vadd.f32 %v1158, %v1451
      %v1500 = vadd.f32 %v1161, %v1454
      %v1501 = vadd.f32 %v1166, %v1459
      %v1502 = vadd.f32 %v1169, %v1462
      %v1503 = vadd.f32 %v1174, %v1467
      %v1504 = vadd.f32 %v1177, %v1470
      %v1505 = vld [vmem:[%s2] sm:$0x1]
      %v1507 = vlaneseq
      %v1508 = vshrl.u32 %v1507, 7
      %v1509 = vsub.s32 0, %v1508
      %v1510 = vrot.slane %v1505, %v1509
      %v1512 = vadd.f32 %v1473, %v1510
      %v1513 = vadd.f32 %v1474, %v1510
      %v1514 = vadd.f32 %v1475, %v1510
      %v1515 = vadd.f32 %v1476, %v1510
      %v1516 = vadd.f32 %v1477, %v1510
      %v1517 = vadd.f32 %v1478, %v1510
      %v1518 = vadd.f32 %v1479, %v1510
      %v1519 = vadd.f32 %v1480, %v1510
      %v1520 = vadd.f32 %v1481, %v1510
      %v1521 = vadd.f32 %v1482, %v1510
      %v1522 = vadd.f32 %v1483, %v1510
      %v1523 = vadd.f32 %v1484, %v1510
      %v1524 = vadd.f32 %v1485, %v1510
      %v1525 = vadd.f32 %v1486, %v1510
      %v1526 = vadd.f32 %v1487, %v1510
      %v1527 = vadd.f32 %v1488, %v1510
      %v1528 = vadd.f32 %v1489, %v1510
      %v1529 = vadd.f32 %v1490, %v1510
      %v1530 = vadd.f32 %v1491, %v1510
      %v1531 = vadd.f32 %v1492, %v1510
      %v1532 = vadd.f32 %v1493, %v1510
      %v1533 = vadd.f32 %v1494, %v1510
      %v1534 = vadd.f32 %v1495, %v1510
      %v1535 = vadd.f32 %v1496, %v1510
      %v1536 = vadd.f32 %v1497, %v1510
      %v1537 = vadd.f32 %v1498, %v1510
      %v1538 = vadd.f32 %v1499, %v1510
      %v1539 = vadd.f32 %v1500, %v1510
      %v1540 = vadd.f32 %v1501, %v1510
      %v1541 = vadd.f32 %v1502, %v1510
      %v1542 = vadd.f32 %v1503, %v1510
      %v1543 = vadd.f32 %v1504, %v1510
      %1544 = vst [vmem:[%s146] sm:$0xff] %v1512
      %1545 = vst [vmem:[%s146 + $0x8] sm:$0xff] %v1513
      %1546 = vst [vmem:[%s146 + $0x10] sm:$0xff] %v1514
      %1547 = vst [vmem:[%s146 + $0x18] sm:$0xff] %v1515
      %1548 = vst [vmem:[%s146 + $0x20] sm:$0xff] %v1516
      %1549 = vst [vmem:[%s146 + $0x28] sm:$0xff] %v1517
      %1550 = vst [vmem:[%s146 + $0x30] sm:$0xff] %v1518
      %1551 = vst [vmem:[%s146 + $0x38] sm:$0xff] %v1519
      %1552 = vst [vmem:[%s146 + $0x40] sm:$0xff] %v1520
      %1553 = vst [vmem:[%s146 + $0x48] sm:$0xff] %v1521
      %1554 = vst [vmem:[%s146 + $0x50] sm:$0xff] %v1522
      %1555 = vst [vmem:[%s146 + $0x58] sm:$0xff] %v1523
      %1556 = vst [vmem:[%s146 + $0x60] sm:$0xff] %v1524
      %1557 = vst [vmem:[%s146 + $0x68] sm:$0xff] %v1525
      %1558 = vst [vmem:[%s146 + $0x70] sm:$0xff] %v1526
      %1559 = vst [vmem:[%s146 + $0x78] sm:$0xff] %v1527
      %1560 = vst [vmem:[%s146 + $0x80] sm:$0xff] %v1528
      %1561 = vst [vmem:[%s146 + $0x88] sm:$0xff] %v1529
      %1562 = vst [vmem:[%s146 + $0x90] sm:$0xff] %v1530
      %1563 = vst [vmem:[%s146 + $0x98] sm:$0xff] %v1531
      %1564 = vst [vmem:[%s146 + $0xa0] sm:$0xff] %v1532
      %1565 = vst [vmem:[%s146 + $0xa8] sm:$0xff] %v1533
      %1566 = vst [vmem:[%s146 + $0xb0] sm:$0xff] %v1534
      %1567 = vst [vmem:[%s146 + $0xb8] sm:$0xff] %v1535
      %1568 = vst [vmem:[%s146 + $0xc0] sm:$0xff] %v1536
      %1569 = vst [vmem:[%s146 + $0xc8] sm:$0xff] %v1537
      %1570 = vst [vmem:[%s146 + $0xd0] sm:$0xff] %v1538
      %1571 = vst [vmem:[%s146 + $0xd8] sm:$0xff] %v1539
      %1572 = vst [vmem:[%s146 + $0xe0] sm:$0xff] %v1540
      %1573 = vst [vmem:[%s146 + $0xe8] sm:$0xff] %v1541
      %1574 = vst [vmem:[%s146 + $0xf0] sm:$0xff] %v1542
      %1575 = vst [vmem:[%s146 + $0xf8] sm:$0xff] %v1543
      %s1576 = smul.u32 32, %s19
      %p1577 = scmp.lt.s32.totalorder %s18, 1
      %s1578 = scalar_select %p1577, %s18, 1
      %p1579 = scmp.lt.s32.totalorder %s1576, 95
      %s1580 = scalar_select %p1579, %s1576, 95
      %s1581 = smul.addr %s1578, 96
      %s1582 = sadd.s32 %s1580, %s1581
      %s1583 = smul.addr %s1582, 8
      %s1584 = scalar_lea.vmem %s3, %s1583
      // Predicated region
      $region111: #{resblock1_forward.6} parent=27 // pred_check
        %p1585 = pneg %p88
      $region112: #{resblock1_forward.6} parent=27 // pred_check_branch
        %1587 = sbr.rel (%p1585) target = $region114
      $region113: #{resblock1_forward.6} parent=27 // pred_region
        %s1588 = smul.u32 32, %s19
      $region114: #{resblock1_forward.6} parent=27 // pred_fallthru
        _
    $region28: #{resblock1_forward.6} parent=5 // pred_fallthru
      _
    %p1589 = scmp.le.s32.totalorder 2, %s9
    // Predicated region
    $region115: #{resblock1_forward.6} parent=5 // pred_check
      %p1590 = pneg %p1589
    $region116: #{resblock1_forward.6} parent=5 // pred_check_branch
      %1592 = sbr.rel (%p1590) target = $region118
    $region117: #{resblock1_forward.6} parent=5 // pred_region
      %s1593 = ssub.s32 %s9, 2
      // Predicated region
      $region119: #{resblock1_forward.6} parent=117 // pred_check
        %p1594 = pneg %p94
      $region120: #{resblock1_forward.6} parent=117 // pred_check_branch
        %1596 = sbr.rel (%p1594) target = $region122
      $region121: #{resblock1_forward.6} parent=117 // pred_region
        %s1597 = smul.u32 32, %s21
        %p1598 = scmp.lt.s32.totalorder %s20, 1
        %s1599 = scalar_select %p1598, %s20, 1
        %p1600 = scmp.lt.s32.totalorder %s1597, 95
        %s1601 = scalar_select %p1600, %s1597, 95
        %s1602 = smul.addr %s1599, 96
        %s1603 = sadd.s32 %s1601, %s1602
        %s1604 = smul.addr %s1603, 8
        %s1605 = scalar_lea.vmem %s3, %s1604
      $region122: #{resblock1_forward.6} parent=117 // pred_fallthru
        _
    $region118: #{resblock1_forward.6} parent=5 // pred_fallthru
      _
  $region6: #{resblock1_forward.6} parent=0 // loop_footer
    %s13 = sadd.s32 1, %s9
  $region7: #{resblock1_forward.6} parent=0 // loop_footer_branch
    %8 = sbr.rel target = $region3
  $region8: #{resblock1_forward.6} parent=0 // loop_exit
    _
  %1606 = vsyncmov [#allocation3]
  %s1607 = vpop.sfrf %1606
  %p1608 = scmp.eq.s32.totalorder %s1607, 0
  %p1609 = pneg %p1608
  %1611 = shalt.err (%p1609)
  %s1612 = scalar_lea.sflag [#allocation3], 1
  %1613 = vsyncmov %s1612
  %s1614 = vpop.sfrf %1613
  %p1615 = scmp.eq.s32.totalorder %s1614, 0
  %p1616 = pneg %p1615
  %1618 = shalt.err (%p1616)

// kernel: resblock1_forward.7
$region0: #{resblock1_forward.7}
  #allocation0 [shape = 'u32[]', space=smem, size = 0x4, offset = 0x4, fixed_abs, tag = 'smem constant byte address 0x4 - core index']
  #allocation1 [shape = 'u32[144,128]{1,0:T(1,128)}', space=vmem, size = 0x12000, scoped, tag = 'internal scratch']
  #allocation2 [shape = 'f32[2,258,128]{2,1,0:T(8,128)}', space=vmem, size = 0x42000, scoped, tag = 'scratch operand']
  #allocation3 [shape = 's32[2]{0}', space=sflag, size = 0x8, scoped, tag = 'scratch operand']
  #allocation4 [shape = 's32[]', space=sflag, size = 0x4, offset = 0, fixed_abs, tag = 'sflag constant byte address 0x0 - dummy sync flag']
  #allocation5 [shape = 's32[]', space=sflag, size = 0x4, offset = 0, fixed_abs, tag = 'sflag constant byte address 0x0 - dummy sync flag']
  %s0 = inlined_call_operand.vmem [shape: f32[2,770,128], index: 0, kind: input, shape index: {}]
  %s1 = inlined_call_operand.vmem [shape: bf16[3,128,128], index: 1, kind: input, shape index: {}]
  %s2 = inlined_call_operand.vmem [shape: f32[1,128], index: 2, kind: input, shape index: {}]
  %s3 = inlined_call_operand.vmem [shape: f32[2,768,128], index: 3, kind: input, shape index: {}]
  %s4 = inlined_call_operand.vmem [shape: f32[2,768,128], index: 4, kind: output, shape index: {}]
  %s5 = sld [smem:[#allocation0]]
  $region127: #{resblock1_forward.7} parent=0
    _
  %s7 = ssub.s32 1, %s5
  %s8 = scalar_select 0, %s7, %s5
  loop: start=0, step=1, limit=8
  $region2: #{resblock1_forward.7} parent=0 // loop_pre_header
    _
  $region3: #{resblock1_forward.7} parent=0 // loop_header
    %s10 = sphi 0, %s14
    %p11 = scmp.ge.s32.totalorder %s10, 8
    %s17 = sphi 0, %s29
    %s18 = sphi 0, %s25
    %s19 = sphi 0, %s17
    %s20 = sphi 0, %s18
    %s21 = sphi 0, %s19
    %s22 = sphi 0, %s20
    %s30 = sphi 0, %s30
    %s32 = sphi 0, %s30
    %s33 = sphi 0, %s32
    %s47 = sphi 0, %s33
    %s51 = sphi 0, %s51
    %s53 = sphi 0, %s51
    %s54 = sphi 0, %s53
    %s68 = sphi 0, %s54
    %s76 = sphi 0, %s78
    %s79 = sphi 0, %s76
    %s80 = sphi 0, %s79
    %s96 = sphi 0, %s80
    %s104 = sphi 0, %s106
    %s107 = sphi 0, %s104
    %s108 = sphi 0, %s107
    %s124 = sphi 0, %s108
  $region4: #{resblock1_forward.7} parent=0 // loop_header_branch
    %13 = sbr.rel (%p11) target = $region8
  $region5: #{resblock1_forward.7} parent=0 // loop_body
    %s15 = ssub.s32 %s10, 1
    %s16 = ssub.s32 %s10, 2
    %s23 = sadd.s32 1, %s18
    %p24 = scmp.ge.s32.totalorder %s23, 3
    %s25 = scalar_select %p24, 0, %s23
    %s26 = sadd.s32 1, %s17
    %s27 = scalar_select %p24, %s26, %s17
    %p28 = scmp.ge.s32.totalorder %s27, 2
    %s29 = scalar_select %p28, 0, %s27
    %s31 = sadd.s32 %s30, 1
    %p34 = scmp.eq.s32.totalorder %s10, 5
    %p35 = scmp.ne.s32.totalorder %s30, %s32
    %p36 = scmp.eq.s32.totalorder %s10, 0
    %p37 = por %p35, %p36
    %p38 = scmp.ne.s32.totalorder %s30, %s32
    %p39 = scmp.eq.s32.totalorder %s15, 5
    %p40 = por %p38, %p39
    %p41 = scmp.ne.s32.totalorder %s32, %s33
    %p42 = scmp.eq.s32.totalorder %s15, 0
    %p43 = por %p41, %p42
    %p44 = scmp.ne.s32.totalorder %s32, %s33
    %p45 = scmp.eq.s32.totalorder %s16, 5
    %p46 = por %p44, %p45
    %p48 = scmp.ne.s32.totalorder %s33, %s47
    %p49 = scmp.eq.s32.totalorder %s16, 0
    %p50 = por %p48, %p49
    %s52 = sadd.s32 %s51, 1
    %p55 = scmp.eq.s32.totalorder %s10, 5
    %p56 = scmp.ne.s32.totalorder %s51, %s53
    %p57 = scmp.eq.s32.totalorder %s10, 0
    %p58 = por %p56, %p57
    %p59 = scmp.ne.s32.totalorder %s51, %s53
    %p60 = scmp.eq.s32.totalorder %s15, 5
    %p61 = por %p59, %p60
    %p62 = scmp.ne.s32.totalorder %s53, %s54
    %p63 = scmp.eq.s32.totalorder %s15, 0
    %p64 = por %p62, %p63
    %p65 = scmp.ne.s32.totalorder %s53, %s54
    %p66 = scmp.eq.s32.totalorder %s16, 5
    %p67 = por %p65, %p66
    %p69 = scmp.ne.s32.totalorder %s54, %s68
    %p70 = scmp.eq.s32.totalorder %s16, 0
    %p71 = por %p69, %p70
    %s72 = ssub.s32 %s17, %s29
    %s73 = ssub.s32 %s18, %s25
    %s74 = sor.u32 %s72, %s73
    %p75 = scmp.eq.s32.totalorder %s74, 0
    %s77 = sadd.s32 %s76, 1
    %s78 = scalar_select %p75, %s76, %s77
    %p81 = pneg %p75
    %p82 = scmp.eq.s32.totalorder %s10, 5
    %p83 = por %p81, %p82
    %p84 = scmp.ne.s32.totalorder %s76, %s79
    %p85 = scmp.eq.s32.totalorder %s10, 0
    %p86 = por %p84, %p85
    %p87 = scmp.ne.s32.totalorder %s76, %s79
    %p88 = scmp.eq.s32.totalorder %s15, 5
    %p89 = por %p87, %p88
    %p90 = scmp.ne.s32.totalorder %s79, %s80
    %p91 = scmp.eq.s32.totalorder %s15, 0
    %p92 = por %p90, %p91
    %p93 = scmp.ne.s32.totalorder %s79, %s80
    %p94 = scmp.eq.s32.totalorder %s16, 5
    %p95 = por %p93, %p94
    %p97 = scmp.ne.s32.totalorder %s80, %s96
    %p98 = scmp.eq.s32.totalorder %s16, 0
    %p99 = por %p97, %p98
    %s100 = ssub.s32 %s17, %s29
    %s101 = ssub.s32 %s18, %s25
    %s102 = sor.u32 %s100, %s101
    %p103 = scmp.eq.s32.totalorder %s102, 0
    %s105 = sadd.s32 %s104, 1
    %s106 = scalar_select %p103, %s104, %s105
    %p109 = pneg %p103
    %p110 = scmp.eq.s32.totalorder %s10, 5
    %p111 = por %p109, %p110
    %p112 = scmp.ne.s32.totalorder %s104, %s107
    %p113 = scmp.eq.s32.totalorder %s10, 0
    %p114 = por %p112, %p113
    %p115 = scmp.ne.s32.totalorder %s104, %s107
    %p116 = scmp.eq.s32.totalorder %s15, 5
    %p117 = por %p115, %p116
    %p118 = scmp.ne.s32.totalorder %s107, %s108
    %p119 = scmp.eq.s32.totalorder %s15, 0
    %p120 = por %p118, %p119
    %p121 = scmp.ne.s32.totalorder %s107, %s108
    %p122 = scmp.eq.s32.totalorder %s16, 5
    %p123 = por %p121, %p122
    %p125 = scmp.ne.s32.totalorder %s108, %s124
    %p126 = scmp.eq.s32.totalorder %s16, 0
    %p127 = por %p125, %p126
    %p128 = scmp.le.s32.totalorder 1, %s10
    %p129 = scmp.lt.s32.totalorder %s10, 7
    %p130 = pnand %p128, %p129
    %p131 = pneg %p130
    // Predicated region
    $region9: #{resblock1_forward.7} parent=5 // pred_check
      _
    $region10: #{resblock1_forward.7} parent=5 // pred_check_branch
      %133 = sbr.rel (%p130) target = $region12
    $region11: #{resblock1_forward.7} parent=5 // pred_region
      %s134 = ssub.s32 %s10, 1
      // Predicated region
      $region13: #{resblock1_forward.7} parent=11 // pred_check
        %p135 = pneg %p43
      $region14: #{resblock1_forward.7} parent=11 // pred_check_branch
        %137 = sbr.rel (%p135) target = $region16
      $region15: #{resblock1_forward.7} parent=11 // pred_region
        _
      $region16: #{resblock1_forward.7} parent=11 // pred_fallthru
        _
      // Predicated region
      $region17: #{resblock1_forward.7} parent=11 // pred_check
        %p138 = pneg %p64
      $region18: #{resblock1_forward.7} parent=11 // pred_check_branch
        %140 = sbr.rel (%p138) target = $region20
      $region19: #{resblock1_forward.7} parent=11 // pred_region
        _
      $region20: #{resblock1_forward.7} parent=11 // pred_fallthru
        _
    $region12: #{resblock1_forward.7} parent=5 // pred_fallthru
      _
    %p141 = scmp.lt.s32.totalorder %s10, 6
    // Predicated region
    $region21: #{resblock1_forward.7} parent=5 // pred_check
      %p142 = pneg %p141
    $region22: #{resblock1_forward.7} parent=5 // pred_check_branch
      %144 = sbr.rel (%p142) target = $region24
    $region23: #{resblock1_forward.7} parent=5 // pred_region
      // Predicated region
      $region25: #{resblock1_forward.7} parent=23 // pred_check
        %p145 = pneg %p86
      $region26: #{resblock1_forward.7} parent=23 // pred_check_branch
        %147 = sbr.rel (%p145) target = $region28
      $region27: #{resblock1_forward.7} parent=23 // pred_region
        %s148 = smul.u32 32, %s18
        %p149 = scmp.lt.s32.totalorder %s17, 1
        %s150 = scalar_select %p149, %s17, 1
        %p151 = scmp.lt.s32.totalorder %s148, 95
        %s152 = scalar_select %p151, %s148, 95
        %s153 = smul.addr %s150, 96
        %s154 = sadd.s32 %s152, %s153
        %s155 = smul.addr %s154, 8
        %s156 = scalar_lea.vmem %s3, %s155
        %s157 = smul.u32 32, %s18
      $region28: #{resblock1_forward.7} parent=23 // pred_fallthru
        _
    $region24: #{resblock1_forward.7} parent=5 // pred_fallthru
      _
    %p158 = scmp.le.s32.totalorder 1, %s10
    %p159 = scmp.lt.s32.totalorder %s10, 7
    %p160 = pnand %p158, %p159
    %p161 = pneg %p160
    // Predicated region
    $region29: #{resblock1_forward.7} parent=5 // pred_check
      _
    $region30: #{resblock1_forward.7} parent=5 // pred_check_branch
      %163 = sbr.rel (%p160) target = $region32
    $region31: #{resblock1_forward.7} parent=5 // pred_region
      %s164 = ssub.s32 %s10, 1
      %p165 = pneg %p43
      %p166 = pneg %p40
      %p167 = pneg %p64
      %p168 = pneg %p61
      %s169 = smul.u32 32, %s20
      %p170 = scmp.lt.s32.totalorder %s19, 1
      %s171 = scalar_select %p170, %s19, 1
      %p172 = scmp.lt.s32.totalorder %s169, 95
      %s173 = scalar_select %p172, %s169, 95
      %s174 = smul.addr %s171, 96
      %s175 = sadd.s32 %s173, %s174
      %s176 = smul.addr %s175, 8
      %s177 = scalar_lea.vmem %s3, %s176
      %p178 = pneg %p92
      %p179 = pneg %p89
      %p180 = pneg %p120
      %p181 = pneg %p117
      %s182 = smul.u32 32, %s20
      %p183 = scmp.lt.s32.totalorder %s19, 1
      %s184 = scalar_select %p183, %s19, 1
      %p185 = scmp.lt.s32.totalorder %s182, 95
      %s186 = scalar_select %p185, %s182, 95
      %s187 = smul.addr %s184, 96
      %s188 = sadd.s32 %s186, %s187
      %s189 = smul.addr %s188, 8
      %s190 = scalar_lea.vmem %s4, %s189
      %s191 = smul.u32 32, %s20
      %p192 = scmp.lt.s32.totalorder %s19, 1
      %s193 = scalar_select %p192, %s19, 1
      %p194 = scmp.lt.s32.totalorder %s191, 95
      %s195 = scalar_select %p194, %s191, 95
      %s196 = smul.addr %s193, 96
      %s197 = sadd.s32 %s195, %s196
      %s198 = smul.addr %s197, 8
      %s199 = scalar_lea.vmem %s3, %s198
      %s200 = smul.u32 32, %s20
      %s201 = smul.u32 32, %s20
      %p202 = scmp.lt.s32.totalorder %s19, 1
      %s203 = scalar_select %p202, %s19, 1
      %p204 = scmp.lt.s32.totalorder %s201, 95
      %s205 = scalar_select %p204, %s201, 95
      %s206 = smul.addr %s203, 96
      %s207 = sadd.s32 %s205, %s206
      %s208 = smul.addr %s207, 8
      %s209 = scalar_lea.vmem %s4, %s208
      %s210 = smul.u32 32, %s20
      %p212 = scmp.eq.s32.totalorder %s20, 0
      // Predicated region
      $region33: #{resblock1_forward.7} parent=31 // pred_check
        %p213 = pneg %p212
      $region34: #{resblock1_forward.7} parent=31 // pred_check_branch
        %215 = sbr.rel (%p213) target = $region36
      $region35: #{resblock1_forward.7} parent=31 // pred_region
        %s216 = smul.u32 %s19, 776
        %s217 = sadd.s32 0, %s216
        %s218 = scalar_lea.vmem %s0, %s217
        %p220 = scmp.lt.u32.totalorder 258, 8
        %p221 = pneg %p220
        // Predicated region
        $region37: #{resblock1_forward.7} parent=35 // pred_check
          _
        $region38: #{resblock1_forward.7} parent=35 // pred_check_branch
          %223 = sbr.rel (%p220) target = $region40
        $region39: #{resblock1_forward.7} parent=35 // pred_region
          %s238 = sand.u32 258, 7
          %p239 = scmp.eq.s32.totalorder %s238, 0
          %p240 = pneg %p239
          // Predicated region
          $region52: #{resblock1_forward.7} parent=39 // pred_check
            _
          $region53: #{resblock1_forward.7} parent=39 // pred_check_branch
            %242 = sbr.rel (%p239) target = $region55
          $region54: #{resblock1_forward.7} parent=39 // pred_region
            %s243 = sand.u32 258, 7
            %s244 = ssub.s32 258, %s243
            %s245 = scalar_lea.vmem %s218, %s244
            %s246 = ssub.s32 258, %s243
            %s247 = scalar_lea.vmem [#allocation2], %s246
            loop: start=0, step=1, limit=1
            $region56: #{resblock1_forward.7} parent=54 // loop_pre_header
              _
            $region57: #{resblock1_forward.7} parent=54 // loop_header
              %s249 = sphi 0, %s253
              %p250 = scmp.ge.s32.totalorder %s249, 1
              %s254 = sphi %s218, %s218
              %s255 = sphi [#allocation2], [#allocation2]
            $region58: #{resblock1_forward.7} parent=54 // loop_header_branch
              %252 = sbr.rel (%p250) target = $region62
            $region59: #{resblock1_forward.7} parent=54 // loop_body
              %v256 = vld [vmem:[%s254] sm:$0xff]
              %257 = vst [vmem:[%s255] sm:$0xff] %v256
              %v258 = vld [vmem:[%s254 + $0x8] sm:$0xff]
              %259 = vst [vmem:[%s255 + $0x8] sm:$0xff] %v258
              %v260 = vld [vmem:[%s254 + $0x10] sm:$0xff]
              %261 = vst [vmem:[%s255 + $0x10] sm:$0xff] %v260
              %v262 = vld [vmem:[%s254 + $0x18] sm:$0xff]
              %263 = vst [vmem:[%s255 + $0x18] sm:$0xff] %v262
              %v264 = vld [vmem:[%s254 + $0x20] sm:$0xff]
              %265 = vst [vmem:[%s255 + $0x20] sm:$0xff] %v264
              %v266 = vld [vmem:[%s254 + $0x28] sm:$0xff]
              %267 = vst [vmem:[%s255 + $0x28] sm:$0xff] %v266
              %v268 = vld [vmem:[%s254 + $0x30] sm:$0xff]
              %269 = vst [vmem:[%s255 + $0x30] sm:$0xff] %v268
              %v270 = vld [vmem:[%s254 + $0x38] sm:$0xff]
              %271 = vst [vmem:[%s255 + $0x38] sm:$0xff] %v270
              %v272 = vld [vmem:[%s254 + $0x40] sm:$0xff]
              %273 = vst [vmem:[%s255 + $0x40] sm:$0xff] %v272
              %v274 = vld [vmem:[%s254 + $0x48] sm:$0xff]
              %275 = vst [vmem:[%s255 + $0x48] sm:$0xff] %v274
              %v276 = vld [vmem:[%s254 + $0x50] sm:$0xff]
              %277 = vst [vmem:[%s255 + $0x50] sm:$0xff] %v276
              %v278 = vld [vmem:[%s254 + $0x58] sm:$0xff]
              %279 = vst [vmem:[%s255 + $0x58] sm:$0xff] %v278
              %v280 = vld [vmem:[%s254 + $0x60] sm:$0xff]
              %281 = vst [vmem:[%s255 + $0x60] sm:$0xff] %v280
              %v282 = vld [vmem:[%s254 + $0x68] sm:$0xff]
              %283 = vst [vmem:[%s255 + $0x68] sm:$0xff] %v282
              %v284 = vld [vmem:[%s254 + $0x70] sm:$0xff]
              %285 = vst [vmem:[%s255 + $0x70] sm:$0xff] %v284
              %v286 = vld [vmem:[%s254 + $0x78] sm:$0xff]
              %287 = vst [vmem:[%s255 + $0x78] sm:$0xff] %v286
              %v288 = vld [vmem:[%s254 + $0x80] sm:$0xff]
              %289 = vst [vmem:[%s255 + $0x80] sm:$0xff] %v288
              %v290 = vld [vmem:[%s254 + $0x88] sm:$0xff]
              %291 = vst [vmem:[%s255 + $0x88] sm:$0xff] %v290
              %v292 = vld [vmem:[%s254 + $0x90] sm:$0xff]
              %293 = vst [vmem:[%s255 + $0x90] sm:$0xff] %v292
              %v294 = vld [vmem:[%s254 + $0x98] sm:$0xff]
              %295 = vst [vmem:[%s255 + $0x98] sm:$0xff] %v294
              %v296 = vld [vmem:[%s254 + $0xa0] sm:$0xff]
              %297 = vst [vmem:[%s255 + $0xa0] sm:$0xff] %v296
              %v298 = vld [vmem:[%s254 + $0xa8] sm:$0xff]
              %299 = vst [vmem:[%s255 + $0xa8] sm:$0xff] %v298
              %v300 = vld [vmem:[%s254 + $0xb0] sm:$0xff]
              %301 = vst [vmem:[%s255 + $0xb0] sm:$0xff] %v300
              %v302 = vld [vmem:[%s254 + $0xb8] sm:$0xff]
              %303 = vst [vmem:[%s255 + $0xb8] sm:$0xff] %v302
              %v304 = vld [vmem:[%s254 + $0xc0] sm:$0xff]
              %305 = vst [vmem:[%s255 + $0xc0] sm:$0xff] %v304
              %v306 = vld [vmem:[%s254 + $0xc8] sm:$0xff]
              %307 = vst [vmem:[%s255 + $0xc8] sm:$0xff] %v306
              %v308 = vld [vmem:[%s254 + $0xd0] sm:$0xff]
              %309 = vst [vmem:[%s255 + $0xd0] sm:$0xff] %v308
              %v310 = vld [vmem:[%s254 + $0xd8] sm:$0xff]
              %311 = vst [vmem:[%s255 + $0xd8] sm:$0xff] %v310
              %v312 = vld [vmem:[%s254 + $0xe0] sm:$0xff]
              %313 = vst [vmem:[%s255 + $0xe0] sm:$0xff] %v312
              %v314 = vld [vmem:[%s254 + $0xe8] sm:$0xff]
              %315 = vst [vmem:[%s255 + $0xe8] sm:$0xff] %v314
              %v316 = vld [vmem:[%s254 + $0xf0] sm:$0xff]
              %317 = vst [vmem:[%s255 + $0xf0] sm:$0xff] %v316
              %v318 = vld [vmem:[%s254 + $0xf8] sm:$0xff]
              %319 = vst [vmem:[%s255 + $0xf8] sm:$0xff] %v318
            $region60: #{resblock1_forward.7} parent=54 // loop_footer
              %s253 = sadd.s32 1, %s249
            $region61: #{resblock1_forward.7} parent=54 // loop_footer_branch
              %248 = sbr.rel target = $region57
            $region62: #{resblock1_forward.7} parent=54 // loop_exit
              _
            %s320 = sshllo.u32 0, %s243
            loop: start=0, step=1, limit=1
            $region63: #{resblock1_forward.7} parent=54 // loop_pre_header
              _
            $region64: #{resblock1_forward.7} parent=54 // loop_header
              %s322 = sphi 0, %s326
              %p323 = scmp.ge.s32.totalorder %s322, 1
              %s327 = sphi %s245, %s245
              %s328 = sphi %s247, %s247
            $region65: #{resblock1_forward.7} parent=54 // loop_header_branch
              %325 = sbr.rel (%p323) target = $region69
            $region66: #{resblock1_forward.7} parent=54 // loop_body
              %v329 = vld [vmem:[%s327] sm:%s320]
              %330 = vst [vmem:[%s328] sm:%s320] %v329
            $region67: #{resblock1_forward.7} parent=54 // loop_footer
              %s326 = sadd.s32 1, %s322
            $region68: #{resblock1_forward.7} parent=54 // loop_footer_branch
              %321 = sbr.rel target = $region64
            $region69: #{resblock1_forward.7} parent=54 // loop_exit
              _
          $region55: #{resblock1_forward.7} parent=39 // pred_fallthru
            _
        $region40: #{resblock1_forward.7} parent=35 // pred_fallthru
          _
        // Predicated region
        $region41: #{resblock1_forward.7} parent=35 // pred_check
          %p224 = pneg %p220
        $region42: #{resblock1_forward.7} parent=35 // pred_check_branch
          %226 = sbr.rel (%p224) target = $region44
        $region43: #{resblock1_forward.7} parent=35 // pred_region
          %s227 = sshllo.u32 0, 258
          loop: start=0, step=1, limit=1
          $region45: #{resblock1_forward.7} parent=43 // loop_pre_header
            _
          $region46: #{resblock1_forward.7} parent=43 // loop_header
            %s229 = sphi 0, %s233
            %p230 = scmp.ge.s32.totalorder %s229, 1
            %s234 = sphi %s218, %s218
            %s235 = sphi [#allocation2], [#allocation2]
          $region47: #{resblock1_forward.7} parent=43 // loop_header_branch
            %232 = sbr.rel (%p230) target = $region51
          $region48: #{resblock1_forward.7} parent=43 // loop_body
            %v236 = vld [vmem:[%s234] sm:%s227]
            %237 = vst [vmem:[%s235] sm:%s227] %v236
          $region49: #{resblock1_forward.7} parent=43 // loop_footer
            %s233 = sadd.s32 1, %s229
          $region50: #{resblock1_forward.7} parent=43 // loop_footer_branch
            %228 = sbr.rel target = $region46
          $region51: #{resblock1_forward.7} parent=43 // loop_exit
            _
        $region44: #{resblock1_forward.7} parent=35 // pred_fallthru
          _
        // Predicated region
        $region70: #{resblock1_forward.7} parent=35 // pred_check
          _
        $region71: #{resblock1_forward.7} parent=35 // pred_check_branch
          %333 = sbr.rel (0) target = $region73
        $region72: #{resblock1_forward.7} parent=35 // pred_region
          %334 = vsyncadd [#allocation3], 4128
        $region73: #{resblock1_forward.7} parent=35 // pred_fallthru
          _
      $region36: #{resblock1_forward.7} parent=31 // pred_fallthru
        _
      %s335 = sadd.s32 %s20, 1
      %p336 = scmp.lt.s32.totalorder %s335, 3
      // Predicated region
      $region74: #{resblock1_forward.7} parent=31 // pred_check
        %p337 = pneg %p336
      $region75: #{resblock1_forward.7} parent=31 // pred_check_branch
        %339 = sbr.rel (%p337) target = $region77
      $region76: #{resblock1_forward.7} parent=31 // pred_region
        %p340 = scmp.lt.s32.totalorder %s335, 0
        %s341 = ssub.s32 0, %s335
        %s342 = scalar_select %p340, %s341, %s335
        %s343 = sand.u32 %s342, 1
        %s344 = ssub.s32 0, %s343
        %s345 = scalar_select %p340, %s344, %s343
        %p346 = scmp.ne.s32.totalorder %s345, 0
        %p347 = scmp.lt.s32.totalorder %s345, 0
        %p348 = pnand %p347, %p346
        %p349 = pneg %p348
        %s350 = sadd.s32 %s345, 2
        %s351 = scalar_select %p349, %s350, %s345
        %s352 = smul.u32 %s335, 256
        %s353 = smul.u32 %s19, 776
        %s354 = sadd.s32 %s352, %s353
        %s355 = scalar_lea.vmem %s0, %s354
        %s356 = smul.u32 %s351, 264
        %s357 = scalar_lea.vmem [#allocation2], %s356
        %s358 = scalar_lea.sflag [#allocation3], %s351
        %p360 = scmp.lt.u32.totalorder 258, 8
        %p361 = pneg %p360
        // Predicated region
        $region78: #{resblock1_forward.7} parent=76 // pred_check
          _
        $region79: #{resblock1_forward.7} parent=76 // pred_check_branch
          %363 = sbr.rel (%p360) target = $region81
        $region80: #{resblock1_forward.7} parent=76 // pred_region
          %s378 = sand.u32 258, 7
          %p379 = scmp.eq.s32.totalorder %s378, 0
          %p380 = pneg %p379
          // Predicated region
          $region93: #{resblock1_forward.7} parent=80 // pred_check
            _
          $region94: #{resblock1_forward.7} parent=80 // pred_check_branch
            %382 = sbr.rel (%p379) target = $region96
          $region95: #{resblock1_forward.7} parent=80 // pred_region
            %s383 = sand.u32 258, 7
            %s384 = ssub.s32 258, %s383
            %s385 = scalar_lea.vmem %s355, %s384
            %s386 = ssub.s32 258, %s383
            %s387 = scalar_lea.vmem %s357, %s386 [#allocation2]
            loop: start=0, step=1, limit=1
            $region97: #{resblock1_forward.7} parent=95 // loop_pre_header
              _
            $region98: #{resblock1_forward.7} parent=95 // loop_header
              %s389 = sphi 0, %s393
              %p390 = scmp.ge.s32.totalorder %s389, 1
              %s394 = sphi %s355, %s355
              %s395 = sphi %s357, %s357
            $region99: #{resblock1_forward.7} parent=95 // loop_header_branch
              %392 = sbr.rel (%p390) target = $region103
            $region100: #{resblock1_forward.7} parent=95 // loop_body
              %v396 = vld [vmem:[%s394] sm:$0xff]
              %397 = vst [vmem:[%s395] sm:$0xff] %v396
              %v398 = vld [vmem:[%s394 + $0x8] sm:$0xff]
              %399 = vst [vmem:[%s395 + $0x8] sm:$0xff] %v398
              %v400 = vld [vmem:[%s394 + $0x10] sm:$0xff]
              %401 = vst [vmem:[%s395 + $0x10] sm:$0xff] %v400
              %v402 = vld [vmem:[%s394 + $0x18] sm:$0xff]
              %403 = vst [vmem:[%s395 + $0x18] sm:$0xff] %v402
              %v404 = vld [vmem:[%s394 + $0x20] sm:$0xff]
              %405 = vst [vmem:[%s395 + $0x20] sm:$0xff] %v404
              %v406 = vld [vmem:[%s394 + $0x28] sm:$0xff]
              %407 = vst [vmem:[%s395 + $0x28] sm:$0xff] %v406
              %v408 = vld [vmem:[%s394 + $0x30] sm:$0xff]
              %409 = vst [vmem:[%s395 + $0x30] sm:$0xff] %v408
              %v410 = vld [vmem:[%s394 + $0x38] sm:$0xff]
              %411 = vst [vmem:[%s395 + $0x38] sm:$0xff] %v410
              %v412 = vld [vmem:[%s394 + $0x40] sm:$0xff]
              %413 = vst [vmem:[%s395 + $0x40] sm:$0xff] %v412
              %v414 = vld [vmem:[%s394 + $0x48] sm:$0xff]
              %415 = vst [vmem:[%s395 + $0x48] sm:$0xff] %v414
              %v416 = vld [vmem:[%s394 + $0x50] sm:$0xff]
              %417 = vst [vmem:[%s395 + $0x50] sm:$0xff] %v416
              %v418 = vld [vmem:[%s394 + $0x58] sm:$0xff]
              %419 = vst [vmem:[%s395 + $0x58] sm:$0xff] %v418
              %v420 = vld [vmem:[%s394 + $0x60] sm:$0xff]
              %421 = vst [vmem:[%s395 + $0x60] sm:$0xff] %v420
              %v422 = vld [vmem:[%s394 + $0x68] sm:$0xff]
              %423 = vst [vmem:[%s395 + $0x68] sm:$0xff] %v422
              %v424 = vld [vmem:[%s394 + $0x70] sm:$0xff]
              %425 = vst [vmem:[%s395 + $0x70] sm:$0xff] %v424
              %v426 = vld [vmem:[%s394 + $0x78] sm:$0xff]
              %427 = vst [vmem:[%s395 + $0x78] sm:$0xff] %v426
              %v428 = vld [vmem:[%s394 + $0x80] sm:$0xff]
              %429 = vst [vmem:[%s395 + $0x80] sm:$0xff] %v428
              %v430 = vld [vmem:[%s394 + $0x88] sm:$0xff]
              %431 = vst [vmem:[%s395 + $0x88] sm:$0xff] %v430
              %v432 = vld [vmem:[%s394 + $0x90] sm:$0xff]
              %433 = vst [vmem:[%s395 + $0x90] sm:$0xff] %v432
              %v434 = vld [vmem:[%s394 + $0x98] sm:$0xff]
              %435 = vst [vmem:[%s395 + $0x98] sm:$0xff] %v434
              %v436 = vld [vmem:[%s394 + $0xa0] sm:$0xff]
              %437 = vst [vmem:[%s395 + $0xa0] sm:$0xff] %v436
              %v438 = vld [vmem:[%s394 + $0xa8] sm:$0xff]
              %439 = vst [vmem:[%s395 + $0xa8] sm:$0xff] %v438
              %v440 = vld [vmem:[%s394 + $0xb0] sm:$0xff]
              %441 = vst [vmem:[%s395 + $0xb0] sm:$0xff] %v440
              %v442 = vld [vmem:[%s394 + $0xb8] sm:$0xff]
              %443 = vst [vmem:[%s395 + $0xb8] sm:$0xff] %v442
              %v444 = vld [vmem:[%s394 + $0xc0] sm:$0xff]
              %445 = vst [vmem:[%s395 + $0xc0] sm:$0xff] %v444
              %v446 = vld [vmem:[%s394 + $0xc8] sm:$0xff]
              %447 = vst [vmem:[%s395 + $0xc8] sm:$0xff] %v446
              %v448 = vld [vmem:[%s394 + $0xd0] sm:$0xff]
              %449 = vst [vmem:[%s395 + $0xd0] sm:$0xff] %v448
              %v450 = vld [vmem:[%s394 + $0xd8] sm:$0xff]
              %451 = vst [vmem:[%s395 + $0xd8] sm:$0xff] %v450
              %v452 = vld [vmem:[%s394 + $0xe0] sm:$0xff]
              %453 = vst [vmem:[%s395 + $0xe0] sm:$0xff] %v452
              %v454 = vld [vmem:[%s394 + $0xe8] sm:$0xff]
              %455 = vst [vmem:[%s395 + $0xe8] sm:$0xff] %v454
              %v456 = vld [vmem:[%s394 + $0xf0] sm:$0xff]
              %457 = vst [vmem:[%s395 + $0xf0] sm:$0xff] %v456
              %v458 = vld [vmem:[%s394 + $0xf8] sm:$0xff]
              %459 = vst [vmem:[%s395 + $0xf8] sm:$0xff] %v458
            $region101: #{resblock1_forward.7} parent=95 // loop_footer
              %s393 = sadd.s32 1, %s389
            $region102: #{resblock1_forward.7} parent=95 // loop_footer_branch
              %388 = sbr.rel target = $region98
            $region103: #{resblock1_forward.7} parent=95 // loop_exit
              _
            %s460 = sshllo.u32 0, %s383
            loop: start=0, step=1, limit=1
            $region104: #{resblock1_forward.7} parent=95 // loop_pre_header
              _
            $region105: #{resblock1_forward.7} parent=95 // loop_header
              %s462 = sphi 0, %s466
              %p463 = scmp.ge.s32.totalorder %s462, 1
              %s467 = sphi %s385, %s385
              %s468 = sphi %s387, %s387
            $region106: #{resblock1_forward.7} parent=95 // loop_header_branch
              %465 = sbr.rel (%p463) target = $region110
            $region107: #{resblock1_forward.7} parent=95 // loop_body
              %v469 = vld [vmem:[%s467] sm:%s460]
              %470 = vst [vmem:[%s468] sm:%s460] %v469
            $region108: #{resblock1_forward.7} parent=95 // loop_footer
              %s466 = sadd.s32 1, %s462
            $region109: #{resblock1_forward.7} parent=95 // loop_footer_branch
              %461 = sbr.rel target = $region105
            $region110: #{resblock1_forward.7} parent=95 // loop_exit
              _
          $region96: #{resblock1_forward.7} parent=80 // pred_fallthru
            _
        $region81: #{resblock1_forward.7} parent=76 // pred_fallthru
          _
        // Predicated region
        $region82: #{resblock1_forward.7} parent=76 // pred_check
          %p364 = pneg %p360
        $region83: #{resblock1_forward.7} parent=76 // pred_check_branch
          %366 = sbr.rel (%p364) target = $region85
        $region84: #{resblock1_forward.7} parent=76 // pred_region
          %s367 = sshllo.u32 0, 258
          loop: start=0, step=1, limit=1
          $region86: #{resblock1_forward.7} parent=84 // loop_pre_header
            _
          $region87: #{resblock1_forward.7} parent=84 // loop_header
            %s369 = sphi 0, %s373
            %p370 = scmp.ge.s32.totalorder %s369, 1
            %s374 = sphi %s355, %s355
            %s375 = sphi %s357, %s357
          $region88: #{resblock1_forward.7} parent=84 // loop_header_branch
            %372 = sbr.rel (%p370) target = $region92
          $region89: #{resblock1_forward.7} parent=84 // loop_body
            %v376 = vld [vmem:[%s374] sm:%s367]
            %377 = vst [vmem:[%s375] sm:%s367] %v376
          $region90: #{resblock1_forward.7} parent=84 // loop_footer
            %s373 = sadd.s32 1, %s369
          $region91: #{resblock1_forward.7} parent=84 // loop_footer_branch
            %368 = sbr.rel target = $region87
          $region92: #{resblock1_forward.7} parent=84 // loop_exit
            _
        $region85: #{resblock1_forward.7} parent=76 // pred_fallthru
          _
        // Predicated region
        $region111: #{resblock1_forward.7} parent=76 // pred_check
          _
        $region112: #{resblock1_forward.7} parent=76 // pred_check_branch
          %473 = sbr.rel (0) target = $region114
        $region113: #{resblock1_forward.7} parent=76 // pred_region
          %474 = vsyncadd %s358, 4128
        $region114: #{resblock1_forward.7} parent=76 // pred_fallthru
          _
      $region77: #{resblock1_forward.7} parent=31 // pred_fallthru
        _
      %p475 = scmp.lt.s32.totalorder %s20, 0
      %s476 = ssub.s32 0, %s20
      %s477 = scalar_select %p475, %s476, %s20
      %s478 = sand.u32 %s477, 1
      %s479 = ssub.s32 0, %s478
      %s480 = scalar_select %p475, %s479, %s478
      %p481 = scmp.ne.s32.totalorder %s480, 0
      %p482 = scmp.lt.s32.totalorder %s480, 0
      %p483 = pnand %p482, %p481
      %p484 = pneg %p483
      %s485 = sadd.s32 %s480, 2
      %s486 = scalar_select %p484, %s485, %s480
      %s487 = smul.u32 %s20, 256
      %s488 = smul.u32 %s486, 264
      %s489 = scalar_lea.vmem [#allocation2], %s488
      %s490 = scalar_lea.sflag [#allocation3], %s486
      %s491 = smul.u32 258, 1
      %s492 = sshll.u32 %s491, 4
      %493 = dma.done %s490, %s492
      %v494 = vld [vmem:[%s489] sm:$0xff]
      %v495 = vld [vmem:[%s489 + $0x8] sm:$0xff]
      %v496 = vld [vmem:[%s489 + $0x10] sm:$0xff]
      %v497 = vld [vmem:[%s489 + $0x18] sm:$0xff]
      %v498 = vld [vmem:[%s489 + $0x20] sm:$0xff]
      %v499 = vld [vmem:[%s489 + $0x28] sm:$0xff]
      %v500 = vld [vmem:[%s489 + $0x30] sm:$0xff]
      %v501 = vld [vmem:[%s489 + $0x38] sm:$0xff]
      %v502 = vld [vmem:[%s489 + $0x40] sm:$0xff]
      %v503 = vld [vmem:[%s489 + $0x48] sm:$0xff]
      %v504 = vld [vmem:[%s489 + $0x50] sm:$0xff]
      %v505 = vld [vmem:[%s489 + $0x58] sm:$0xff]
      %v506 = vld [vmem:[%s489 + $0x60] sm:$0xff]
      %v507 = vld [vmem:[%s489 + $0x68] sm:$0xff]
      %v508 = vld [vmem:[%s489 + $0x70] sm:$0xff]
      %v509 = vld [vmem:[%s489 + $0x78] sm:$0xff]
      %v510 = vld [vmem:[%s489 + $0x80] sm:$0xff]
      %v511 = vld [vmem:[%s489 + $0x88] sm:$0xff]
      %v512 = vld [vmem:[%s489 + $0x90] sm:$0xff]
      %v513 = vld [vmem:[%s489 + $0x98] sm:$0xff]
      %v514 = vld [vmem:[%s489 + $0xa0] sm:$0xff]
      %v515 = vld [vmem:[%s489 + $0xa8] sm:$0xff]
      %v516 = vld [vmem:[%s489 + $0xb0] sm:$0xff]
      %v517 = vld [vmem:[%s489 + $0xb8] sm:$0xff]
      %v518 = vld [vmem:[%s489 + $0xc0] sm:$0xff]
      %v519 = vld [vmem:[%s489 + $0xc8] sm:$0xff]
      %v520 = vld [vmem:[%s489 + $0xd0] sm:$0xff]
      %v521 = vld [vmem:[%s489 + $0xd8] sm:$0xff]
      %v522 = vld [vmem:[%s489 + $0xe0] sm:$0xff]
      %v523 = vld [vmem:[%s489 + $0xe8] sm:$0xff]
      %v524 = vld [vmem:[%s489 + $0xf0] sm:$0xff]
      %v525 = vld [vmem:[%s489 + $0xf8] sm:$0xff]
      %v526 = vld [vmem:[%s489 + $0x100] sm:$0x3]
      %vm527 = vcmp.ge.f32.partialorder %v494, 0.0
      %vm528 = vcmp.ge.f32.partialorder %v495, 0.0
      %vm529 = vcmp.ge.f32.partialorder %v496, 0.0
      %vm530 = vcmp.ge.f32.partialorder %v497, 0.0
      %vm531 = vcmp.ge.f32.partialorder %v498, 0.0
      %vm532 = vcmp.ge.f32.partialorder %v499, 0.0
      %vm533 = vcmp.ge.f32.partialorder %v500, 0.0
      %vm534 = vcmp.ge.f32.partialorder %v501, 0.0
      %vm535 = vcmp.ge.f32.partialorder %v502, 0.0
      %vm536 = vcmp.ge.f32.partialorder %v503, 0.0
      %vm537 = vcmp.ge.f32.partialorder %v504, 0.0
      %vm538 = vcmp.ge.f32.partialorder %v505, 0.0
      %vm539 = vcmp.ge.f32.partialorder %v506, 0.0
      %vm540 = vcmp.ge.f32.partialorder %v507, 0.0
      %vm541 = vcmp.ge.f32.partialorder %v508, 0.0
      %vm542 = vcmp.ge.f32.partialorder %v509, 0.0
      %vm543 = vcmp.ge.f32.partialorder %v510, 0.0
      %vm544 = vcmp.ge.f32.partialorder %v511, 0.0
      %vm545 = vcmp.ge.f32.partialorder %v512, 0.0
      %vm546 = vcmp.ge.f32.partialorder %v513, 0.0
      %vm547 = vcmp.ge.f32.partialorder %v514, 0.0
      %vm548 = vcmp.ge.f32.partialorder %v515, 0.0
      %vm549 = vcmp.ge.f32.partialorder %v516, 0.0
      %vm550 = vcmp.ge.f32.partialorder %v517, 0.0
      %vm551 = vcmp.ge.f32.partialorder %v518, 0.0
      %vm552 = vcmp.ge.f32.partialorder %v519, 0.0
      %vm553 = vcmp.ge.f32.partialorder %v520, 0.0
      %vm554 = vcmp.ge.f32.partialorder %v521, 0.0
      %vm555 = vcmp.ge.f32.partialorder %v522, 0.0
      %vm556 = vcmp.ge.f32.partialorder %v523, 0.0
      %vm557 = vcmp.ge.f32.partialorder %v524, 0.0
      %vm558 = vcmp.ge.f32.partialorder %v525, 0.0
      %vm559 = vcmp.ge.f32.partialorder %v526, 0.0
      %v560 = vmul.f32 %v494, 0.1
      %v561 = vmul.f32 %v495, 0.1
      %v562 = vmul.f32 %v496, 0.1
      %v563 = vmul.f32 %v497, 0.1
      %v564 = vmul.f32 %v498, 0.1
      %v565 = vmul.f32 %v499, 0.1
      %v566 = vmul.f32 %v500, 0.1
      %v567 = vmul.f32 %v501, 0.1
      %v568 = vmul.f32 %v502, 0.1
      %v569 = vmul.f32 %v503, 0.1
      %v570 = vmul.f32 %v504, 0.1
      %v571 = vmul.f32 %v505, 0.1
      %v572 = vmul.f32 %v506, 0.1
      %v573 = vmul.f32 %v507, 0.1
      %v574 = vmul.f32 %v508, 0.1
      %v575 = vmul.f32 %v509, 0.1
      %v576 = vmul.f32 %v510, 0.1
      %v577 = vmul.f32 %v511, 0.1
      %v578 = vmul.f32 %v512, 0.1
      %v579 = vmul.f32 %v513, 0.1
      %v580 = vmul.f32 %v514, 0.1
      %v581 = vmul.f32 %v515, 0.1
      %v582 = vmul.f32 %v516, 0.1
      %v583 = vmul.f32 %v517, 0.1
      %v584 = vmul.f32 %v518, 0.1
      %v585 = vmul.f32 %v519, 0.1
      %v586 = vmul.f32 %v520, 0.1
      %v587 = vmul.f32 %v521, 0.1
      %v588 = vmul.f32 %v522, 0.1
      %v589 = vmul.f32 %v523, 0.1
      %v590 = vmul.f32 %v524, 0.1
      %v591 = vmul.f32 %v525, 0.1
      %v592 = vmul.f32 %v526, 0.1
      %v593 = vsel %vm527, %v494, %v560
      %v594 = vsel %vm528, %v495, %v561
      %v595 = vsel %vm529, %v496, %v562
      %v596 = vsel %vm530, %v497, %v563
      %v597 = vsel %vm531, %v498, %v564
      %v598 = vsel %vm532, %v499, %v565
      %v599 = vsel %vm533, %v500, %v566
      %v600 = vsel %vm534, %v501, %v567
      %v601 = vsel %vm535, %v502, %v568
      %v602 = vsel %vm536, %v503, %v569
      %v603 = vsel %vm537, %v504, %v570
      %v604 = vsel %vm538, %v505, %v571
      %v605 = vsel %vm539, %v506, %v572
      %v606 = vsel %vm540, %v507, %v573
      %v607 = vsel %vm541, %v508, %v574
      %v608 = vsel %vm542, %v509, %v575
      %v609 = vsel %vm543, %v510, %v576
      %v610 = vsel %vm544, %v511, %v577
      %v611 = vsel %vm545, %v512, %v578
      %v612 = vsel %vm546, %v513, %v579
      %v613 = vsel %vm547, %v514, %v580
      %v614 = vsel %vm548, %v515, %v581
      %v615 = vsel %vm549, %v516, %v582
      %v616 = vsel %vm550, %v517, %v583
      %v617 = vsel %vm551, %v518, %v584
      %v618 = vsel %vm552, %v519, %v585
      %v619 = vsel %vm553, %v520, %v586
      %v620 = vsel %vm554, %v521, %v587
      %v621 = vsel %vm555, %v522, %v588
      %v622 = vsel %vm556, %v523, %v589
      %v623 = vsel %vm557, %v524, %v590
      %v624 = vsel %vm558, %v525, %v591
      %v625 = vsel %vm559, %v526, %v592
      %v626 = vpack.c.bf16 %v594, %v593
      %v627 = vpack.c.bf16 %v596, %v595
      %v628 = vpack.c.bf16 %v598, %v597
      %v629 = vpack.c.bf16 %v600, %v599
      %v630 = vpack.c.bf16 %v602, %v601
      %v631 = vpack.c.bf16 %v604, %v603
      %v632 = vpack.c.bf16 %v606, %v605
      %v633 = vpack.c.bf16 %v608, %v607
      %v634 = vpack.c.bf16 %v610, %v609
      %v635 = vpack.c.bf16 %v612, %v611
      %v636 = vpack.c.bf16 %v614, %v613
      %v637 = vpack.c.bf16 %v616, %v615
      %v638 = vpack.c.bf16 %v618, %v617
      %v639 = vpack.c.bf16 %v620, %v619
      %v640 = vpack.c.bf16 %v622, %v621
      %v641 = vpack.c.bf16 %v624, %v623
      %v642 = vpack.c.bf16 %v625, %v625
      %v643 = vld [vmem:[%s1] sm:$0xf]
      %v644 = vld [vmem:[%s1 + $0x4] sm:$0xf]
      %v645 = vld [vmem:[%s1 + $0x8] sm:$0xf]
      %v646 = vld [vmem:[%s1 + $0xc] sm:$0xf]
      %v647 = vld [vmem:[%s1 + $0x10] sm:$0xf]
      %v648 = vld [vmem:[%s1 + $0x14] sm:$0xf]
      %v649 = vld [vmem:[%s1 + $0x18] sm:$0xf]
      %v650 = vld [vmem:[%s1 + $0x1c] sm:$0xf]
      %v651 = vld [vmem:[%s1 + $0x20] sm:$0xf]
      %v652 = vld [vmem:[%s1 + $0x24] sm:$0xf]
      %v653 = vld [vmem:[%s1 + $0x28] sm:$0xf]
      %v654 = vld [vmem:[%s1 + $0x2c] sm:$0xf]
      %v655 = vld [vmem:[%s1 + $0x30] sm:$0xf]
      %v656 = vld [vmem:[%s1 + $0x34] sm:$0xf]
      %v657 = vld [vmem:[%s1 + $0x38] sm:$0xf]
      %v658 = vld [vmem:[%s1 + $0x3c] sm:$0xf]
      %s659 = scalar_lea.vmem %s1, 64
      %v660 = vld [vmem:[%s659] sm:$0xf]
      %v661 = vld [vmem:[%s659 + $0x4] sm:$0xf]
      %v662 = vld [vmem:[%s659 + $0x8] sm:$0xf]
      %v663 = vld [vmem:[%s659 + $0xc] sm:$0xf]
      %v664 = vld [vmem:[%s659 + $0x10] sm:$0xf]
      %v665 = vld [vmem:[%s659 + $0x14] sm:$0xf]
      %v666 = vld [vmem:[%s659 + $0x18] sm:$0xf]
      %v667 = vld [vmem:[%s659 + $0x1c] sm:$0xf]
      %v668 = vld [vmem:[%s659 + $0x20] sm:$0xf]
      %v669 = vld [vmem:[%s659 + $0x24] sm:$0xf]
      %v670 = vld [vmem:[%s659 + $0x28] sm:$0xf]
      %v671 = vld [vmem:[%s659 + $0x2c] sm:$0xf]
      %v672 = vld [vmem:[%s659 + $0x30] sm:$0xf]
      %v673 = vld [vmem:[%s659 + $0x34] sm:$0xf]
      %v674 = vld [vmem:[%s659 + $0x38] sm:$0xf]
      %v675 = vld [vmem:[%s659 + $0x3c] sm:$0xf]
      %vm676 = vsmask.f32 7424
      %v678 = vshrl.u32 %v626, 16
      %v680 = vshll.u32 %v626, 16
      %v682 = vrot.slane %v680, 1
      %v683 = vor.u32 %v678, %v682
      %v685 = vshll.u32 %v627, 16
      %v687 = vrot.slane %v685, 1
      %v688 = vsel %vm676, %v683, %v687
      %v689 = vshrl.u32 %v627, 16
      %v691 = vor.u32 %v689, %v687
      %v693 = vshll.u32 %v628, 16
      %v695 = vrot.slane %v693, 1
      %v696 = vsel %vm676, %v691, %v695
      %v697 = vshrl.u32 %v628, 16
      %v699 = vor.u32 %v697, %v695
      %v701 = vshll.u32 %v629, 16
      %v703 = vrot.slane %v701, 1
      %v704 = vsel %vm676, %v699, %v703
      %v705 = vshrl.u32 %v629, 16
      %v707 = vor.u32 %v705, %v703
      %v709 = vshll.u32 %v630, 16
      %v711 = vrot.slane %v709, 1
      %v712 = vsel %vm676, %v707, %v711
      %v713 = vshrl.u32 %v630, 16
      %v715 = vor.u32 %v713, %v711
      %v717 = vshll.u32 %v631, 16
      %v719 = vrot.slane %v717, 1
      %v720 = vsel %vm676, %v715, %v719
      %v721 = vshrl.u32 %v631, 16
      %v723 = vor.u32 %v721, %v719
      %v725 = vshll.u32 %v632, 16
      %v727 = vrot.slane %v725, 1
      %v728 = vsel %vm676, %v723, %v727
      %v729 = vshrl.u32 %v632, 16
      %v731 = vor.u32 %v729, %v727
      %v733 = vshll.u32 %v633, 16
      %v735 = vrot.slane %v733, 1
      %v736 = vsel %vm676, %v731, %v735
      %v737 = vshrl.u32 %v633, 16
      %v739 = vor.u32 %v737, %v735
      %v741 = vshll.u32 %v634, 16
      %v743 = vrot.slane %v741, 1
      %v744 = vsel %vm676, %v739, %v743
      %v745 = vshrl.u32 %v634, 16
      %v747 = vor.u32 %v745, %v743
      %v749 = vshll.u32 %v635, 16
      %v751 = vrot.slane %v749, 1
      %v752 = vsel %vm676, %v747, %v751
      %v753 = vshrl.u32 %v635, 16
      %v755 = vor.u32 %v753, %v751
      %v757 = vshll.u32 %v636, 16
      %v759 = vrot.slane %v757, 1
      %v760 = vsel %vm676, %v755, %v759
      %v761 = vshrl.u32 %v636, 16
      %v763 = vor.u32 %v761, %v759
      %v765 = vshll.u32 %v637, 16
      %v767 = vrot.slane %v765, 1
      %v768 = vsel %vm676, %v763, %v767
      %v769 = vshrl.u32 %v637, 16
      %v771 = vor.u32 %v769, %v767
      %v773 = vshll.u32 %v638, 16
      %v775 = vrot.slane %v773, 1
      %v776 = vsel %vm676, %v771, %v775
      %v777 = vshrl.u32 %v638, 16
      %v779 = vor.u32 %v777, %v775
      %v781 = vshll.u32 %v639, 16
      %v783 = vrot.slane %v781, 1
      %v784 = vsel %vm676, %v779, %v783
      %v785 = vshrl.u32 %v639, 16
      %v787 = vor.u32 %v785, %v783
      %v789 = vshll.u32 %v640, 16
      %v791 = vrot.slane %v789, 1
      %v792 = vsel %vm676, %v787, %v791
      %v793 = vshrl.u32 %v640, 16
      %v795 = vor.u32 %v793, %v791
      %v797 = vshll.u32 %v641, 16
      %v799 = vrot.slane %v797, 1
      %v800 = vsel %vm676, %v795, %v799
      %v801 = vshrl.u32 %v641, 16
      %v803 = vor.u32 %v801, %v799
      %v805 = vshll.u32 %v642, 16
      %v807 = vrot.slane %v805, 1
      %v808 = vsel %vm676, %v803, %v807
      %v841 = vunpack.c.l.b16 %v660
      %v842 = vunpack.c.l.b16 %v661
      %v843 = vunpack.c.l.b16 %v662
      %v844 = vunpack.c.l.b16 %v663
      %v845 = vunpack.c.l.b16 %v664
      %v846 = vunpack.c.l.b16 %v665
      %v847 = vunpack.c.l.b16 %v666
      %v848 = vunpack.c.l.b16 %v667
      %v849 = vunpack.c.l.b16 %v668
      %v850 = vunpack.c.l.b16 %v669
      %v851 = vunpack.c.l.b16 %v670
      %v852 = vunpack.c.l.b16 %v671
      %v853 = vunpack.c.l.b16 %v672
      %v854 = vunpack.c.l.b16 %v673
      %v855 = vunpack.c.l.b16 %v674
      %v856 = vunpack.c.l.b16 %v675
      %v857 = vpack.c.b16 %v842, %v841
      %v858 = vpack.c.b16 %v844, %v843
      %v859 = vpack.c.b16 %v846, %v845
      %v860 = vpack.c.b16 %v848, %v847
      %v861 = vpack.c.b16 %v850, %v849
      %v862 = vpack.c.b16 %v852, %v851
      %v863 = vpack.c.b16 %v854, %v853
      %v864 = vpack.c.b16 %v856, %v855
      %873 = vmatprep.subr.bf16.mxu0 0
      %874 = vmatpush1.bf16.msra.mxu0 %v857
      %875 = vmatprep.subr.bf16.mxu0 0
      %876 = vmatpush1.bf16.msra.mxu0 %v858
      %877 = vmatprep.subr.bf16.mxu0 0
      %878 = vmatpush1.bf16.msra.mxu0 %v859
      %879 = vmatprep.subr.bf16.mxu0 0
      %880 = vmatpush1.bf16.msra.mxu0 %v860
      %881 = vmatprep.subr.bf16.mxu0 0
      %882 = vmatpush1.bf16.msra.mxu0 %v861
      %883 = vmatprep.subr.bf16.mxu0 0
      %884 = vmatpush1.bf16.msra.mxu0 %v862
      %885 = vmatprep.subr.bf16.mxu0 0
      %886 = vmatpush1.bf16.msra.mxu0 %v863
      %887 = vmatprep.subr.bf16.mxu0 0
      %888 = vmatpush1.bf16.msra.mxu0 %v864
      %889 = vmatprep.subr.bf16.mxu0 0
      %890 = vmatpush1.bf16.msra.mxu0 0
      %891 = vmatprep.subr.bf16.mxu0 0
      %892 = vmatpush1.bf16.msra.mxu0 0
      %893 = vmatprep.subr.bf16.mxu0 0
      %894 = vmatpush1.bf16.msra.mxu0 0
      %895 = vmatprep.subr.bf16.mxu0 0
      %896 = vmatpush1.bf16.msra.mxu0 0
      %897 = vmatprep.subr.bf16.mxu0 0
      %898 = vmatpush1.bf16.msra.mxu0 0
      %899 = vmatprep.subr.bf16.mxu0 0
      %900 = vmatpush1.bf16.msra.mxu0 0
      %901 = vmatprep.subr.bf16.mxu0 0
      %902 = vmatpush1.bf16.msra.mxu0 0
      %903 = vmatprep.subr.bf16.mxu0 0
      %904 = vmatpush1.bf16.msra.mxu0 0
      %905 = vmatprep.mubr.bf16.mxu0 0
      %906 = vmatmul.mubr.bf16.gmra.mrb[0].mxu0 %v688
      %v907 = vpop.f32.mrb[0].mxu0
      %v908 = vadd.f32 0.0, %v907
      %v909 = vpop.f32.mrb[0].mxu0
      %v910 = vpop.f32.mrb[0].mxu0
      %v911 = vadd.f32 0.0, %v910
      %v912 = vpop.f32.mrb[0].mxu0
      %913 = vmatprep.mubr.bf16.mxu0 0
      %914 = vmatmul.mubr.bf16.gmra.mrb[0].mxu0 %v696
      %v915 = vpop.f32.mrb[0].mxu0
      %v916 = vadd.f32 0.0, %v915
      %v917 = vpop.f32.mrb[0].mxu0
      %v918 = vpop.f32.mrb[0].mxu0
      %v919 = vadd.f32 0.0, %v918
      %v920 = vpop.f32.mrb[0].mxu0
      %921 = vmatprep.mubr.bf16.mxu0 0
      %922 = vmatmul.mubr.bf16.gmra.mrb[0].mxu0 %v704
      %v923 = vpop.f32.mrb[0].mxu0
      %v924 = vadd.f32 0.0, %v923
      %v925 = vpop.f32.mrb[0].mxu0
      %v926 = vpop.f32.mrb[0].mxu0
      %v927 = vadd.f32 0.0, %v926
      %v928 = vpop.f32.mrb[0].mxu0
      %929 = vmatprep.mubr.bf16.mxu0 0
      %930 = vmatmul.mubr.bf16.gmra.mrb[0].mxu0 %v712
      %v931 = vpop.f32.mrb[0].mxu0
      %v932 = vadd.f32 0.0, %v931
      %v933 = vpop.f32.mrb[0].mxu0
      %v934 = vpop.f32.mrb[0].mxu0
      %v935 = vadd.f32 0.0, %v934
      %v936 = vpop.f32.mrb[0].mxu0
      %937 = vmatprep.mubr.bf16.mxu0 0
      %938 = vmatmul.mubr.bf16.gmra.mrb[0].mxu0 %v720
      %v939 = vpop.f32.mrb[0].mxu0
      %v940 = vadd.f32 0.0, %v939
      %v941 = vpop.f32.mrb[0].mxu0
      %v942 = vpop.f32.mrb[0].mxu0
      %v943 = vadd.f32 0.0, %v942
      %v944 = vpop.f32.mrb[0].mxu0
      %945 = vmatprep.mubr.bf16.mxu0 0
      %946 = vmatmul.mubr.bf16.gmra.mrb[0].mxu0 %v728
      %v947 = vpop.f32.mrb[0].mxu0
      %v948 = vadd.f32 0.0, %v947
      %v949 = vpop.f32.mrb[0].mxu0
      %v950 = vpop.f32.mrb[0].mxu0
      %v951 = vadd.f32 0.0, %v950
      %v952 = vpop.f32.mrb[0].mxu0
      %953 = vmatprep.mubr.bf16.mxu0 0
      %954 = vmatmul.mubr.bf16.gmra.mrb[0].mxu0 %v736
      %v955 = vpop.f32.mrb[0].mxu0
      %v956 = vadd.f32 0.0, %v955
      %v957 = vpop.f32.mrb[0].mxu0
      %v958 = vpop.f32.mrb[0].mxu0
      %v959 = vadd.f32 0.0, %v958
      %v960 = vpop.f32.mrb[0].mxu0
      %961 = vmatprep.mubr.bf16.mxu0 0
      %962 = vmatmul.mubr.bf16.gmra.mrb[0].mxu0 %v744
      %v963 = vpop.f32.mrb[0].mxu0
      %v964 = vadd.f32 0.0, %v963
      %v965 = vpop.f32.mrb[0].mxu0
      %v966 = vpop.f32.mrb[0].mxu0
      %v967 = vadd.f32 0.0, %v966
      %v968 = vpop.f32.mrb[0].mxu0
      %969 = vmatprep.mubr.bf16.mxu0 0
      %970 = vmatmul.mubr.bf16.gmra.mrb[0].mxu0 %v752
      %v971 = vpop.f32.mrb[0].mxu0
      %v972 = vadd.f32 0.0, %v971
      %v973 = vpop.f32.mrb[0].mxu0
      %v974 = vpop.f32.mrb[0].mxu0
      %v975 = vadd.f32 0.0, %v974
      %v976 = vpop.f32.mrb[0].mxu0
      %977 = vmatprep.mubr.bf16.mxu0 0
      %978 = vmatmul.mubr.bf16.gmra.mrb[0].mxu0 %v760
      %v979 = vpop.f32.mrb[0].mxu0
      %v980 = vadd.f32 0.0, %v979
      %v981 = vpop.f32.mrb[0].mxu0
      %v982 = vpop.f32.mrb[0].mxu0
      %v983 = vadd.f32 0.0, %v982
      %v984 = vpop.f32.mrb[0].mxu0
      %985 = vmatprep.mubr.bf16.mxu0 0
      %986 = vmatmul.mubr.bf16.gmra.mrb[0].mxu0 %v768
      %v987 = vpop.f32.mrb[0].mxu0
      %v988 = vadd.f32 0.0, %v987
      %v989 = vpop.f32.mrb[0].mxu0
      %v990 = vpop.f32.mrb[0].mxu0
      %v991 = vadd.f32 0.0, %v990
      %v992 = vpop.f32.mrb[0].mxu0
      %993 = vmatprep.mubr.bf16.mxu0 0
      %994 = vmatmul.mubr.bf16.gmra.mrb[0].mxu0 %v776
      %v995 = vpop.f32.mrb[0].mxu0
      %v996 = vadd.f32 0.0, %v995
      %v997 = vpop.f32.mrb[0].mxu0
      %v998 = vpop.f32.mrb[0].mxu0
      %v999 = vadd.f32 0.0, %v998
      %v1000 = vpop.f32.mrb[0].mxu0
      %1001 = vmatprep.mubr.bf16.mxu0 0
      %1002 = vmatmul.mubr.bf16.gmra.mrb[0].mxu0 %v784
      %v1003 = vpop.f32.mrb[0].mxu0
      %v1004 = vadd.f32 0.0, %v1003
      %v1005 = vpop.f32.mrb[0].mxu0
      %v1006 = vpop.f32.mrb[0].mxu0
      %v1007 = vadd.f32 0.0, %v1006
      %v1008 = vpop.f32.mrb[0].mxu0
      %1009 = vmatprep.mubr.bf16.mxu0 0
      %1010 = vmatmul.mubr.bf16.gmra.mrb[0].mxu0 %v792
      %v1011 = vpop.f32.mrb[0].mxu0
      %v1012 = vadd.f32 0.0, %v1011
      %v1013 = vpop.f32.mrb[0].mxu0
      %v1014 = vpop.f32.mrb[0].mxu0
      %v1015 = vadd.f32 0.0, %v1014
      %v1016 = vpop.f32.mrb[0].mxu0
      %1017 = vmatprep.mubr.bf16.mxu0 0
      %1018 = vmatmul.mubr.bf16.gmra.mrb[0].mxu0 %v800
      %v1019 = vpop.f32.mrb[0].mxu0
      %v1020 = vadd.f32 0.0, %v1019
      %v1021 = vpop.f32.mrb[0].mxu0
      %v1022 = vpop.f32.mrb[0].mxu0
      %v1023 = vadd.f32 0.0, %v1022
      %v1024 = vpop.f32.mrb[0].mxu0
      %1025 = vmatprep.mubr.bf16.mxu0 0
      %1026 = vmatmul.mubr.bf16.gmra.mrb[0].mxu0 %v808
      %v1027 = vpop.f32.mrb[0].mxu0
      %v1028 = vadd.f32 0.0, %v1027
      %v1029 = vpop.f32.mrb[0].mxu0
      %v1030 = vpop.f32.mrb[0].mxu0
      %v1031 = vadd.f32 0.0, %v1030
      %v1032 = vpop.f32.mrb[0].mxu0
      %1033 = vdwg.mxu0
      %v1050 = vunpack.c.l.b16 %v643
      %v1051 = vunpack.c.l.b16 %v644
      %v1052 = vunpack.c.l.b16 %v645
      %v1053 = vunpack.c.l.b16 %v646
      %v1054 = vunpack.c.l.b16 %v647
      %v1055 = vunpack.c.l.b16 %v648
      %v1056 = vunpack.c.l.b16 %v649
      %v1057 = vunpack.c.l.b16 %v650
      %v1058 = vunpack.c.l.b16 %v651
      %v1059 = vunpack.c.l.b16 %v652
      %v1060 = vunpack.c.l.b16 %v653
      %v1061 = vunpack.c.l.b16 %v654
      %v1062 = vunpack.c.l.b16 %v655
      %v1063 = vunpack.c.l.b16 %v656
      %v1064 = vunpack.c.l.b16 %v657
      %v1065 = vunpack.c.l.b16 %v658
      %v1066 = vpack.c.b16 %v1051, %v1050
      %v1067 = vpack.c.b16 %v1053, %v1052
      %v1068 = vpack.c.b16 %v1055, %v1054
      %v1069 = vpack.c.b16 %v1057, %v1056
      %v1070 = vpack.c.b16 %v1059, %v1058
      %v1071 = vpack.c.b16 %v1061, %v1060
      %v1072 = vpack.c.b16 %v1063, %v1062
      %v1073 = vpack.c.b16 %v1065, %v1064
      %1082 = vmatprep.subr.bf16.mxu0 0
      %1083 = vmatpush1.bf16.msra.mxu0 %v1066
      %1084 = vmatprep.subr.bf16.mxu0 0
      %1085 = vmatpush1.bf16.msra.mxu0 %v1067
      %1086 = vmatprep.subr.bf16.mxu0 0
      %1087 = vmatpush1.bf16.msra.mxu0 %v1068
      %1088 = vmatprep.subr.bf16.mxu0 0
      %1089 = vmatpush1.bf16.msra.mxu0 %v1069
      %1090 = vmatprep.subr.bf16.mxu0 0
      %1091 = vmatpush1.bf16.msra.mxu0 %v1070
      %1092 = vmatprep.subr.bf16.mxu0 0
      %1093 = vmatpush1.bf16.msra.mxu0 %v1071
      %1094 = vmatprep.subr.bf16.mxu0 0
      %1095 = vmatpush1.bf16.msra.mxu0 %v1072
      %1096 = vmatprep.subr.bf16.mxu0 0
      %1097 = vmatpush1.bf16.msra.mxu0 %v1073
      %1098 = vmatprep.subr.bf16.mxu0 0
      %1099 = vmatpush1.bf16.msra.mxu0 0
      %1100 = vmatprep.subr.bf16.mxu0 0
      %1101 = vmatpush1.bf16.msra.mxu0 0
      %1102 = vmatprep.subr.bf16.mxu0 0
      %1103 = vmatpush1.bf16.msra.mxu0 0
      %1104 = vmatprep.subr.bf16.mxu0 0
      %1105 = vmatpush1.bf16.msra.mxu0 0
      %1106 = vmatprep.subr.bf16.mxu0 0
      %1107 = vmatpush1.bf16.msra.mxu0 0
      %1108 = vmatprep.subr.bf16.mxu0 0
      %1109 = vmatpush1.bf16.msra.mxu0 0
      %1110 = vmatprep.subr.bf16.mxu0 0
      %1111 = vmatpush1.bf16.msra.mxu0 0
      %1112 = vmatprep.subr.bf16.mxu0 0
      %1113 = vmatpush1.bf16.msra.mxu0 0
      %1114 = vmatprep.mubr.bf16.mxu0 0
      %1115 = vmatmul.mubr.bf16.gmra.mrb[0].mxu0 %v626
      %v1116 = vpop.f32.mrb[0].mxu0
      %v1117 = vadd.f32 %v908, %v1116
      %v1118 = vpop.f32.mrb[0].mxu0
      %v1119 = vpop.f32.mrb[0].mxu0
      %v1120 = vadd.f32 %v911, %v1119
      %v1121 = vpop.f32.mrb[0].mxu0
      %1122 = vmatprep.mubr.bf16.mxu0 0
      %1123 = vmatmul.mubr.bf16.gmra.mrb[0].mxu0 %v627
      %v1124 = vpop.f32.mrb[0].mxu0
      %v1125 = vadd.f32 %v916, %v1124
      %v1126 = vpop.f32.mrb[0].mxu0
      %v1127 = vpop.f32.mrb[0].mxu0
      %v1128 = vadd.f32 %v919, %v1127
      %v1129 = vpop.f32.mrb[0].mxu0
      %1130 = vmatprep.mubr.bf16.mxu0 0
      %1131 = vmatmul.mubr.bf16.gmra.mrb[0].mxu0 %v628
      %v1132 = vpop.f32.mrb[0].mxu0
      %v1133 = vadd.f32 %v924, %v1132
      %v1134 = vpop.f32.mrb[0].mxu0
      %v1135 = vpop.f32.mrb[0].mxu0
      %v1136 = vadd.f32 %v927, %v1135
      %v1137 = vpop.f32.mrb[0].mxu0
      %1138 = vmatprep.mubr.bf16.mxu0 0
      %1139 = vmatmul.mubr.bf16.gmra.mrb[0].mxu0 %v629
      %v1140 = vpop.f32.mrb[0].mxu0
      %v1141 = vadd.f32 %v932, %v1140
      %v1142 = vpop.f32.mrb[0].mxu0
      %v1143 = vpop.f32.mrb[0].mxu0
      %v1144 = vadd.f32 %v935, %v1143
      %v1145 = vpop.f32.mrb[0].mxu0
      %1146 = vmatprep.mubr.bf16.mxu0 0
      %1147 = vmatmul.mubr.bf16.gmra.mrb[0].mxu0 %v630
      %v1148 = vpop.f32.mrb[0].mxu0
      %v1149 = vadd.f32 %v940, %v1148
      %v1150 = vpop.f32.mrb[0].mxu0
      %v1151 = vpop.f32.mrb[0].mxu0
      %v1152 = vadd.f32 %v943, %v1151
      %v1153 = vpop.f32.mrb[0].mxu0
      %1154 = vmatprep.mubr.bf16.mxu0 0
      %1155 = vmatmul.mubr.bf16.gmra.mrb[0].mxu0 %v631
      %v1156 = vpop.f32.mrb[0].mxu0
      %v1157 = vadd.f32 %v948, %v1156
      %v1158 = vpop.f32.mrb[0].mxu0
      %v1159 = vpop.f32.mrb[0].mxu0
      %v1160 = vadd.f32 %v951, %v1159
      %v1161 = vpop.f32.mrb[0].mxu0
      %1162 = vmatprep.mubr.bf16.mxu0 0
      %1163 = vmatmul.mubr.bf16.gmra.mrb[0].mxu0 %v632
      %v1164 = vpop.f32.mrb[0].mxu0
      %v1165 = vadd.f32 %v956, %v1164
      %v1166 = vpop.f32.mrb[0].mxu0
      %v1167 = vpop.f32.mrb[0].mxu0
      %v1168 = vadd.f32 %v959, %v1167
      %v1169 = vpop.f32.mrb[0].mxu0
      %1170 = vmatprep.mubr.bf16.mxu0 0
      %1171 = vmatmul.mubr.bf16.gmra.mrb[0].mxu0 %v633
      %v1172 = vpop.f32.mrb[0].mxu0
      %v1173 = vadd.f32 %v964, %v1172
      %v1174 = vpop.f32.mrb[0].mxu0
      %v1175 = vpop.f32.mrb[0].mxu0
      %v1176 = vadd.f32 %v967, %v1175
      %v1177 = vpop.f32.mrb[0].mxu0
      %1178 = vmatprep.mubr.bf16.mxu0 0
      %1179 = vmatmul.mubr.bf16.gmra.mrb[0].mxu0 %v634
      %v1180 = vpop.f32.mrb[0].mxu0
      %v1181 = vadd.f32 %v972, %v1180
      %v1182 = vpop.f32.mrb[0].mxu0
      %v1183 = vpop.f32.mrb[0].mxu0
      %v1184 = vadd.f32 %v975, %v1183
      %v1185 = vpop.f32.mrb[0].mxu0
      %1186 = vmatprep.mubr.bf16.mxu0 0
      %1187 = vmatmul.mubr.bf16.gmra.mrb[0].mxu0 %v635
      %v1188 = vpop.f32.mrb[0].mxu0
      %v1189 = vadd.f32 %v980, %v1188
      %v1190 = vpop.f32.mrb[0].mxu0
      %v1191 = vpop.f32.mrb[0].mxu0
      %v1192 = vadd.f32 %v983, %v1191
      %v1193 = vpop.f32.mrb[0].mxu0
      %1194 = vmatprep.mubr.bf16.mxu0 0
      %1195 = vmatmul.mubr.bf16.gmra.mrb[0].mxu0 %v636
      %v1196 = vpop.f32.mrb[0].mxu0
      %v1197 = vadd.f32 %v988, %v1196
      %v1198 = vpop.f32.mrb[0].mxu0
      %v1199 = vpop.f32.mrb[0].mxu0
      %v1200 = vadd.f32 %v991, %v1199
      %v1201 = vpop.f32.mrb[0].mxu0
      %1202 = vmatprep.mubr.bf16.mxu0 0
      %1203 = vmatmul.mubr.bf16.gmra.mrb[0].mxu0 %v637
      %v1204 = vpop.f32.mrb[0].mxu0
      %v1205 = vadd.f32 %v996, %v1204
      %v1206 = vpop.f32.mrb[0].mxu0
      %v1207 = vpop.f32.mrb[0].mxu0
      %v1208 = vadd.f32 %v999, %v1207
      %v1209 = vpop.f32.mrb[0].mxu0
      %1210 = vmatprep.mubr.bf16.mxu0 0
      %1211 = vmatmul.mubr.bf16.gmra.mrb[0].mxu0 %v638
      %v1212 = vpop.f32.mrb[0].mxu0
      %v1213 = vadd.f32 %v1004, %v1212
      %v1214 = vpop.f32.mrb[0].mxu0
      %v1215 = vpop.f32.mrb[0].mxu0
      %v1216 = vadd.f32 %v1007, %v1215
      %v1217 = vpop.f32.mrb[0].mxu0
      %1218 = vmatprep.mubr.bf16.mxu0 0
      %1219 = vmatmul.mubr.bf16.gmra.mrb[0].mxu0 %v639
      %v1220 = vpop.f32.mrb[0].mxu0
      %v1221 = vadd.f32 %v1012, %v1220
      %v1222 = vpop.f32.mrb[0].mxu0
      %v1223 = vpop.f32.mrb[0].mxu0
      %v1224 = vadd.f32 %v1015, %v1223
      %v1225 = vpop.f32.mrb[0].mxu0
      %1226 = vmatprep.mubr.bf16.mxu0 0
      %1227 = vmatmul.mubr.bf16.gmra.mrb[0].mxu0 %v640
      %v1228 = vpop.f32.mrb[0].mxu0
      %v1229 = vadd.f32 %v1020, %v1228
      %v1230 = vpop.f32.mrb[0].mxu0
      %v1231 = vpop.f32.mrb[0].mxu0
      %v1232 = vadd.f32 %v1023, %v1231
      %v1233 = vpop.f32.mrb[0].mxu0
      %1234 = vmatprep.mubr.bf16.mxu0 0
      %1235 = vmatmul.mubr.bf16.gmra.mrb[0].mxu0 %v641
      %v1236 = vpop.f32.mrb[0].mxu0
      %v1237 = vadd.f32 %v1028, %v1236
      %v1238 = vpop.f32.mrb[0].mxu0
      %v1239 = vpop.f32.mrb[0].mxu0
      %v1240 = vadd.f32 %v1031, %v1239
      %v1241 = vpop.f32.mrb[0].mxu0
      %1242 = vdwg.mxu0
      %s1243 = scalar_lea.vmem %s1, 128
      %v1244 = vld [vmem:[%s1243] sm:$0xf]
      %v1245 = vld [vmem:[%s1243 + $0x4] sm:$0xf]
      %v1246 = vld [vmem:[%s1243 + $0x8] sm:$0xf]
      %v1247 = vld [vmem:[%s1243 + $0xc] sm:$0xf]
      %v1248 = vld [vmem:[%s1243 + $0x10] sm:$0xf]
      %v1249 = vld [vmem:[%s1243 + $0x14] sm:$0xf]
      %v1250 = vld [vmem:[%s1243 + $0x18] sm:$0xf]
      %v1251 = vld [vmem:[%s1243 + $0x1c] sm:$0xf]
      %v1252 = vld [vmem:[%s1243 + $0x20] sm:$0xf]
      %v1253 = vld [vmem:[%s1243 + $0x24] sm:$0xf]
      %v1254 = vld [vmem:[%s1243 + $0x28] sm:$0xf]
      %v1255 = vld [vmem:[%s1243 + $0x2c] sm:$0xf]
      %v1256 = vld [vmem:[%s1243 + $0x30] sm:$0xf]
      %v1257 = vld [vmem:[%s1243 + $0x34] sm:$0xf]
      %v1258 = vld [vmem:[%s1243 + $0x38] sm:$0xf]
      %v1259 = vld [vmem:[%s1243 + $0x3c] sm:$0xf]
      %vm1277 = vcmask 1046528
      %v1278 = vrot.slane %v626, 1
      %v1279 = vrot.slane %v627, 1
      %v1280 = vsel %vm1277, %v1278, %v1279
      %v1281 = vrot.slane %v628, 1
      %v1282 = vsel %vm1277, %v1279, %v1281
      %v1283 = vrot.slane %v629, 1
      %v1284 = vsel %vm1277, %v1281, %v1283
      %v1285 = vrot.slane %v630, 1
      %v1286 = vsel %vm1277, %v1283, %v1285
      %v1287 = vrot.slane %v631, 1
      %v1288 = vsel %vm1277, %v1285, %v1287
      %v1289 = vrot.slane %v632, 1
      %v1290 = vsel %vm1277, %v1287, %v1289
      %v1291 = vrot.slane %v633, 1
      %v1292 = vsel %vm1277, %v1289, %v1291
      %v1293 = vrot.slane %v634, 1
      %v1294 = vsel %vm1277, %v1291, %v1293
      %v1295 = vrot.slane %v635, 1
      %v1296 = vsel %vm1277, %v1293, %v1295
      %v1297 = vrot.slane %v636, 1
      %v1298 = vsel %vm1277, %v1295, %v1297
      %v1299 = vrot.slane %v637, 1
      %v1300 = vsel %vm1277, %v1297, %v1299
      %v1301 = vrot.slane %v638, 1
      %v1302 = vsel %vm1277, %v1299, %v1301
      %v1303 = vrot.slane %v639, 1
      %v1304 = vsel %vm1277, %v1301, %v1303
      %v1305 = vrot.slane %v640, 1
      %v1306 = vsel %vm1277, %v1303, %v1305
      %v1307 = vrot.slane %v641, 1
      %v1308 = vsel %vm1277, %v1305, %v1307
      %v1309 = vrot.slane %v642, 1
      %v1310 = vsel %vm1277, %v1307, %v1309
      %v1343 = vunpack.c.l.b16 %v1244
      %v1344 = vunpack.c.l.b16 %v1245
      %v1345 = vunpack.c.l.b16 %v1246
      %v1346 = vunpack.c.l.b16 %v1247
      %v1347 = vunpack.c.l.b16 %v1248
      %v1348 = vunpack.c.l.b16 %v1249
      %v1349 = vunpack.c.l.b16 %v1250
      %v1350 = vunpack.c.l.b16 %v1251
      %v1351 = vunpack.c.l.b16 %v1252
      %v1352 = vunpack.c.l.b16 %v1253
      %v1353 = vunpack.c.l.b16 %v1254
      %v1354 = vunpack.c.l.b16 %v1255
      %v1355 = vunpack.c.l.b16 %v1256
      %v1356 = vunpack.c.l.b16 %v1257
      %v1357 = vunpack.c.l.b16 %v1258
      %v1358 = vunpack.c.l.b16 %v1259
      %v1359 = vpack.c.b16 %v1344, %v1343
      %v1360 = vpack.c.b16 %v1346, %v1345
      %v1361 = vpack.c.b16 %v1348, %v1347
      %v1362 = vpack.c.b16 %v1350, %v1349
      %v1363 = vpack.c.b16 %v1352, %v1351
      %v1364 = vpack.c.b16 %v1354, %v1353
      %v1365 = vpack.c.b16 %v1356, %v1355
      %v1366 = vpack.c.b16 %v1358, %v1357
      %1375 = vmatprep.subr.bf16.mxu0 0
      %1376 = vmatpush1.bf16.msra.mxu0 %v1359
      %1377 = vmatprep.subr.bf16.mxu0 0
      %1378 = vmatpush1.bf16.msra.mxu0 %v1360
      %1379 = vmatprep.subr.bf16.mxu0 0
      %1380 = vmatpush1.bf16.msra.mxu0 %v1361
      %1381 = vmatprep.subr.bf16.mxu0 0
      %1382 = vmatpush1.bf16.msra.mxu0 %v1362
      %1383 = vmatprep.subr.bf16.mxu0 0
      %1384 = vmatpush1.bf16.msra.mxu0 %v1363
      %1385 = vmatprep.subr.bf16.mxu0 0
      %1386 = vmatpush1.bf16.msra.mxu0 %v1364
      %1387 = vmatprep.subr.bf16.mxu0 0
      %1388 = vmatpush1.bf16.msra.mxu0 %v1365
      %1389 = vmatprep.subr.bf16.mxu0 0
      %1390 = vmatpush1.bf16.msra.mxu0 %v1366
      %1391 = vmatprep.subr.bf16.mxu0 0
      %1392 = vmatpush1.bf16.msra.mxu0 0
      %1393 = vmatprep.subr.bf16.mxu0 0
      %1394 = vmatpush1.bf16.msra.mxu0 0
      %1395 = vmatprep.subr.bf16.mxu0 0
      %1396 = vmatpush1.bf16.msra.mxu0 0
      %1397 = vmatprep.subr.bf16.mxu0 0
      %1398 = vmatpush1.bf16.msra.mxu0 0
      %1399 = vmatprep.subr.bf16.mxu0 0
      %1400 = vmatpush1.bf16.msra.mxu0 0
      %1401 = vmatprep.subr.bf16.mxu0 0
      %1402 = vmatpush1.bf16.msra.mxu0 0
      %1403 = vmatprep.subr.bf16.mxu0 0
      %1404 = vmatpush1.bf16.msra.mxu0 0
      %1405 = vmatprep.subr.bf16.mxu0 0
      %1406 = vmatpush1.bf16.msra.mxu0 0
      %1407 = vmatprep.mubr.bf16.mxu0 0
      %1408 = vmatmul.mubr.bf16.gmra.mrb[0].mxu0 %v1280
      %v1409 = vpop.f32.mrb[0].mxu0
      %v1410 = vadd.f32 0.0, %v1409
      %v1411 = vpop.f32.mrb[0].mxu0
      %v1412 = vpop.f32.mrb[0].mxu0
      %v1413 = vadd.f32 0.0, %v1412
      %v1414 = vpop.f32.mrb[0].mxu0
      %1415 = vmatprep.mubr.bf16.mxu0 0
      %1416 = vmatmul.mubr.bf16.gmra.mrb[0].mxu0 %v1282
      %v1417 = vpop.f32.mrb[0].mxu0
      %v1418 = vadd.f32 0.0, %v1417
      %v1419 = vpop.f32.mrb[0].mxu0
      %v1420 = vpop.f32.mrb[0].mxu0
      %v1421 = vadd.f32 0.0, %v1420
      %v1422 = vpop.f32.mrb[0].mxu0
      %1423 = vmatprep.mubr.bf16.mxu0 0
      %1424 = vmatmul.mubr.bf16.gmra.mrb[0].mxu0 %v1284
      %v1425 = vpop.f32.mrb[0].mxu0
      %v1426 = vadd.f32 0.0, %v1425
      %v1427 = vpop.f32.mrb[0].mxu0
      %v1428 = vpop.f32.mrb[0].mxu0
      %v1429 = vadd.f32 0.0, %v1428
      %v1430 = vpop.f32.mrb[0].mxu0
      %1431 = vmatprep.mubr.bf16.mxu0 0
      %1432 = vmatmul.mubr.bf16.gmra.mrb[0].mxu0 %v1286
      %v1433 = vpop.f32.mrb[0].mxu0
      %v1434 = vadd.f32 0.0, %v1433
      %v1435 = vpop.f32.mrb[0].mxu0
      %v1436 = vpop.f32.mrb[0].mxu0
      %v1437 = vadd.f32 0.0, %v1436
      %v1438 = vpop.f32.mrb[0].mxu0
      %1439 = vmatprep.mubr.bf16.mxu0 0
      %1440 = vmatmul.mubr.bf16.gmra.mrb[0].mxu0 %v1288
      %v1441 = vpop.f32.mrb[0].mxu0
      %v1442 = vadd.f32 0.0, %v1441
      %v1443 = vpop.f32.mrb[0].mxu0
      %v1444 = vpop.f32.mrb[0].mxu0
      %v1445 = vadd.f32 0.0, %v1444
      %v1446 = vpop.f32.mrb[0].mxu0
      %1447 = vmatprep.mubr.bf16.mxu0 0
      %1448 = vmatmul.mubr.bf16.gmra.mrb[0].mxu0 %v1290
      %v1449 = vpop.f32.mrb[0].mxu0
      %v1450 = vadd.f32 0.0, %v1449
      %v1451 = vpop.f32.mrb[0].mxu0
      %v1452 = vpop.f32.mrb[0].mxu0
      %v1453 = vadd.f32 0.0, %v1452
      %v1454 = vpop.f32.mrb[0].mxu0
      %1455 = vmatprep.mubr.bf16.mxu0 0
      %1456 = vmatmul.mubr.bf16.gmra.mrb[0].mxu0 %v1292
      %v1457 = vpop.f32.mrb[0].mxu0
      %v1458 = vadd.f32 0.0, %v1457
      %v1459 = vpop.f32.mrb[0].mxu0
      %v1460 = vpop.f32.mrb[0].mxu0
      %v1461 = vadd.f32 0.0, %v1460
      %v1462 = vpop.f32.mrb[0].mxu0
      %1463 = vmatprep.mubr.bf16.mxu0 0
      %1464 = vmatmul.mubr.bf16.gmra.mrb[0].mxu0 %v1294
      %v1465 = vpop.f32.mrb[0].mxu0
      %v1466 = vadd.f32 0.0, %v1465
      %v1467 = vpop.f32.mrb[0].mxu0
      %v1468 = vpop.f32.mrb[0].mxu0
      %v1469 = vadd.f32 0.0, %v1468
      %v1470 = vpop.f32.mrb[0].mxu0
      %1471 = vmatprep.mubr.bf16.mxu0 0
      %1472 = vmatmul.mubr.bf16.gmra.mrb[0].mxu0 %v1296
      %v1473 = vpop.f32.mrb[0].mxu0
      %v1474 = vadd.f32 0.0, %v1473
      %v1475 = vpop.f32.mrb[0].mxu0
      %v1476 = vpop.f32.mrb[0].mxu0
      %v1477 = vadd.f32 0.0, %v1476
      %v1478 = vpop.f32.mrb[0].mxu0
      %1479 = vmatprep.mubr.bf16.mxu0 0
      %1480 = vmatmul.mubr.bf16.gmra.mrb[0].mxu0 %v1298
      %v1481 = vpop.f32.mrb[0].mxu0
      %v1482 = vadd.f32 0.0, %v1481
      %v1483 = vpop.f32.mrb[0].mxu0
      %v1484 = vpop.f32.mrb[0].mxu0
      %v1485 = vadd.f32 0.0, %v1484
      %v1486 = vpop.f32.mrb[0].mxu0
      %1487 = vmatprep.mubr.bf16.mxu0 0
      %1488 = vmatmul.mubr.bf16.gmra.mrb[0].mxu0 %v1300
      %v1489 = vpop.f32.mrb[0].mxu0
      %v1490 = vadd.f32 0.0, %v1489
      %v1491 = vpop.f32.mrb[0].mxu0
      %v1492 = vpop.f32.mrb[0].mxu0
      %v1493 = vadd.f32 0.0, %v1492
      %v1494 = vpop.f32.mrb[0].mxu0
      %1495 = vmatprep.mubr.bf16.mxu0 0
      %1496 = vmatmul.mubr.bf16.gmra.mrb[0].mxu0 %v1302
      %v1497 = vpop.f32.mrb[0].mxu0
      %v1498 = vadd.f32 0.0, %v1497
      %v1499 = vpop.f32.mrb[0].mxu0
      %v1500 = vpop.f32.mrb[0].mxu0
      %v1501 = vadd.f32 0.0, %v1500
      %v1502 = vpop.f32.mrb[0].mxu0
      %1503 = vmatprep.mubr.bf16.mxu0 0
      %1504 = vmatmul.mubr.bf16.gmra.mrb[0].mxu0 %v1304
      %v1505 = vpop.f32.mrb[0].mxu0
      %v1506 = vadd.f32 0.0, %v1505
      %v1507 = vpop.f32.mrb[0].mxu0
      %v1508 = vpop.f32.mrb[0].mxu0
      %v1509 = vadd.f32 0.0, %v1508
      %v1510 = vpop.f32.mrb[0].mxu0
      %1511 = vmatprep.mubr.bf16.mxu0 0
      %1512 = vmatmul.mubr.bf16.gmra.mrb[0].mxu0 %v1306
      %v1513 = vpop.f32.mrb[0].mxu0
      %v1514 = vadd.f32 0.0, %v1513
      %v1515 = vpop.f32.mrb[0].mxu0
      %v1516 = vpop.f32.mrb[0].mxu0
      %v1517 = vadd.f32 0.0, %v1516
      %v1518 = vpop.f32.mrb[0].mxu0
      %1519 = vmatprep.mubr.bf16.mxu0 0
      %1520 = vmatmul.mubr.bf16.gmra.mrb[0].mxu0 %v1308
      %v1521 = vpop.f32.mrb[0].mxu0
      %v1522 = vadd.f32 0.0, %v1521
      %v1523 = vpop.f32.mrb[0].mxu0
      %v1524 = vpop.f32.mrb[0].mxu0
      %v1525 = vadd.f32 0.0, %v1524
      %v1526 = vpop.f32.mrb[0].mxu0
      %1527 = vmatprep.mubr.bf16.mxu0 0
      %1528 = vmatmul.mubr.bf16.gmra.mrb[0].mxu0 %v1310
      %v1529 = vpop.f32.mrb[0].mxu0
      %v1530 = vadd.f32 0.0, %v1529
      %v1531 = vpop.f32.mrb[0].mxu0
      %v1532 = vpop.f32.mrb[0].mxu0
      %v1533 = vadd.f32 0.0, %v1532
      %v1534 = vpop.f32.mrb[0].mxu0
      %1535 = vdwg.mxu0
      %v1536 = vadd.f32 %v1117, %v1410
      %v1537 = vadd.f32 %v1120, %v1413
      %v1538 = vadd.f32 %v1125, %v1418
      %v1539 = vadd.f32 %v1128, %v1421
      %v1540 = vadd.f32 %v1133, %v1426
      %v1541 = vadd.f32 %v1136, %v1429
      %v1542 = vadd.f32 %v1141, %v1434
      %v1543 = vadd.f32 %v1144, %v1437
      %v1544 = vadd.f32 %v1149, %v1442
      %v1545 = vadd.f32 %v1152, %v1445
      %v1546 = vadd.f32 %v1157, %v1450
      %v1547 = vadd.f32 %v1160, %v1453
      %v1548 = vadd.f32 %v1165, %v1458
      %v1549 = vadd.f32 %v1168, %v1461
      %v1550 = vadd.f32 %v1173, %v1466
      %v1551 = vadd.f32 %v1176, %v1469
      %v1552 = vadd.f32 %v1181, %v1474
      %v1553 = vadd.f32 %v1184, %v1477
      %v1554 = vadd.f32 %v1189, %v1482
      %v1555 = vadd.f32 %v1192, %v1485
      %v1556 = vadd.f32 %v1197, %v1490
      %v1557 = vadd.f32 %v1200, %v1493
      %v1558 = vadd.f32 %v1205, %v1498
      %v1559 = vadd.f32 %v1208, %v1501
      %v1560 = vadd.f32 %v1213, %v1506
      %v1561 = vadd.f32 %v1216, %v1509
      %v1562 = vadd.f32 %v1221, %v1514
      %v1563 = vadd.f32 %v1224, %v1517
      %v1564 = vadd.f32 %v1229, %v1522
      %v1565 = vadd.f32 %v1232, %v1525
      %v1566 = vadd.f32 %v1237, %v1530
      %v1567 = vadd.f32 %v1240, %v1533
      %v1568 = vld [vmem:[%s2] sm:$0x1]
      %v1570 = vlaneseq
      %v1571 = vshrl.u32 %v1570, 7
      %v1572 = vsub.s32 0, %v1571
      %v1573 = vrot.slane %v1568, %v1572
      %v1575 = vadd.f32 %v1536, %v1573
      %v1576 = vadd.f32 %v1537, %v1573
      %v1577 = vadd.f32 %v1538, %v1573
      %v1578 = vadd.f32 %v1539, %v1573
      %v1579 = vadd.f32 %v1540, %v1573
      %v1580 = vadd.f32 %v1541, %v1573
      %v1581 = vadd.f32 %v1542, %v1573
      %v1582 = vadd.f32 %v1543, %v1573
      %v1583 = vadd.f32 %v1544, %v1573
      %v1584 = vadd.f32 %v1545, %v1573
      %v1585 = vadd.f32 %v1546, %v1573
      %v1586 = vadd.f32 %v1547, %v1573
      %v1587 = vadd.f32 %v1548, %v1573
      %v1588 = vadd.f32 %v1549, %v1573
      %v1589 = vadd.f32 %v1550, %v1573
      %v1590 = vadd.f32 %v1551, %v1573
      %v1591 = vadd.f32 %v1552, %v1573
      %v1592 = vadd.f32 %v1553, %v1573
      %v1593 = vadd.f32 %v1554, %v1573
      %v1594 = vadd.f32 %v1555, %v1573
      %v1595 = vadd.f32 %v1556, %v1573
      %v1596 = vadd.f32 %v1557, %v1573
      %v1597 = vadd.f32 %v1558, %v1573
      %v1598 = vadd.f32 %v1559, %v1573
      %v1599 = vadd.f32 %v1560, %v1573
      %v1600 = vadd.f32 %v1561, %v1573
      %v1601 = vadd.f32 %v1562, %v1573
      %v1602 = vadd.f32 %v1563, %v1573
      %v1603 = vadd.f32 %v1564, %v1573
      %v1604 = vadd.f32 %v1565, %v1573
      %v1605 = vadd.f32 %v1566, %v1573
      %v1606 = vadd.f32 %v1567, %v1573
      %v1607 = vld [vmem:[%s199] sm:$0xff]
      %v1608 = vld [vmem:[%s199 + $0x8] sm:$0xff]
      %v1609 = vld [vmem:[%s199 + $0x10] sm:$0xff]
      %v1610 = vld [vmem:[%s199 + $0x18] sm:$0xff]
      %v1611 = vld [vmem:[%s199 + $0x20] sm:$0xff]
      %v1612 = vld [vmem:[%s199 + $0x28] sm:$0xff]
      %v1613 = vld [vmem:[%s199 + $0x30] sm:$0xff]
      %v1614 = vld [vmem:[%s199 + $0x38] sm:$0xff]
      %v1615 = vld [vmem:[%s199 + $0x40] sm:$0xff]
      %v1616 = vld [vmem:[%s199 + $0x48] sm:$0xff]
      %v1617 = vld [vmem:[%s199 + $0x50] sm:$0xff]
      %v1618 = vld [vmem:[%s199 + $0x58] sm:$0xff]
      %v1619 = vld [vmem:[%s199 + $0x60] sm:$0xff]
      %v1620 = vld [vmem:[%s199 + $0x68] sm:$0xff]
      %v1621 = vld [vmem:[%s199 + $0x70] sm:$0xff]
      %v1622 = vld [vmem:[%s199 + $0x78] sm:$0xff]
      %v1623 = vld [vmem:[%s199 + $0x80] sm:$0xff]
      %v1624 = vld [vmem:[%s199 + $0x88] sm:$0xff]
      %v1625 = vld [vmem:[%s199 + $0x90] sm:$0xff]
      %v1626 = vld [vmem:[%s199 + $0x98] sm:$0xff]
      %v1627 = vld [vmem:[%s199 + $0xa0] sm:$0xff]
      %v1628 = vld [vmem:[%s199 + $0xa8] sm:$0xff]
      %v1629 = vld [vmem:[%s199 + $0xb0] sm:$0xff]
      %v1630 = vld [vmem:[%s199 + $0xb8] sm:$0xff]
      %v1631 = vld [vmem:[%s199 + $0xc0] sm:$0xff]
      %v1632 = vld [vmem:[%s199 + $0xc8] sm:$0xff]
      %v1633 = vld [vmem:[%s199 + $0xd0] sm:$0xff]
      %v1634 = vld [vmem:[%s199 + $0xd8] sm:$0xff]
      %v1635 = vld [vmem:[%s199 + $0xe0] sm:$0xff]
      %v1636 = vld [vmem:[%s199 + $0xe8] sm:$0xff]
      %v1637 = vld [vmem:[%s199 + $0xf0] sm:$0xff]
      %v1638 = vld [vmem:[%s199 + $0xf8] sm:$0xff]
      %v1639 = vadd.f32 %v1575, %v1607
      %v1640 = vadd.f32 %v1576, %v1608
      %v1641 = vadd.f32 %v1577, %v1609
      %v1642 = vadd.f32 %v1578, %v1610
      %v1643 = vadd.f32 %v1579, %v1611
      %v1644 = vadd.f32 %v1580, %v1612
      %v1645 = vadd.f32 %v1581, %v1613
      %v1646 = vadd.f32 %v1582, %v1614
      %v1647 = vadd.f32 %v1583, %v1615
      %v1648 = vadd.f32 %v1584, %v1616
      %v1649 = vadd.f32 %v1585, %v1617
      %v1650 = vadd.f32 %v1586, %v1618
      %v1651 = vadd.f32 %v1587, %v1619
      %v1652 = vadd.f32 %v1588, %v1620
      %v1653 = vadd.f32 %v1589, %v1621
      %v1654 = vadd.f32 %v1590, %v1622
      %v1655 = vadd.f32 %v1591, %v1623
      %v1656 = vadd.f32 %v1592, %v1624
      %v1657 = vadd.f32 %v1593, %v1625
      %v1658 = vadd.f32 %v1594, %v1626
      %v1659 = vadd.f32 %v1595, %v1627
      %v1660 = vadd.f32 %v1596, %v1628
      %v1661 = vadd.f32 %v1597, %v1629
      %v1662 = vadd.f32 %v1598, %v1630
      %v1663 = vadd.f32 %v1599, %v1631
      %v1664 = vadd.f32 %v1600, %v1632
      %v1665 = vadd.f32 %v1601, %v1633
      %v1666 = vadd.f32 %v1602, %v1634
      %v1667 = vadd.f32 %v1603, %v1635
      %v1668 = vadd.f32 %v1604, %v1636
      %v1669 = vadd.f32 %v1605, %v1637
      %v1670 = vadd.f32 %v1606, %v1638
      %1671 = vst [vmem:[%s209] sm:$0xff] %v1639
      %1672 = vst [vmem:[%s209 + $0x8] sm:$0xff] %v1640
      %1673 = vst [vmem:[%s209 + $0x10] sm:$0xff] %v1641
      %1674 = vst [vmem:[%s209 + $0x18] sm:$0xff] %v1642
      %1675 = vst [vmem:[%s209 + $0x20] sm:$0xff] %v1643
      %1676 = vst [vmem:[%s209 + $0x28] sm:$0xff] %v1644
      %1677 = vst [vmem:[%s209 + $0x30] sm:$0xff] %v1645
      %1678 = vst [vmem:[%s209 + $0x38] sm:$0xff] %v1646
      %1679 = vst [vmem:[%s209 + $0x40] sm:$0xff] %v1647
      %1680 = vst [vmem:[%s209 + $0x48] sm:$0xff] %v1648
      %1681 = vst [vmem:[%s209 + $0x50] sm:$0xff] %v1649
      %1682 = vst [vmem:[%s209 + $0x58] sm:$0xff] %v1650
      %1683 = vst [vmem:[%s209 + $0x60] sm:$0xff] %v1651
      %1684 = vst [vmem:[%s209 + $0x68] sm:$0xff] %v1652
      %1685 = vst [vmem:[%s209 + $0x70] sm:$0xff] %v1653
      %1686 = vst [vmem:[%s209 + $0x78] sm:$0xff] %v1654
      %1687 = vst [vmem:[%s209 + $0x80] sm:$0xff] %v1655
      %1688 = vst [vmem:[%s209 + $0x88] sm:$0xff] %v1656
      %1689 = vst [vmem:[%s209 + $0x90] sm:$0xff] %v1657
      %1690 = vst [vmem:[%s209 + $0x98] sm:$0xff] %v1658
      %1691 = vst [vmem:[%s209 + $0xa0] sm:$0xff] %v1659
      %1692 = vst [vmem:[%s209 + $0xa8] sm:$0xff] %v1660
      %1693 = vst [vmem:[%s209 + $0xb0] sm:$0xff] %v1661
      %1694 = vst [vmem:[%s209 + $0xb8] sm:$0xff] %v1662
      %1695 = vst [vmem:[%s209 + $0xc0] sm:$0xff] %v1663
      %1696 = vst [vmem:[%s209 + $0xc8] sm:$0xff] %v1664
      %1697 = vst [vmem:[%s209 + $0xd0] sm:$0xff] %v1665
      %1698 = vst [vmem:[%s209 + $0xd8] sm:$0xff] %v1666
      %1699 = vst [vmem:[%s209 + $0xe0] sm:$0xff] %v1667
      %1700 = vst [vmem:[%s209 + $0xe8] sm:$0xff] %v1668
      %1701 = vst [vmem:[%s209 + $0xf0] sm:$0xff] %v1669
      %1702 = vst [vmem:[%s209 + $0xf8] sm:$0xff] %v1670
      %s1703 = smul.u32 32, %s20
      %p1704 = scmp.lt.s32.totalorder %s19, 1
      %s1705 = scalar_select %p1704, %s19, 1
      %p1706 = scmp.lt.s32.totalorder %s1703, 95
      %s1707 = scalar_select %p1706, %s1703, 95
      %s1708 = smul.addr %s1705, 96
      %s1709 = sadd.s32 %s1707, %s1708
      %s1710 = smul.addr %s1709, 8
      %s1711 = scalar_lea.vmem %s4, %s1710
      // Predicated region
      $region115: #{resblock1_forward.7} parent=31 // pred_check
        %p1712 = pneg %p117
      $region116: #{resblock1_forward.7} parent=31 // pred_check_branch
        %1714 = sbr.rel (%p1712) target = $region118
      $region117: #{resblock1_forward.7} parent=31 // pred_region
        %s1715 = smul.u32 32, %s20
      $region118: #{resblock1_forward.7} parent=31 // pred_fallthru
        _
    $region32: #{resblock1_forward.7} parent=5 // pred_fallthru
      _
    %p1716 = scmp.le.s32.totalorder 2, %s10
    // Predicated region
    $region119: #{resblock1_forward.7} parent=5 // pred_check
      %p1717 = pneg %p1716
    $region120: #{resblock1_forward.7} parent=5 // pred_check_branch
      %1719 = sbr.rel (%p1717) target = $region122
    $region121: #{resblock1_forward.7} parent=5 // pred_region
      %s1720 = ssub.s32 %s10, 2
      // Predicated region
      $region123: #{resblock1_forward.7} parent=121 // pred_check
        %p1721 = pneg %p123
      $region124: #{resblock1_forward.7} parent=121 // pred_check_branch
        %1723 = sbr.rel (%p1721) target = $region126
      $region125: #{resblock1_forward.7} parent=121 // pred_region
        %s1724 = smul.u32 32, %s22
        %p1725 = scmp.lt.s32.totalorder %s21, 1
        %s1726 = scalar_select %p1725, %s21, 1
        %p1727 = scmp.lt.s32.totalorder %s1724, 95
        %s1728 = scalar_select %p1727, %s1724, 95
        %s1729 = smul.addr %s1726, 96
        %s1730 = sadd.s32 %s1728, %s1729
        %s1731 = smul.addr %s1730, 8
        %s1732 = scalar_lea.vmem %s4, %s1731
      $region126: #{resblock1_forward.7} parent=121 // pred_fallthru
        _
    $region122: #{resblock1_forward.7} parent=5 // pred_fallthru
      _
  $region6: #{resblock1_forward.7} parent=0 // loop_footer
    %s14 = sadd.s32 1, %s10
  $region7: #{resblock1_forward.7} parent=0 // loop_footer_branch
    %9 = sbr.rel target = $region3
  $region8: #{resblock1_forward.7} parent=0 // loop_exit
    _
  %1733 = vsyncmov [#allocation3]
  %s1734 = vpop.sfrf %1733
  %p1735 = scmp.eq.s32.totalorder %s1734, 0
  %p1736 = pneg %p1735
  %1738 = shalt.err (%p1736)
  %s1739 = scalar_lea.sflag [#allocation3], 1
  %1740 = vsyncmov %s1739
  %s1741 = vpop.sfrf %1740
  %p1742 = scmp.eq.s32.totalorder %s1741, 0
  %p1743 = pneg %p1742
  %1745 = shalt.err (%p1743)

// kernel: resblock1_forward.8
$region0: #{resblock1_forward.8}
  #allocation0 [shape = 'u32[]', space=smem, size = 0x4, offset = 0x4, fixed_abs, tag = 'smem constant byte address 0x4 - core index']
  #allocation1 [shape = 'u32[144,128]{1,0:T(1,128)}', space=vmem, size = 0x12000, scoped, tag = 'internal scratch']
  #allocation2 [shape = 'f32[2,262,128]{2,1,0:T(8,128)}', space=vmem, size = 0x42000, scoped, tag = 'scratch operand']
  #allocation3 [shape = 's32[2]{0}', space=sflag, size = 0x8, scoped, tag = 'scratch operand']
  #allocation4 [shape = 's32[]', space=sflag, size = 0x4, offset = 0, fixed_abs, tag = 'sflag constant byte address 0x0 - dummy sync flag']
  #allocation5 [shape = 's32[]', space=sflag, size = 0x4, offset = 0, fixed_abs, tag = 'sflag constant byte address 0x0 - dummy sync flag']
  %s0 = inlined_call_operand.vmem [shape: f32[2,774,128], index: 0, kind: input, shape index: {}]
  %s1 = inlined_call_operand.vmem [shape: bf16[3,128,128], index: 1, kind: input, shape index: {}]
  %s2 = inlined_call_operand.vmem [shape: f32[1,128], index: 2, kind: input, shape index: {}]
  %s3 = inlined_call_operand.vmem [shape: f32[2,768,128], index: 3, kind: output, shape index: {}]
  %s4 = sld [smem:[#allocation0]]
  $region123: #{resblock1_forward.8} parent=0
    _
  %s6 = ssub.s32 1, %s4
  %s7 = scalar_select 0, %s6, %s4
  loop: start=0, step=1, limit=8
  $region2: #{resblock1_forward.8} parent=0 // loop_pre_header
    _
  $region3: #{resblock1_forward.8} parent=0 // loop_header
    %s9 = sphi 0, %s13
    %p10 = scmp.ge.s32.totalorder %s9, 8
    %s16 = sphi 0, %s28
    %s17 = sphi 0, %s24
    %s18 = sphi 0, %s16
    %s19 = sphi 0, %s17
    %s20 = sphi 0, %s18
    %s21 = sphi 0, %s19
    %s29 = sphi 0, %s29
    %s31 = sphi 0, %s29
    %s32 = sphi 0, %s31
    %s46 = sphi 0, %s32
    %s50 = sphi 0, %s50
    %s52 = sphi 0, %s50
    %s53 = sphi 0, %s52
    %s67 = sphi 0, %s53
    %s75 = sphi 0, %s77
    %s78 = sphi 0, %s75
    %s79 = sphi 0, %s78
    %s95 = sphi 0, %s79
  $region4: #{resblock1_forward.8} parent=0 // loop_header_branch
    %12 = sbr.rel (%p10) target = $region8
  $region5: #{resblock1_forward.8} parent=0 // loop_body
    %s14 = ssub.s32 %s9, 1
    %s15 = ssub.s32 %s9, 2
    %s22 = sadd.s32 1, %s17
    %p23 = scmp.ge.s32.totalorder %s22, 3
    %s24 = scalar_select %p23, 0, %s22
    %s25 = sadd.s32 1, %s16
    %s26 = scalar_select %p23, %s25, %s16
    %p27 = scmp.ge.s32.totalorder %s26, 2
    %s28 = scalar_select %p27, 0, %s26
    %s30 = sadd.s32 %s29, 1
    %p33 = scmp.eq.s32.totalorder %s9, 5
    %p34 = scmp.ne.s32.totalorder %s29, %s31
    %p35 = scmp.eq.s32.totalorder %s9, 0
    %p36 = por %p34, %p35
    %p37 = scmp.ne.s32.totalorder %s29, %s31
    %p38 = scmp.eq.s32.totalorder %s14, 5
    %p39 = por %p37, %p38
    %p40 = scmp.ne.s32.totalorder %s31, %s32
    %p41 = scmp.eq.s32.totalorder %s14, 0
    %p42 = por %p40, %p41
    %p43 = scmp.ne.s32.totalorder %s31, %s32
    %p44 = scmp.eq.s32.totalorder %s15, 5
    %p45 = por %p43, %p44
    %p47 = scmp.ne.s32.totalorder %s32, %s46
    %p48 = scmp.eq.s32.totalorder %s15, 0
    %p49 = por %p47, %p48
    %s51 = sadd.s32 %s50, 1
    %p54 = scmp.eq.s32.totalorder %s9, 5
    %p55 = scmp.ne.s32.totalorder %s50, %s52
    %p56 = scmp.eq.s32.totalorder %s9, 0
    %p57 = por %p55, %p56
    %p58 = scmp.ne.s32.totalorder %s50, %s52
    %p59 = scmp.eq.s32.totalorder %s14, 5
    %p60 = por %p58, %p59
    %p61 = scmp.ne.s32.totalorder %s52, %s53
    %p62 = scmp.eq.s32.totalorder %s14, 0
    %p63 = por %p61, %p62
    %p64 = scmp.ne.s32.totalorder %s52, %s53
    %p65 = scmp.eq.s32.totalorder %s15, 5
    %p66 = por %p64, %p65
    %p68 = scmp.ne.s32.totalorder %s53, %s67
    %p69 = scmp.eq.s32.totalorder %s15, 0
    %p70 = por %p68, %p69
    %s71 = ssub.s32 %s16, %s28
    %s72 = ssub.s32 %s17, %s24
    %s73 = sor.u32 %s71, %s72
    %p74 = scmp.eq.s32.totalorder %s73, 0
    %s76 = sadd.s32 %s75, 1
    %s77 = scalar_select %p74, %s75, %s76
    %p80 = pneg %p74
    %p81 = scmp.eq.s32.totalorder %s9, 5
    %p82 = por %p80, %p81
    %p83 = scmp.ne.s32.totalorder %s75, %s78
    %p84 = scmp.eq.s32.totalorder %s9, 0
    %p85 = por %p83, %p84
    %p86 = scmp.ne.s32.totalorder %s75, %s78
    %p87 = scmp.eq.s32.totalorder %s14, 5
    %p88 = por %p86, %p87
    %p89 = scmp.ne.s32.totalorder %s78, %s79
    %p90 = scmp.eq.s32.totalorder %s14, 0
    %p91 = por %p89, %p90
    %p92 = scmp.ne.s32.totalorder %s78, %s79
    %p93 = scmp.eq.s32.totalorder %s15, 5
    %p94 = por %p92, %p93
    %p96 = scmp.ne.s32.totalorder %s79, %s95
    %p97 = scmp.eq.s32.totalorder %s15, 0
    %p98 = por %p96, %p97
    %p99 = scmp.le.s32.totalorder 1, %s9
    %p100 = scmp.lt.s32.totalorder %s9, 7
    %p101 = pnand %p99, %p100
    %p102 = pneg %p101
    // Predicated region
    $region9: #{resblock1_forward.8} parent=5 // pred_check
      _
    $region10: #{resblock1_forward.8} parent=5 // pred_check_branch
      %104 = sbr.rel (%p101) target = $region12
    $region11: #{resblock1_forward.8} parent=5 // pred_region
      %s105 = ssub.s32 %s9, 1
      // Predicated region
      $region13: #{resblock1_forward.8} parent=11 // pred_check
        %p106 = pneg %p42
      $region14: #{resblock1_forward.8} parent=11 // pred_check_branch
        %108 = sbr.rel (%p106) target = $region16
      $region15: #{resblock1_forward.8} parent=11 // pred_region
        _
      $region16: #{resblock1_forward.8} parent=11 // pred_fallthru
        _
      // Predicated region
      $region17: #{resblock1_forward.8} parent=11 // pred_check
        %p109 = pneg %p63
      $region18: #{resblock1_forward.8} parent=11 // pred_check_branch
        %111 = sbr.rel (%p109) target = $region20
      $region19: #{resblock1_forward.8} parent=11 // pred_region
        _
      $region20: #{resblock1_forward.8} parent=11 // pred_fallthru
        _
    $region12: #{resblock1_forward.8} parent=5 // pred_fallthru
      _
    %p112 = scmp.lt.s32.totalorder %s9, 6
    // Predicated region
    $region21: #{resblock1_forward.8} parent=5 // pred_check
      %p113 = pneg %p112
    $region22: #{resblock1_forward.8} parent=5 // pred_check_branch
      %115 = sbr.rel (%p113) target = $region24
    $region23: #{resblock1_forward.8} parent=5 // pred_region
      _
    $region24: #{resblock1_forward.8} parent=5 // pred_fallthru
      _
    %p116 = scmp.le.s32.totalorder 1, %s9
    %p117 = scmp.lt.s32.totalorder %s9, 7
    %p118 = pnand %p116, %p117
    %p119 = pneg %p118
    // Predicated region
    $region25: #{resblock1_forward.8} parent=5 // pred_check
      _
    $region26: #{resblock1_forward.8} parent=5 // pred_check_branch
      %121 = sbr.rel (%p118) target = $region28
    $region27: #{resblock1_forward.8} parent=5 // pred_region
      %s122 = ssub.s32 %s9, 1
      %p123 = pneg %p42
      %p124 = pneg %p39
      %p125 = pneg %p63
      %p126 = pneg %p60
      %p127 = pneg %p91
      %p128 = pneg %p88
      %s129 = smul.u32 32, %s19
      %p130 = scmp.lt.s32.totalorder %s18, 1
      %s131 = scalar_select %p130, %s18, 1
      %p132 = scmp.lt.s32.totalorder %s129, 95
      %s133 = scalar_select %p132, %s129, 95
      %s134 = smul.addr %s131, 96
      %s135 = sadd.s32 %s133, %s134
      %s136 = smul.addr %s135, 8
      %s137 = scalar_lea.vmem %s3, %s136
      %s138 = smul.u32 32, %s19
      %p139 = scmp.lt.s32.totalorder %s18, 1
      %s140 = scalar_select %p139, %s18, 1
      %p141 = scmp.lt.s32.totalorder %s138, 95
      %s142 = scalar_select %p141, %s138, 95
      %s143 = smul.addr %s140, 96
      %s144 = sadd.s32 %s142, %s143
      %s145 = smul.addr %s144, 8
      %s146 = scalar_lea.vmem %s3, %s145
      %s147 = smul.u32 32, %s19
      %p149 = scmp.eq.s32.totalorder %s19, 0
      // Predicated region
      $region29: #{resblock1_forward.8} parent=27 // pred_check
        %p150 = pneg %p149
      $region30: #{resblock1_forward.8} parent=27 // pred_check_branch
        %152 = sbr.rel (%p150) target = $region32
      $region31: #{resblock1_forward.8} parent=27 // pred_region
        %s153 = smul.u32 %s18, 776
        %s154 = sadd.s32 0, %s153
        %s155 = scalar_lea.vmem %s0, %s154
        %p157 = scmp.lt.u32.totalorder 262, 8
        %p158 = pneg %p157
        // Predicated region
        $region33: #{resblock1_forward.8} parent=31 // pred_check
          _
        $region34: #{resblock1_forward.8} parent=31 // pred_check_branch
          %160 = sbr.rel (%p157) target = $region36
        $region35: #{resblock1_forward.8} parent=31 // pred_region
          %s175 = sand.u32 262, 7
          %p176 = scmp.eq.s32.totalorder %s175, 0
          %p177 = pneg %p176
          // Predicated region
          $region48: #{resblock1_forward.8} parent=35 // pred_check
            _
          $region49: #{resblock1_forward.8} parent=35 // pred_check_branch
            %179 = sbr.rel (%p176) target = $region51
          $region50: #{resblock1_forward.8} parent=35 // pred_region
            %s180 = sand.u32 262, 7
            %s181 = ssub.s32 262, %s180
            %s182 = scalar_lea.vmem %s155, %s181
            %s183 = ssub.s32 262, %s180
            %s184 = scalar_lea.vmem [#allocation2], %s183
            loop: start=0, step=1, limit=1
            $region52: #{resblock1_forward.8} parent=50 // loop_pre_header
              _
            $region53: #{resblock1_forward.8} parent=50 // loop_header
              %s186 = sphi 0, %s190
              %p187 = scmp.ge.s32.totalorder %s186, 1
              %s191 = sphi %s155, %s155
              %s192 = sphi [#allocation2], [#allocation2]
            $region54: #{resblock1_forward.8} parent=50 // loop_header_branch
              %189 = sbr.rel (%p187) target = $region58
            $region55: #{resblock1_forward.8} parent=50 // loop_body
              %v193 = vld [vmem:[%s191] sm:$0xff]
              %194 = vst [vmem:[%s192] sm:$0xff] %v193
              %v195 = vld [vmem:[%s191 + $0x8] sm:$0xff]
              %196 = vst [vmem:[%s192 + $0x8] sm:$0xff] %v195
              %v197 = vld [vmem:[%s191 + $0x10] sm:$0xff]
              %198 = vst [vmem:[%s192 + $0x10] sm:$0xff] %v197
              %v199 = vld [vmem:[%s191 + $0x18] sm:$0xff]
              %200 = vst [vmem:[%s192 + $0x18] sm:$0xff] %v199
              %v201 = vld [vmem:[%s191 + $0x20] sm:$0xff]
              %202 = vst [vmem:[%s192 + $0x20] sm:$0xff] %v201
              %v203 = vld [vmem:[%s191 + $0x28] sm:$0xff]
              %204 = vst [vmem:[%s192 + $0x28] sm:$0xff] %v203
              %v205 = vld [vmem:[%s191 + $0x30] sm:$0xff]
              %206 = vst [vmem:[%s192 + $0x30] sm:$0xff] %v205
              %v207 = vld [vmem:[%s191 + $0x38] sm:$0xff]
              %208 = vst [vmem:[%s192 + $0x38] sm:$0xff] %v207
              %v209 = vld [vmem:[%s191 + $0x40] sm:$0xff]
              %210 = vst [vmem:[%s192 + $0x40] sm:$0xff] %v209
              %v211 = vld [vmem:[%s191 + $0x48] sm:$0xff]
              %212 = vst [vmem:[%s192 + $0x48] sm:$0xff] %v211
              %v213 = vld [vmem:[%s191 + $0x50] sm:$0xff]
              %214 = vst [vmem:[%s192 + $0x50] sm:$0xff] %v213
              %v215 = vld [vmem:[%s191 + $0x58] sm:$0xff]
              %216 = vst [vmem:[%s192 + $0x58] sm:$0xff] %v215
              %v217 = vld [vmem:[%s191 + $0x60] sm:$0xff]
              %218 = vst [vmem:[%s192 + $0x60] sm:$0xff] %v217
              %v219 = vld [vmem:[%s191 + $0x68] sm:$0xff]
              %220 = vst [vmem:[%s192 + $0x68] sm:$0xff] %v219
              %v221 = vld [vmem:[%s191 + $0x70] sm:$0xff]
              %222 = vst [vmem:[%s192 + $0x70] sm:$0xff] %v221
              %v223 = vld [vmem:[%s191 + $0x78] sm:$0xff]
              %224 = vst [vmem:[%s192 + $0x78] sm:$0xff] %v223
              %v225 = vld [vmem:[%s191 + $0x80] sm:$0xff]
              %226 = vst [vmem:[%s192 + $0x80] sm:$0xff] %v225
              %v227 = vld [vmem:[%s191 + $0x88] sm:$0xff]
              %228 = vst [vmem:[%s192 + $0x88] sm:$0xff] %v227
              %v229 = vld [vmem:[%s191 + $0x90] sm:$0xff]
              %230 = vst [vmem:[%s192 + $0x90] sm:$0xff] %v229
              %v231 = vld [vmem:[%s191 + $0x98] sm:$0xff]
              %232 = vst [vmem:[%s192 + $0x98] sm:$0xff] %v231
              %v233 = vld [vmem:[%s191 + $0xa0] sm:$0xff]
              %234 = vst [vmem:[%s192 + $0xa0] sm:$0xff] %v233
              %v235 = vld [vmem:[%s191 + $0xa8] sm:$0xff]
              %236 = vst [vmem:[%s192 + $0xa8] sm:$0xff] %v235
              %v237 = vld [vmem:[%s191 + $0xb0] sm:$0xff]
              %238 = vst [vmem:[%s192 + $0xb0] sm:$0xff] %v237
              %v239 = vld [vmem:[%s191 + $0xb8] sm:$0xff]
              %240 = vst [vmem:[%s192 + $0xb8] sm:$0xff] %v239
              %v241 = vld [vmem:[%s191 + $0xc0] sm:$0xff]
              %242 = vst [vmem:[%s192 + $0xc0] sm:$0xff] %v241
              %v243 = vld [vmem:[%s191 + $0xc8] sm:$0xff]
              %244 = vst [vmem:[%s192 + $0xc8] sm:$0xff] %v243
              %v245 = vld [vmem:[%s191 + $0xd0] sm:$0xff]
              %246 = vst [vmem:[%s192 + $0xd0] sm:$0xff] %v245
              %v247 = vld [vmem:[%s191 + $0xd8] sm:$0xff]
              %248 = vst [vmem:[%s192 + $0xd8] sm:$0xff] %v247
              %v249 = vld [vmem:[%s191 + $0xe0] sm:$0xff]
              %250 = vst [vmem:[%s192 + $0xe0] sm:$0xff] %v249
              %v251 = vld [vmem:[%s191 + $0xe8] sm:$0xff]
              %252 = vst [vmem:[%s192 + $0xe8] sm:$0xff] %v251
              %v253 = vld [vmem:[%s191 + $0xf0] sm:$0xff]
              %254 = vst [vmem:[%s192 + $0xf0] sm:$0xff] %v253
              %v255 = vld [vmem:[%s191 + $0xf8] sm:$0xff]
              %256 = vst [vmem:[%s192 + $0xf8] sm:$0xff] %v255
            $region56: #{resblock1_forward.8} parent=50 // loop_footer
              %s190 = sadd.s32 1, %s186
            $region57: #{resblock1_forward.8} parent=50 // loop_footer_branch
              %185 = sbr.rel target = $region53
            $region58: #{resblock1_forward.8} parent=50 // loop_exit
              _
            %s257 = sshllo.u32 0, %s180
            loop: start=0, step=1, limit=1
            $region59: #{resblock1_forward.8} parent=50 // loop_pre_header
              _
            $region60: #{resblock1_forward.8} parent=50 // loop_header
              %s259 = sphi 0, %s263
              %p260 = scmp.ge.s32.totalorder %s259, 1
              %s264 = sphi %s182, %s182
              %s265 = sphi %s184, %s184
            $region61: #{resblock1_forward.8} parent=50 // loop_header_branch
              %262 = sbr.rel (%p260) target = $region65
            $region62: #{resblock1_forward.8} parent=50 // loop_body
              %v266 = vld [vmem:[%s264] sm:%s257]
              %267 = vst [vmem:[%s265] sm:%s257] %v266
            $region63: #{resblock1_forward.8} parent=50 // loop_footer
              %s263 = sadd.s32 1, %s259
            $region64: #{resblock1_forward.8} parent=50 // loop_footer_branch
              %258 = sbr.rel target = $region60
            $region65: #{resblock1_forward.8} parent=50 // loop_exit
              _
          $region51: #{resblock1_forward.8} parent=35 // pred_fallthru
            _
        $region36: #{resblock1_forward.8} parent=31 // pred_fallthru
          _
        // Predicated region
        $region37: #{resblock1_forward.8} parent=31 // pred_check
          %p161 = pneg %p157
        $region38: #{resblock1_forward.8} parent=31 // pred_check_branch
          %163 = sbr.rel (%p161) target = $region40
        $region39: #{resblock1_forward.8} parent=31 // pred_region
          %s164 = sshllo.u32 0, 262
          loop: start=0, step=1, limit=1
          $region41: #{resblock1_forward.8} parent=39 // loop_pre_header
            _
          $region42: #{resblock1_forward.8} parent=39 // loop_header
            %s166 = sphi 0, %s170
            %p167 = scmp.ge.s32.totalorder %s166, 1
            %s171 = sphi %s155, %s155
            %s172 = sphi [#allocation2], [#allocation2]
          $region43: #{resblock1_forward.8} parent=39 // loop_header_branch
            %169 = sbr.rel (%p167) target = $region47
          $region44: #{resblock1_forward.8} parent=39 // loop_body
            %v173 = vld [vmem:[%s171] sm:%s164]
            %174 = vst [vmem:[%s172] sm:%s164] %v173
          $region45: #{resblock1_forward.8} parent=39 // loop_footer
            %s170 = sadd.s32 1, %s166
          $region46: #{resblock1_forward.8} parent=39 // loop_footer_branch
            %165 = sbr.rel target = $region42
          $region47: #{resblock1_forward.8} parent=39 // loop_exit
            _
        $region40: #{resblock1_forward.8} parent=31 // pred_fallthru
          _
        // Predicated region
        $region66: #{resblock1_forward.8} parent=31 // pred_check
          _
        $region67: #{resblock1_forward.8} parent=31 // pred_check_branch
          %270 = sbr.rel (0) target = $region69
        $region68: #{resblock1_forward.8} parent=31 // pred_region
          %271 = vsyncadd [#allocation3], 4192
        $region69: #{resblock1_forward.8} parent=31 // pred_fallthru
          _
      $region32: #{resblock1_forward.8} parent=27 // pred_fallthru
        _
      %s272 = sadd.s32 %s19, 1
      %p273 = scmp.lt.s32.totalorder %s272, 3
      // Predicated region
      $region70: #{resblock1_forward.8} parent=27 // pred_check
        %p274 = pneg %p273
      $region71: #{resblock1_forward.8} parent=27 // pred_check_branch
        %276 = sbr.rel (%p274) target = $region73
      $region72: #{resblock1_forward.8} parent=27 // pred_region
        %p277 = scmp.lt.s32.totalorder %s272, 0
        %s278 = ssub.s32 0, %s272
        %s279 = scalar_select %p277, %s278, %s272
        %s280 = sand.u32 %s279, 1
        %s281 = ssub.s32 0, %s280
        %s282 = scalar_select %p277, %s281, %s280
        %p283 = scmp.ne.s32.totalorder %s282, 0
        %p284 = scmp.lt.s32.totalorder %s282, 0
        %p285 = pnand %p284, %p283
        %p286 = pneg %p285
        %s287 = sadd.s32 %s282, 2
        %s288 = scalar_select %p286, %s287, %s282
        %s289 = smul.u32 %s272, 256
        %s290 = smul.u32 %s18, 776
        %s291 = sadd.s32 %s289, %s290
        %s292 = scalar_lea.vmem %s0, %s291
        %s293 = smul.u32 %s288, 264
        %s294 = scalar_lea.vmem [#allocation2], %s293
        %s295 = scalar_lea.sflag [#allocation3], %s288
        %p297 = scmp.lt.u32.totalorder 262, 8
        %p298 = pneg %p297
        // Predicated region
        $region74: #{resblock1_forward.8} parent=72 // pred_check
          _
        $region75: #{resblock1_forward.8} parent=72 // pred_check_branch
          %300 = sbr.rel (%p297) target = $region77
        $region76: #{resblock1_forward.8} parent=72 // pred_region
          %s315 = sand.u32 262, 7
          %p316 = scmp.eq.s32.totalorder %s315, 0
          %p317 = pneg %p316
          // Predicated region
          $region89: #{resblock1_forward.8} parent=76 // pred_check
            _
          $region90: #{resblock1_forward.8} parent=76 // pred_check_branch
            %319 = sbr.rel (%p316) target = $region92
          $region91: #{resblock1_forward.8} parent=76 // pred_region
            %s320 = sand.u32 262, 7
            %s321 = ssub.s32 262, %s320
            %s322 = scalar_lea.vmem %s292, %s321
            %s323 = ssub.s32 262, %s320
            %s324 = scalar_lea.vmem %s294, %s323 [#allocation2]
            loop: start=0, step=1, limit=1
            $region93: #{resblock1_forward.8} parent=91 // loop_pre_header
              _
            $region94: #{resblock1_forward.8} parent=91 // loop_header
              %s326 = sphi 0, %s330
              %p327 = scmp.ge.s32.totalorder %s326, 1
              %s331 = sphi %s292, %s292
              %s332 = sphi %s294, %s294
            $region95: #{resblock1_forward.8} parent=91 // loop_header_branch
              %329 = sbr.rel (%p327) target = $region99
            $region96: #{resblock1_forward.8} parent=91 // loop_body
              %v333 = vld [vmem:[%s331] sm:$0xff]
              %334 = vst [vmem:[%s332] sm:$0xff] %v333
              %v335 = vld [vmem:[%s331 + $0x8] sm:$0xff]
              %336 = vst [vmem:[%s332 + $0x8] sm:$0xff] %v335
              %v337 = vld [vmem:[%s331 + $0x10] sm:$0xff]
              %338 = vst [vmem:[%s332 + $0x10] sm:$0xff] %v337
              %v339 = vld [vmem:[%s331 + $0x18] sm:$0xff]
              %340 = vst [vmem:[%s332 + $0x18] sm:$0xff] %v339
              %v341 = vld [vmem:[%s331 + $0x20] sm:$0xff]
              %342 = vst [vmem:[%s332 + $0x20] sm:$0xff] %v341
              %v343 = vld [vmem:[%s331 + $0x28] sm:$0xff]
              %344 = vst [vmem:[%s332 + $0x28] sm:$0xff] %v343
              %v345 = vld [vmem:[%s331 + $0x30] sm:$0xff]
              %346 = vst [vmem:[%s332 + $0x30] sm:$0xff] %v345
              %v347 = vld [vmem:[%s331 + $0x38] sm:$0xff]
              %348 = vst [vmem:[%s332 + $0x38] sm:$0xff] %v347
              %v349 = vld [vmem:[%s331 + $0x40] sm:$0xff]
              %350 = vst [vmem:[%s332 + $0x40] sm:$0xff] %v349
              %v351 = vld [vmem:[%s331 + $0x48] sm:$0xff]
              %352 = vst [vmem:[%s332 + $0x48] sm:$0xff] %v351
              %v353 = vld [vmem:[%s331 + $0x50] sm:$0xff]
              %354 = vst [vmem:[%s332 + $0x50] sm:$0xff] %v353
              %v355 = vld [vmem:[%s331 + $0x58] sm:$0xff]
              %356 = vst [vmem:[%s332 + $0x58] sm:$0xff] %v355
              %v357 = vld [vmem:[%s331 + $0x60] sm:$0xff]
              %358 = vst [vmem:[%s332 + $0x60] sm:$0xff] %v357
              %v359 = vld [vmem:[%s331 + $0x68] sm:$0xff]
              %360 = vst [vmem:[%s332 + $0x68] sm:$0xff] %v359
              %v361 = vld [vmem:[%s331 + $0x70] sm:$0xff]
              %362 = vst [vmem:[%s332 + $0x70] sm:$0xff] %v361
              %v363 = vld [vmem:[%s331 + $0x78] sm:$0xff]
              %364 = vst [vmem:[%s332 + $0x78] sm:$0xff] %v363
              %v365 = vld [vmem:[%s331 + $0x80] sm:$0xff]
              %366 = vst [vmem:[%s332 + $0x80] sm:$0xff] %v365
              %v367 = vld [vmem:[%s331 + $0x88] sm:$0xff]
              %368 = vst [vmem:[%s332 + $0x88] sm:$0xff] %v367
              %v369 = vld [vmem:[%s331 + $0x90] sm:$0xff]
              %370 = vst [vmem:[%s332 + $0x90] sm:$0xff] %v369
              %v371 = vld [vmem:[%s331 + $0x98] sm:$0xff]
              %372 = vst [vmem:[%s332 + $0x98] sm:$0xff] %v371
              %v373 = vld [vmem:[%s331 + $0xa0] sm:$0xff]
              %374 = vst [vmem:[%s332 + $0xa0] sm:$0xff] %v373
              %v375 = vld [vmem:[%s331 + $0xa8] sm:$0xff]
              %376 = vst [vmem:[%s332 + $0xa8] sm:$0xff] %v375
              %v377 = vld [vmem:[%s331 + $0xb0] sm:$0xff]
              %378 = vst [vmem:[%s332 + $0xb0] sm:$0xff] %v377
              %v379 = vld [vmem:[%s331 + $0xb8] sm:$0xff]
              %380 = vst [vmem:[%s332 + $0xb8] sm:$0xff] %v379
              %v381 = vld [vmem:[%s331 + $0xc0] sm:$0xff]
              %382 = vst [vmem:[%s332 + $0xc0] sm:$0xff] %v381
              %v383 = vld [vmem:[%s331 + $0xc8] sm:$0xff]
              %384 = vst [vmem:[%s332 + $0xc8] sm:$0xff] %v383
              %v385 = vld [vmem:[%s331 + $0xd0] sm:$0xff]
              %386 = vst [vmem:[%s332 + $0xd0] sm:$0xff] %v385
              %v387 = vld [vmem:[%s331 + $0xd8] sm:$0xff]
              %388 = vst [vmem:[%s332 + $0xd8] sm:$0xff] %v387
              %v389 = vld [vmem:[%s331 + $0xe0] sm:$0xff]
              %390 = vst [vmem:[%s332 + $0xe0] sm:$0xff] %v389
              %v391 = vld [vmem:[%s331 + $0xe8] sm:$0xff]
              %392 = vst [vmem:[%s332 + $0xe8] sm:$0xff] %v391
              %v393 = vld [vmem:[%s331 + $0xf0] sm:$0xff]
              %394 = vst [vmem:[%s332 + $0xf0] sm:$0xff] %v393
              %v395 = vld [vmem:[%s331 + $0xf8] sm:$0xff]
              %396 = vst [vmem:[%s332 + $0xf8] sm:$0xff] %v395
            $region97: #{resblock1_forward.8} parent=91 // loop_footer
              %s330 = sadd.s32 1, %s326
            $region98: #{resblock1_forward.8} parent=91 // loop_footer_branch
              %325 = sbr.rel target = $region94
            $region99: #{resblock1_forward.8} parent=91 // loop_exit
              _
            %s397 = sshllo.u32 0, %s320
            loop: start=0, step=1, limit=1
            $region100: #{resblock1_forward.8} parent=91 // loop_pre_header
              _
            $region101: #{resblock1_forward.8} parent=91 // loop_header
              %s399 = sphi 0, %s403
              %p400 = scmp.ge.s32.totalorder %s399, 1
              %s404 = sphi %s322, %s322
              %s405 = sphi %s324, %s324
            $region102: #{resblock1_forward.8} parent=91 // loop_header_branch
              %402 = sbr.rel (%p400) target = $region106
            $region103: #{resblock1_forward.8} parent=91 // loop_body
              %v406 = vld [vmem:[%s404] sm:%s397]
              %407 = vst [vmem:[%s405] sm:%s397] %v406
            $region104: #{resblock1_forward.8} parent=91 // loop_footer
              %s403 = sadd.s32 1, %s399
            $region105: #{resblock1_forward.8} parent=91 // loop_footer_branch
              %398 = sbr.rel target = $region101
            $region106: #{resblock1_forward.8} parent=91 // loop_exit
              _
          $region92: #{resblock1_forward.8} parent=76 // pred_fallthru
            _
        $region77: #{resblock1_forward.8} parent=72 // pred_fallthru
          _
        // Predicated region
        $region78: #{resblock1_forward.8} parent=72 // pred_check
          %p301 = pneg %p297
        $region79: #{resblock1_forward.8} parent=72 // pred_check_branch
          %303 = sbr.rel (%p301) target = $region81
        $region80: #{resblock1_forward.8} parent=72 // pred_region
          %s304 = sshllo.u32 0, 262
          loop: start=0, step=1, limit=1
          $region82: #{resblock1_forward.8} parent=80 // loop_pre_header
            _
          $region83: #{resblock1_forward.8} parent=80 // loop_header
            %s306 = sphi 0, %s310
            %p307 = scmp.ge.s32.totalorder %s306, 1
            %s311 = sphi %s292, %s292
            %s312 = sphi %s294, %s294
          $region84: #{resblock1_forward.8} parent=80 // loop_header_branch
            %309 = sbr.rel (%p307) target = $region88
          $region85: #{resblock1_forward.8} parent=80 // loop_body
            %v313 = vld [vmem:[%s311] sm:%s304]
            %314 = vst [vmem:[%s312] sm:%s304] %v313
          $region86: #{resblock1_forward.8} parent=80 // loop_footer
            %s310 = sadd.s32 1, %s306
          $region87: #{resblock1_forward.8} parent=80 // loop_footer_branch
            %305 = sbr.rel target = $region83
          $region88: #{resblock1_forward.8} parent=80 // loop_exit
            _
        $region81: #{resblock1_forward.8} parent=72 // pred_fallthru
          _
        // Predicated region
        $region107: #{resblock1_forward.8} parent=72 // pred_check
          _
        $region108: #{resblock1_forward.8} parent=72 // pred_check_branch
          %410 = sbr.rel (0) target = $region110
        $region109: #{resblock1_forward.8} parent=72 // pred_region
          %411 = vsyncadd %s295, 4192
        $region110: #{resblock1_forward.8} parent=72 // pred_fallthru
          _
      $region73: #{resblock1_forward.8} parent=27 // pred_fallthru
        _
      %p412 = scmp.lt.s32.totalorder %s19, 0
      %s413 = ssub.s32 0, %s19
      %s414 = scalar_select %p412, %s413, %s19
      %s415 = sand.u32 %s414, 1
      %s416 = ssub.s32 0, %s415
      %s417 = scalar_select %p412, %s416, %s415
      %p418 = scmp.ne.s32.totalorder %s417, 0
      %p419 = scmp.lt.s32.totalorder %s417, 0
      %p420 = pnand %p419, %p418
      %p421 = pneg %p420
      %s422 = sadd.s32 %s417, 2
      %s423 = scalar_select %p421, %s422, %s417
      %s424 = smul.u32 %s19, 256
      %s425 = smul.u32 %s423, 264
      %s426 = scalar_lea.vmem [#allocation2], %s425
      %s427 = scalar_lea.sflag [#allocation3], %s423
      %s428 = smul.u32 262, 1
      %s429 = sshll.u32 %s428, 4
      %430 = dma.done %s427, %s429
      %v431 = vld [vmem:[%s426] sm:$0xff]
      %v432 = vld [vmem:[%s426 + $0x8] sm:$0xff]
      %v433 = vld [vmem:[%s426 + $0x10] sm:$0xff]
      %v434 = vld [vmem:[%s426 + $0x18] sm:$0xff]
      %v435 = vld [vmem:[%s426 + $0x20] sm:$0xff]
      %v436 = vld [vmem:[%s426 + $0x28] sm:$0xff]
      %v437 = vld [vmem:[%s426 + $0x30] sm:$0xff]
      %v438 = vld [vmem:[%s426 + $0x38] sm:$0xff]
      %v439 = vld [vmem:[%s426 + $0x40] sm:$0xff]
      %v440 = vld [vmem:[%s426 + $0x48] sm:$0xff]
      %v441 = vld [vmem:[%s426 + $0x50] sm:$0xff]
      %v442 = vld [vmem:[%s426 + $0x58] sm:$0xff]
      %v443 = vld [vmem:[%s426 + $0x60] sm:$0xff]
      %v444 = vld [vmem:[%s426 + $0x68] sm:$0xff]
      %v445 = vld [vmem:[%s426 + $0x70] sm:$0xff]
      %v446 = vld [vmem:[%s426 + $0x78] sm:$0xff]
      %v447 = vld [vmem:[%s426 + $0x80] sm:$0xff]
      %v448 = vld [vmem:[%s426 + $0x88] sm:$0xff]
      %v449 = vld [vmem:[%s426 + $0x90] sm:$0xff]
      %v450 = vld [vmem:[%s426 + $0x98] sm:$0xff]
      %v451 = vld [vmem:[%s426 + $0xa0] sm:$0xff]
      %v452 = vld [vmem:[%s426 + $0xa8] sm:$0xff]
      %v453 = vld [vmem:[%s426 + $0xb0] sm:$0xff]
      %v454 = vld [vmem:[%s426 + $0xb8] sm:$0xff]
      %v455 = vld [vmem:[%s426 + $0xc0] sm:$0xff]
      %v456 = vld [vmem:[%s426 + $0xc8] sm:$0xff]
      %v457 = vld [vmem:[%s426 + $0xd0] sm:$0xff]
      %v458 = vld [vmem:[%s426 + $0xd8] sm:$0xff]
      %v459 = vld [vmem:[%s426 + $0xe0] sm:$0xff]
      %v460 = vld [vmem:[%s426 + $0xe8] sm:$0xff]
      %v461 = vld [vmem:[%s426 + $0xf0] sm:$0xff]
      %v462 = vld [vmem:[%s426 + $0xf8] sm:$0xff]
      %v463 = vld [vmem:[%s426 + $0x100] sm:$0x3f]
      %vm464 = vcmp.ge.f32.partialorder %v431, 0.0
      %vm465 = vcmp.ge.f32.partialorder %v432, 0.0
      %vm466 = vcmp.ge.f32.partialorder %v433, 0.0
      %vm467 = vcmp.ge.f32.partialorder %v434, 0.0
      %vm468 = vcmp.ge.f32.partialorder %v435, 0.0
      %vm469 = vcmp.ge.f32.partialorder %v436, 0.0
      %vm470 = vcmp.ge.f32.partialorder %v437, 0.0
      %vm471 = vcmp.ge.f32.partialorder %v438, 0.0
      %vm472 = vcmp.ge.f32.partialorder %v439, 0.0
      %vm473 = vcmp.ge.f32.partialorder %v440, 0.0
      %vm474 = vcmp.ge.f32.partialorder %v441, 0.0
      %vm475 = vcmp.ge.f32.partialorder %v442, 0.0
      %vm476 = vcmp.ge.f32.partialorder %v443, 0.0
      %vm477 = vcmp.ge.f32.partialorder %v444, 0.0
      %vm478 = vcmp.ge.f32.partialorder %v445, 0.0
      %vm479 = vcmp.ge.f32.partialorder %v446, 0.0
      %vm480 = vcmp.ge.f32.partialorder %v447, 0.0
      %vm481 = vcmp.ge.f32.partialorder %v448, 0.0
      %vm482 = vcmp.ge.f32.partialorder %v449, 0.0
      %vm483 = vcmp.ge.f32.partialorder %v450, 0.0
      %vm484 = vcmp.ge.f32.partialorder %v451, 0.0
      %vm485 = vcmp.ge.f32.partialorder %v452, 0.0
      %vm486 = vcmp.ge.f32.partialorder %v453, 0.0
      %vm487 = vcmp.ge.f32.partialorder %v454, 0.0
      %vm488 = vcmp.ge.f32.partialorder %v455, 0.0
      %vm489 = vcmp.ge.f32.partialorder %v456, 0.0
      %vm490 = vcmp.ge.f32.partialorder %v457, 0.0
      %vm491 = vcmp.ge.f32.partialorder %v458, 0.0
      %vm492 = vcmp.ge.f32.partialorder %v459, 0.0
      %vm493 = vcmp.ge.f32.partialorder %v460, 0.0
      %vm494 = vcmp.ge.f32.partialorder %v461, 0.0
      %vm495 = vcmp.ge.f32.partialorder %v462, 0.0
      %vm496 = vcmp.ge.f32.partialorder %v463, 0.0
      %v497 = vmul.f32 %v431, 0.1
      %v498 = vmul.f32 %v432, 0.1
      %v499 = vmul.f32 %v433, 0.1
      %v500 = vmul.f32 %v434, 0.1
      %v501 = vmul.f32 %v435, 0.1
      %v502 = vmul.f32 %v436, 0.1
      %v503 = vmul.f32 %v437, 0.1
      %v504 = vmul.f32 %v438, 0.1
      %v505 = vmul.f32 %v439, 0.1
      %v506 = vmul.f32 %v440, 0.1
      %v507 = vmul.f32 %v441, 0.1
      %v508 = vmul.f32 %v442, 0.1
      %v509 = vmul.f32 %v443, 0.1
      %v510 = vmul.f32 %v444, 0.1
      %v511 = vmul.f32 %v445, 0.1
      %v512 = vmul.f32 %v446, 0.1
      %v513 = vmul.f32 %v447, 0.1
      %v514 = vmul.f32 %v448, 0.1
      %v515 = vmul.f32 %v449, 0.1
      %v516 = vmul.f32 %v450, 0.1
      %v517 = vmul.f32 %v451, 0.1
      %v518 = vmul.f32 %v452, 0.1
      %v519 = vmul.f32 %v453, 0.1
      %v520 = vmul.f32 %v454, 0.1
      %v521 = vmul.f32 %v455, 0.1
      %v522 = vmul.f32 %v456, 0.1
      %v523 = vmul.f32 %v457, 0.1
      %v524 = vmul.f32 %v458, 0.1
      %v525 = vmul.f32 %v459, 0.1
      %v526 = vmul.f32 %v460, 0.1
      %v527 = vmul.f32 %v461, 0.1
      %v528 = vmul.f32 %v462, 0.1
      %v529 = vmul.f32 %v463, 0.1
      %v530 = vsel %vm464, %v431, %v497
      %v531 = vsel %vm465, %v432, %v498
      %v532 = vsel %vm466, %v433, %v499
      %v533 = vsel %vm467, %v434, %v500
      %v534 = vsel %vm468, %v435, %v501
      %v535 = vsel %vm469, %v436, %v502
      %v536 = vsel %vm470, %v437, %v503
      %v537 = vsel %vm471, %v438, %v504
      %v538 = vsel %vm472, %v439, %v505
      %v539 = vsel %vm473, %v440, %v506
      %v540 = vsel %vm474, %v441, %v507
      %v541 = vsel %vm475, %v442, %v508
      %v542 = vsel %vm476, %v443, %v509
      %v543 = vsel %vm477, %v444, %v510
      %v544 = vsel %vm478, %v445, %v511
      %v545 = vsel %vm479, %v446, %v512
      %v546 = vsel %vm480, %v447, %v513
      %v547 = vsel %vm481, %v448, %v514
      %v548 = vsel %vm482, %v449, %v515
      %v549 = vsel %vm483, %v450, %v516
      %v550 = vsel %vm484, %v451, %v517
      %v551 = vsel %vm485, %v452, %v518
      %v552 = vsel %vm486, %v453, %v519
      %v553 = vsel %vm487, %v454, %v520
      %v554 = vsel %vm488, %v455, %v521
      %v555 = vsel %vm489, %v456, %v522
      %v556 = vsel %vm490, %v457, %v523
      %v557 = vsel %vm491, %v458, %v524
      %v558 = vsel %vm492, %v459, %v525
      %v559 = vsel %vm493, %v460, %v526
      %v560 = vsel %vm494, %v461, %v527
      %v561 = vsel %vm495, %v462, %v528
      %v562 = vsel %vm496, %v463, %v529
      %v563 = vpack.c.bf16 %v531, %v530
      %v564 = vpack.c.bf16 %v533, %v532
      %v565 = vpack.c.bf16 %v535, %v534
      %v566 = vpack.c.bf16 %v537, %v536
      %v567 = vpack.c.bf16 %v539, %v538
      %v568 = vpack.c.bf16 %v541, %v540
      %v569 = vpack.c.bf16 %v543, %v542
      %v570 = vpack.c.bf16 %v545, %v544
      %v571 = vpack.c.bf16 %v547, %v546
      %v572 = vpack.c.bf16 %v549, %v548
      %v573 = vpack.c.bf16 %v551, %v550
      %v574 = vpack.c.bf16 %v553, %v552
      %v575 = vpack.c.bf16 %v555, %v554
      %v576 = vpack.c.bf16 %v557, %v556
      %v577 = vpack.c.bf16 %v559, %v558
      %v578 = vpack.c.bf16 %v561, %v560
      %v579 = vpack.c.bf16 %v562, %v562
      %v580 = vld [vmem:[%s1] sm:$0xf]
      %v581 = vld [vmem:[%s1 + $0x4] sm:$0xf]
      %v582 = vld [vmem:[%s1 + $0x8] sm:$0xf]
      %v583 = vld [vmem:[%s1 + $0xc] sm:$0xf]
      %v584 = vld [vmem:[%s1 + $0x10] sm:$0xf]
      %v585 = vld [vmem:[%s1 + $0x14] sm:$0xf]
      %v586 = vld [vmem:[%s1 + $0x18] sm:$0xf]
      %v587 = vld [vmem:[%s1 + $0x1c] sm:$0xf]
      %v588 = vld [vmem:[%s1 + $0x20] sm:$0xf]
      %v589 = vld [vmem:[%s1 + $0x24] sm:$0xf]
      %v590 = vld [vmem:[%s1 + $0x28] sm:$0xf]
      %v591 = vld [vmem:[%s1 + $0x2c] sm:$0xf]
      %v592 = vld [vmem:[%s1 + $0x30] sm:$0xf]
      %v593 = vld [vmem:[%s1 + $0x34] sm:$0xf]
      %v594 = vld [vmem:[%s1 + $0x38] sm:$0xf]
      %v595 = vld [vmem:[%s1 + $0x3c] sm:$0xf]
      %s596 = scalar_lea.vmem %s1, 64
      %v597 = vld [vmem:[%s596] sm:$0xf]
      %v598 = vld [vmem:[%s596 + $0x4] sm:$0xf]
      %v599 = vld [vmem:[%s596 + $0x8] sm:$0xf]
      %v600 = vld [vmem:[%s596 + $0xc] sm:$0xf]
      %v601 = vld [vmem:[%s596 + $0x10] sm:$0xf]
      %v602 = vld [vmem:[%s596 + $0x14] sm:$0xf]
      %v603 = vld [vmem:[%s596 + $0x18] sm:$0xf]
      %v604 = vld [vmem:[%s596 + $0x1c] sm:$0xf]
      %v605 = vld [vmem:[%s596 + $0x20] sm:$0xf]
      %v606 = vld [vmem:[%s596 + $0x24] sm:$0xf]
      %v607 = vld [vmem:[%s596 + $0x28] sm:$0xf]
      %v608 = vld [vmem:[%s596 + $0x2c] sm:$0xf]
      %v609 = vld [vmem:[%s596 + $0x30] sm:$0xf]
      %v610 = vld [vmem:[%s596 + $0x34] sm:$0xf]
      %v611 = vld [vmem:[%s596 + $0x38] sm:$0xf]
      %v612 = vld [vmem:[%s596 + $0x3c] sm:$0xf]
      %vm613 = vsmask.f32 6400
      %v615 = vshrl.u32 %v563, 16
      %v617 = vrot.slane %v615, 1
      %v618 = vshll.u32 %v563, 16
      %v620 = vrot.slane %v618, 2
      %v621 = vor.u32 %v617, %v620
      %v623 = vshrl.u32 %v564, 16
      %v625 = vrot.slane %v623, 1
      %v626 = vshll.u32 %v564, 16
      %v628 = vrot.slane %v626, 2
      %v629 = vor.u32 %v625, %v628
      %v630 = vsel %vm613, %v621, %v629
      %v632 = vshrl.u32 %v565, 16
      %v634 = vrot.slane %v632, 1
      %v635 = vshll.u32 %v565, 16
      %v637 = vrot.slane %v635, 2
      %v638 = vor.u32 %v634, %v637
      %v639 = vsel %vm613, %v629, %v638
      %v641 = vshrl.u32 %v566, 16
      %v643 = vrot.slane %v641, 1
      %v644 = vshll.u32 %v566, 16
      %v646 = vrot.slane %v644, 2
      %v647 = vor.u32 %v643, %v646
      %v648 = vsel %vm613, %v638, %v647
      %v650 = vshrl.u32 %v567, 16
      %v652 = vrot.slane %v650, 1
      %v653 = vshll.u32 %v567, 16
      %v655 = vrot.slane %v653, 2
      %v656 = vor.u32 %v652, %v655
      %v657 = vsel %vm613, %v647, %v656
      %v659 = vshrl.u32 %v568, 16
      %v661 = vrot.slane %v659, 1
      %v662 = vshll.u32 %v568, 16
      %v664 = vrot.slane %v662, 2
      %v665 = vor.u32 %v661, %v664
      %v666 = vsel %vm613, %v656, %v665
      %v668 = vshrl.u32 %v569, 16
      %v670 = vrot.slane %v668, 1
      %v671 = vshll.u32 %v569, 16
      %v673 = vrot.slane %v671, 2
      %v674 = vor.u32 %v670, %v673
      %v675 = vsel %vm613, %v665, %v674
      %v677 = vshrl.u32 %v570, 16
      %v679 = vrot.slane %v677, 1
      %v680 = vshll.u32 %v570, 16
      %v682 = vrot.slane %v680, 2
      %v683 = vor.u32 %v679, %v682
      %v684 = vsel %vm613, %v674, %v683
      %v686 = vshrl.u32 %v571, 16
      %v688 = vrot.slane %v686, 1
      %v689 = vshll.u32 %v571, 16
      %v691 = vrot.slane %v689, 2
      %v692 = vor.u32 %v688, %v691
      %v693 = vsel %vm613, %v683, %v692
      %v695 = vshrl.u32 %v572, 16
      %v697 = vrot.slane %v695, 1
      %v698 = vshll.u32 %v572, 16
      %v700 = vrot.slane %v698, 2
      %v701 = vor.u32 %v697, %v700
      %v702 = vsel %vm613, %v692, %v701
      %v704 = vshrl.u32 %v573, 16
      %v706 = vrot.slane %v704, 1
      %v707 = vshll.u32 %v573, 16
      %v709 = vrot.slane %v707, 2
      %v710 = vor.u32 %v706, %v709
      %v711 = vsel %vm613, %v701, %v710
      %v713 = vshrl.u32 %v574, 16
      %v715 = vrot.slane %v713, 1
      %v716 = vshll.u32 %v574, 16
      %v718 = vrot.slane %v716, 2
      %v719 = vor.u32 %v715, %v718
      %v720 = vsel %vm613, %v710, %v719
      %v722 = vshrl.u32 %v575, 16
      %v724 = vrot.slane %v722, 1
      %v725 = vshll.u32 %v575, 16
      %v727 = vrot.slane %v725, 2
      %v728 = vor.u32 %v724, %v727
      %v729 = vsel %vm613, %v719, %v728
      %v731 = vshrl.u32 %v576, 16
      %v733 = vrot.slane %v731, 1
      %v734 = vshll.u32 %v576, 16
      %v736 = vrot.slane %v734, 2
      %v737 = vor.u32 %v733, %v736
      %v738 = vsel %vm613, %v728, %v737
      %v740 = vshrl.u32 %v577, 16
      %v742 = vrot.slane %v740, 1
      %v743 = vshll.u32 %v577, 16
      %v745 = vrot.slane %v743, 2
      %v746 = vor.u32 %v742, %v745
      %v747 = vsel %vm613, %v737, %v746
      %v749 = vshrl.u32 %v578, 16
      %v751 = vrot.slane %v749, 1
      %v752 = vshll.u32 %v578, 16
      %v754 = vrot.slane %v752, 2
      %v755 = vor.u32 %v751, %v754
      %v756 = vsel %vm613, %v746, %v755
      %v758 = vshrl.u32 %v579, 16
      %v760 = vrot.slane %v758, 1
      %v761 = vshll.u32 %v579, 16
      %v763 = vrot.slane %v761, 2
      %v764 = vor.u32 %v760, %v763
      %v765 = vsel %vm613, %v755, %v764
      %v798 = vunpack.c.l.b16 %v597
      %v799 = vunpack.c.l.b16 %v598
      %v800 = vunpack.c.l.b16 %v599
      %v801 = vunpack.c.l.b16 %v600
      %v802 = vunpack.c.l.b16 %v601
      %v803 = vunpack.c.l.b16 %v602
      %v804 = vunpack.c.l.b16 %v603
      %v805 = vunpack.c.l.b16 %v604
      %v806 = vunpack.c.l.b16 %v605
      %v807 = vunpack.c.l.b16 %v606
      %v808 = vunpack.c.l.b16 %v607
      %v809 = vunpack.c.l.b16 %v608
      %v810 = vunpack.c.l.b16 %v609
      %v811 = vunpack.c.l.b16 %v610
      %v812 = vunpack.c.l.b16 %v611
      %v813 = vunpack.c.l.b16 %v612
      %v814 = vpack.c.b16 %v799, %v798
      %v815 = vpack.c.b16 %v801, %v800
      %v816 = vpack.c.b16 %v803, %v802
      %v817 = vpack.c.b16 %v805, %v804
      %v818 = vpack.c.b16 %v807, %v806
      %v819 = vpack.c.b16 %v809, %v808
      %v820 = vpack.c.b16 %v811, %v810
      %v821 = vpack.c.b16 %v813, %v812
      %830 = vmatprep.subr.bf16.mxu0 0
      %831 = vmatpush1.bf16.msra.mxu0 %v814
      %832 = vmatprep.subr.bf16.mxu0 0
      %833 = vmatpush1.bf16.msra.mxu0 %v815
      %834 = vmatprep.subr.bf16.mxu0 0
      %835 = vmatpush1.bf16.msra.mxu0 %v816
      %836 = vmatprep.subr.bf16.mxu0 0
      %837 = vmatpush1.bf16.msra.mxu0 %v817
      %838 = vmatprep.subr.bf16.mxu0 0
      %839 = vmatpush1.bf16.msra.mxu0 %v818
      %840 = vmatprep.subr.bf16.mxu0 0
      %841 = vmatpush1.bf16.msra.mxu0 %v819
      %842 = vmatprep.subr.bf16.mxu0 0
      %843 = vmatpush1.bf16.msra.mxu0 %v820
      %844 = vmatprep.subr.bf16.mxu0 0
      %845 = vmatpush1.bf16.msra.mxu0 %v821
      %846 = vmatprep.subr.bf16.mxu0 0
      %847 = vmatpush1.bf16.msra.mxu0 0
      %848 = vmatprep.subr.bf16.mxu0 0
      %849 = vmatpush1.bf16.msra.mxu0 0
      %850 = vmatprep.subr.bf16.mxu0 0
      %851 = vmatpush1.bf16.msra.mxu0 0
      %852 = vmatprep.subr.bf16.mxu0 0
      %853 = vmatpush1.bf16.msra.mxu0 0
      %854 = vmatprep.subr.bf16.mxu0 0
      %855 = vmatpush1.bf16.msra.mxu0 0
      %856 = vmatprep.subr.bf16.mxu0 0
      %857 = vmatpush1.bf16.msra.mxu0 0
      %858 = vmatprep.subr.bf16.mxu0 0
      %859 = vmatpush1.bf16.msra.mxu0 0
      %860 = vmatprep.subr.bf16.mxu0 0
      %861 = vmatpush1.bf16.msra.mxu0 0
      %862 = vmatprep.mubr.bf16.mxu0 0
      %863 = vmatmul.mubr.bf16.gmra.mrb[0].mxu0 %v630
      %v864 = vpop.f32.mrb[0].mxu0
      %v865 = vadd.f32 0.0, %v864
      %v866 = vpop.f32.mrb[0].mxu0
      %v867 = vpop.f32.mrb[0].mxu0
      %v868 = vadd.f32 0.0, %v867
      %v869 = vpop.f32.mrb[0].mxu0
      %870 = vmatprep.mubr.bf16.mxu0 0
      %871 = vmatmul.mubr.bf16.gmra.mrb[0].mxu0 %v639
      %v872 = vpop.f32.mrb[0].mxu0
      %v873 = vadd.f32 0.0, %v872
      %v874 = vpop.f32.mrb[0].mxu0
      %v875 = vpop.f32.mrb[0].mxu0
      %v876 = vadd.f32 0.0, %v875
      %v877 = vpop.f32.mrb[0].mxu0
      %878 = vmatprep.mubr.bf16.mxu0 0
      %879 = vmatmul.mubr.bf16.gmra.mrb[0].mxu0 %v648
      %v880 = vpop.f32.mrb[0].mxu0
      %v881 = vadd.f32 0.0, %v880
      %v882 = vpop.f32.mrb[0].mxu0
      %v883 = vpop.f32.mrb[0].mxu0
      %v884 = vadd.f32 0.0, %v883
      %v885 = vpop.f32.mrb[0].mxu0
      %886 = vmatprep.mubr.bf16.mxu0 0
      %887 = vmatmul.mubr.bf16.gmra.mrb[0].mxu0 %v657
      %v888 = vpop.f32.mrb[0].mxu0
      %v889 = vadd.f32 0.0, %v888
      %v890 = vpop.f32.mrb[0].mxu0
      %v891 = vpop.f32.mrb[0].mxu0
      %v892 = vadd.f32 0.0, %v891
      %v893 = vpop.f32.mrb[0].mxu0
      %894 = vmatprep.mubr.bf16.mxu0 0
      %895 = vmatmul.mubr.bf16.gmra.mrb[0].mxu0 %v666
      %v896 = vpop.f32.mrb[0].mxu0
      %v897 = vadd.f32 0.0, %v896
      %v898 = vpop.f32.mrb[0].mxu0
      %v899 = vpop.f32.mrb[0].mxu0
      %v900 = vadd.f32 0.0, %v899
      %v901 = vpop.f32.mrb[0].mxu0
      %902 = vmatprep.mubr.bf16.mxu0 0
      %903 = vmatmul.mubr.bf16.gmra.mrb[0].mxu0 %v675
      %v904 = vpop.f32.mrb[0].mxu0
      %v905 = vadd.f32 0.0, %v904
      %v906 = vpop.f32.mrb[0].mxu0
      %v907 = vpop.f32.mrb[0].mxu0
      %v908 = vadd.f32 0.0, %v907
      %v909 = vpop.f32.mrb[0].mxu0
      %910 = vmatprep.mubr.bf16.mxu0 0
      %911 = vmatmul.mubr.bf16.gmra.mrb[0].mxu0 %v684
      %v912 = vpop.f32.mrb[0].mxu0
      %v913 = vadd.f32 0.0, %v912
      %v914 = vpop.f32.mrb[0].mxu0
      %v915 = vpop.f32.mrb[0].mxu0
      %v916 = vadd.f32 0.0, %v915
      %v917 = vpop.f32.mrb[0].mxu0
      %918 = vmatprep.mubr.bf16.mxu0 0
      %919 = vmatmul.mubr.bf16.gmra.mrb[0].mxu0 %v693
      %v920 = vpop.f32.mrb[0].mxu0
      %v921 = vadd.f32 0.0, %v920
      %v922 = vpop.f32.mrb[0].mxu0
      %v923 = vpop.f32.mrb[0].mxu0
      %v924 = vadd.f32 0.0, %v923
      %v925 = vpop.f32.mrb[0].mxu0
      %926 = vmatprep.mubr.bf16.mxu0 0
      %927 = vmatmul.mubr.bf16.gmra.mrb[0].mxu0 %v702
      %v928 = vpop.f32.mrb[0].mxu0
      %v929 = vadd.f32 0.0, %v928
      %v930 = vpop.f32.mrb[0].mxu0
      %v931 = vpop.f32.mrb[0].mxu0
      %v932 = vadd.f32 0.0, %v931
      %v933 = vpop.f32.mrb[0].mxu0
      %934 = vmatprep.mubr.bf16.mxu0 0
      %935 = vmatmul.mubr.bf16.gmra.mrb[0].mxu0 %v711
      %v936 = vpop.f32.mrb[0].mxu0
      %v937 = vadd.f32 0.0, %v936
      %v938 = vpop.f32.mrb[0].mxu0
      %v939 = vpop.f32.mrb[0].mxu0
      %v940 = vadd.f32 0.0, %v939
      %v941 = vpop.f32.mrb[0].mxu0
      %942 = vmatprep.mubr.bf16.mxu0 0
      %943 = vmatmul.mubr.bf16.gmra.mrb[0].mxu0 %v720
      %v944 = vpop.f32.mrb[0].mxu0
      %v945 = vadd.f32 0.0, %v944
      %v946 = vpop.f32.mrb[0].mxu0
      %v947 = vpop.f32.mrb[0].mxu0
      %v948 = vadd.f32 0.0, %v947
      %v949 = vpop.f32.mrb[0].mxu0
      %950 = vmatprep.mubr.bf16.mxu0 0
      %951 = vmatmul.mubr.bf16.gmra.mrb[0].mxu0 %v729
      %v952 = vpop.f32.mrb[0].mxu0
      %v953 = vadd.f32 0.0, %v952
      %v954 = vpop.f32.mrb[0].mxu0
      %v955 = vpop.f32.mrb[0].mxu0
      %v956 = vadd.f32 0.0, %v955
      %v957 = vpop.f32.mrb[0].mxu0
      %958 = vmatprep.mubr.bf16.mxu0 0
      %959 = vmatmul.mubr.bf16.gmra.mrb[0].mxu0 %v738
      %v960 = vpop.f32.mrb[0].mxu0
      %v961 = vadd.f32 0.0, %v960
      %v962 = vpop.f32.mrb[0].mxu0
      %v963 = vpop.f32.mrb[0].mxu0
      %v964 = vadd.f32 0.0, %v963
      %v965 = vpop.f32.mrb[0].mxu0
      %966 = vmatprep.mubr.bf16.mxu0 0
      %967 = vmatmul.mubr.bf16.gmra.mrb[0].mxu0 %v747
      %v968 = vpop.f32.mrb[0].mxu0
      %v969 = vadd.f32 0.0, %v968
      %v970 = vpop.f32.mrb[0].mxu0
      %v971 = vpop.f32.mrb[0].mxu0
      %v972 = vadd.f32 0.0, %v971
      %v973 = vpop.f32.mrb[0].mxu0
      %974 = vmatprep.mubr.bf16.mxu0 0
      %975 = vmatmul.mubr.bf16.gmra.mrb[0].mxu0 %v756
      %v976 = vpop.f32.mrb[0].mxu0
      %v977 = vadd.f32 0.0, %v976
      %v978 = vpop.f32.mrb[0].mxu0
      %v979 = vpop.f32.mrb[0].mxu0
      %v980 = vadd.f32 0.0, %v979
      %v981 = vpop.f32.mrb[0].mxu0
      %982 = vmatprep.mubr.bf16.mxu0 0
      %983 = vmatmul.mubr.bf16.gmra.mrb[0].mxu0 %v765
      %v984 = vpop.f32.mrb[0].mxu0
      %v985 = vadd.f32 0.0, %v984
      %v986 = vpop.f32.mrb[0].mxu0
      %v987 = vpop.f32.mrb[0].mxu0
      %v988 = vadd.f32 0.0, %v987
      %v989 = vpop.f32.mrb[0].mxu0
      %990 = vdwg.mxu0
      %v1007 = vunpack.c.l.b16 %v580
      %v1008 = vunpack.c.l.b16 %v581
      %v1009 = vunpack.c.l.b16 %v582
      %v1010 = vunpack.c.l.b16 %v583
      %v1011 = vunpack.c.l.b16 %v584
      %v1012 = vunpack.c.l.b16 %v585
      %v1013 = vunpack.c.l.b16 %v586
      %v1014 = vunpack.c.l.b16 %v587
      %v1015 = vunpack.c.l.b16 %v588
      %v1016 = vunpack.c.l.b16 %v589
      %v1017 = vunpack.c.l.b16 %v590
      %v1018 = vunpack.c.l.b16 %v591
      %v1019 = vunpack.c.l.b16 %v592
      %v1020 = vunpack.c.l.b16 %v593
      %v1021 = vunpack.c.l.b16 %v594
      %v1022 = vunpack.c.l.b16 %v595
      %v1023 = vpack.c.b16 %v1008, %v1007
      %v1024 = vpack.c.b16 %v1010, %v1009
      %v1025 = vpack.c.b16 %v1012, %v1011
      %v1026 = vpack.c.b16 %v1014, %v1013
      %v1027 = vpack.c.b16 %v1016, %v1015
      %v1028 = vpack.c.b16 %v1018, %v1017
      %v1029 = vpack.c.b16 %v1020, %v1019
      %v1030 = vpack.c.b16 %v1022, %v1021
      %1039 = vmatprep.subr.bf16.mxu0 0
      %1040 = vmatpush1.bf16.msra.mxu0 %v1023
      %1041 = vmatprep.subr.bf16.mxu0 0
      %1042 = vmatpush1.bf16.msra.mxu0 %v1024
      %1043 = vmatprep.subr.bf16.mxu0 0
      %1044 = vmatpush1.bf16.msra.mxu0 %v1025
      %1045 = vmatprep.subr.bf16.mxu0 0
      %1046 = vmatpush1.bf16.msra.mxu0 %v1026
      %1047 = vmatprep.subr.bf16.mxu0 0
      %1048 = vmatpush1.bf16.msra.mxu0 %v1027
      %1049 = vmatprep.subr.bf16.mxu0 0
      %1050 = vmatpush1.bf16.msra.mxu0 %v1028
      %1051 = vmatprep.subr.bf16.mxu0 0
      %1052 = vmatpush1.bf16.msra.mxu0 %v1029
      %1053 = vmatprep.subr.bf16.mxu0 0
      %1054 = vmatpush1.bf16.msra.mxu0 %v1030
      %1055 = vmatprep.subr.bf16.mxu0 0
      %1056 = vmatpush1.bf16.msra.mxu0 0
      %1057 = vmatprep.subr.bf16.mxu0 0
      %1058 = vmatpush1.bf16.msra.mxu0 0
      %1059 = vmatprep.subr.bf16.mxu0 0
      %1060 = vmatpush1.bf16.msra.mxu0 0
      %1061 = vmatprep.subr.bf16.mxu0 0
      %1062 = vmatpush1.bf16.msra.mxu0 0
      %1063 = vmatprep.subr.bf16.mxu0 0
      %1064 = vmatpush1.bf16.msra.mxu0 0
      %1065 = vmatprep.subr.bf16.mxu0 0
      %1066 = vmatpush1.bf16.msra.mxu0 0
      %1067 = vmatprep.subr.bf16.mxu0 0
      %1068 = vmatpush1.bf16.msra.mxu0 0
      %1069 = vmatprep.subr.bf16.mxu0 0
      %1070 = vmatpush1.bf16.msra.mxu0 0
      %1071 = vmatprep.mubr.bf16.mxu0 0
      %1072 = vmatmul.mubr.bf16.gmra.mrb[0].mxu0 %v563
      %v1073 = vpop.f32.mrb[0].mxu0
      %v1074 = vadd.f32 %v865, %v1073
      %v1075 = vpop.f32.mrb[0].mxu0
      %v1076 = vpop.f32.mrb[0].mxu0
      %v1077 = vadd.f32 %v868, %v1076
      %v1078 = vpop.f32.mrb[0].mxu0
      %1079 = vmatprep.mubr.bf16.mxu0 0
      %1080 = vmatmul.mubr.bf16.gmra.mrb[0].mxu0 %v564
      %v1081 = vpop.f32.mrb[0].mxu0
      %v1082 = vadd.f32 %v873, %v1081
      %v1083 = vpop.f32.mrb[0].mxu0
      %v1084 = vpop.f32.mrb[0].mxu0
      %v1085 = vadd.f32 %v876, %v1084
      %v1086 = vpop.f32.mrb[0].mxu0
      %1087 = vmatprep.mubr.bf16.mxu0 0
      %1088 = vmatmul.mubr.bf16.gmra.mrb[0].mxu0 %v565
      %v1089 = vpop.f32.mrb[0].mxu0
      %v1090 = vadd.f32 %v881, %v1089
      %v1091 = vpop.f32.mrb[0].mxu0
      %v1092 = vpop.f32.mrb[0].mxu0
      %v1093 = vadd.f32 %v884, %v1092
      %v1094 = vpop.f32.mrb[0].mxu0
      %1095 = vmatprep.mubr.bf16.mxu0 0
      %1096 = vmatmul.mubr.bf16.gmra.mrb[0].mxu0 %v566
      %v1097 = vpop.f32.mrb[0].mxu0
      %v1098 = vadd.f32 %v889, %v1097
      %v1099 = vpop.f32.mrb[0].mxu0
      %v1100 = vpop.f32.mrb[0].mxu0
      %v1101 = vadd.f32 %v892, %v1100
      %v1102 = vpop.f32.mrb[0].mxu0
      %1103 = vmatprep.mubr.bf16.mxu0 0
      %1104 = vmatmul.mubr.bf16.gmra.mrb[0].mxu0 %v567
      %v1105 = vpop.f32.mrb[0].mxu0
      %v1106 = vadd.f32 %v897, %v1105
      %v1107 = vpop.f32.mrb[0].mxu0
      %v1108 = vpop.f32.mrb[0].mxu0
      %v1109 = vadd.f32 %v900, %v1108
      %v1110 = vpop.f32.mrb[0].mxu0
      %1111 = vmatprep.mubr.bf16.mxu0 0
      %1112 = vmatmul.mubr.bf16.gmra.mrb[0].mxu0 %v568
      %v1113 = vpop.f32.mrb[0].mxu0
      %v1114 = vadd.f32 %v905, %v1113
      %v1115 = vpop.f32.mrb[0].mxu0
      %v1116 = vpop.f32.mrb[0].mxu0
      %v1117 = vadd.f32 %v908, %v1116
      %v1118 = vpop.f32.mrb[0].mxu0
      %1119 = vmatprep.mubr.bf16.mxu0 0
      %1120 = vmatmul.mubr.bf16.gmra.mrb[0].mxu0 %v569
      %v1121 = vpop.f32.mrb[0].mxu0
      %v1122 = vadd.f32 %v913, %v1121
      %v1123 = vpop.f32.mrb[0].mxu0
      %v1124 = vpop.f32.mrb[0].mxu0
      %v1125 = vadd.f32 %v916, %v1124
      %v1126 = vpop.f32.mrb[0].mxu0
      %1127 = vmatprep.mubr.bf16.mxu0 0
      %1128 = vmatmul.mubr.bf16.gmra.mrb[0].mxu0 %v570
      %v1129 = vpop.f32.mrb[0].mxu0
      %v1130 = vadd.f32 %v921, %v1129
      %v1131 = vpop.f32.mrb[0].mxu0
      %v1132 = vpop.f32.mrb[0].mxu0
      %v1133 = vadd.f32 %v924, %v1132
      %v1134 = vpop.f32.mrb[0].mxu0
      %1135 = vmatprep.mubr.bf16.mxu0 0
      %1136 = vmatmul.mubr.bf16.gmra.mrb[0].mxu0 %v571
      %v1137 = vpop.f32.mrb[0].mxu0
      %v1138 = vadd.f32 %v929, %v1137
      %v1139 = vpop.f32.mrb[0].mxu0
      %v1140 = vpop.f32.mrb[0].mxu0
      %v1141 = vadd.f32 %v932, %v1140
      %v1142 = vpop.f32.mrb[0].mxu0
      %1143 = vmatprep.mubr.bf16.mxu0 0
      %1144 = vmatmul.mubr.bf16.gmra.mrb[0].mxu0 %v572
      %v1145 = vpop.f32.mrb[0].mxu0
      %v1146 = vadd.f32 %v937, %v1145
      %v1147 = vpop.f32.mrb[0].mxu0
      %v1148 = vpop.f32.mrb[0].mxu0
      %v1149 = vadd.f32 %v940, %v1148
      %v1150 = vpop.f32.mrb[0].mxu0
      %1151 = vmatprep.mubr.bf16.mxu0 0
      %1152 = vmatmul.mubr.bf16.gmra.mrb[0].mxu0 %v573
      %v1153 = vpop.f32.mrb[0].mxu0
      %v1154 = vadd.f32 %v945, %v1153
      %v1155 = vpop.f32.mrb[0].mxu0
      %v1156 = vpop.f32.mrb[0].mxu0
      %v1157 = vadd.f32 %v948, %v1156
      %v1158 = vpop.f32.mrb[0].mxu0
      %1159 = vmatprep.mubr.bf16.mxu0 0
      %1160 = vmatmul.mubr.bf16.gmra.mrb[0].mxu0 %v574
      %v1161 = vpop.f32.mrb[0].mxu0
      %v1162 = vadd.f32 %v953, %v1161
      %v1163 = vpop.f32.mrb[0].mxu0
      %v1164 = vpop.f32.mrb[0].mxu0
      %v1165 = vadd.f32 %v956, %v1164
      %v1166 = vpop.f32.mrb[0].mxu0
      %1167 = vmatprep.mubr.bf16.mxu0 0
      %1168 = vmatmul.mubr.bf16.gmra.mrb[0].mxu0 %v575
      %v1169 = vpop.f32.mrb[0].mxu0
      %v1170 = vadd.f32 %v961, %v1169
      %v1171 = vpop.f32.mrb[0].mxu0
      %v1172 = vpop.f32.mrb[0].mxu0
      %v1173 = vadd.f32 %v964, %v1172
      %v1174 = vpop.f32.mrb[0].mxu0
      %1175 = vmatprep.mubr.bf16.mxu0 0
      %1176 = vmatmul.mubr.bf16.gmra.mrb[0].mxu0 %v576
      %v1177 = vpop.f32.mrb[0].mxu0
      %v1178 = vadd.f32 %v969, %v1177
      %v1179 = vpop.f32.mrb[0].mxu0
      %v1180 = vpop.f32.mrb[0].mxu0
      %v1181 = vadd.f32 %v972, %v1180
      %v1182 = vpop.f32.mrb[0].mxu0
      %1183 = vmatprep.mubr.bf16.mxu0 0
      %1184 = vmatmul.mubr.bf16.gmra.mrb[0].mxu0 %v577
      %v1185 = vpop.f32.mrb[0].mxu0
      %v1186 = vadd.f32 %v977, %v1185
      %v1187 = vpop.f32.mrb[0].mxu0
      %v1188 = vpop.f32.mrb[0].mxu0
      %v1189 = vadd.f32 %v980, %v1188
      %v1190 = vpop.f32.mrb[0].mxu0
      %1191 = vmatprep.mubr.bf16.mxu0 0
      %1192 = vmatmul.mubr.bf16.gmra.mrb[0].mxu0 %v578
      %v1193 = vpop.f32.mrb[0].mxu0
      %v1194 = vadd.f32 %v985, %v1193
      %v1195 = vpop.f32.mrb[0].mxu0
      %v1196 = vpop.f32.mrb[0].mxu0
      %v1197 = vadd.f32 %v988, %v1196
      %v1198 = vpop.f32.mrb[0].mxu0
      %1199 = vdwg.mxu0
      %s1200 = scalar_lea.vmem %s1, 128
      %v1201 = vld [vmem:[%s1200] sm:$0xf]
      %v1202 = vld [vmem:[%s1200 + $0x4] sm:$0xf]
      %v1203 = vld [vmem:[%s1200 + $0x8] sm:$0xf]
      %v1204 = vld [vmem:[%s1200 + $0xc] sm:$0xf]
      %v1205 = vld [vmem:[%s1200 + $0x10] sm:$0xf]
      %v1206 = vld [vmem:[%s1200 + $0x14] sm:$0xf]
      %v1207 = vld [vmem:[%s1200 + $0x18] sm:$0xf]
      %v1208 = vld [vmem:[%s1200 + $0x1c] sm:$0xf]
      %v1209 = vld [vmem:[%s1200 + $0x20] sm:$0xf]
      %v1210 = vld [vmem:[%s1200 + $0x24] sm:$0xf]
      %v1211 = vld [vmem:[%s1200 + $0x28] sm:$0xf]
      %v1212 = vld [vmem:[%s1200 + $0x2c] sm:$0xf]
      %v1213 = vld [vmem:[%s1200 + $0x30] sm:$0xf]
      %v1214 = vld [vmem:[%s1200 + $0x34] sm:$0xf]
      %v1215 = vld [vmem:[%s1200 + $0x38] sm:$0xf]
      %v1216 = vld [vmem:[%s1200 + $0x3c] sm:$0xf]
      %vm1234 = vcmask 1044480
      %v1235 = vrot.slane %v563, 3
      %v1236 = vrot.slane %v564, 3
      %v1237 = vsel %vm1234, %v1235, %v1236
      %v1238 = vrot.slane %v565, 3
      %v1239 = vsel %vm1234, %v1236, %v1238
      %v1240 = vrot.slane %v566, 3
      %v1241 = vsel %vm1234, %v1238, %v1240
      %v1242 = vrot.slane %v567, 3
      %v1243 = vsel %vm1234, %v1240, %v1242
      %v1244 = vrot.slane %v568, 3
      %v1245 = vsel %vm1234, %v1242, %v1244
      %v1246 = vrot.slane %v569, 3
      %v1247 = vsel %vm1234, %v1244, %v1246
      %v1248 = vrot.slane %v570, 3
      %v1249 = vsel %vm1234, %v1246, %v1248
      %v1250 = vrot.slane %v571, 3
      %v1251 = vsel %vm1234, %v1248, %v1250
      %v1252 = vrot.slane %v572, 3
      %v1253 = vsel %vm1234, %v1250, %v1252
      %v1254 = vrot.slane %v573, 3
      %v1255 = vsel %vm1234, %v1252, %v1254
      %v1256 = vrot.slane %v574, 3
      %v1257 = vsel %vm1234, %v1254, %v1256
      %v1258 = vrot.slane %v575, 3
      %v1259 = vsel %vm1234, %v1256, %v1258
      %v1260 = vrot.slane %v576, 3
      %v1261 = vsel %vm1234, %v1258, %v1260
      %v1262 = vrot.slane %v577, 3
      %v1263 = vsel %vm1234, %v1260, %v1262
      %v1264 = vrot.slane %v578, 3
      %v1265 = vsel %vm1234, %v1262, %v1264
      %v1266 = vrot.slane %v579, 3
      %v1267 = vsel %vm1234, %v1264, %v1266
      %v1300 = vunpack.c.l.b16 %v1201
      %v1301 = vunpack.c.l.b16 %v1202
      %v1302 = vunpack.c.l.b16 %v1203
      %v1303 = vunpack.c.l.b16 %v1204
      %v1304 = vunpack.c.l.b16 %v1205
      %v1305 = vunpack.c.l.b16 %v1206
      %v1306 = vunpack.c.l.b16 %v1207
      %v1307 = vunpack.c.l.b16 %v1208
      %v1308 = vunpack.c.l.b16 %v1209
      %v1309 = vunpack.c.l.b16 %v1210
      %v1310 = vunpack.c.l.b16 %v1211
      %v1311 = vunpack.c.l.b16 %v1212
      %v1312 = vunpack.c.l.b16 %v1213
      %v1313 = vunpack.c.l.b16 %v1214
      %v1314 = vunpack.c.l.b16 %v1215
      %v1315 = vunpack.c.l.b16 %v1216
      %v1316 = vpack.c.b16 %v1301, %v1300
      %v1317 = vpack.c.b16 %v1303, %v1302
      %v1318 = vpack.c.b16 %v1305, %v1304
      %v1319 = vpack.c.b16 %v1307, %v1306
      %v1320 = vpack.c.b16 %v1309, %v1308
      %v1321 = vpack.c.b16 %v1311, %v1310
      %v1322 = vpack.c.b16 %v1313, %v1312
      %v1323 = vpack.c.b16 %v1315, %v1314
      %1332 = vmatprep.subr.bf16.mxu0 0
      %1333 = vmatpush1.bf16.msra.mxu0 %v1316
      %1334 = vmatprep.subr.bf16.mxu0 0
      %1335 = vmatpush1.bf16.msra.mxu0 %v1317
      %1336 = vmatprep.subr.bf16.mxu0 0
      %1337 = vmatpush1.bf16.msra.mxu0 %v1318
      %1338 = vmatprep.subr.bf16.mxu0 0
      %1339 = vmatpush1.bf16.msra.mxu0 %v1319
      %1340 = vmatprep.subr.bf16.mxu0 0
      %1341 = vmatpush1.bf16.msra.mxu0 %v1320
      %1342 = vmatprep.subr.bf16.mxu0 0
      %1343 = vmatpush1.bf16.msra.mxu0 %v1321
      %1344 = vmatprep.subr.bf16.mxu0 0
      %1345 = vmatpush1.bf16.msra.mxu0 %v1322
      %1346 = vmatprep.subr.bf16.mxu0 0
      %1347 = vmatpush1.bf16.msra.mxu0 %v1323
      %1348 = vmatprep.subr.bf16.mxu0 0
      %1349 = vmatpush1.bf16.msra.mxu0 0
      %1350 = vmatprep.subr.bf16.mxu0 0
      %1351 = vmatpush1.bf16.msra.mxu0 0
      %1352 = vmatprep.subr.bf16.mxu0 0
      %1353 = vmatpush1.bf16.msra.mxu0 0
      %1354 = vmatprep.subr.bf16.mxu0 0
      %1355 = vmatpush1.bf16.msra.mxu0 0
      %1356 = vmatprep.subr.bf16.mxu0 0
      %1357 = vmatpush1.bf16.msra.mxu0 0
      %1358 = vmatprep.subr.bf16.mxu0 0
      %1359 = vmatpush1.bf16.msra.mxu0 0
      %1360 = vmatprep.subr.bf16.mxu0 0
      %1361 = vmatpush1.bf16.msra.mxu0 0
      %1362 = vmatprep.subr.bf16.mxu0 0
      %1363 = vmatpush1.bf16.msra.mxu0 0
      %1364 = vmatprep.mubr.bf16.mxu0 0
      %1365 = vmatmul.mubr.bf16.gmra.mrb[0].mxu0 %v1237
      %v1366 = vpop.f32.mrb[0].mxu0
      %v1367 = vadd.f32 0.0, %v1366
      %v1368 = vpop.f32.mrb[0].mxu0
      %v1369 = vpop.f32.mrb[0].mxu0
      %v1370 = vadd.f32 0.0, %v1369
      %v1371 = vpop.f32.mrb[0].mxu0
      %1372 = vmatprep.mubr.bf16.mxu0 0
      %1373 = vmatmul.mubr.bf16.gmra.mrb[0].mxu0 %v1239
      %v1374 = vpop.f32.mrb[0].mxu0
      %v1375 = vadd.f32 0.0, %v1374
      %v1376 = vpop.f32.mrb[0].mxu0
      %v1377 = vpop.f32.mrb[0].mxu0
      %v1378 = vadd.f32 0.0, %v1377
      %v1379 = vpop.f32.mrb[0].mxu0
      %1380 = vmatprep.mubr.bf16.mxu0 0
      %1381 = vmatmul.mubr.bf16.gmra.mrb[0].mxu0 %v1241
      %v1382 = vpop.f32.mrb[0].mxu0
      %v1383 = vadd.f32 0.0, %v1382
      %v1384 = vpop.f32.mrb[0].mxu0
      %v1385 = vpop.f32.mrb[0].mxu0
      %v1386 = vadd.f32 0.0, %v1385
      %v1387 = vpop.f32.mrb[0].mxu0
      %1388 = vmatprep.mubr.bf16.mxu0 0
      %1389 = vmatmul.mubr.bf16.gmra.mrb[0].mxu0 %v1243
      %v1390 = vpop.f32.mrb[0].mxu0
      %v1391 = vadd.f32 0.0, %v1390
      %v1392 = vpop.f32.mrb[0].mxu0
      %v1393 = vpop.f32.mrb[0].mxu0
      %v1394 = vadd.f32 0.0, %v1393
      %v1395 = vpop.f32.mrb[0].mxu0
      %1396 = vmatprep.mubr.bf16.mxu0 0
      %1397 = vmatmul.mubr.bf16.gmra.mrb[0].mxu0 %v1245
      %v1398 = vpop.f32.mrb[0].mxu0
      %v1399 = vadd.f32 0.0, %v1398
      %v1400 = vpop.f32.mrb[0].mxu0
      %v1401 = vpop.f32.mrb[0].mxu0
      %v1402 = vadd.f32 0.0, %v1401
      %v1403 = vpop.f32.mrb[0].mxu0
      %1404 = vmatprep.mubr.bf16.mxu0 0
      %1405 = vmatmul.mubr.bf16.gmra.mrb[0].mxu0 %v1247
      %v1406 = vpop.f32.mrb[0].mxu0
      %v1407 = vadd.f32 0.0, %v1406
      %v1408 = vpop.f32.mrb[0].mxu0
      %v1409 = vpop.f32.mrb[0].mxu0
      %v1410 = vadd.f32 0.0, %v1409
      %v1411 = vpop.f32.mrb[0].mxu0
      %1412 = vmatprep.mubr.bf16.mxu0 0
      %1413 = vmatmul.mubr.bf16.gmra.mrb[0].mxu0 %v1249
      %v1414 = vpop.f32.mrb[0].mxu0
      %v1415 = vadd.f32 0.0, %v1414
      %v1416 = vpop.f32.mrb[0].mxu0
      %v1417 = vpop.f32.mrb[0].mxu0
      %v1418 = vadd.f32 0.0, %v1417
      %v1419 = vpop.f32.mrb[0].mxu0
      %1420 = vmatprep.mubr.bf16.mxu0 0
      %1421 = vmatmul.mubr.bf16.gmra.mrb[0].mxu0 %v1251
      %v1422 = vpop.f32.mrb[0].mxu0
      %v1423 = vadd.f32 0.0, %v1422
      %v1424 = vpop.f32.mrb[0].mxu0
      %v1425 = vpop.f32.mrb[0].mxu0
      %v1426 = vadd.f32 0.0, %v1425
      %v1427 = vpop.f32.mrb[0].mxu0
      %1428 = vmatprep.mubr.bf16.mxu0 0
      %1429 = vmatmul.mubr.bf16.gmra.mrb[0].mxu0 %v1253
      %v1430 = vpop.f32.mrb[0].mxu0
      %v1431 = vadd.f32 0.0, %v1430
      %v1432 = vpop.f32.mrb[0].mxu0
      %v1433 = vpop.f32.mrb[0].mxu0
      %v1434 = vadd.f32 0.0, %v1433
      %v1435 = vpop.f32.mrb[0].mxu0
      %1436 = vmatprep.mubr.bf16.mxu0 0
      %1437 = vmatmul.mubr.bf16.gmra.mrb[0].mxu0 %v1255
      %v1438 = vpop.f32.mrb[0].mxu0
      %v1439 = vadd.f32 0.0, %v1438
      %v1440 = vpop.f32.mrb[0].mxu0
      %v1441 = vpop.f32.mrb[0].mxu0
      %v1442 = vadd.f32 0.0, %v1441
      %v1443 = vpop.f32.mrb[0].mxu0
      %1444 = vmatprep.mubr.bf16.mxu0 0
      %1445 = vmatmul.mubr.bf16.gmra.mrb[0].mxu0 %v1257
      %v1446 = vpop.f32.mrb[0].mxu0
      %v1447 = vadd.f32 0.0, %v1446
      %v1448 = vpop.f32.mrb[0].mxu0
      %v1449 = vpop.f32.mrb[0].mxu0
      %v1450 = vadd.f32 0.0, %v1449
      %v1451 = vpop.f32.mrb[0].mxu0
      %1452 = vmatprep.mubr.bf16.mxu0 0
      %1453 = vmatmul.mubr.bf16.gmra.mrb[0].mxu0 %v1259
      %v1454 = vpop.f32.mrb[0].mxu0
      %v1455 = vadd.f32 0.0, %v1454
      %v1456 = vpop.f32.mrb[0].mxu0
      %v1457 = vpop.f32.mrb[0].mxu0
      %v1458 = vadd.f32 0.0, %v1457
      %v1459 = vpop.f32.mrb[0].mxu0
      %1460 = vmatprep.mubr.bf16.mxu0 0
      %1461 = vmatmul.mubr.bf16.gmra.mrb[0].mxu0 %v1261
      %v1462 = vpop.f32.mrb[0].mxu0
      %v1463 = vadd.f32 0.0, %v1462
      %v1464 = vpop.f32.mrb[0].mxu0
      %v1465 = vpop.f32.mrb[0].mxu0
      %v1466 = vadd.f32 0.0, %v1465
      %v1467 = vpop.f32.mrb[0].mxu0
      %1468 = vmatprep.mubr.bf16.mxu0 0
      %1469 = vmatmul.mubr.bf16.gmra.mrb[0].mxu0 %v1263
      %v1470 = vpop.f32.mrb[0].mxu0
      %v1471 = vadd.f32 0.0, %v1470
      %v1472 = vpop.f32.mrb[0].mxu0
      %v1473 = vpop.f32.mrb[0].mxu0
      %v1474 = vadd.f32 0.0, %v1473
      %v1475 = vpop.f32.mrb[0].mxu0
      %1476 = vmatprep.mubr.bf16.mxu0 0
      %1477 = vmatmul.mubr.bf16.gmra.mrb[0].mxu0 %v1265
      %v1478 = vpop.f32.mrb[0].mxu0
      %v1479 = vadd.f32 0.0, %v1478
      %v1480 = vpop.f32.mrb[0].mxu0
      %v1481 = vpop.f32.mrb[0].mxu0
      %v1482 = vadd.f32 0.0, %v1481
      %v1483 = vpop.f32.mrb[0].mxu0
      %1484 = vmatprep.mubr.bf16.mxu0 0
      %1485 = vmatmul.mubr.bf16.gmra.mrb[0].mxu0 %v1267
      %v1486 = vpop.f32.mrb[0].mxu0
      %v1487 = vadd.f32 0.0, %v1486
      %v1488 = vpop.f32.mrb[0].mxu0
      %v1489 = vpop.f32.mrb[0].mxu0
      %v1490 = vadd.f32 0.0, %v1489
      %v1491 = vpop.f32.mrb[0].mxu0
      %1492 = vdwg.mxu0
      %v1493 = vadd.f32 %v1074, %v1367
      %v1494 = vadd.f32 %v1077, %v1370
      %v1495 = vadd.f32 %v1082, %v1375
      %v1496 = vadd.f32 %v1085, %v1378
      %v1497 = vadd.f32 %v1090, %v1383
      %v1498 = vadd.f32 %v1093, %v1386
      %v1499 = vadd.f32 %v1098, %v1391
      %v1500 = vadd.f32 %v1101, %v1394
      %v1501 = vadd.f32 %v1106, %v1399
      %v1502 = vadd.f32 %v1109, %v1402
      %v1503 = vadd.f32 %v1114, %v1407
      %v1504 = vadd.f32 %v1117, %v1410
      %v1505 = vadd.f32 %v1122, %v1415
      %v1506 = vadd.f32 %v1125, %v1418
      %v1507 = vadd.f32 %v1130, %v1423
      %v1508 = vadd.f32 %v1133, %v1426
      %v1509 = vadd.f32 %v1138, %v1431
      %v1510 = vadd.f32 %v1141, %v1434
      %v1511 = vadd.f32 %v1146, %v1439
      %v1512 = vadd.f32 %v1149, %v1442
      %v1513 = vadd.f32 %v1154, %v1447
      %v1514 = vadd.f32 %v1157, %v1450
      %v1515 = vadd.f32 %v1162, %v1455
      %v1516 = vadd.f32 %v1165, %v1458
      %v1517 = vadd.f32 %v1170, %v1463
      %v1518 = vadd.f32 %v1173, %v1466
      %v1519 = vadd.f32 %v1178, %v1471
      %v1520 = vadd.f32 %v1181, %v1474
      %v1521 = vadd.f32 %v1186, %v1479
      %v1522 = vadd.f32 %v1189, %v1482
      %v1523 = vadd.f32 %v1194, %v1487
      %v1524 = vadd.f32 %v1197, %v1490
      %v1525 = vld [vmem:[%s2] sm:$0x1]
      %v1527 = vlaneseq
      %v1528 = vshrl.u32 %v1527, 7
      %v1529 = vsub.s32 0, %v1528
      %v1530 = vrot.slane %v1525, %v1529
      %v1532 = vadd.f32 %v1493, %v1530
      %v1533 = vadd.f32 %v1494, %v1530
      %v1534 = vadd.f32 %v1495, %v1530
      %v1535 = vadd.f32 %v1496, %v1530
      %v1536 = vadd.f32 %v1497, %v1530
      %v1537 = vadd.f32 %v1498, %v1530
      %v1538 = vadd.f32 %v1499, %v1530
      %v1539 = vadd.f32 %v1500, %v1530
      %v1540 = vadd.f32 %v1501, %v1530
      %v1541 = vadd.f32 %v1502, %v1530
      %v1542 = vadd.f32 %v1503, %v1530
      %v1543 = vadd.f32 %v1504, %v1530
      %v1544 = vadd.f32 %v1505, %v1530
      %v1545 = vadd.f32 %v1506, %v1530
      %v1546 = vadd.f32 %v1507, %v1530
      %v1547 = vadd.f32 %v1508, %v1530
      %v1548 = vadd.f32 %v1509, %v1530
      %v1549 = vadd.f32 %v1510, %v1530
      %v1550 = vadd.f32 %v1511, %v1530
      %v1551 = vadd.f32 %v1512, %v1530
      %v1552 = vadd.f32 %v1513, %v1530
      %v1553 = vadd.f32 %v1514, %v1530
      %v1554 = vadd.f32 %v1515, %v1530
      %v1555 = vadd.f32 %v1516, %v1530
      %v1556 = vadd.f32 %v1517, %v1530
      %v1557 = vadd.f32 %v1518, %v1530
      %v1558 = vadd.f32 %v1519, %v1530
      %v1559 = vadd.f32 %v1520, %v1530
      %v1560 = vadd.f32 %v1521, %v1530
      %v1561 = vadd.f32 %v1522, %v1530
      %v1562 = vadd.f32 %v1523, %v1530
      %v1563 = vadd.f32 %v1524, %v1530
      %1564 = vst [vmem:[%s146] sm:$0xff] %v1532
      %1565 = vst [vmem:[%s146 + $0x8] sm:$0xff] %v1533
      %1566 = vst [vmem:[%s146 + $0x10] sm:$0xff] %v1534
      %1567 = vst [vmem:[%s146 + $0x18] sm:$0xff] %v1535
      %1568 = vst [vmem:[%s146 + $0x20] sm:$0xff] %v1536
      %1569 = vst [vmem:[%s146 + $0x28] sm:$0xff] %v1537
      %1570 = vst [vmem:[%s146 + $0x30] sm:$0xff] %v1538
      %1571 = vst [vmem:[%s146 + $0x38] sm:$0xff] %v1539
      %1572 = vst [vmem:[%s146 + $0x40] sm:$0xff] %v1540
      %1573 = vst [vmem:[%s146 + $0x48] sm:$0xff] %v1541
      %1574 = vst [vmem:[%s146 + $0x50] sm:$0xff] %v1542
      %1575 = vst [vmem:[%s146 + $0x58] sm:$0xff] %v1543
      %1576 = vst [vmem:[%s146 + $0x60] sm:$0xff] %v1544
      %1577 = vst [vmem:[%s146 + $0x68] sm:$0xff] %v1545
      %1578 = vst [vmem:[%s146 + $0x70] sm:$0xff] %v1546
      %1579 = vst [vmem:[%s146 + $0x78] sm:$0xff] %v1547
      %1580 = vst [vmem:[%s146 + $0x80] sm:$0xff] %v1548
      %1581 = vst [vmem:[%s146 + $0x88] sm:$0xff] %v1549
      %1582 = vst [vmem:[%s146 + $0x90] sm:$0xff] %v1550
      %1583 = vst [vmem:[%s146 + $0x98] sm:$0xff] %v1551
      %1584 = vst [vmem:[%s146 + $0xa0] sm:$0xff] %v1552
      %1585 = vst [vmem:[%s146 + $0xa8] sm:$0xff] %v1553
      %1586 = vst [vmem:[%s146 + $0xb0] sm:$0xff] %v1554
      %1587 = vst [vmem:[%s146 + $0xb8] sm:$0xff] %v1555
      %1588 = vst [vmem:[%s146 + $0xc0] sm:$0xff] %v1556
      %1589 = vst [vmem:[%s146 + $0xc8] sm:$0xff] %v1557
      %1590 = vst [vmem:[%s146 + $0xd0] sm:$0xff] %v1558
      %1591 = vst [vmem:[%s146 + $0xd8] sm:$0xff] %v1559
      %1592 = vst [vmem:[%s146 + $0xe0] sm:$0xff] %v1560
      %1593 = vst [vmem:[%s146 + $0xe8] sm:$0xff] %v1561
      %1594 = vst [vmem:[%s146 + $0xf0] sm:$0xff] %v1562
      %1595 = vst [vmem:[%s146 + $0xf8] sm:$0xff] %v1563
      %s1596 = smul.u32 32, %s19
      %p1597 = scmp.lt.s32.totalorder %s18, 1
      %s1598 = scalar_select %p1597, %s18, 1
      %p1599 = scmp.lt.s32.totalorder %s1596, 95
      %s1600 = scalar_select %p1599, %s1596, 95
      %s1601 = smul.addr %s1598, 96
      %s1602 = sadd.s32 %s1600, %s1601
      %s1603 = smul.addr %s1602, 8
      %s1604 = scalar_lea.vmem %s3, %s1603
      // Predicated region
      $region111: #{resblock1_forward.8} parent=27 // pred_check
        %p1605 = pneg %p88
      $region112: #{resblock1_forward.8} parent=27 // pred_check_branch
        %1607 = sbr.rel (%p1605) target = $region114
      $region113: #{resblock1_forward.8} parent=27 // pred_region
        %s1608 = smul.u32 32, %s19
      $region114: #{resblock1_forward.8} parent=27 // pred_fallthru
        _
    $region28: #{resblock1_forward.8} parent=5 // pred_fallthru
      _
    %p1609 = scmp.le.s32.totalorder 2, %s9
    // Predicated region
    $region115: #{resblock1_forward.8} parent=5 // pred_check
      %p1610 = pneg %p1609
    $region116: #{resblock1_forward.8} parent=5 // pred_check_branch
      %1612 = sbr.rel (%p1610) target = $region118
    $region117: #{resblock1_forward.8} parent=5 // pred_region
      %s1613 = ssub.s32 %s9, 2
      // Predicated region
      $region119: #{resblock1_forward.8} parent=117 // pred_check
        %p1614 = pneg %p94
      $region120: #{resblock1_forward.8} parent=117 // pred_check_branch
        %1616 = sbr.rel (%p1614) target = $region122
      $region121: #{resblock1_forward.8} parent=117 // pred_region
        %s1617 = smul.u32 32, %s21
        %p1618 = scmp.lt.s32.totalorder %s20, 1
        %s1619 = scalar_select %p1618, %s20, 1
        %p1620 = scmp.lt.s32.totalorder %s1617, 95
        %s1621 = scalar_select %p1620, %s1617, 95
        %s1622 = smul.addr %s1619, 96
        %s1623 = sadd.s32 %s1621, %s1622
        %s1624 = smul.addr %s1623, 8
        %s1625 = scalar_lea.vmem %s3, %s1624
      $region122: #{resblock1_forward.8} parent=117 // pred_fallthru
        _
    $region118: #{resblock1_forward.8} parent=5 // pred_fallthru
      _
  $region6: #{resblock1_forward.8} parent=0 // loop_footer
    %s13 = sadd.s32 1, %s9
  $region7: #{resblock1_forward.8} parent=0 // loop_footer_branch
    %8 = sbr.rel target = $region3
  $region8: #{resblock1_forward.8} parent=0 // loop_exit
    _
  %1626 = vsyncmov [#allocation3]
  %s1627 = vpop.sfrf %1626
  %p1628 = scmp.eq.s32.totalorder %s1627, 0
  %p1629 = pneg %p1628
  %1631 = shalt.err (%p1629)
  %s1632 = scalar_lea.sflag [#allocation3], 1
  %1633 = vsyncmov %s1632
  %s1634 = vpop.sfrf %1633
  %p1635 = scmp.eq.s32.totalorder %s1634, 0
  %p1636 = pneg %p1635
  %1638 = shalt.err (%p1636)

// kernel: resblock1_forward.10
$region0: #{resblock1_forward.10}
  #allocation0 [shape = 'u32[]', space=smem, size = 0x4, offset = 0x4, fixed_abs, tag = 'smem constant byte address 0x4 - core index']
  #allocation1 [shape = 'u32[144,128]{1,0:T(1,128)}', space=vmem, size = 0x12000, scoped, tag = 'internal scratch']
  #allocation2 [shape = 'f32[2,266,128]{2,1,0:T(8,128)}', space=vmem, size = 0x44000, scoped, tag = 'scratch operand']
  #allocation3 [shape = 's32[2]{0}', space=sflag, size = 0x8, scoped, tag = 'scratch operand']
  #allocation4 [shape = 's32[]', space=sflag, size = 0x4, offset = 0, fixed_abs, tag = 'sflag constant byte address 0x0 - dummy sync flag']
  #allocation5 [shape = 's32[]', space=sflag, size = 0x4, offset = 0, fixed_abs, tag = 'sflag constant byte address 0x0 - dummy sync flag']
  %s0 = inlined_call_operand.vmem [shape: f32[2,778,128], index: 0, kind: input, shape index: {}]
  %s1 = inlined_call_operand.vmem [shape: bf16[3,128,128], index: 1, kind: input, shape index: {}]
  %s2 = inlined_call_operand.vmem [shape: f32[1,128], index: 2, kind: input, shape index: {}]
  %s3 = inlined_call_operand.vmem [shape: f32[2,768,128], index: 3, kind: output, shape index: {}]
  %s4 = sld [smem:[#allocation0]]
  $region123: #{resblock1_forward.10} parent=0
    _
  %s6 = ssub.s32 1, %s4
  %s7 = scalar_select 0, %s6, %s4
  loop: start=0, step=1, limit=8
  $region2: #{resblock1_forward.10} parent=0 // loop_pre_header
    _
  $region3: #{resblock1_forward.10} parent=0 // loop_header
    %s9 = sphi 0, %s13
    %p10 = scmp.ge.s32.totalorder %s9, 8
    %s16 = sphi 0, %s28
    %s17 = sphi 0, %s24
    %s18 = sphi 0, %s16
    %s19 = sphi 0, %s17
    %s20 = sphi 0, %s18
    %s21 = sphi 0, %s19
    %s29 = sphi 0, %s29
    %s31 = sphi 0, %s29
    %s32 = sphi 0, %s31
    %s46 = sphi 0, %s32
    %s50 = sphi 0, %s50
    %s52 = sphi 0, %s50
    %s53 = sphi 0, %s52
    %s67 = sphi 0, %s53
    %s75 = sphi 0, %s77
    %s78 = sphi 0, %s75
    %s79 = sphi 0, %s78
    %s95 = sphi 0, %s79
  $region4: #{resblock1_forward.10} parent=0 // loop_header_branch
    %12 = sbr.rel (%p10) target = $region8
  $region5: #{resblock1_forward.10} parent=0 // loop_body
    %s14 = ssub.s32 %s9, 1
    %s15 = ssub.s32 %s9, 2
    %s22 = sadd.s32 1, %s17
    %p23 = scmp.ge.s32.totalorder %s22, 3
    %s24 = scalar_select %p23, 0, %s22
    %s25 = sadd.s32 1, %s16
    %s26 = scalar_select %p23, %s25, %s16
    %p27 = scmp.ge.s32.totalorder %s26, 2
    %s28 = scalar_select %p27, 0, %s26
    %s30 = sadd.s32 %s29, 1
    %p33 = scmp.eq.s32.totalorder %s9, 5
    %p34 = scmp.ne.s32.totalorder %s29, %s31
    %p35 = scmp.eq.s32.totalorder %s9, 0
    %p36 = por %p34, %p35
    %p37 = scmp.ne.s32.totalorder %s29, %s31
    %p38 = scmp.eq.s32.totalorder %s14, 5
    %p39 = por %p37, %p38
    %p40 = scmp.ne.s32.totalorder %s31, %s32
    %p41 = scmp.eq.s32.totalorder %s14, 0
    %p42 = por %p40, %p41
    %p43 = scmp.ne.s32.totalorder %s31, %s32
    %p44 = scmp.eq.s32.totalorder %s15, 5
    %p45 = por %p43, %p44
    %p47 = scmp.ne.s32.totalorder %s32, %s46
    %p48 = scmp.eq.s32.totalorder %s15, 0
    %p49 = por %p47, %p48
    %s51 = sadd.s32 %s50, 1
    %p54 = scmp.eq.s32.totalorder %s9, 5
    %p55 = scmp.ne.s32.totalorder %s50, %s52
    %p56 = scmp.eq.s32.totalorder %s9, 0
    %p57 = por %p55, %p56
    %p58 = scmp.ne.s32.totalorder %s50, %s52
    %p59 = scmp.eq.s32.totalorder %s14, 5
    %p60 = por %p58, %p59
    %p61 = scmp.ne.s32.totalorder %s52, %s53
    %p62 = scmp.eq.s32.totalorder %s14, 0
    %p63 = por %p61, %p62
    %p64 = scmp.ne.s32.totalorder %s52, %s53
    %p65 = scmp.eq.s32.totalorder %s15, 5
    %p66 = por %p64, %p65
    %p68 = scmp.ne.s32.totalorder %s53, %s67
    %p69 = scmp.eq.s32.totalorder %s15, 0
    %p70 = por %p68, %p69
    %s71 = ssub.s32 %s16, %s28
    %s72 = ssub.s32 %s17, %s24
    %s73 = sor.u32 %s71, %s72
    %p74 = scmp.eq.s32.totalorder %s73, 0
    %s76 = sadd.s32 %s75, 1
    %s77 = scalar_select %p74, %s75, %s76
    %p80 = pneg %p74
    %p81 = scmp.eq.s32.totalorder %s9, 5
    %p82 = por %p80, %p81
    %p83 = scmp.ne.s32.totalorder %s75, %s78
    %p84 = scmp.eq.s32.totalorder %s9, 0
    %p85 = por %p83, %p84
    %p86 = scmp.ne.s32.totalorder %s75, %s78
    %p87 = scmp.eq.s32.totalorder %s14, 5
    %p88 = por %p86, %p87
    %p89 = scmp.ne.s32.totalorder %s78, %s79
    %p90 = scmp.eq.s32.totalorder %s14, 0
    %p91 = por %p89, %p90
    %p92 = scmp.ne.s32.totalorder %s78, %s79
    %p93 = scmp.eq.s32.totalorder %s15, 5
    %p94 = por %p92, %p93
    %p96 = scmp.ne.s32.totalorder %s79, %s95
    %p97 = scmp.eq.s32.totalorder %s15, 0
    %p98 = por %p96, %p97
    %p99 = scmp.le.s32.totalorder 1, %s9
    %p100 = scmp.lt.s32.totalorder %s9, 7
    %p101 = pnand %p99, %p100
    %p102 = pneg %p101
    // Predicated region
    $region9: #{resblock1_forward.10} parent=5 // pred_check
      _
    $region10: #{resblock1_forward.10} parent=5 // pred_check_branch
      %104 = sbr.rel (%p101) target = $region12
    $region11: #{resblock1_forward.10} parent=5 // pred_region
      %s105 = ssub.s32 %s9, 1
      // Predicated region
      $region13: #{resblock1_forward.10} parent=11 // pred_check
        %p106 = pneg %p42
      $region14: #{resblock1_forward.10} parent=11 // pred_check_branch
        %108 = sbr.rel (%p106) target = $region16
      $region15: #{resblock1_forward.10} parent=11 // pred_region
        _
      $region16: #{resblock1_forward.10} parent=11 // pred_fallthru
        _
      // Predicated region
      $region17: #{resblock1_forward.10} parent=11 // pred_check
        %p109 = pneg %p63
      $region18: #{resblock1_forward.10} parent=11 // pred_check_branch
        %111 = sbr.rel (%p109) target = $region20
      $region19: #{resblock1_forward.10} parent=11 // pred_region
        _
      $region20: #{resblock1_forward.10} parent=11 // pred_fallthru
        _
    $region12: #{resblock1_forward.10} parent=5 // pred_fallthru
      _
    %p112 = scmp.lt.s32.totalorder %s9, 6
    // Predicated region
    $region21: #{resblock1_forward.10} parent=5 // pred_check
      %p113 = pneg %p112
    $region22: #{resblock1_forward.10} parent=5 // pred_check_branch
      %115 = sbr.rel (%p113) target = $region24
    $region23: #{resblock1_forward.10} parent=5 // pred_region
      _
    $region24: #{resblock1_forward.10} parent=5 // pred_fallthru
      _
    %p116 = scmp.le.s32.totalorder 1, %s9
    %p117 = scmp.lt.s32.totalorder %s9, 7
    %p118 = pnand %p116, %p117
    %p119 = pneg %p118
    // Predicated region
    $region25: #{resblock1_forward.10} parent=5 // pred_check
      _
    $region26: #{resblock1_forward.10} parent=5 // pred_check_branch
      %121 = sbr.rel (%p118) target = $region28
    $region27: #{resblock1_forward.10} parent=5 // pred_region
      %s122 = ssub.s32 %s9, 1
      %p123 = pneg %p42
      %p124 = pneg %p39
      %p125 = pneg %p63
      %p126 = pneg %p60
      %p127 = pneg %p91
      %p128 = pneg %p88
      %s129 = smul.u32 32, %s19
      %p130 = scmp.lt.s32.totalorder %s18, 1
      %s131 = scalar_select %p130, %s18, 1
      %p132 = scmp.lt.s32.totalorder %s129, 95
      %s133 = scalar_select %p132, %s129, 95
      %s134 = smul.addr %s131, 96
      %s135 = sadd.s32 %s133, %s134
      %s136 = smul.addr %s135, 8
      %s137 = scalar_lea.vmem %s3, %s136
      %s138 = smul.u32 32, %s19
      %p139 = scmp.lt.s32.totalorder %s18, 1
      %s140 = scalar_select %p139, %s18, 1
      %p141 = scmp.lt.s32.totalorder %s138, 95
      %s142 = scalar_select %p141, %s138, 95
      %s143 = smul.addr %s140, 96
      %s144 = sadd.s32 %s142, %s143
      %s145 = smul.addr %s144, 8
      %s146 = scalar_lea.vmem %s3, %s145
      %s147 = smul.u32 32, %s19
      %p149 = scmp.eq.s32.totalorder %s19, 0
      // Predicated region
      $region29: #{resblock1_forward.10} parent=27 // pred_check
        %p150 = pneg %p149
      $region30: #{resblock1_forward.10} parent=27 // pred_check_branch
        %152 = sbr.rel (%p150) target = $region32
      $region31: #{resblock1_forward.10} parent=27 // pred_region
        %s153 = smul.u32 %s18, 784
        %s154 = sadd.s32 0, %s153
        %s155 = scalar_lea.vmem %s0, %s154
        %p157 = scmp.lt.u32.totalorder 266, 8
        %p158 = pneg %p157
        // Predicated region
        $region33: #{resblock1_forward.10} parent=31 // pred_check
          _
        $region34: #{resblock1_forward.10} parent=31 // pred_check_branch
          %160 = sbr.rel (%p157) target = $region36
        $region35: #{resblock1_forward.10} parent=31 // pred_region
          %s175 = sand.u32 266, 7
          %p176 = scmp.eq.s32.totalorder %s175, 0
          %p177 = pneg %p176
          // Predicated region
          $region48: #{resblock1_forward.10} parent=35 // pred_check
            _
          $region49: #{resblock1_forward.10} parent=35 // pred_check_branch
            %179 = sbr.rel (%p176) target = $region51
          $region50: #{resblock1_forward.10} parent=35 // pred_region
            %s180 = sand.u32 266, 7
            %s181 = ssub.s32 266, %s180
            %s182 = scalar_lea.vmem %s155, %s181
            %s183 = ssub.s32 266, %s180
            %s184 = scalar_lea.vmem [#allocation2], %s183
            loop: start=0, step=1, limit=1
            $region52: #{resblock1_forward.10} parent=50 // loop_pre_header
              _
            $region53: #{resblock1_forward.10} parent=50 // loop_header
              %s186 = sphi 0, %s190
              %p187 = scmp.ge.s32.totalorder %s186, 1
              %s191 = sphi %s155, %s155
              %s192 = sphi [#allocation2], [#allocation2]
            $region54: #{resblock1_forward.10} parent=50 // loop_header_branch
              %189 = sbr.rel (%p187) target = $region58
            $region55: #{resblock1_forward.10} parent=50 // loop_body
              %v193 = vld [vmem:[%s191] sm:$0xff]
              %194 = vst [vmem:[%s192] sm:$0xff] %v193
              %v195 = vld [vmem:[%s191 + $0x8] sm:$0xff]
              %196 = vst [vmem:[%s192 + $0x8] sm:$0xff] %v195
              %v197 = vld [vmem:[%s191 + $0x10] sm:$0xff]
              %198 = vst [vmem:[%s192 + $0x10] sm:$0xff] %v197
              %v199 = vld [vmem:[%s191 + $0x18] sm:$0xff]
              %200 = vst [vmem:[%s192 + $0x18] sm:$0xff] %v199
              %v201 = vld [vmem:[%s191 + $0x20] sm:$0xff]
              %202 = vst [vmem:[%s192 + $0x20] sm:$0xff] %v201
              %v203 = vld [vmem:[%s191 + $0x28] sm:$0xff]
              %204 = vst [vmem:[%s192 + $0x28] sm:$0xff] %v203
              %v205 = vld [vmem:[%s191 + $0x30] sm:$0xff]
              %206 = vst [vmem:[%s192 + $0x30] sm:$0xff] %v205
              %v207 = vld [vmem:[%s191 + $0x38] sm:$0xff]
              %208 = vst [vmem:[%s192 + $0x38] sm:$0xff] %v207
              %v209 = vld [vmem:[%s191 + $0x40] sm:$0xff]
              %210 = vst [vmem:[%s192 + $0x40] sm:$0xff] %v209
              %v211 = vld [vmem:[%s191 + $0x48] sm:$0xff]
              %212 = vst [vmem:[%s192 + $0x48] sm:$0xff] %v211
              %v213 = vld [vmem:[%s191 + $0x50] sm:$0xff]
              %214 = vst [vmem:[%s192 + $0x50] sm:$0xff] %v213
              %v215 = vld [vmem:[%s191 + $0x58] sm:$0xff]
              %216 = vst [vmem:[%s192 + $0x58] sm:$0xff] %v215
              %v217 = vld [vmem:[%s191 + $0x60] sm:$0xff]
              %218 = vst [vmem:[%s192 + $0x60] sm:$0xff] %v217
              %v219 = vld [vmem:[%s191 + $0x68] sm:$0xff]
              %220 = vst [vmem:[%s192 + $0x68] sm:$0xff] %v219
              %v221 = vld [vmem:[%s191 + $0x70] sm:$0xff]
              %222 = vst [vmem:[%s192 + $0x70] sm:$0xff] %v221
              %v223 = vld [vmem:[%s191 + $0x78] sm:$0xff]
              %224 = vst [vmem:[%s192 + $0x78] sm:$0xff] %v223
              %v225 = vld [vmem:[%s191 + $0x80] sm:$0xff]
              %226 = vst [vmem:[%s192 + $0x80] sm:$0xff] %v225
              %v227 = vld [vmem:[%s191 + $0x88] sm:$0xff]
              %228 = vst [vmem:[%s192 + $0x88] sm:$0xff] %v227
              %v229 = vld [vmem:[%s191 + $0x90] sm:$0xff]
              %230 = vst [vmem:[%s192 + $0x90] sm:$0xff] %v229
              %v231 = vld [vmem:[%s191 + $0x98] sm:$0xff]
              %232 = vst [vmem:[%s192 + $0x98] sm:$0xff] %v231
              %v233 = vld [vmem:[%s191 + $0xa0] sm:$0xff]
              %234 = vst [vmem:[%s192 + $0xa0] sm:$0xff] %v233
              %v235 = vld [vmem:[%s191 + $0xa8] sm:$0xff]
              %236 = vst [vmem:[%s192 + $0xa8] sm:$0xff] %v235
              %v237 = vld [vmem:[%s191 + $0xb0] sm:$0xff]
              %238 = vst [vmem:[%s192 + $0xb0] sm:$0xff] %v237
              %v239 = vld [vmem:[%s191 + $0xb8] sm:$0xff]
              %240 = vst [vmem:[%s192 + $0xb8] sm:$0xff] %v239
              %v241 = vld [vmem:[%s191 + $0xc0] sm:$0xff]
              %242 = vst [vmem:[%s192 + $0xc0] sm:$0xff] %v241
              %v243 = vld [vmem:[%s191 + $0xc8] sm:$0xff]
              %244 = vst [vmem:[%s192 + $0xc8] sm:$0xff] %v243
              %v245 = vld [vmem:[%s191 + $0xd0] sm:$0xff]
              %246 = vst [vmem:[%s192 + $0xd0] sm:$0xff] %v245
              %v247 = vld [vmem:[%s191 + $0xd8] sm:$0xff]
              %248 = vst [vmem:[%s192 + $0xd8] sm:$0xff] %v247
              %v249 = vld [vmem:[%s191 + $0xe0] sm:$0xff]
              %250 = vst [vmem:[%s192 + $0xe0] sm:$0xff] %v249
              %v251 = vld [vmem:[%s191 + $0xe8] sm:$0xff]
              %252 = vst [vmem:[%s192 + $0xe8] sm:$0xff] %v251
              %v253 = vld [vmem:[%s191 + $0xf0] sm:$0xff]
              %254 = vst [vmem:[%s192 + $0xf0] sm:$0xff] %v253
              %v255 = vld [vmem:[%s191 + $0xf8] sm:$0xff]
              %256 = vst [vmem:[%s192 + $0xf8] sm:$0xff] %v255
              %v257 = vld [vmem:[%s191 + $0x100] sm:$0xff]
              %258 = vst [vmem:[%s192 + $0x100] sm:$0xff] %v257
            $region56: #{resblock1_forward.10} parent=50 // loop_footer
              %s190 = sadd.s32 1, %s186
            $region57: #{resblock1_forward.10} parent=50 // loop_footer_branch
              %185 = sbr.rel target = $region53
            $region58: #{resblock1_forward.10} parent=50 // loop_exit
              _
            %s259 = sshllo.u32 0, %s180
            loop: start=0, step=1, limit=1
            $region59: #{resblock1_forward.10} parent=50 // loop_pre_header
              _
            $region60: #{resblock1_forward.10} parent=50 // loop_header
              %s261 = sphi 0, %s265
              %p262 = scmp.ge.s32.totalorder %s261, 1
              %s266 = sphi %s182, %s182
              %s267 = sphi %s184, %s184
            $region61: #{resblock1_forward.10} parent=50 // loop_header_branch
              %264 = sbr.rel (%p262) target = $region65
            $region62: #{resblock1_forward.10} parent=50 // loop_body
              %v268 = vld [vmem:[%s266] sm:%s259]
              %269 = vst [vmem:[%s267] sm:%s259] %v268
            $region63: #{resblock1_forward.10} parent=50 // loop_footer
              %s265 = sadd.s32 1, %s261
            $region64: #{resblock1_forward.10} parent=50 // loop_footer_branch
              %260 = sbr.rel target = $region60
            $region65: #{resblock1_forward.10} parent=50 // loop_exit
              _
          $region51: #{resblock1_forward.10} parent=35 // pred_fallthru
            _
        $region36: #{resblock1_forward.10} parent=31 // pred_fallthru
          _
        // Predicated region
        $region37: #{resblock1_forward.10} parent=31 // pred_check
          %p161 = pneg %p157
        $region38: #{resblock1_forward.10} parent=31 // pred_check_branch
          %163 = sbr.rel (%p161) target = $region40
        $region39: #{resblock1_forward.10} parent=31 // pred_region
          %s164 = sshllo.u32 0, 266
          loop: start=0, step=1, limit=1
          $region41: #{resblock1_forward.10} parent=39 // loop_pre_header
            _
          $region42: #{resblock1_forward.10} parent=39 // loop_header
            %s166 = sphi 0, %s170
            %p167 = scmp.ge.s32.totalorder %s166, 1
            %s171 = sphi %s155, %s155
            %s172 = sphi [#allocation2], [#allocation2]
          $region43: #{resblock1_forward.10} parent=39 // loop_header_branch
            %169 = sbr.rel (%p167) target = $region47
          $region44: #{resblock1_forward.10} parent=39 // loop_body
            %v173 = vld [vmem:[%s171] sm:%s164]
            %174 = vst [vmem:[%s172] sm:%s164] %v173
          $region45: #{resblock1_forward.10} parent=39 // loop_footer
            %s170 = sadd.s32 1, %s166
          $region46: #{resblock1_forward.10} parent=39 // loop_footer_branch
            %165 = sbr.rel target = $region42
          $region47: #{resblock1_forward.10} parent=39 // loop_exit
            _
        $region40: #{resblock1_forward.10} parent=31 // pred_fallthru
          _
        // Predicated region
        $region66: #{resblock1_forward.10} parent=31 // pred_check
          _
        $region67: #{resblock1_forward.10} parent=31 // pred_check_branch
          %272 = sbr.rel (0) target = $region69
        $region68: #{resblock1_forward.10} parent=31 // pred_region
          %273 = vsyncadd [#allocation3], 4256
        $region69: #{resblock1_forward.10} parent=31 // pred_fallthru
          _
      $region32: #{resblock1_forward.10} parent=27 // pred_fallthru
        _
      %s274 = sadd.s32 %s19, 1
      %p275 = scmp.lt.s32.totalorder %s274, 3
      // Predicated region
      $region70: #{resblock1_forward.10} parent=27 // pred_check
        %p276 = pneg %p275
      $region71: #{resblock1_forward.10} parent=27 // pred_check_branch
        %278 = sbr.rel (%p276) target = $region73
      $region72: #{resblock1_forward.10} parent=27 // pred_region
        %p279 = scmp.lt.s32.totalorder %s274, 0
        %s280 = ssub.s32 0, %s274
        %s281 = scalar_select %p279, %s280, %s274
        %s282 = sand.u32 %s281, 1
        %s283 = ssub.s32 0, %s282
        %s284 = scalar_select %p279, %s283, %s282
        %p285 = scmp.ne.s32.totalorder %s284, 0
        %p286 = scmp.lt.s32.totalorder %s284, 0
        %p287 = pnand %p286, %p285
        %p288 = pneg %p287
        %s289 = sadd.s32 %s284, 2
        %s290 = scalar_select %p288, %s289, %s284
        %s291 = smul.u32 %s274, 256
        %s292 = smul.u32 %s18, 784
        %s293 = sadd.s32 %s291, %s292
        %s294 = scalar_lea.vmem %s0, %s293
        %s295 = smul.u32 %s290, 272
        %s296 = scalar_lea.vmem [#allocation2], %s295
        %s297 = scalar_lea.sflag [#allocation3], %s290
        %p299 = scmp.lt.u32.totalorder 266, 8
        %p300 = pneg %p299
        // Predicated region
        $region74: #{resblock1_forward.10} parent=72 // pred_check
          _
        $region75: #{resblock1_forward.10} parent=72 // pred_check_branch
          %302 = sbr.rel (%p299) target = $region77
        $region76: #{resblock1_forward.10} parent=72 // pred_region
          %s317 = sand.u32 266, 7
          %p318 = scmp.eq.s32.totalorder %s317, 0
          %p319 = pneg %p318
          // Predicated region
          $region89: #{resblock1_forward.10} parent=76 // pred_check
            _
          $region90: #{resblock1_forward.10} parent=76 // pred_check_branch
            %321 = sbr.rel (%p318) target = $region92
          $region91: #{resblock1_forward.10} parent=76 // pred_region
            %s322 = sand.u32 266, 7
            %s323 = ssub.s32 266, %s322
            %s324 = scalar_lea.vmem %s294, %s323
            %s325 = ssub.s32 266, %s322
            %s326 = scalar_lea.vmem %s296, %s325 [#allocation2]
            loop: start=0, step=1, limit=1
            $region93: #{resblock1_forward.10} parent=91 // loop_pre_header
              _
            $region94: #{resblock1_forward.10} parent=91 // loop_header
              %s328 = sphi 0, %s332
              %p329 = scmp.ge.s32.totalorder %s328, 1
              %s333 = sphi %s294, %s294
              %s334 = sphi %s296, %s296
            $region95: #{resblock1_forward.10} parent=91 // loop_header_branch
              %331 = sbr.rel (%p329) target = $region99
            $region96: #{resblock1_forward.10} parent=91 // loop_body
              %v335 = vld [vmem:[%s333] sm:$0xff]
              %336 = vst [vmem:[%s334] sm:$0xff] %v335
              %v337 = vld [vmem:[%s333 + $0x8] sm:$0xff]
              %338 = vst [vmem:[%s334 + $0x8] sm:$0xff] %v337
              %v339 = vld [vmem:[%s333 + $0x10] sm:$0xff]
              %340 = vst [vmem:[%s334 + $0x10] sm:$0xff] %v339
              %v341 = vld [vmem:[%s333 + $0x18] sm:$0xff]
              %342 = vst [vmem:[%s334 + $0x18] sm:$0xff] %v341
              %v343 = vld [vmem:[%s333 + $0x20] sm:$0xff]
              %344 = vst [vmem:[%s334 + $0x20] sm:$0xff] %v343
              %v345 = vld [vmem:[%s333 + $0x28] sm:$0xff]
              %346 = vst [vmem:[%s334 + $0x28] sm:$0xff] %v345
              %v347 = vld [vmem:[%s333 + $0x30] sm:$0xff]
              %348 = vst [vmem:[%s334 + $0x30] sm:$0xff] %v347
              %v349 = vld [vmem:[%s333 + $0x38] sm:$0xff]
              %350 = vst [vmem:[%s334 + $0x38] sm:$0xff] %v349
              %v351 = vld [vmem:[%s333 + $0x40] sm:$0xff]
              %352 = vst [vmem:[%s334 + $0x40] sm:$0xff] %v351
              %v353 = vld [vmem:[%s333 + $0x48] sm:$0xff]
              %354 = vst [vmem:[%s334 + $0x48] sm:$0xff] %v353
              %v355 = vld [vmem:[%s333 + $0x50] sm:$0xff]
              %356 = vst [vmem:[%s334 + $0x50] sm:$0xff] %v355
              %v357 = vld [vmem:[%s333 + $0x58] sm:$0xff]
              %358 = vst [vmem:[%s334 + $0x58] sm:$0xff] %v357
              %v359 = vld [vmem:[%s333 + $0x60] sm:$0xff]
              %360 = vst [vmem:[%s334 + $0x60] sm:$0xff] %v359
              %v361 = vld [vmem:[%s333 + $0x68] sm:$0xff]
              %362 = vst [vmem:[%s334 + $0x68] sm:$0xff] %v361
              %v363 = vld [vmem:[%s333 + $0x70] sm:$0xff]
              %364 = vst [vmem:[%s334 + $0x70] sm:$0xff] %v363
              %v365 = vld [vmem:[%s333 + $0x78] sm:$0xff]
              %366 = vst [vmem:[%s334 + $0x78] sm:$0xff] %v365
              %v367 = vld [vmem:[%s333 + $0x80] sm:$0xff]
              %368 = vst [vmem:[%s334 + $0x80] sm:$0xff] %v367
              %v369 = vld [vmem:[%s333 + $0x88] sm:$0xff]
              %370 = vst [vmem:[%s334 + $0x88] sm:$0xff] %v369
              %v371 = vld [vmem:[%s333 + $0x90] sm:$0xff]
              %372 = vst [vmem:[%s334 + $0x90] sm:$0xff] %v371
              %v373 = vld [vmem:[%s333 + $0x98] sm:$0xff]
              %374 = vst [vmem:[%s334 + $0x98] sm:$0xff] %v373
              %v375 = vld [vmem:[%s333 + $0xa0] sm:$0xff]
              %376 = vst [vmem:[%s334 + $0xa0] sm:$0xff] %v375
              %v377 = vld [vmem:[%s333 + $0xa8] sm:$0xff]
              %378 = vst [vmem:[%s334 + $0xa8] sm:$0xff] %v377
              %v379 = vld [vmem:[%s333 + $0xb0] sm:$0xff]
              %380 = vst [vmem:[%s334 + $0xb0] sm:$0xff] %v379
              %v381 = vld [vmem:[%s333 + $0xb8] sm:$0xff]
              %382 = vst [vmem:[%s334 + $0xb8] sm:$0xff] %v381
              %v383 = vld [vmem:[%s333 + $0xc0] sm:$0xff]
              %384 = vst [vmem:[%s334 + $0xc0] sm:$0xff] %v383
              %v385 = vld [vmem:[%s333 + $0xc8] sm:$0xff]
              %386 = vst [vmem:[%s334 + $0xc8] sm:$0xff] %v385
              %v387 = vld [vmem:[%s333 + $0xd0] sm:$0xff]
              %388 = vst [vmem:[%s334 + $0xd0] sm:$0xff] %v387
              %v389 = vld [vmem:[%s333 + $0xd8] sm:$0xff]
              %390 = vst [vmem:[%s334 + $0xd8] sm:$0xff] %v389
              %v391 = vld [vmem:[%s333 + $0xe0] sm:$0xff]
              %392 = vst [vmem:[%s334 + $0xe0] sm:$0xff] %v391
              %v393 = vld [vmem:[%s333 + $0xe8] sm:$0xff]
              %394 = vst [vmem:[%s334 + $0xe8] sm:$0xff] %v393
              %v395 = vld [vmem:[%s333 + $0xf0] sm:$0xff]
              %396 = vst [vmem:[%s334 + $0xf0] sm:$0xff] %v395
              %v397 = vld [vmem:[%s333 + $0xf8] sm:$0xff]
              %398 = vst [vmem:[%s334 + $0xf8] sm:$0xff] %v397
              %v399 = vld [vmem:[%s333 + $0x100] sm:$0xff]
              %400 = vst [vmem:[%s334 + $0x100] sm:$0xff] %v399
            $region97: #{resblock1_forward.10} parent=91 // loop_footer
              %s332 = sadd.s32 1, %s328
            $region98: #{resblock1_forward.10} parent=91 // loop_footer_branch
              %327 = sbr.rel target = $region94
            $region99: #{resblock1_forward.10} parent=91 // loop_exit
              _
            %s401 = sshllo.u32 0, %s322
            loop: start=0, step=1, limit=1
            $region100: #{resblock1_forward.10} parent=91 // loop_pre_header
              _
            $region101: #{resblock1_forward.10} parent=91 // loop_header
              %s403 = sphi 0, %s407
              %p404 = scmp.ge.s32.totalorder %s403, 1
              %s408 = sphi %s324, %s324
              %s409 = sphi %s326, %s326
            $region102: #{resblock1_forward.10} parent=91 // loop_header_branch
              %406 = sbr.rel (%p404) target = $region106
            $region103: #{resblock1_forward.10} parent=91 // loop_body
              %v410 = vld [vmem:[%s408] sm:%s401]
              %411 = vst [vmem:[%s409] sm:%s401] %v410
            $region104: #{resblock1_forward.10} parent=91 // loop_footer
              %s407 = sadd.s32 1, %s403
            $region105: #{resblock1_forward.10} parent=91 // loop_footer_branch
              %402 = sbr.rel target = $region101
            $region106: #{resblock1_forward.10} parent=91 // loop_exit
              _
          $region92: #{resblock1_forward.10} parent=76 // pred_fallthru
            _
        $region77: #{resblock1_forward.10} parent=72 // pred_fallthru
          _
        // Predicated region
        $region78: #{resblock1_forward.10} parent=72 // pred_check
          %p303 = pneg %p299
        $region79: #{resblock1_forward.10} parent=72 // pred_check_branch
          %305 = sbr.rel (%p303) target = $region81
        $region80: #{resblock1_forward.10} parent=72 // pred_region
          %s306 = sshllo.u32 0, 266
          loop: start=0, step=1, limit=1
          $region82: #{resblock1_forward.10} parent=80 // loop_pre_header
            _
          $region83: #{resblock1_forward.10} parent=80 // loop_header
            %s308 = sphi 0, %s312
            %p309 = scmp.ge.s32.totalorder %s308, 1
            %s313 = sphi %s294, %s294
            %s314 = sphi %s296, %s296
          $region84: #{resblock1_forward.10} parent=80 // loop_header_branch
            %311 = sbr.rel (%p309) target = $region88
          $region85: #{resblock1_forward.10} parent=80 // loop_body
            %v315 = vld [vmem:[%s313] sm:%s306]
            %316 = vst [vmem:[%s314] sm:%s306] %v315
          $region86: #{resblock1_forward.10} parent=80 // loop_footer
            %s312 = sadd.s32 1, %s308
          $region87: #{resblock1_forward.10} parent=80 // loop_footer_branch
            %307 = sbr.rel target = $region83
          $region88: #{resblock1_forward.10} parent=80 // loop_exit
            _
        $region81: #{resblock1_forward.10} parent=72 // pred_fallthru
          _
        // Predicated region
        $region107: #{resblock1_forward.10} parent=72 // pred_check
          _
        $region108: #{resblock1_forward.10} parent=72 // pred_check_branch
          %414 = sbr.rel (0) target = $region110
        $region109: #{resblock1_forward.10} parent=72 // pred_region
          %415 = vsyncadd %s297, 4256
        $region110: #{resblock1_forward.10} parent=72 // pred_fallthru
          _
      $region73: #{resblock1_forward.10} parent=27 // pred_fallthru
        _
      %p416 = scmp.lt.s32.totalorder %s19, 0
      %s417 = ssub.s32 0, %s19
      %s418 = scalar_select %p416, %s417, %s19
      %s419 = sand.u32 %s418, 1
      %s420 = ssub.s32 0, %s419
      %s421 = scalar_select %p416, %s420, %s419
      %p422 = scmp.ne.s32.totalorder %s421, 0
      %p423 = scmp.lt.s32.totalorder %s421, 0
      %p424 = pnand %p423, %p422
      %p425 = pneg %p424
      %s426 = sadd.s32 %s421, 2
      %s427 = scalar_select %p425, %s426, %s421
      %s428 = smul.u32 %s19, 256
      %s429 = smul.u32 %s427, 272
      %s430 = scalar_lea.vmem [#allocation2], %s429
      %s431 = scalar_lea.sflag [#allocation3], %s427
      %s432 = smul.u32 266, 1
      %s433 = sshll.u32 %s432, 4
      %434 = dma.done %s431, %s433
      %v435 = vld [vmem:[%s430] sm:$0xff]
      %v436 = vld [vmem:[%s430 + $0x8] sm:$0xff]
      %v437 = vld [vmem:[%s430 + $0x10] sm:$0xff]
      %v438 = vld [vmem:[%s430 + $0x18] sm:$0xff]
      %v439 = vld [vmem:[%s430 + $0x20] sm:$0xff]
      %v440 = vld [vmem:[%s430 + $0x28] sm:$0xff]
      %v441 = vld [vmem:[%s430 + $0x30] sm:$0xff]
      %v442 = vld [vmem:[%s430 + $0x38] sm:$0xff]
      %v443 = vld [vmem:[%s430 + $0x40] sm:$0xff]
      %v444 = vld [vmem:[%s430 + $0x48] sm:$0xff]
      %v445 = vld [vmem:[%s430 + $0x50] sm:$0xff]
      %v446 = vld [vmem:[%s430 + $0x58] sm:$0xff]
      %v447 = vld [vmem:[%s430 + $0x60] sm:$0xff]
      %v448 = vld [vmem:[%s430 + $0x68] sm:$0xff]
      %v449 = vld [vmem:[%s430 + $0x70] sm:$0xff]
      %v450 = vld [vmem:[%s430 + $0x78] sm:$0xff]
      %v451 = vld [vmem:[%s430 + $0x80] sm:$0xff]
      %v452 = vld [vmem:[%s430 + $0x88] sm:$0xff]
      %v453 = vld [vmem:[%s430 + $0x90] sm:$0xff]
      %v454 = vld [vmem:[%s430 + $0x98] sm:$0xff]
      %v455 = vld [vmem:[%s430 + $0xa0] sm:$0xff]
      %v456 = vld [vmem:[%s430 + $0xa8] sm:$0xff]
      %v457 = vld [vmem:[%s430 + $0xb0] sm:$0xff]
      %v458 = vld [vmem:[%s430 + $0xb8] sm:$0xff]
      %v459 = vld [vmem:[%s430 + $0xc0] sm:$0xff]
      %v460 = vld [vmem:[%s430 + $0xc8] sm:$0xff]
      %v461 = vld [vmem:[%s430 + $0xd0] sm:$0xff]
      %v462 = vld [vmem:[%s430 + $0xd8] sm:$0xff]
      %v463 = vld [vmem:[%s430 + $0xe0] sm:$0xff]
      %v464 = vld [vmem:[%s430 + $0xe8] sm:$0xff]
      %v465 = vld [vmem:[%s430 + $0xf0] sm:$0xff]
      %v466 = vld [vmem:[%s430 + $0xf8] sm:$0xff]
      %v467 = vld [vmem:[%s430 + $0x100] sm:$0xff]
      %v468 = vld [vmem:[%s430 + $0x108] sm:$0x3]
      %vm469 = vcmp.ge.f32.partialorder %v435, 0.0
      %vm470 = vcmp.ge.f32.partialorder %v436, 0.0
      %vm471 = vcmp.ge.f32.partialorder %v437, 0.0
      %vm472 = vcmp.ge.f32.partialorder %v438, 0.0
      %vm473 = vcmp.ge.f32.partialorder %v439, 0.0
      %vm474 = vcmp.ge.f32.partialorder %v440, 0.0
      %vm475 = vcmp.ge.f32.partialorder %v441, 0.0
      %vm476 = vcmp.ge.f32.partialorder %v442, 0.0
      %vm477 = vcmp.ge.f32.partialorder %v443, 0.0
      %vm478 = vcmp.ge.f32.partialorder %v444, 0.0
      %vm479 = vcmp.ge.f32.partialorder %v445, 0.0
      %vm480 = vcmp.ge.f32.partialorder %v446, 0.0
      %vm481 = vcmp.ge.f32.partialorder %v447, 0.0
      %vm482 = vcmp.ge.f32.partialorder %v448, 0.0
      %vm483 = vcmp.ge.f32.partialorder %v449, 0.0
      %vm484 = vcmp.ge.f32.partialorder %v450, 0.0
      %vm485 = vcmp.ge.f32.partialorder %v451, 0.0
      %vm486 = vcmp.ge.f32.partialorder %v452, 0.0
      %vm487 = vcmp.ge.f32.partialorder %v453, 0.0
      %vm488 = vcmp.ge.f32.partialorder %v454, 0.0
      %vm489 = vcmp.ge.f32.partialorder %v455, 0.0
      %vm490 = vcmp.ge.f32.partialorder %v456, 0.0
      %vm491 = vcmp.ge.f32.partialorder %v457, 0.0
      %vm492 = vcmp.ge.f32.partialorder %v458, 0.0
      %vm493 = vcmp.ge.f32.partialorder %v459, 0.0
      %vm494 = vcmp.ge.f32.partialorder %v460, 0.0
      %vm495 = vcmp.ge.f32.partialorder %v461, 0.0
      %vm496 = vcmp.ge.f32.partialorder %v462, 0.0
      %vm497 = vcmp.ge.f32.partialorder %v463, 0.0
      %vm498 = vcmp.ge.f32.partialorder %v464, 0.0
      %vm499 = vcmp.ge.f32.partialorder %v465, 0.0
      %vm500 = vcmp.ge.f32.partialorder %v466, 0.0
      %vm501 = vcmp.ge.f32.partialorder %v467, 0.0
      %vm502 = vcmp.ge.f32.partialorder %v468, 0.0
      %v503 = vmul.f32 %v435, 0.1
      %v504 = vmul.f32 %v436, 0.1
      %v505 = vmul.f32 %v437, 0.1
      %v506 = vmul.f32 %v438, 0.1
      %v507 = vmul.f32 %v439, 0.1
      %v508 = vmul.f32 %v440, 0.1
      %v509 = vmul.f32 %v441, 0.1
      %v510 = vmul.f32 %v442, 0.1
      %v511 = vmul.f32 %v443, 0.1
      %v512 = vmul.f32 %v444, 0.1
      %v513 = vmul.f32 %v445, 0.1
      %v514 = vmul.f32 %v446, 0.1
      %v515 = vmul.f32 %v447, 0.1
      %v516 = vmul.f32 %v448, 0.1
      %v517 = vmul.f32 %v449, 0.1
      %v518 = vmul.f32 %v450, 0.1
      %v519 = vmul.f32 %v451, 0.1
      %v520 = vmul.f32 %v452, 0.1
      %v521 = vmul.f32 %v453, 0.1
      %v522 = vmul.f32 %v454, 0.1
      %v523 = vmul.f32 %v455, 0.1
      %v524 = vmul.f32 %v456, 0.1
      %v525 = vmul.f32 %v457, 0.1
      %v526 = vmul.f32 %v458, 0.1
      %v527 = vmul.f32 %v459, 0.1
      %v528 = vmul.f32 %v460, 0.1
      %v529 = vmul.f32 %v461, 0.1
      %v530 = vmul.f32 %v462, 0.1
      %v531 = vmul.f32 %v463, 0.1
      %v532 = vmul.f32 %v464, 0.1
      %v533 = vmul.f32 %v465, 0.1
      %v534 = vmul.f32 %v466, 0.1
      %v535 = vmul.f32 %v467, 0.1
      %v536 = vmul.f32 %v468, 0.1
      %v537 = vsel %vm469, %v435, %v503
      %v538 = vsel %vm470, %v436, %v504
      %v539 = vsel %vm471, %v437, %v505
      %v540 = vsel %vm472, %v438, %v506
      %v541 = vsel %vm473, %v439, %v507
      %v542 = vsel %vm474, %v440, %v508
      %v543 = vsel %vm475, %v441, %v509
      %v544 = vsel %vm476, %v442, %v510
      %v545 = vsel %vm477, %v443, %v511
      %v546 = vsel %vm478, %v444, %v512
      %v547 = vsel %vm479, %v445, %v513
      %v548 = vsel %vm480, %v446, %v514
      %v549 = vsel %vm481, %v447, %v515
      %v550 = vsel %vm482, %v448, %v516
      %v551 = vsel %vm483, %v449, %v517
      %v552 = vsel %vm484, %v450, %v518
      %v553 = vsel %vm485, %v451, %v519
      %v554 = vsel %vm486, %v452, %v520
      %v555 = vsel %vm487, %v453, %v521
      %v556 = vsel %vm488, %v454, %v522
      %v557 = vsel %vm489, %v455, %v523
      %v558 = vsel %vm490, %v456, %v524
      %v559 = vsel %vm491, %v457, %v525
      %v560 = vsel %vm492, %v458, %v526
      %v561 = vsel %vm493, %v459, %v527
      %v562 = vsel %vm494, %v460, %v528
      %v563 = vsel %vm495, %v461, %v529
      %v564 = vsel %vm496, %v462, %v530
      %v565 = vsel %vm497, %v463, %v531
      %v566 = vsel %vm498, %v464, %v532
      %v567 = vsel %vm499, %v465, %v533
      %v568 = vsel %vm500, %v466, %v534
      %v569 = vsel %vm501, %v467, %v535
      %v570 = vsel %vm502, %v468, %v536
      %v571 = vpack.c.bf16 %v538, %v537
      %v572 = vpack.c.bf16 %v540, %v539
      %v573 = vpack.c.bf16 %v542, %v541
      %v574 = vpack.c.bf16 %v544, %v543
      %v575 = vpack.c.bf16 %v546, %v545
      %v576 = vpack.c.bf16 %v548, %v547
      %v577 = vpack.c.bf16 %v550, %v549
      %v578 = vpack.c.bf16 %v552, %v551
      %v579 = vpack.c.bf16 %v554, %v553
      %v580 = vpack.c.bf16 %v556, %v555
      %v581 = vpack.c.bf16 %v558, %v557
      %v582 = vpack.c.bf16 %v560, %v559
      %v583 = vpack.c.bf16 %v562, %v561
      %v584 = vpack.c.bf16 %v564, %v563
      %v585 = vpack.c.bf16 %v566, %v565
      %v586 = vpack.c.bf16 %v568, %v567
      %v587 = vpack.c.bf16 %v570, %v569
      %v588 = vld [vmem:[%s1] sm:$0xf]
      %v589 = vld [vmem:[%s1 + $0x4] sm:$0xf]
      %v590 = vld [vmem:[%s1 + $0x8] sm:$0xf]
      %v591 = vld [vmem:[%s1 + $0xc] sm:$0xf]
      %v592 = vld [vmem:[%s1 + $0x10] sm:$0xf]
      %v593 = vld [vmem:[%s1 + $0x14] sm:$0xf]
      %v594 = vld [vmem:[%s1 + $0x18] sm:$0xf]
      %v595 = vld [vmem:[%s1 + $0x1c] sm:$0xf]
      %v596 = vld [vmem:[%s1 + $0x20] sm:$0xf]
      %v597 = vld [vmem:[%s1 + $0x24] sm:$0xf]
      %v598 = vld [vmem:[%s1 + $0x28] sm:$0xf]
      %v599 = vld [vmem:[%s1 + $0x2c] sm:$0xf]
      %v600 = vld [vmem:[%s1 + $0x30] sm:$0xf]
      %v601 = vld [vmem:[%s1 + $0x34] sm:$0xf]
      %v602 = vld [vmem:[%s1 + $0x38] sm:$0xf]
      %v603 = vld [vmem:[%s1 + $0x3c] sm:$0xf]
      %s604 = scalar_lea.vmem %s1, 64
      %v605 = vld [vmem:[%s604] sm:$0xf]
      %v606 = vld [vmem:[%s604 + $0x4] sm:$0xf]
      %v607 = vld [vmem:[%s604 + $0x8] sm:$0xf]
      %v608 = vld [vmem:[%s604 + $0xc] sm:$0xf]
      %v609 = vld [vmem:[%s604 + $0x10] sm:$0xf]
      %v610 = vld [vmem:[%s604 + $0x14] sm:$0xf]
      %v611 = vld [vmem:[%s604 + $0x18] sm:$0xf]
      %v612 = vld [vmem:[%s604 + $0x1c] sm:$0xf]
      %v613 = vld [vmem:[%s604 + $0x20] sm:$0xf]
      %v614 = vld [vmem:[%s604 + $0x24] sm:$0xf]
      %v615 = vld [vmem:[%s604 + $0x28] sm:$0xf]
      %v616 = vld [vmem:[%s604 + $0x2c] sm:$0xf]
      %v617 = vld [vmem:[%s604 + $0x30] sm:$0xf]
      %v618 = vld [vmem:[%s604 + $0x34] sm:$0xf]
      %v619 = vld [vmem:[%s604 + $0x38] sm:$0xf]
      %v620 = vld [vmem:[%s604 + $0x3c] sm:$0xf]
      %vm621 = vsmask.f32 5376
      %v623 = vshrl.u32 %v571, 16
      %v625 = vrot.slane %v623, 2
      %v626 = vshll.u32 %v571, 16
      %v628 = vrot.slane %v626, 3
      %v629 = vor.u32 %v625, %v628
      %v631 = vshrl.u32 %v572, 16
      %v633 = vrot.slane %v631, 2
      %v634 = vshll.u32 %v572, 16
      %v636 = vrot.slane %v634, 3
      %v637 = vor.u32 %v633, %v636
      %v638 = vsel %vm621, %v629, %v637
      %v640 = vshrl.u32 %v573, 16
      %v642 = vrot.slane %v640, 2
      %v643 = vshll.u32 %v573, 16
      %v645 = vrot.slane %v643, 3
      %v646 = vor.u32 %v642, %v645
      %v647 = vsel %vm621, %v637, %v646
      %v649 = vshrl.u32 %v574, 16
      %v651 = vrot.slane %v649, 2
      %v652 = vshll.u32 %v574, 16
      %v654 = vrot.slane %v652, 3
      %v655 = vor.u32 %v651, %v654
      %v656 = vsel %vm621, %v646, %v655
      %v658 = vshrl.u32 %v575, 16
      %v660 = vrot.slane %v658, 2
      %v661 = vshll.u32 %v575, 16
      %v663 = vrot.slane %v661, 3
      %v664 = vor.u32 %v660, %v663
      %v665 = vsel %vm621, %v655, %v664
      %v667 = vshrl.u32 %v576, 16
      %v669 = vrot.slane %v667, 2
      %v670 = vshll.u32 %v576, 16
      %v672 = vrot.slane %v670, 3
      %v673 = vor.u32 %v669, %v672
      %v674 = vsel %vm621, %v664, %v673
      %v676 = vshrl.u32 %v577, 16
      %v678 = vrot.slane %v676, 2
      %v679 = vshll.u32 %v577, 16
      %v681 = vrot.slane %v679, 3
      %v682 = vor.u32 %v678, %v681
      %v683 = vsel %vm621, %v673, %v682
      %v685 = vshrl.u32 %v578, 16
      %v687 = vrot.slane %v685, 2
      %v688 = vshll.u32 %v578, 16
      %v690 = vrot.slane %v688, 3
      %v691 = vor.u32 %v687, %v690
      %v692 = vsel %vm621, %v682, %v691
      %v694 = vshrl.u32 %v579, 16
      %v696 = vrot.slane %v694, 2
      %v697 = vshll.u32 %v579, 16
      %v699 = vrot.slane %v697, 3
      %v700 = vor.u32 %v696, %v699
      %v701 = vsel %vm621, %v691, %v700
      %v703 = vshrl.u32 %v580, 16
      %v705 = vrot.slane %v703, 2
      %v706 = vshll.u32 %v580, 16
      %v708 = vrot.slane %v706, 3
      %v709 = vor.u32 %v705, %v708
      %v710 = vsel %vm621, %v700, %v709
      %v712 = vshrl.u32 %v581, 16
      %v714 = vrot.slane %v712, 2
      %v715 = vshll.u32 %v581, 16
      %v717 = vrot.slane %v715, 3
      %v718 = vor.u32 %v714, %v717
      %v719 = vsel %vm621, %v709, %v718
      %v721 = vshrl.u32 %v582, 16
      %v723 = vrot.slane %v721, 2
      %v724 = vshll.u32 %v582, 16
      %v726 = vrot.slane %v724, 3
      %v727 = vor.u32 %v723, %v726
      %v728 = vsel %vm621, %v718, %v727
      %v730 = vshrl.u32 %v583, 16
      %v732 = vrot.slane %v730, 2
      %v733 = vshll.u32 %v583, 16
      %v735 = vrot.slane %v733, 3
      %v736 = vor.u32 %v732, %v735
      %v737 = vsel %vm621, %v727, %v736
      %v739 = vshrl.u32 %v584, 16
      %v741 = vrot.slane %v739, 2
      %v742 = vshll.u32 %v584, 16
      %v744 = vrot.slane %v742, 3
      %v745 = vor.u32 %v741, %v744
      %v746 = vsel %vm621, %v736, %v745
      %v748 = vshrl.u32 %v585, 16
      %v750 = vrot.slane %v748, 2
      %v751 = vshll.u32 %v585, 16
      %v753 = vrot.slane %v751, 3
      %v754 = vor.u32 %v750, %v753
      %v755 = vsel %vm621, %v745, %v754
      %v757 = vshrl.u32 %v586, 16
      %v759 = vrot.slane %v757, 2
      %v760 = vshll.u32 %v586, 16
      %v762 = vrot.slane %v760, 3
      %v763 = vor.u32 %v759, %v762
      %v764 = vsel %vm621, %v754, %v763
      %v766 = vshrl.u32 %v587, 16
      %v768 = vrot.slane %v766, 2
      %v769 = vshll.u32 %v587, 16
      %v771 = vrot.slane %v769, 3
      %v772 = vor.u32 %v768, %v771
      %v773 = vsel %vm621, %v763, %v772
      %v806 = vunpack.c.l.b16 %v605
      %v807 = vunpack.c.l.b16 %v606
      %v808 = vunpack.c.l.b16 %v607
      %v809 = vunpack.c.l.b16 %v608
      %v810 = vunpack.c.l.b16 %v609
      %v811 = vunpack.c.l.b16 %v610
      %v812 = vunpack.c.l.b16 %v611
      %v813 = vunpack.c.l.b16 %v612
      %v814 = vunpack.c.l.b16 %v613
      %v815 = vunpack.c.l.b16 %v614
      %v816 = vunpack.c.l.b16 %v615
      %v817 = vunpack.c.l.b16 %v616
      %v818 = vunpack.c.l.b16 %v617
      %v819 = vunpack.c.l.b16 %v618
      %v820 = vunpack.c.l.b16 %v619
      %v821 = vunpack.c.l.b16 %v620
      %v822 = vpack.c.b16 %v807, %v806
      %v823 = vpack.c.b16 %v809, %v808
      %v824 = vpack.c.b16 %v811, %v810
      %v825 = vpack.c.b16 %v813, %v812
      %v826 = vpack.c.b16 %v815, %v814
      %v827 = vpack.c.b16 %v817, %v816
      %v828 = vpack.c.b16 %v819, %v818
      %v829 = vpack.c.b16 %v821, %v820
      %838 = vmatprep.subr.bf16.mxu0 0
      %839 = vmatpush1.bf16.msra.mxu0 %v822
      %840 = vmatprep.subr.bf16.mxu0 0
      %841 = vmatpush1.bf16.msra.mxu0 %v823
      %842 = vmatprep.subr.bf16.mxu0 0
      %843 = vmatpush1.bf16.msra.mxu0 %v824
      %844 = vmatprep.subr.bf16.mxu0 0
      %845 = vmatpush1.bf16.msra.mxu0 %v825
      %846 = vmatprep.subr.bf16.mxu0 0
      %847 = vmatpush1.bf16.msra.mxu0 %v826
      %848 = vmatprep.subr.bf16.mxu0 0
      %849 = vmatpush1.bf16.msra.mxu0 %v827
      %850 = vmatprep.subr.bf16.mxu0 0
      %851 = vmatpush1.bf16.msra.mxu0 %v828
      %852 = vmatprep.subr.bf16.mxu0 0
      %853 = vmatpush1.bf16.msra.mxu0 %v829
      %854 = vmatprep.subr.bf16.mxu0 0
      %855 = vmatpush1.bf16.msra.mxu0 0
      %856 = vmatprep.subr.bf16.mxu0 0
      %857 = vmatpush1.bf16.msra.mxu0 0
      %858 = vmatprep.subr.bf16.mxu0 0
      %859 = vmatpush1.bf16.msra.mxu0 0
      %860 = vmatprep.subr.bf16.mxu0 0
      %861 = vmatpush1.bf16.msra.mxu0 0
      %862 = vmatprep.subr.bf16.mxu0 0
      %863 = vmatpush1.bf16.msra.mxu0 0
      %864 = vmatprep.subr.bf16.mxu0 0
      %865 = vmatpush1.bf16.msra.mxu0 0
      %866 = vmatprep.subr.bf16.mxu0 0
      %867 = vmatpush1.bf16.msra.mxu0 0
      %868 = vmatprep.subr.bf16.mxu0 0
      %869 = vmatpush1.bf16.msra.mxu0 0
      %870 = vmatprep.mubr.bf16.mxu0 0
      %871 = vmatmul.mubr.bf16.gmra.mrb[0].mxu0 %v638
      %v872 = vpop.f32.mrb[0].mxu0
      %v873 = vadd.f32 0.0, %v872
      %v874 = vpop.f32.mrb[0].mxu0
      %v875 = vpop.f32.mrb[0].mxu0
      %v876 = vadd.f32 0.0, %v875
      %v877 = vpop.f32.mrb[0].mxu0
      %878 = vmatprep.mubr.bf16.mxu0 0
      %879 = vmatmul.mubr.bf16.gmra.mrb[0].mxu0 %v647
      %v880 = vpop.f32.mrb[0].mxu0
      %v881 = vadd.f32 0.0, %v880
      %v882 = vpop.f32.mrb[0].mxu0
      %v883 = vpop.f32.mrb[0].mxu0
      %v884 = vadd.f32 0.0, %v883
      %v885 = vpop.f32.mrb[0].mxu0
      %886 = vmatprep.mubr.bf16.mxu0 0
      %887 = vmatmul.mubr.bf16.gmra.mrb[0].mxu0 %v656
      %v888 = vpop.f32.mrb[0].mxu0
      %v889 = vadd.f32 0.0, %v888
      %v890 = vpop.f32.mrb[0].mxu0
      %v891 = vpop.f32.mrb[0].mxu0
      %v892 = vadd.f32 0.0, %v891
      %v893 = vpop.f32.mrb[0].mxu0
      %894 = vmatprep.mubr.bf16.mxu0 0
      %895 = vmatmul.mubr.bf16.gmra.mrb[0].mxu0 %v665
      %v896 = vpop.f32.mrb[0].mxu0
      %v897 = vadd.f32 0.0, %v896
      %v898 = vpop.f32.mrb[0].mxu0
      %v899 = vpop.f32.mrb[0].mxu0
      %v900 = vadd.f32 0.0, %v899
      %v901 = vpop.f32.mrb[0].mxu0
      %902 = vmatprep.mubr.bf16.mxu0 0
      %903 = vmatmul.mubr.bf16.gmra.mrb[0].mxu0 %v674
      %v904 = vpop.f32.mrb[0].mxu0
      %v905 = vadd.f32 0.0, %v904
      %v906 = vpop.f32.mrb[0].mxu0
      %v907 = vpop.f32.mrb[0].mxu0
      %v908 = vadd.f32 0.0, %v907
      %v909 = vpop.f32.mrb[0].mxu0
      %910 = vmatprep.mubr.bf16.mxu0 0
      %911 = vmatmul.mubr.bf16.gmra.mrb[0].mxu0 %v683
      %v912 = vpop.f32.mrb[0].mxu0
      %v913 = vadd.f32 0.0, %v912
      %v914 = vpop.f32.mrb[0].mxu0
      %v915 = vpop.f32.mrb[0].mxu0
      %v916 = vadd.f32 0.0, %v915
      %v917 = vpop.f32.mrb[0].mxu0
      %918 = vmatprep.mubr.bf16.mxu0 0
      %919 = vmatmul.mubr.bf16.gmra.mrb[0].mxu0 %v692
      %v920 = vpop.f32.mrb[0].mxu0
      %v921 = vadd.f32 0.0, %v920
      %v922 = vpop.f32.mrb[0].mxu0
      %v923 = vpop.f32.mrb[0].mxu0
      %v924 = vadd.f32 0.0, %v923
      %v925 = vpop.f32.mrb[0].mxu0
      %926 = vmatprep.mubr.bf16.mxu0 0
      %927 = vmatmul.mubr.bf16.gmra.mrb[0].mxu0 %v701
      %v928 = vpop.f32.mrb[0].mxu0
      %v929 = vadd.f32 0.0, %v928
      %v930 = vpop.f32.mrb[0].mxu0
      %v931 = vpop.f32.mrb[0].mxu0
      %v932 = vadd.f32 0.0, %v931
      %v933 = vpop.f32.mrb[0].mxu0
      %934 = vmatprep.mubr.bf16.mxu0 0
      %935 = vmatmul.mubr.bf16.gmra.mrb[0].mxu0 %v710
      %v936 = vpop.f32.mrb[0].mxu0
      %v937 = vadd.f32 0.0, %v936
      %v938 = vpop.f32.mrb[0].mxu0
      %v939 = vpop.f32.mrb[0].mxu0
      %v940 = vadd.f32 0.0, %v939
      %v941 = vpop.f32.mrb[0].mxu0
      %942 = vmatprep.mubr.bf16.mxu0 0
      %943 = vmatmul.mubr.bf16.gmra.mrb[0].mxu0 %v719
      %v944 = vpop.f32.mrb[0].mxu0
      %v945 = vadd.f32 0.0, %v944
      %v946 = vpop.f32.mrb[0].mxu0
      %v947 = vpop.f32.mrb[0].mxu0
      %v948 = vadd.f32 0.0, %v947
      %v949 = vpop.f32.mrb[0].mxu0
      %950 = vmatprep.mubr.bf16.mxu0 0
      %951 = vmatmul.mubr.bf16.gmra.mrb[0].mxu0 %v728
      %v952 = vpop.f32.mrb[0].mxu0
      %v953 = vadd.f32 0.0, %v952
      %v954 = vpop.f32.mrb[0].mxu0
      %v955 = vpop.f32.mrb[0].mxu0
      %v956 = vadd.f32 0.0, %v955
      %v957 = vpop.f32.mrb[0].mxu0
      %958 = vmatprep.mubr.bf16.mxu0 0
      %959 = vmatmul.mubr.bf16.gmra.mrb[0].mxu0 %v737
      %v960 = vpop.f32.mrb[0].mxu0
      %v961 = vadd.f32 0.0, %v960
      %v962 = vpop.f32.mrb[0].mxu0
      %v963 = vpop.f32.mrb[0].mxu0
      %v964 = vadd.f32 0.0, %v963
      %v965 = vpop.f32.mrb[0].mxu0
      %966 = vmatprep.mubr.bf16.mxu0 0
      %967 = vmatmul.mubr.bf16.gmra.mrb[0].mxu0 %v746
      %v968 = vpop.f32.mrb[0].mxu0
      %v969 = vadd.f32 0.0, %v968
      %v970 = vpop.f32.mrb[0].mxu0
      %v971 = vpop.f32.mrb[0].mxu0
      %v972 = vadd.f32 0.0, %v971
      %v973 = vpop.f32.mrb[0].mxu0
      %974 = vmatprep.mubr.bf16.mxu0 0
      %975 = vmatmul.mubr.bf16.gmra.mrb[0].mxu0 %v755
      %v976 = vpop.f32.mrb[0].mxu0
      %v977 = vadd.f32 0.0, %v976
      %v978 = vpop.f32.mrb[0].mxu0
      %v979 = vpop.f32.mrb[0].mxu0
      %v980 = vadd.f32 0.0, %v979
      %v981 = vpop.f32.mrb[0].mxu0
      %982 = vmatprep.mubr.bf16.mxu0 0
      %983 = vmatmul.mubr.bf16.gmra.mrb[0].mxu0 %v764
      %v984 = vpop.f32.mrb[0].mxu0
      %v985 = vadd.f32 0.0, %v984
      %v986 = vpop.f32.mrb[0].mxu0
      %v987 = vpop.f32.mrb[0].mxu0
      %v988 = vadd.f32 0.0, %v987
      %v989 = vpop.f32.mrb[0].mxu0
      %990 = vmatprep.mubr.bf16.mxu0 0
      %991 = vmatmul.mubr.bf16.gmra.mrb[0].mxu0 %v773
      %v992 = vpop.f32.mrb[0].mxu0
      %v993 = vadd.f32 0.0, %v992
      %v994 = vpop.f32.mrb[0].mxu0
      %v995 = vpop.f32.mrb[0].mxu0
      %v996 = vadd.f32 0.0, %v995
      %v997 = vpop.f32.mrb[0].mxu0
      %998 = vdwg.mxu0
      %v1015 = vunpack.c.l.b16 %v588
      %v1016 = vunpack.c.l.b16 %v589
      %v1017 = vunpack.c.l.b16 %v590
      %v1018 = vunpack.c.l.b16 %v591
      %v1019 = vunpack.c.l.b16 %v592
      %v1020 = vunpack.c.l.b16 %v593
      %v1021 = vunpack.c.l.b16 %v594
      %v1022 = vunpack.c.l.b16 %v595
      %v1023 = vunpack.c.l.b16 %v596
      %v1024 = vunpack.c.l.b16 %v597
      %v1025 = vunpack.c.l.b16 %v598
      %v1026 = vunpack.c.l.b16 %v599
      %v1027 = vunpack.c.l.b16 %v600
      %v1028 = vunpack.c.l.b16 %v601
      %v1029 = vunpack.c.l.b16 %v602
      %v1030 = vunpack.c.l.b16 %v603
      %v1031 = vpack.c.b16 %v1016, %v1015
      %v1032 = vpack.c.b16 %v1018, %v1017
      %v1033 = vpack.c.b16 %v1020, %v1019
      %v1034 = vpack.c.b16 %v1022, %v1021
      %v1035 = vpack.c.b16 %v1024, %v1023
      %v1036 = vpack.c.b16 %v1026, %v1025
      %v1037 = vpack.c.b16 %v1028, %v1027
      %v1038 = vpack.c.b16 %v1030, %v1029
      %1047 = vmatprep.subr.bf16.mxu0 0
      %1048 = vmatpush1.bf16.msra.mxu0 %v1031
      %1049 = vmatprep.subr.bf16.mxu0 0
      %1050 = vmatpush1.bf16.msra.mxu0 %v1032
      %1051 = vmatprep.subr.bf16.mxu0 0
      %1052 = vmatpush1.bf16.msra.mxu0 %v1033
      %1053 = vmatprep.subr.bf16.mxu0 0
      %1054 = vmatpush1.bf16.msra.mxu0 %v1034
      %1055 = vmatprep.subr.bf16.mxu0 0
      %1056 = vmatpush1.bf16.msra.mxu0 %v1035
      %1057 = vmatprep.subr.bf16.mxu0 0
      %1058 = vmatpush1.bf16.msra.mxu0 %v1036
      %1059 = vmatprep.subr.bf16.mxu0 0
      %1060 = vmatpush1.bf16.msra.mxu0 %v1037
      %1061 = vmatprep.subr.bf16.mxu0 0
      %1062 = vmatpush1.bf16.msra.mxu0 %v1038
      %1063 = vmatprep.subr.bf16.mxu0 0
      %1064 = vmatpush1.bf16.msra.mxu0 0
      %1065 = vmatprep.subr.bf16.mxu0 0
      %1066 = vmatpush1.bf16.msra.mxu0 0
      %1067 = vmatprep.subr.bf16.mxu0 0
      %1068 = vmatpush1.bf16.msra.mxu0 0
      %1069 = vmatprep.subr.bf16.mxu0 0
      %1070 = vmatpush1.bf16.msra.mxu0 0
      %1071 = vmatprep.subr.bf16.mxu0 0
      %1072 = vmatpush1.bf16.msra.mxu0 0
      %1073 = vmatprep.subr.bf16.mxu0 0
      %1074 = vmatpush1.bf16.msra.mxu0 0
      %1075 = vmatprep.subr.bf16.mxu0 0
      %1076 = vmatpush1.bf16.msra.mxu0 0
      %1077 = vmatprep.subr.bf16.mxu0 0
      %1078 = vmatpush1.bf16.msra.mxu0 0
      %1079 = vmatprep.mubr.bf16.mxu0 0
      %1080 = vmatmul.mubr.bf16.gmra.mrb[0].mxu0 %v571
      %v1081 = vpop.f32.mrb[0].mxu0
      %v1082 = vadd.f32 %v873, %v1081
      %v1083 = vpop.f32.mrb[0].mxu0
      %v1084 = vpop.f32.mrb[0].mxu0
      %v1085 = vadd.f32 %v876, %v1084
      %v1086 = vpop.f32.mrb[0].mxu0
      %1087 = vmatprep.mubr.bf16.mxu0 0
      %1088 = vmatmul.mubr.bf16.gmra.mrb[0].mxu0 %v572
      %v1089 = vpop.f32.mrb[0].mxu0
      %v1090 = vadd.f32 %v881, %v1089
      %v1091 = vpop.f32.mrb[0].mxu0
      %v1092 = vpop.f32.mrb[0].mxu0
      %v1093 = vadd.f32 %v884, %v1092
      %v1094 = vpop.f32.mrb[0].mxu0
      %1095 = vmatprep.mubr.bf16.mxu0 0
      %1096 = vmatmul.mubr.bf16.gmra.mrb[0].mxu0 %v573
      %v1097 = vpop.f32.mrb[0].mxu0
      %v1098 = vadd.f32 %v889, %v1097
      %v1099 = vpop.f32.mrb[0].mxu0
      %v1100 = vpop.f32.mrb[0].mxu0
      %v1101 = vadd.f32 %v892, %v1100
      %v1102 = vpop.f32.mrb[0].mxu0
      %1103 = vmatprep.mubr.bf16.mxu0 0
      %1104 = vmatmul.mubr.bf16.gmra.mrb[0].mxu0 %v574
      %v1105 = vpop.f32.mrb[0].mxu0
      %v1106 = vadd.f32 %v897, %v1105
      %v1107 = vpop.f32.mrb[0].mxu0
      %v1108 = vpop.f32.mrb[0].mxu0
      %v1109 = vadd.f32 %v900, %v1108
      %v1110 = vpop.f32.mrb[0].mxu0
      %1111 = vmatprep.mubr.bf16.mxu0 0
      %1112 = vmatmul.mubr.bf16.gmra.mrb[0].mxu0 %v575
      %v1113 = vpop.f32.mrb[0].mxu0
      %v1114 = vadd.f32 %v905, %v1113
      %v1115 = vpop.f32.mrb[0].mxu0
      %v1116 = vpop.f32.mrb[0].mxu0
      %v1117 = vadd.f32 %v908, %v1116
      %v1118 = vpop.f32.mrb[0].mxu0
      %1119 = vmatprep.mubr.bf16.mxu0 0
      %1120 = vmatmul.mubr.bf16.gmra.mrb[0].mxu0 %v576
      %v1121 = vpop.f32.mrb[0].mxu0
      %v1122 = vadd.f32 %v913, %v1121
      %v1123 = vpop.f32.mrb[0].mxu0
      %v1124 = vpop.f32.mrb[0].mxu0
      %v1125 = vadd.f32 %v916, %v1124
      %v1126 = vpop.f32.mrb[0].mxu0
      %1127 = vmatprep.mubr.bf16.mxu0 0
      %1128 = vmatmul.mubr.bf16.gmra.mrb[0].mxu0 %v577
      %v1129 = vpop.f32.mrb[0].mxu0
      %v1130 = vadd.f32 %v921, %v1129
      %v1131 = vpop.f32.mrb[0].mxu0
      %v1132 = vpop.f32.mrb[0].mxu0
      %v1133 = vadd.f32 %v924, %v1132
      %v1134 = vpop.f32.mrb[0].mxu0
      %1135 = vmatprep.mubr.bf16.mxu0 0
      %1136 = vmatmul.mubr.bf16.gmra.mrb[0].mxu0 %v578
      %v1137 = vpop.f32.mrb[0].mxu0
      %v1138 = vadd.f32 %v929, %v1137
      %v1139 = vpop.f32.mrb[0].mxu0
      %v1140 = vpop.f32.mrb[0].mxu0
      %v1141 = vadd.f32 %v932, %v1140
      %v1142 = vpop.f32.mrb[0].mxu0
      %1143 = vmatprep.mubr.bf16.mxu0 0
      %1144 = vmatmul.mubr.bf16.gmra.mrb[0].mxu0 %v579
      %v1145 = vpop.f32.mrb[0].mxu0
      %v1146 = vadd.f32 %v937, %v1145
      %v1147 = vpop.f32.mrb[0].mxu0
      %v1148 = vpop.f32.mrb[0].mxu0
      %v1149 = vadd.f32 %v940, %v1148
      %v1150 = vpop.f32.mrb[0].mxu0
      %1151 = vmatprep.mubr.bf16.mxu0 0
      %1152 = vmatmul.mubr.bf16.gmra.mrb[0].mxu0 %v580
      %v1153 = vpop.f32.mrb[0].mxu0
      %v1154 = vadd.f32 %v945, %v1153
      %v1155 = vpop.f32.mrb[0].mxu0
      %v1156 = vpop.f32.mrb[0].mxu0
      %v1157 = vadd.f32 %v948, %v1156
      %v1158 = vpop.f32.mrb[0].mxu0
      %1159 = vmatprep.mubr.bf16.mxu0 0
      %1160 = vmatmul.mubr.bf16.gmra.mrb[0].mxu0 %v581
      %v1161 = vpop.f32.mrb[0].mxu0
      %v1162 = vadd.f32 %v953, %v1161
      %v1163 = vpop.f32.mrb[0].mxu0
      %v1164 = vpop.f32.mrb[0].mxu0
      %v1165 = vadd.f32 %v956, %v1164
      %v1166 = vpop.f32.mrb[0].mxu0
      %1167 = vmatprep.mubr.bf16.mxu0 0
      %1168 = vmatmul.mubr.bf16.gmra.mrb[0].mxu0 %v582
      %v1169 = vpop.f32.mrb[0].mxu0
      %v1170 = vadd.f32 %v961, %v1169
      %v1171 = vpop.f32.mrb[0].mxu0
      %v1172 = vpop.f32.mrb[0].mxu0
      %v1173 = vadd.f32 %v964, %v1172
      %v1174 = vpop.f32.mrb[0].mxu0
      %1175 = vmatprep.mubr.bf16.mxu0 0
      %1176 = vmatmul.mubr.bf16.gmra.mrb[0].mxu0 %v583
      %v1177 = vpop.f32.mrb[0].mxu0
      %v1178 = vadd.f32 %v969, %v1177
      %v1179 = vpop.f32.mrb[0].mxu0
      %v1180 = vpop.f32.mrb[0].mxu0
      %v1181 = vadd.f32 %v972, %v1180
      %v1182 = vpop.f32.mrb[0].mxu0
      %1183 = vmatprep.mubr.bf16.mxu0 0
      %1184 = vmatmul.mubr.bf16.gmra.mrb[0].mxu0 %v584
      %v1185 = vpop.f32.mrb[0].mxu0
      %v1186 = vadd.f32 %v977, %v1185
      %v1187 = vpop.f32.mrb[0].mxu0
      %v1188 = vpop.f32.mrb[0].mxu0
      %v1189 = vadd.f32 %v980, %v1188
      %v1190 = vpop.f32.mrb[0].mxu0
      %1191 = vmatprep.mubr.bf16.mxu0 0
      %1192 = vmatmul.mubr.bf16.gmra.mrb[0].mxu0 %v585
      %v1193 = vpop.f32.mrb[0].mxu0
      %v1194 = vadd.f32 %v985, %v1193
      %v1195 = vpop.f32.mrb[0].mxu0
      %v1196 = vpop.f32.mrb[0].mxu0
      %v1197 = vadd.f32 %v988, %v1196
      %v1198 = vpop.f32.mrb[0].mxu0
      %1199 = vmatprep.mubr.bf16.mxu0 0
      %1200 = vmatmul.mubr.bf16.gmra.mrb[0].mxu0 %v586
      %v1201 = vpop.f32.mrb[0].mxu0
      %v1202 = vadd.f32 %v993, %v1201
      %v1203 = vpop.f32.mrb[0].mxu0
      %v1204 = vpop.f32.mrb[0].mxu0
      %v1205 = vadd.f32 %v996, %v1204
      %v1206 = vpop.f32.mrb[0].mxu0
      %1207 = vdwg.mxu0
      %s1208 = scalar_lea.vmem %s1, 128
      %v1209 = vld [vmem:[%s1208] sm:$0xf]
      %v1210 = vld [vmem:[%s1208 + $0x4] sm:$0xf]
      %v1211 = vld [vmem:[%s1208 + $0x8] sm:$0xf]
      %v1212 = vld [vmem:[%s1208 + $0xc] sm:$0xf]
      %v1213 = vld [vmem:[%s1208 + $0x10] sm:$0xf]
      %v1214 = vld [vmem:[%s1208 + $0x14] sm:$0xf]
      %v1215 = vld [vmem:[%s1208 + $0x18] sm:$0xf]
      %v1216 = vld [vmem:[%s1208 + $0x1c] sm:$0xf]
      %v1217 = vld [vmem:[%s1208 + $0x20] sm:$0xf]
      %v1218 = vld [vmem:[%s1208 + $0x24] sm:$0xf]
      %v1219 = vld [vmem:[%s1208 + $0x28] sm:$0xf]
      %v1220 = vld [vmem:[%s1208 + $0x2c] sm:$0xf]
      %v1221 = vld [vmem:[%s1208 + $0x30] sm:$0xf]
      %v1222 = vld [vmem:[%s1208 + $0x34] sm:$0xf]
      %v1223 = vld [vmem:[%s1208 + $0x38] sm:$0xf]
      %v1224 = vld [vmem:[%s1208 + $0x3c] sm:$0xf]
      %vm1242 = vcmask 1042432
      %v1243 = vrot.slane %v571, 5
      %v1244 = vrot.slane %v572, 5
      %v1245 = vsel %vm1242, %v1243, %v1244
      %v1246 = vrot.slane %v573, 5
      %v1247 = vsel %vm1242, %v1244, %v1246
      %v1248 = vrot.slane %v574, 5
      %v1249 = vsel %vm1242, %v1246, %v1248
      %v1250 = vrot.slane %v575, 5
      %v1251 = vsel %vm1242, %v1248, %v1250
      %v1252 = vrot.slane %v576, 5
      %v1253 = vsel %vm1242, %v1250, %v1252
      %v1254 = vrot.slane %v577, 5
      %v1255 = vsel %vm1242, %v1252, %v1254
      %v1256 = vrot.slane %v578, 5
      %v1257 = vsel %vm1242, %v1254, %v1256
      %v1258 = vrot.slane %v579, 5
      %v1259 = vsel %vm1242, %v1256, %v1258
      %v1260 = vrot.slane %v580, 5
      %v1261 = vsel %vm1242, %v1258, %v1260
      %v1262 = vrot.slane %v581, 5
      %v1263 = vsel %vm1242, %v1260, %v1262
      %v1264 = vrot.slane %v582, 5
      %v1265 = vsel %vm1242, %v1262, %v1264
      %v1266 = vrot.slane %v583, 5
      %v1267 = vsel %vm1242, %v1264, %v1266
      %v1268 = vrot.slane %v584, 5
      %v1269 = vsel %vm1242, %v1266, %v1268
      %v1270 = vrot.slane %v585, 5
      %v1271 = vsel %vm1242, %v1268, %v1270
      %v1272 = vrot.slane %v586, 5
      %v1273 = vsel %vm1242, %v1270, %v1272
      %v1274 = vrot.slane %v587, 5
      %v1275 = vsel %vm1242, %v1272, %v1274
      %v1308 = vunpack.c.l.b16 %v1209
      %v1309 = vunpack.c.l.b16 %v1210
      %v1310 = vunpack.c.l.b16 %v1211
      %v1311 = vunpack.c.l.b16 %v1212
      %v1312 = vunpack.c.l.b16 %v1213
      %v1313 = vunpack.c.l.b16 %v1214
      %v1314 = vunpack.c.l.b16 %v1215
      %v1315 = vunpack.c.l.b16 %v1216
      %v1316 = vunpack.c.l.b16 %v1217
      %v1317 = vunpack.c.l.b16 %v1218
      %v1318 = vunpack.c.l.b16 %v1219
      %v1319 = vunpack.c.l.b16 %v1220
      %v1320 = vunpack.c.l.b16 %v1221
      %v1321 = vunpack.c.l.b16 %v1222
      %v1322 = vunpack.c.l.b16 %v1223
      %v1323 = vunpack.c.l.b16 %v1224
      %v1324 = vpack.c.b16 %v1309, %v1308
      %v1325 = vpack.c.b16 %v1311, %v1310
      %v1326 = vpack.c.b16 %v1313, %v1312
      %v1327 = vpack.c.b16 %v1315, %v1314
      %v1328 = vpack.c.b16 %v1317, %v1316
      %v1329 = vpack.c.b16 %v1319, %v1318
      %v1330 = vpack.c.b16 %v1321, %v1320
      %v1331 = vpack.c.b16 %v1323, %v1322
      %1340 = vmatprep.subr.bf16.mxu0 0
      %1341 = vmatpush1.bf16.msra.mxu0 %v1324
      %1342 = vmatprep.subr.bf16.mxu0 0
      %1343 = vmatpush1.bf16.msra.mxu0 %v1325
      %1344 = vmatprep.subr.bf16.mxu0 0
      %1345 = vmatpush1.bf16.msra.mxu0 %v1326
      %1346 = vmatprep.subr.bf16.mxu0 0
      %1347 = vmatpush1.bf16.msra.mxu0 %v1327
      %1348 = vmatprep.subr.bf16.mxu0 0
      %1349 = vmatpush1.bf16.msra.mxu0 %v1328
      %1350 = vmatprep.subr.bf16.mxu0 0
      %1351 = vmatpush1.bf16.msra.mxu0 %v1329
      %1352 = vmatprep.subr.bf16.mxu0 0
      %1353 = vmatpush1.bf16.msra.mxu0 %v1330
      %1354 = vmatprep.subr.bf16.mxu0 0
      %1355 = vmatpush1.bf16.msra.mxu0 %v1331
      %1356 = vmatprep.subr.bf16.mxu0 0
      %1357 = vmatpush1.bf16.msra.mxu0 0
      %1358 = vmatprep.subr.bf16.mxu0 0
      %1359 = vmatpush1.bf16.msra.mxu0 0
      %1360 = vmatprep.subr.bf16.mxu0 0
      %1361 = vmatpush1.bf16.msra.mxu0 0
      %1362 = vmatprep.subr.bf16.mxu0 0
      %1363 = vmatpush1.bf16.msra.mxu0 0
      %1364 = vmatprep.subr.bf16.mxu0 0
      %1365 = vmatpush1.bf16.msra.mxu0 0
      %1366 = vmatprep.subr.bf16.mxu0 0
      %1367 = vmatpush1.bf16.msra.mxu0 0
      %1368 = vmatprep.subr.bf16.mxu0 0
      %1369 = vmatpush1.bf16.msra.mxu0 0
      %1370 = vmatprep.subr.bf16.mxu0 0
      %1371 = vmatpush1.bf16.msra.mxu0 0
      %1372 = vmatprep.mubr.bf16.mxu0 0
      %1373 = vmatmul.mubr.bf16.gmra.mrb[0].mxu0 %v1245
      %v1374 = vpop.f32.mrb[0].mxu0
      %v1375 = vadd.f32 0.0, %v1374
      %v1376 = vpop.f32.mrb[0].mxu0
      %v1377 = vpop.f32.mrb[0].mxu0
      %v1378 = vadd.f32 0.0, %v1377
      %v1379 = vpop.f32.mrb[0].mxu0
      %1380 = vmatprep.mubr.bf16.mxu0 0
      %1381 = vmatmul.mubr.bf16.gmra.mrb[0].mxu0 %v1247
      %v1382 = vpop.f32.mrb[0].mxu0
      %v1383 = vadd.f32 0.0, %v1382
      %v1384 = vpop.f32.mrb[0].mxu0
      %v1385 = vpop.f32.mrb[0].mxu0
      %v1386 = vadd.f32 0.0, %v1385
      %v1387 = vpop.f32.mrb[0].mxu0
      %1388 = vmatprep.mubr.bf16.mxu0 0
      %1389 = vmatmul.mubr.bf16.gmra.mrb[0].mxu0 %v1249
      %v1390 = vpop.f32.mrb[0].mxu0
      %v1391 = vadd.f32 0.0, %v1390
      %v1392 = vpop.f32.mrb[0].mxu0
      %v1393 = vpop.f32.mrb[0].mxu0
      %v1394 = vadd.f32 0.0, %v1393
      %v1395 = vpop.f32.mrb[0].mxu0
      %1396 = vmatprep.mubr.bf16.mxu0 0
      %1397 = vmatmul.mubr.bf16.gmra.mrb[0].mxu0 %v1251
      %v1398 = vpop.f32.mrb[0].mxu0
      %v1399 = vadd.f32 0.0, %v1398
      %v1400 = vpop.f32.mrb[0].mxu0
      %v1401 = vpop.f32.mrb[0].mxu0
      %v1402 = vadd.f32 0.0, %v1401
      %v1403 = vpop.f32.mrb[0].mxu0
      %1404 = vmatprep.mubr.bf16.mxu0 0
      %1405 = vmatmul.mubr.bf16.gmra.mrb[0].mxu0 %v1253
      %v1406 = vpop.f32.mrb[0].mxu0
      %v1407 = vadd.f32 0.0, %v1406
      %v1408 = vpop.f32.mrb[0].mxu0
      %v1409 = vpop.f32.mrb[0].mxu0
      %v1410 = vadd.f32 0.0, %v1409
      %v1411 = vpop.f32.mrb[0].mxu0
      %1412 = vmatprep.mubr.bf16.mxu0 0
      %1413 = vmatmul.mubr.bf16.gmra.mrb[0].mxu0 %v1255
      %v1414 = vpop.f32.mrb[0].mxu0
      %v1415 = vadd.f32 0.0, %v1414
      %v1416 = vpop.f32.mrb[0].mxu0
      %v1417 = vpop.f32.mrb[0].mxu0
      %v1418 = vadd.f32 0.0, %v1417
      %v1419 = vpop.f32.mrb[0].mxu0
      %1420 = vmatprep.mubr.bf16.mxu0 0
      %1421 = vmatmul.mubr.bf16.gmra.mrb[0].mxu0 %v1257
      %v1422 = vpop.f32.mrb[0].mxu0
      %v1423 = vadd.f32 0.0, %v1422
      %v1424 = vpop.f32.mrb[0].mxu0
      %v1425 = vpop.f32.mrb[0].mxu0
      %v1426 = vadd.f32 0.0, %v1425
      %v1427 = vpop.f32.mrb[0].mxu0
      %1428 = vmatprep.mubr.bf16.mxu0 0
      %1429 = vmatmul.mubr.bf16.gmra.mrb[0].mxu0 %v1259
      %v1430 = vpop.f32.mrb[0].mxu0
      %v1431 = vadd.f32 0.0, %v1430
      %v1432 = vpop.f32.mrb[0].mxu0
      %v1433 = vpop.f32.mrb[0].mxu0
      %v1434 = vadd.f32 0.0, %v1433
      %v1435 = vpop.f32.mrb[0].mxu0
      %1436 = vmatprep.mubr.bf16.mxu0 0
      %1437 = vmatmul.mubr.bf16.gmra.mrb[0].mxu0 %v1261
      %v1438 = vpop.f32.mrb[0].mxu0
      %v1439 = vadd.f32 0.0, %v1438
      %v1440 = vpop.f32.mrb[0].mxu0
      %v1441 = vpop.f32.mrb[0].mxu0
      %v1442 = vadd.f32 0.0, %v1441
      %v1443 = vpop.f32.mrb[0].mxu0
      %1444 = vmatprep.mubr.bf16.mxu0 0
      %1445 = vmatmul.mubr.bf16.gmra.mrb[0].mxu0 %v1263
      %v1446 = vpop.f32.mrb[0].mxu0
      %v1447 = vadd.f32 0.0, %v1446
      %v1448 = vpop.f32.mrb[0].mxu0
      %v1449 = vpop.f32.mrb[0].mxu0
      %v1450 = vadd.f32 0.0, %v1449
      %v1451 = vpop.f32.mrb[0].mxu0
      %1452 = vmatprep.mubr.bf16.mxu0 0
      %1453 = vmatmul.mubr.bf16.gmra.mrb[0].mxu0 %v1265
      %v1454 = vpop.f32.mrb[0].mxu0
      %v1455 = vadd.f32 0.0, %v1454
      %v1456 = vpop.f32.mrb[0].mxu0
      %v1457 = vpop.f32.mrb[0].mxu0
      %v1458 = vadd.f32 0.0, %v1457
      %v1459 = vpop.f32.mrb[0].mxu0
      %1460 = vmatprep.mubr.bf16.mxu0 0
      %1461 = vmatmul.mubr.bf16.gmra.mrb[0].mxu0 %v1267
      %v1462 = vpop.f32.mrb[0].mxu0
      %v1463 = vadd.f32 0.0, %v1462
      %v1464 = vpop.f32.mrb[0].mxu0
      %v1465 = vpop.f32.mrb[0].mxu0
      %v1466 = vadd.f32 0.0, %v1465
      %v1467 = vpop.f32.mrb[0].mxu0
      %1468 = vmatprep.mubr.bf16.mxu0 0
      %1469 = vmatmul.mubr.bf16.gmra.mrb[0].mxu0 %v1269
      %v1470 = vpop.f32.mrb[0].mxu0
      %v1471 = vadd.f32 0.0, %v1470
      %v1472 = vpop.f32.mrb[0].mxu0
      %v1473 = vpop.f32.mrb[0].mxu0
      %v1474 = vadd.f32 0.0, %v1473
      %v1475 = vpop.f32.mrb[0].mxu0
      %1476 = vmatprep.mubr.bf16.mxu0 0
      %1477 = vmatmul.mubr.bf16.gmra.mrb[0].mxu0 %v1271
      %v1478 = vpop.f32.mrb[0].mxu0
      %v1479 = vadd.f32 0.0, %v1478
      %v1480 = vpop.f32.mrb[0].mxu0
      %v1481 = vpop.f32.mrb[0].mxu0
      %v1482 = vadd.f32 0.0, %v1481
      %v1483 = vpop.f32.mrb[0].mxu0
      %1484 = vmatprep.mubr.bf16.mxu0 0
      %1485 = vmatmul.mubr.bf16.gmra.mrb[0].mxu0 %v1273
      %v1486 = vpop.f32.mrb[0].mxu0
      %v1487 = vadd.f32 0.0, %v1486
      %v1488 = vpop.f32.mrb[0].mxu0
      %v1489 = vpop.f32.mrb[0].mxu0
      %v1490 = vadd.f32 0.0, %v1489
      %v1491 = vpop.f32.mrb[0].mxu0
      %1492 = vmatprep.mubr.bf16.mxu0 0
      %1493 = vmatmul.mubr.bf16.gmra.mrb[0].mxu0 %v1275
      %v1494 = vpop.f32.mrb[0].mxu0
      %v1495 = vadd.f32 0.0, %v1494
      %v1496 = vpop.f32.mrb[0].mxu0
      %v1497 = vpop.f32.mrb[0].mxu0
      %v1498 = vadd.f32 0.0, %v1497
      %v1499 = vpop.f32.mrb[0].mxu0
      %1500 = vdwg.mxu0
      %v1501 = vadd.f32 %v1082, %v1375
      %v1502 = vadd.f32 %v1085, %v1378
      %v1503 = vadd.f32 %v1090, %v1383
      %v1504 = vadd.f32 %v1093, %v1386
      %v1505 = vadd.f32 %v1098, %v1391
      %v1506 = vadd.f32 %v1101, %v1394
      %v1507 = vadd.f32 %v1106, %v1399
      %v1508 = vadd.f32 %v1109, %v1402
      %v1509 = vadd.f32 %v1114, %v1407
      %v1510 = vadd.f32 %v1117, %v1410
      %v1511 = vadd.f32 %v1122, %v1415
      %v1512 = vadd.f32 %v1125, %v1418
      %v1513 = vadd.f32 %v1130, %v1423
      %v1514 = vadd.f32 %v1133, %v1426
      %v1515 = vadd.f32 %v1138, %v1431
      %v1516 = vadd.f32 %v1141, %v1434
      %v1517 = vadd.f32 %v1146, %v1439
      %v1518 = vadd.f32 %v1149, %v1442
      %v1519 = vadd.f32 %v1154, %v1447
      %v1520 = vadd.f32 %v1157, %v1450
      %v1521 = vadd.f32 %v1162, %v1455
      %v1522 = vadd.f32 %v1165, %v1458
      %v1523 = vadd.f32 %v1170, %v1463
      %v1524 = vadd.f32 %v1173, %v1466
      %v1525 = vadd.f32 %v1178, %v1471
      %v1526 = vadd.f32 %v1181, %v1474
      %v1527 = vadd.f32 %v1186, %v1479
      %v1528 = vadd.f32 %v1189, %v1482
      %v1529 = vadd.f32 %v1194, %v1487
      %v1530 = vadd.f32 %v1197, %v1490
      %v1531 = vadd.f32 %v1202, %v1495
      %v1532 = vadd.f32 %v1205, %v1498
      %v1533 = vld [vmem:[%s2] sm:$0x1]
      %v1535 = vlaneseq
      %v1536 = vshrl.u32 %v1535, 7
      %v1537 = vsub.s32 0, %v1536
      %v1538 = vrot.slane %v1533, %v1537
      %v1540 = vadd.f32 %v1501, %v1538
      %v1541 = vadd.f32 %v1502, %v1538
      %v1542 = vadd.f32 %v1503, %v1538
      %v1543 = vadd.f32 %v1504, %v1538
      %v1544 = vadd.f32 %v1505, %v1538
      %v1545 = vadd.f32 %v1506, %v1538
      %v1546 = vadd.f32 %v1507, %v1538
      %v1547 = vadd.f32 %v1508, %v1538
      %v1548 = vadd.f32 %v1509, %v1538
      %v1549 = vadd.f32 %v1510, %v1538
      %v1550 = vadd.f32 %v1511, %v1538
      %v1551 = vadd.f32 %v1512, %v1538
      %v1552 = vadd.f32 %v1513, %v1538
      %v1553 = vadd.f32 %v1514, %v1538
      %v1554 = vadd.f32 %v1515, %v1538
      %v1555 = vadd.f32 %v1516, %v1538
      %v1556 = vadd.f32 %v1517, %v1538
      %v1557 = vadd.f32 %v1518, %v1538
      %v1558 = vadd.f32 %v1519, %v1538
      %v1559 = vadd.f32 %v1520, %v1538
      %v1560 = vadd.f32 %v1521, %v1538
      %v1561 = vadd.f32 %v1522, %v1538
      %v1562 = vadd.f32 %v1523, %v1538
      %v1563 = vadd.f32 %v1524, %v1538
      %v1564 = vadd.f32 %v1525, %v1538
      %v1565 = vadd.f32 %v1526, %v1538
      %v1566 = vadd.f32 %v1527, %v1538
      %v1567 = vadd.f32 %v1528, %v1538
      %v1568 = vadd.f32 %v1529, %v1538
      %v1569 = vadd.f32 %v1530, %v1538
      %v1570 = vadd.f32 %v1531, %v1538
      %v1571 = vadd.f32 %v1532, %v1538
      %1572 = vst [vmem:[%s146] sm:$0xff] %v1540
      %1573 = vst [vmem:[%s146 + $0x8] sm:$0xff] %v1541
      %1574 = vst [vmem:[%s146 + $0x10] sm:$0xff] %v1542
      %1575 = vst [vmem:[%s146 + $0x18] sm:$0xff] %v1543
      %1576 = vst [vmem:[%s146 + $0x20] sm:$0xff] %v1544
      %1577 = vst [vmem:[%s146 + $0x28] sm:$0xff] %v1545
      %1578 = vst [vmem:[%s146 + $0x30] sm:$0xff] %v1546
      %1579 = vst [vmem:[%s146 + $0x38] sm:$0xff] %v1547
      %1580 = vst [vmem:[%s146 + $0x40] sm:$0xff] %v1548
      %1581 = vst [vmem:[%s146 + $0x48] sm:$0xff] %v1549
      %1582 = vst [vmem:[%s146 + $0x50] sm:$0xff] %v1550
      %1583 = vst [vmem:[%s146 + $0x58] sm:$0xff] %v1551
      %1584 = vst [vmem:[%s146 + $0x60] sm:$0xff] %v1552
      %1585 = vst [vmem:[%s146 + $0x68] sm:$0xff] %v1553
      %1586 = vst [vmem:[%s146 + $0x70] sm:$0xff] %v1554
      %1587 = vst [vmem:[%s146 + $0x78] sm:$0xff] %v1555
      %1588 = vst [vmem:[%s146 + $0x80] sm:$0xff] %v1556
      %1589 = vst [vmem:[%s146 + $0x88] sm:$0xff] %v1557
      %1590 = vst [vmem:[%s146 + $0x90] sm:$0xff] %v1558
      %1591 = vst [vmem:[%s146 + $0x98] sm:$0xff] %v1559
      %1592 = vst [vmem:[%s146 + $0xa0] sm:$0xff] %v1560
      %1593 = vst [vmem:[%s146 + $0xa8] sm:$0xff] %v1561
      %1594 = vst [vmem:[%s146 + $0xb0] sm:$0xff] %v1562
      %1595 = vst [vmem:[%s146 + $0xb8] sm:$0xff] %v1563
      %1596 = vst [vmem:[%s146 + $0xc0] sm:$0xff] %v1564
      %1597 = vst [vmem:[%s146 + $0xc8] sm:$0xff] %v1565
      %1598 = vst [vmem:[%s146 + $0xd0] sm:$0xff] %v1566
      %1599 = vst [vmem:[%s146 + $0xd8] sm:$0xff] %v1567
      %1600 = vst [vmem:[%s146 + $0xe0] sm:$0xff] %v1568
      %1601 = vst [vmem:[%s146 + $0xe8] sm:$0xff] %v1569
      %1602 = vst [vmem:[%s146 + $0xf0] sm:$0xff] %v1570
      %1603 = vst [vmem:[%s146 + $0xf8] sm:$0xff] %v1571
      %s1604 = smul.u32 32, %s19
      %p1605 = scmp.lt.s32.totalorder %s18, 1
      %s1606 = scalar_select %p1605, %s18, 1
      %p1607 = scmp.lt.s32.totalorder %s1604, 95
      %s1608 = scalar_select %p1607, %s1604, 95
      %s1609 = smul.addr %s1606, 96
      %s1610 = sadd.s32 %s1608, %s1609
      %s1611 = smul.addr %s1610, 8
      %s1612 = scalar_lea.vmem %s3, %s1611
      // Predicated region
      $region111: #{resblock1_forward.10} parent=27 // pred_check
        %p1613 = pneg %p88
      $region112: #{resblock1_forward.10} parent=27 // pred_check_branch
        %1615 = sbr.rel (%p1613) target = $region114
      $region113: #{resblock1_forward.10} parent=27 // pred_region
        %s1616 = smul.u32 32, %s19
      $region114: #{resblock1_forward.10} parent=27 // pred_fallthru
        _
    $region28: #{resblock1_forward.10} parent=5 // pred_fallthru
      _
    %p1617 = scmp.le.s32.totalorder 2, %s9
    // Predicated region
    $region115: #{resblock1_forward.10} parent=5 // pred_check
      %p1618 = pneg %p1617
    $region116: #{resblock1_forward.10} parent=5 // pred_check_branch
      %1620 = sbr.rel (%p1618) target = $region118
    $region117: #{resblock1_forward.10} parent=5 // pred_region
      %s1621 = ssub.s32 %s9, 2
      // Predicated region
      $region119: #{resblock1_forward.10} parent=117 // pred_check
        %p1622 = pneg %p94
      $region120: #{resblock1_forward.10} parent=117 // pred_check_branch
        %1624 = sbr.rel (%p1622) target = $region122
      $region121: #{resblock1_forward.10} parent=117 // pred_region
        %s1625 = smul.u32 32, %s21
        %p1626 = scmp.lt.s32.totalorder %s20, 1
        %s1627 = scalar_select %p1626, %s20, 1
        %p1628 = scmp.lt.s32.totalorder %s1625, 95
        %s1629 = scalar_select %p1628, %s1625, 95
        %s1630 = smul.addr %s1627, 96
        %s1631 = sadd.s32 %s1629, %s1630
        %s1632 = smul.addr %s1631, 8
        %s1633 = scalar_lea.vmem %s3, %s1632
      $region122: #{resblock1_forward.10} parent=117 // pred_fallthru
        _
    $region118: #{resblock1_forward.10} parent=5 // pred_fallthru
      _
  $region6: #{resblock1_forward.10} parent=0 // loop_footer
    %s13 = sadd.s32 1, %s9
  $region7: #{resblock1_forward.10} parent=0 // loop_footer_branch
    %8 = sbr.rel target = $region3
  $region8: #{resblock1_forward.10} parent=0 // loop_exit
    _
  %1634 = vsyncmov [#allocation3]
  %s1635 = vpop.sfrf %1634
  %p1636 = scmp.eq.s32.totalorder %s1635, 0
  %p1637 = pneg %p1636
  %1639 = shalt.err (%p1637)
  %s1640 = scalar_lea.sflag [#allocation3], 1
  %1641 = vsyncmov %s1640
  %s1642 = vpop.sfrf %1641
  %p1643 = scmp.eq.s32.totalorder %s1642, 0
  %p1644 = pneg %p1643
  %1646 = shalt.err (%p1644)

</llo_original>
